<compile_context>
chip_gen: v5e
topology: v5e:2x2
jax: 0.10.0
libtpu: 0.0.40
codegen_flags: <defaults>
</compile_context>

<pallas_src>
import functools

import jax
import jax.numpy as jnp
from jax.experimental import pallas as pl
from jax.experimental.pallas import tpu as pltpu


_LN_EPS = 1e-5
_SQRT_2_OVER_PI = 0.7978845608028654
_VMEM_LIMIT = 32 * 1024 * 1024


# ----------------------------- in-kernel helpers -----------------------------

def _gelu(x):
    # tanh-approximation GELU (EUP tanh; cheap next to the MXU work).
    return 0.5 * x * (1.0 + jnp.tanh(_SQRT_2_OVER_PI * (x + 0.044715 * x * x * x)))


def _pick_tile(dim, candidates):
    for c in candidates:
        if dim % c == 0:
            return c
    return dim


def _pick_tile_m(m):
    # Prefer the largest tile that still leaves >= 2 grid steps on the parallel
    # M axis (feeds both v7x TensorCores); fall back to any divisor.
    cands = (512, 256, 128, 64, 32, 16, 8)
    for c in cands:
        if m % c == 0 and m // c >= 2:
            return c
    for c in cands:
        if m % c == 0:
            return c
    return m


# ------------------------- fused LN + matmul + epilogue ------------------------

def _make_mm_kernel(*, act, use_ln, use_bias, use_res, multi_k):
    def kernel(*refs):
        idx = 0
        x_ref = refs[idx]; idx += 1
        w_ref = refs[idx]; idx += 1
        bias_ref = None
        if use_bias:
            bias_ref = refs[idx]; idx += 1
        g_ref = b_ref = None
        if use_ln:
            g_ref = refs[idx]; idx += 1
            b_ref = refs[idx]; idx += 1
        res_ref = None
        if use_res:
            res_ref = refs[idx]; idx += 1
        o_ref = refs[idx]; idx += 1
        acc_ref = None
        if multi_k:
            acc_ref = refs[idx]; idx += 1
        xln_ref = None
        if use_ln:
            xln_ref = refs[idx]; idx += 1

        j = pl.program_id(1)
        k = pl.program_id(2)

        if use_ln:
            # LayerNorm needs the full feature dim, so tk == K and nk == 1.
            # Compute LN once per M tile (at the first N tile) and reuse the
            # cached bf16 result for all remaining N tiles.  The N axis is
            # marked "arbitrary", so j == 0 always runs first on each core.
            @pl.when(j == 0)
            def _():
                xv = x_ref[...].astype(jnp.float32)
                mu = jnp.mean(xv, axis=-1, keepdims=True)
                xc = xv - mu
                var = jnp.mean(xc * xc, axis=-1, keepdims=True)
                y = (xc * jax.lax.rsqrt(var + _LN_EPS)) * g_ref[...] + b_ref[...]
                xln_ref[...] = y.astype(jnp.bfloat16)

            xop = xln_ref[...]
        else:
            xop = x_ref[...]
            if xop.dtype != jnp.bfloat16:
                xop = xop.astype(jnp.bfloat16)

        part = jnp.dot(xop, w_ref[...], preferred_element_type=jnp.float32)

        def epilogue(r):
            if use_bias:
                r = r + bias_ref[...]
            if act == "gelu":
                r = _gelu(r)
            if use_res:
                r = r + res_ref[...].astype(jnp.float32)
            o_ref[...] = r.astype(o_ref.dtype)

        if multi_k:
            @pl.when(k == 0)
            def _():
                acc_ref[...] = jnp.zeros_like(acc_ref)

            acc_ref[...] += part

            @pl.when(k == pl.num_programs(2) - 1)
            def _():
                epilogue(acc_ref[...])
        else:
            epilogue(part)

    return kernel


def fused_matmul(x, w, *, bias=None, ln=None, act=None, residual=None,
                 out_dtype=jnp.float32):
    """(M, K) @ (K, N) with optional fused LayerNorm prologue (over K) and fused
    bias / GELU / residual-add epilogue.  bf16 MXU operands, f32 accumulation."""
    M, K = x.shape
    Kw, N = w.shape
    assert K == Kw
    w = w.astype(jnp.bfloat16)

    use_ln = ln is not None
    use_bias = bias is not None
    use_res = residual is not None

    tm = _pick_tile_m(M)
    tn = _pick_tile(N, (512, 256, 128))
    if use_ln or K <= 512:
        tk = K                 # LayerNorm needs the full feature dim per block.
    else:
        tk = _pick_tile(K, (512, 256, 128))
    nm, nn_, nk = M // tm, N // tn, K // tk
    multi_k = nk > 1

    # TPU tiling constraint (last two block dims multiples of (8,128) or full).
    if not ((tm % 8 == 0 or tm == M) and (tn % 128 == 0 or tn == N)
            and (tk % 128 == 0 or tk == K)):
        raise ValueError(f"bad tiling for shapes M={M} K={K} N={N}")

    in_specs = [
        pl.BlockSpec((tm, tk), lambda i, j, k: (i, k)),
        pl.BlockSpec((tk, tn), lambda i, j, k: (k, j)),
    ]
    args = [x, w]
    if use_bias:
        in_specs.append(pl.BlockSpec((1, tn), lambda i, j, k: (0, j)))
        args.append(jnp.asarray(bias, jnp.float32).reshape(1, N))
    if use_ln:
        gamma, beta = ln
        in_specs.append(pl.BlockSpec((1, tk), lambda i, j, k: (0, k)))
        in_specs.append(pl.BlockSpec((1, tk), lambda i, j, k: (0, k)))
        args.append(jnp.asarray(gamma, jnp.float32).reshape(1, K))
        args.append(jnp.asarray(beta, jnp.float32).reshape(1, K))
    if use_res:
        in_specs.append(pl.BlockSpec((tm, tn), lambda i, j, k: (i, j)))
        args.append(residual)

    scratch_shapes = []
    if multi_k:
        scratch_shapes.append(pltpu.VMEM((tm, tn), jnp.float32))
    if use_ln:
        scratch_shapes.append(pltpu.VMEM((tm, tk), jnp.bfloat16))

    # The LN cache is only valid if, for each M tile, the N axis is iterated in
    # order on a single core -> keep it "arbitrary" when the cache is in play.
    sem = (("parallel", "arbitrary", "arbitrary") if use_ln
           else ("parallel", "parallel", "arbitrary"))

    return pl.pallas_call(
        _make_mm_kernel(act=act, use_ln=use_ln, use_bias=use_bias,
                        use_res=use_res, multi_k=multi_k),
        out_shape=jax.ShapeDtypeStruct((M, N), out_dtype),
        grid=(nm, nn_, nk),
        in_specs=in_specs,
        out_specs=pl.BlockSpec((tm, tn), lambda i, j, k: (i, j)),
        scratch_shapes=scratch_shapes,
        compiler_params=pltpu.CompilerParams(
            dimension_semantics=sem,
            vmem_limit_bytes=_VMEM_LIMIT),
    )(*args)


# ---------------------------- multi-head attention -----------------------------

def _attn_kernel(qkv_ref, bias_ref, o_ref, *, heads, dim_head, inner):
    # qkv_ref: (1, n, 3*inner) bf16 (attention scale pre-folded into q weights)
    # bias_ref: (heads, n, n) bf16, resident across the batch grid
    # o_ref:   (1, n, inner) bf16
    for h in range(heads):
        lo = h * dim_head
        hi = lo + dim_head
        q = qkv_ref[0, :, lo:hi]                                    # (n, d) bf16
        k = qkv_ref[0, :, inner + lo:inner + hi]
        v = qkv_ref[0, :, 2 * inner + lo:2 * inner + hi]
        s = jax.lax.dot_general(q, k, (((1,), (1,)), ((), ())),
                                preferred_element_type=jnp.float32)  # (n, n) f32
        s = s + bias_ref[h].astype(jnp.float32)
        s = s - jnp.max(s, axis=-1, keepdims=True)
        e = jnp.exp(s)
        p = e * pl.reciprocal(jnp.sum(e, axis=-1, keepdims=True), approx=True)
        out_h = jnp.dot(p.astype(jnp.bfloat16), v,
                        preferred_element_type=jnp.float32)
        o_ref[0, :, lo:hi] = out_h.astype(o_ref.dtype)


def pallas_attention(qkv, rel_bias, heads, dim_head):
    B, n, three_inner = qkv.shape
    inner = heads * dim_head
    assert three_inner == 3 * inner
    kern = functools.partial(_attn_kernel, heads=heads, dim_head=dim_head,
                             inner=inner)
    return pl.pallas_call(
        kern,
        out_shape=jax.ShapeDtypeStruct((B, n, inner), jnp.bfloat16),
        grid=(B,),
        in_specs=[
            pl.BlockSpec((1, n, 3 * inner), lambda b: (b, 0, 0)),
            pl.BlockSpec((heads, n, n), lambda b: (0, 0, 0)),   # stays resident
        ],
        out_specs=pl.BlockSpec((1, n, inner), lambda b: (b, 0, 0)),
        compiler_params=pltpu.CompilerParams(
            dimension_semantics=("parallel",),
            vmem_limit_bytes=_VMEM_LIMIT),
    )(qkv.astype(jnp.bfloat16), rel_bias.astype(jnp.bfloat16))


# ----------------------------- 3x3/s2 max pooling ------------------------------

def _maxpool_kernel(ee_ref, eo_ref, oe_ref, oo_ref, o_ref):
    # Phases (no padding): ee = x[2ho, 2wo], eo = x[2ho, 2wo+1],
    #                      oe = x[2ho+1, 2wo], oo = x[2ho+1, 2wo+1].
    # Edge-replicated shifts supply the (2wo-1)/(2ho-1) taps; at the boundary
    # the shift duplicates an already-included tap, so the max is unchanged.
    ee = ee_ref[0]
    eo = eo_ref[0]
    oe = oe_ref[0]
    oo = oo_ref[0]
    eo_l = jnp.concatenate([eo[:, :1], eo[:, :-1]], axis=1)     # eo[ho, wo-1]
    oo_l = jnp.concatenate([oo[:, :1], oo[:, :-1]], axis=1)     # oo[ho, wo-1]
    row_even = jnp.maximum(jnp.maximum(ee, eo), eo_l)           # row 2ho
    row_odd = jnp.maximum(jnp.maximum(oe, oo), oo_l)            # row 2ho+1
    row_odd_u = jnp.concatenate([row_odd[:1], row_odd[:-1]], axis=0)  # row 2ho-1
    o_ref[0] = jnp.maximum(jnp.maximum(row_even, row_odd), row_odd_u)


def maxpool3x3_s2(x):
    """MaxPool2d(kernel=3, stride=2, padding=1) on NHWC (H, W even) -> bf16."""
    B, H, W, C = x.shape
    assert H % 2 == 0 and W % 2 == 0
    Ho, Wo = H // 2, W // 2
    xb = x.astype(jnp.bfloat16)
    ee = xb[:, 0::2, 0::2, :]
    eo = xb[:, 0::2, 1::2, :]
    oe = xb[:, 1::2, 0::2, :]
    oo = xb[:, 1::2, 1::2, :]
    spec = pl.BlockSpec((1, Ho, Wo, C), lambda b: (b, 0, 0, 0))
    return pl.pallas_call(
        _maxpool_kernel,
        out_shape=jax.ShapeDtypeStruct((B, Ho, Wo, C), jnp.bfloat16),
        grid=(B,),
        in_specs=[spec, spec, spec, spec],
        out_specs=spec,
        compiler_params=pltpu.CompilerParams(
            dimension_semantics=("parallel",),
            vmem_limit_bytes=_VMEM_LIMIT),
    )(ee, eo, oe, oo)


# ---------------------------- parameter construction ---------------------------

class _KeyGen:
    def __init__(self, seed):
        self._key = jax.random.PRNGKey(seed)

    def __call__(self):
        self._key, k = jax.random.split(self._key)
        return k


def _normal(kg, shape, scale=0.1):
    return scale * jax.random.normal(kg(), shape, jnp.float32)


def _relative_index(ih, iw):
    ys, xs = jnp.meshgrid(jnp.arange(ih), jnp.arange(iw), indexing="ij")
    coords = jnp.stack([ys.reshape(-1), xs.reshape(-1)])      # (2, n)
    rel = coords[:, :, None] - coords[:, None, :]             # (2, n, n)
    rel = rel.at[0].add(ih - 1)
    rel = rel.at[1].add(iw - 1)
    rel = rel.at[0].multiply(2 * iw - 1)
    return jnp.sum(jnp.transpose(rel, (1, 2, 0)), axis=-1).reshape(-1)


def build_transformer_params(seed, inp, oup, image_size, heads=8, dim_head=32,
                             downsample=False):
    kg = _KeyGen(seed)
    ih, iw = image_size
    n = ih * iw
    inner = heads * dim_head
    hidden = int(inp * 4)
    scale = dim_head ** -0.5

    # to_qkv (Linear, no bias) in matmul form (inp, 3*inner); fold the attention
    # scale into the q columns so the kernel never rescales the n*n scores.
    qkv_w = _normal(kg, (inner * 3, inp), 0.05)
    qkv_mm = qkv_w.T
    qkv_mm = jnp.concatenate([qkv_mm[:, :inner] * scale, qkv_mm[:, inner:]],
                             axis=1)

    out_w = _normal(kg, (oup, inner), 0.05).T                  # (inner, oup)
    ff_w1 = _normal(kg, (hidden, oup), 0.05).T                 # (oup, hidden)
    ff_w2 = _normal(kg, (oup, hidden), 0.05).T                 # (hidden, oup)

    # Relative-position bias: precompute gather + reshape/transpose, store bf16.
    table = _normal(kg, ((2 * ih - 1) * (2 * iw - 1), heads), 0.1)
    rel_index = _relative_index(ih, iw)
    rel_bias = jnp.take(table, rel_index, axis=0)              # (n*n, heads)
    rel_bias = rel_bias.reshape(n, n, heads).transpose(2, 0, 1)  # (heads, n, n)

    p = dict(
        downsample=downsample, heads=heads, dim_head=dim_head, ih=ih, iw=iw,
        ln1_g=1.0 + _normal(kg, (inp,), 0.1), ln1_b=_normal(kg, (inp,), 0.1),
        rel_bias=rel_bias.astype(jnp.bfloat16),
        qkv_w=qkv_mm.astype(jnp.bfloat16),
        out_w=out_w.astype(jnp.bfloat16),
        out_b=_normal(kg, (oup,), 0.1),
        ln2_g=1.0 + _normal(kg, (oup,), 0.1), ln2_b=_normal(kg, (oup,), 0.1),
        ff_w1=ff_w1.astype(jnp.bfloat16),
        ff_b1=_normal(kg, (hidden,), 0.1),
        ff_w2=ff_w2.astype(jnp.bfloat16),
        ff_b2=_normal(kg, (oup,), 0.1),
    )
    if downsample:
        proj_w = _normal(kg, (oup, inp, 1, 1), 0.05)           # Conv2d 1x1, no bias
        proj_mm = proj_w[:, :, 0, 0].T                         # (inp, oup)
        # Fold the shortcut projection into the out-projection:
        # [att | pooled] @ [out_w ; proj_w] + out_b
        p["outproj_w"] = jnp.concatenate([out_w, proj_mm],
                                         axis=0).astype(jnp.bfloat16)
    return p


# --------------------------------- forward pass --------------------------------

def transformer_forward(x_nchw, p):
    heads, dim_head = p["heads"], p["dim_head"]
    inner = heads * dim_head

    x = jnp.transpose(x_nchw, (0, 2, 3, 1)).astype(jnp.float32)   # NCHW -> NHWC

    if p["downsample"]:
        pooled = maxpool3x3_s2(x)                     # pool1(x) == pool2(x), bf16
        B, ih, iw, cin = pooled.shape
        M = B * ih * iw
        attn_in = pooled.reshape(M, cin)              # bf16
    else:
        B, ih, iw, cin = x.shape
        M = B * ih * iw
        attn_in = x.reshape(M, cin)                   # f32
    n = ih * iw

    # ---- attention branch: LN -> QKV -> attention -> out-proj (+ shortcut) ----
    qkv = fused_matmul(attn_in, p["qkv_w"], ln=(p["ln1_g"], p["ln1_b"]),
                       out_dtype=jnp.bfloat16)                      # (M, 3*inner)
    att = pallas_attention(qkv.reshape(B, n, 3 * inner), p["rel_bias"],
                           heads, dim_head)                         # (B, n, inner)
    att2 = att.reshape(M, inner)                                    # bf16

    if p["downsample"]:
        # Shortcut 1x1 projection folded into the out-projection matmul.
        xcat = jnp.concatenate([att2, attn_in], axis=-1)            # (M, inner+cin)
        x1 = fused_matmul(xcat, p["outproj_w"], bias=p["out_b"],
                          out_dtype=jnp.float32)                    # (M, oup)
    else:
        x1 = fused_matmul(att2, p["out_w"], bias=p["out_b"],
                          residual=attn_in, out_dtype=jnp.float32)  # x + attn(x)

    # ---- feed-forward branch: LN -> W1 + GELU -> W2 (+ x1) ----
    h = fused_matmul(x1, p["ff_w1"], bias=p["ff_b1"],
                     ln=(p["ln2_g"], p["ln2_b"]), act="gelu",
                     out_dtype=jnp.bfloat16)                        # (M, hidden)
    y = fused_matmul(h, p["ff_w2"], bias=p["ff_b2"], residual=x1,
                     out_dtype=jnp.float32)                         # (M, oup)

    oup = y.shape[-1]
    y = y.reshape(B, ih, iw, oup)
    return jnp.transpose(y, (0, 3, 1, 2))                            # NHWC -> NCHW


# ------------------------------------ main -------------------------------------

if __name__ == "__main__":
    inp, oup = 128, 128
    heads, dim_head = 8, 32
    image_size = (8, 8)          # attention token grid (post-downsample size)
    downsample = True
    batch = 2

    params = build_transformer_params(0, inp, oup, image_size,
                                      heads=heads, dim_head=dim_head,
                                      downsample=downsample)

    h_in = image_size[0] * (2 if downsample else 1)
    w_in = image_size[1] * (2 if downsample else 1)
    x = jax.random.normal(jax.random.PRNGKey(0),
                          (batch, inp, h_in, w_in), jnp.float32)

    forward = jax.jit(lambda v: transformer_forward(v, params))
    out = jax.block_until_ready(forward(x))

    assert out.shape == (batch, oup, image_size[0], image_size[1]), out.shape
    assert bool(jnp.all(jnp.isfinite(out)))
    print("KERNEL_OK")
</pallas_src>

<mosaic_0001>
module attributes {stable_mosaic.version = 11 : i64} {
  func.func @_attn_kernel(%arg0: i32, %arg1: memref<1x64x768xbf16, #tpu.memory_space<vmem>>, %arg2: memref<8x64x64xbf16, #tpu.memory_space<vmem>>, %arg3: memref<1x64x256xbf16, #tpu.memory_space<vmem>>) attributes {dimension_semantics = [#tpu.dimension_semantics<parallel>], iteration_bounds = array<i64: 2>, scalar_prefetch = 0 : i64, scratch_operands = 0 : i64, tpu.core_type = #tpu.core_type<tc>, window_params = [{transform_indices = @transform_0, window_bounds = array<i64: 1, 64, 768>}, {pipeline_mode = #tpu.pipeline_mode<synchronous>, transform_indices = @transform_1, window_bounds = array<i64: 8, 64, 64>}, {transform_indices = @transform_2, window_bounds = array<i64: 1, 64, 256>}]} {
    %c0 = arith.constant 0 : index
    %c0_0 = arith.constant 0 : index
    %c0_1 = arith.constant 0 : index
    %0 = vector.load %arg1[%c0, %c0_0, %c0_1] : memref<1x64x768xbf16, #tpu.memory_space<vmem>>, vector<1x64x32xbf16>
    %1 = vector.shape_cast %0 : vector<1x64x32xbf16> to vector<64x32xbf16>
    %c0_2 = arith.constant 0 : index
    %c0_3 = arith.constant 0 : index
    %c256 = arith.constant 256 : index
    %2 = vector.load %arg1[%c0_2, %c0_3, %c256] : memref<1x64x768xbf16, #tpu.memory_space<vmem>>, vector<1x64x32xbf16>
    %3 = vector.shape_cast %2 : vector<1x64x32xbf16> to vector<64x32xbf16>
    %c0_4 = arith.constant 0 : index
    %c0_5 = arith.constant 0 : index
    %c512 = arith.constant 512 : index
    %4 = vector.load %arg1[%c0_4, %c0_5, %c512] : memref<1x64x768xbf16, #tpu.memory_space<vmem>>, vector<1x64x32xbf16>
    %5 = vector.shape_cast %4 : vector<1x64x32xbf16> to vector<64x32xbf16>
    %cst = arith.constant dense<0.000000e+00> : vector<64x64xf32>
    %6 = tpu.matmul %1, %3, %cst {dimension_numbers = #tpu.dot_dimension_numbers<[1], [1], [0], [0], [0, 0, 1, 0], [], []>} : vector<64x32xbf16>, vector<64x32xbf16>, vector<64x64xf32> -> vector<64x64xf32>
    %c0_6 = arith.constant 0 : index
    %c0_7 = arith.constant 0 : index
    %c0_8 = arith.constant 0 : index
    %7 = vector.load %arg2[%c0_6, %c0_7, %c0_8] : memref<8x64x64xbf16, #tpu.memory_space<vmem>>, vector<1x64x64xbf16>
    %8 = vector.shape_cast %7 : vector<1x64x64xbf16> to vector<64x64xbf16>
    %9 = arith.extf %8 : vector<64x64xbf16> to vector<64x64xf32>
    %10 = arith.addf %6, %9 : vector<64x64xf32>
    %cst_9 = arith.constant dense<0xFF800000> : vector<64xf32>
    %11 = vector.multi_reduction <maximumf>, %10, %cst_9 [1] : vector<64x64xf32> to vector<64xf32>
    %12 = vector.shape_cast %11 : vector<64xf32> to vector<64x1xf32>
    %13 = vector.broadcast %12 : vector<64x1xf32> to vector<64x64xf32>
    %14 = arith.subf %10, %13 : vector<64x64xf32>
    %15 = math.exp %14 : vector<64x64xf32>
    %cst_10 = arith.constant dense<0.000000e+00> : vector<64xf32>
    %16 = vector.multi_reduction <add>, %15, %cst_10 [1] : vector<64x64xf32> to vector<64xf32>
    %17 = vector.shape_cast %16 : vector<64xf32> to vector<64x1xf32>
    %18 = tpu.reciprocal %17 {approx = true} : vector<64x1xf32> -> vector<64x1xf32>
    %19 = vector.broadcast %18 : vector<64x1xf32> to vector<64x64xf32>
    %20 = arith.mulf %15, %19 : vector<64x64xf32>
    %21 = arith.truncf %20 : vector<64x64xf32> to vector<64x64xbf16>
    %cst_11 = arith.constant dense<0.000000e+00> : vector<64x32xf32>
    %22 = tpu.matmul %21, %5, %cst_11 {dimension_numbers = #tpu.dot_dimension_numbers<[1], [0], [0], [1], [0, 0, 1, 1], [], []>} : vector<64x64xbf16>, vector<64x32xbf16>, vector<64x32xf32> -> vector<64x32xf32>
    %23 = arith.truncf %22 : vector<64x32xf32> to vector<64x32xbf16>
    %c0_12 = arith.constant 0 : index
    %c0_13 = arith.constant 0 : index
    %c0_14 = arith.constant 0 : index
    %24 = vector.load %arg3[%c0_12, %c0_13, %c0_14] : memref<1x64x256xbf16, #tpu.memory_space<vmem>>, vector<1x64x32xbf16>
    %25 = vector.shape_cast %24 : vector<1x64x32xbf16> to vector<64x32xbf16>
    %26 = vector.shape_cast %23 : vector<64x32xbf16> to vector<1x64x32xbf16>
    tpu.vector_store %arg3[%c0_12, %c0_13, %c0_14], %26 {strides = array<i32>} : memref<1x64x256xbf16, #tpu.memory_space<vmem>>, vector<1x64x32xbf16>,
    %c0_15 = arith.constant 0 : index
    %c0_16 = arith.constant 0 : index
    %c32 = arith.constant 32 : index
    %27 = vector.load %arg1[%c0_15, %c0_16, %c32] : memref<1x64x768xbf16, #tpu.memory_space<vmem>>, vector<1x64x32xbf16>
    %28 = vector.shape_cast %27 : vector<1x64x32xbf16> to vector<64x32xbf16>
    %c0_17 = arith.constant 0 : index
    %c0_18 = arith.constant 0 : index
    %c288 = arith.constant 288 : index
    %29 = vector.load %arg1[%c0_17, %c0_18, %c288] : memref<1x64x768xbf16, #tpu.memory_space<vmem>>, vector<1x64x32xbf16>
    %30 = vector.shape_cast %29 : vector<1x64x32xbf16> to vector<64x32xbf16>
    %c0_19 = arith.constant 0 : index
    %c0_20 = arith.constant 0 : index
    %c544 = arith.constant 544 : index
    %31 = vector.load %arg1[%c0_19, %c0_20, %c544] : memref<1x64x768xbf16, #tpu.memory_space<vmem>>, vector<1x64x32xbf16>
    %32 = vector.shape_cast %31 : vector<1x64x32xbf16> to vector<64x32xbf16>
    %cst_21 = arith.constant dense<0.000000e+00> : vector<64x64xf32>
    %33 = tpu.matmul %28, %30, %cst_21 {dimension_numbers = #tpu.dot_dimension_numbers<[1], [1], [0], [0], [0, 0, 1, 0], [], []>} : vector<64x32xbf16>, vector<64x32xbf16>, vector<64x64xf32> -> vector<64x64xf32>
    %c1 = arith.constant 1 : index
    %c0_22 = arith.constant 0 : index
    %c0_23 = arith.constant 0 : index
    %34 = vector.load %arg2[%c1, %c0_22, %c0_23] : memref<8x64x64xbf16, #tpu.memory_space<vmem>>, vector<1x64x64xbf16>
    %35 = vector.shape_cast %34 : vector<1x64x64xbf16> to vector<64x64xbf16>
    %36 = arith.extf %35 : vector<64x64xbf16> to vector<64x64xf32>
    %37 = arith.addf %33, %36 : vector<64x64xf32>
    %cst_24 = arith.constant dense<0xFF800000> : vector<64xf32>
    %38 = vector.multi_reduction <maximumf>, %37, %cst_24 [1] : vector<64x64xf32> to vector<64xf32>
    %39 = vector.shape_cast %38 : vector<64xf32> to vector<64x1xf32>
    %40 = vector.broadcast %39 : vector<64x1xf32> to vector<64x64xf32>
    %41 = arith.subf %37, %40 : vector<64x64xf32>
    %42 = math.exp %41 : vector<64x64xf32>
    %cst_25 = arith.constant dense<0.000000e+00> : vector<64xf32>
    %43 = vector.multi_reduction <add>, %42, %cst_25 [1] : vector<64x64xf32> to vector<64xf32>
    %44 = vector.shape_cast %43 : vector<64xf32> to vector<64x1xf32>
    %45 = tpu.reciprocal %44 {approx = true} : vector<64x1xf32> -> vector<64x1xf32>
    %46 = vector.broadcast %45 : vector<64x1xf32> to vector<64x64xf32>
    %47 = arith.mulf %42, %46 : vector<64x64xf32>
    %48 = arith.truncf %47 : vector<64x64xf32> to vector<64x64xbf16>
    %cst_26 = arith.constant dense<0.000000e+00> : vector<64x32xf32>
    %49 = tpu.matmul %48, %32, %cst_26 {dimension_numbers = #tpu.dot_dimension_numbers<[1], [0], [0], [1], [0, 0, 1, 1], [], []>} : vector<64x64xbf16>, vector<64x32xbf16>, vector<64x32xf32> -> vector<64x32xf32>
    %50 = arith.truncf %49 : vector<64x32xf32> to vector<64x32xbf16>
    %c0_27 = arith.constant 0 : index
    %c0_28 = arith.constant 0 : index
    %c32_29 = arith.constant 32 : index
    %51 = vector.load %arg3[%c0_27, %c0_28, %c32_29] : memref<1x64x256xbf16, #tpu.memory_space<vmem>>, vector<1x64x32xbf16>
    %52 = vector.shape_cast %51 : vector<1x64x32xbf16> to vector<64x32xbf16>
    %53 = vector.shape_cast %50 : vector<64x32xbf16> to vector<1x64x32xbf16>
    tpu.vector_store %arg3[%c0_27, %c0_28, %c32_29], %53 {strides = array<i32>} : memref<1x64x256xbf16, #tpu.memory_space<vmem>>, vector<1x64x32xbf16>,
    %c0_30 = arith.constant 0 : index
    %c0_31 = arith.constant 0 : index
    %c64 = arith.constant 64 : index
    %54 = vector.load %arg1[%c0_30, %c0_31, %c64] : memref<1x64x768xbf16, #tpu.memory_space<vmem>>, vector<1x64x32xbf16>
    %55 = vector.shape_cast %54 : vector<1x64x32xbf16> to vector<64x32xbf16>
    %c0_32 = arith.constant 0 : index
    %c0_33 = arith.constant 0 : index
    %c320 = arith.constant 320 : index
    %56 = vector.load %arg1[%c0_32, %c0_33, %c320] : memref<1x64x768xbf16, #tpu.memory_space<vmem>>, vector<1x64x32xbf16>
    %57 = vector.shape_cast %56 : vector<1x64x32xbf16> to vector<64x32xbf16>
    %c0_34 = arith.constant 0 : index
    %c0_35 = arith.constant 0 : index
    %c576 = arith.constant 576 : index
    %58 = vector.load %arg1[%c0_34, %c0_35, %c576] : memref<1x64x768xbf16, #tpu.memory_space<vmem>>, vector<1x64x32xbf16>
    %59 = vector.shape_cast %58 : vector<1x64x32xbf16> to vector<64x32xbf16>
    %cst_36 = arith.constant dense<0.000000e+00> : vector<64x64xf32>
    %60 = tpu.matmul %55, %57, %cst_36 {dimension_numbers = #tpu.dot_dimension_numbers<[1], [1], [0], [0], [0, 0, 1, 0], [], []>} : vector<64x32xbf16>, vector<64x32xbf16>, vector<64x64xf32> -> vector<64x64xf32>
    %c2 = arith.constant 2 : index
    %c0_37 = arith.constant 0 : index
    %c0_38 = arith.constant 0 : index
    %61 = vector.load %arg2[%c2, %c0_37, %c0_38] : memref<8x64x64xbf16, #tpu.memory_space<vmem>>, vector<1x64x64xbf16>
    %62 = vector.shape_cast %61 : vector<1x64x64xbf16> to vector<64x64xbf16>
    %63 = arith.extf %62 : vector<64x64xbf16> to vector<64x64xf32>
    %64 = arith.addf %60, %63 : vector<64x64xf32>
    %cst_39 = arith.constant dense<0xFF800000> : vector<64xf32>
    %65 = vector.multi_reduction <maximumf>, %64, %cst_39 [1] : vector<64x64xf32> to vector<64xf32>
    %66 = vector.shape_cast %65 : vector<64xf32> to vector<64x1xf32>
    %67 = vector.broadcast %66 : vector<64x1xf32> to vector<64x64xf32>
    %68 = arith.subf %64, %67 : vector<64x64xf32>
    %69 = math.exp %68 : vector<64x64xf32>
    %cst_40 = arith.constant dense<0.000000e+00> : vector<64xf32>
    %70 = vector.multi_reduction <add>, %69, %cst_40 [1] : vector<64x64xf32> to vector<64xf32>
    %71 = vector.shape_cast %70 : vector<64xf32> to vector<64x1xf32>
    %72 = tpu.reciprocal %71 {approx = true} : vector<64x1xf32> -> vector<64x1xf32>
    %73 = vector.broadcast %72 : vector<64x1xf32> to vector<64x64xf32>
    %74 = arith.mulf %69, %73 : vector<64x64xf32>
    %75 = arith.truncf %74 : vector<64x64xf32> to vector<64x64xbf16>
    %cst_41 = arith.constant dense<0.000000e+00> : vector<64x32xf32>
    %76 = tpu.matmul %75, %59, %cst_41 {dimension_numbers = #tpu.dot_dimension_numbers<[1], [0], [0], [1], [0, 0, 1, 1], [], []>} : vector<64x64xbf16>, vector<64x32xbf16>, vector<64x32xf32> -> vector<64x32xf32>
    %77 = arith.truncf %76 : vector<64x32xf32> to vector<64x32xbf16>
    %c0_42 = arith.constant 0 : index
    %c0_43 = arith.constant 0 : index
    %c64_44 = arith.constant 64 : index
    %78 = vector.load %arg3[%c0_42, %c0_43, %c64_44] : memref<1x64x256xbf16, #tpu.memory_space<vmem>>, vector<1x64x32xbf16>
    %79 = vector.shape_cast %78 : vector<1x64x32xbf16> to vector<64x32xbf16>
    %80 = vector.shape_cast %77 : vector<64x32xbf16> to vector<1x64x32xbf16>
    tpu.vector_store %arg3[%c0_42, %c0_43, %c64_44], %80 {strides = array<i32>} : memref<1x64x256xbf16, #tpu.memory_space<vmem>>, vector<1x64x32xbf16>,
    %c0_45 = arith.constant 0 : index
    %c0_46 = arith.constant 0 : index
    %c96 = arith.constant 96 : index
    %81 = vector.load %arg1[%c0_45, %c0_46, %c96] : memref<1x64x768xbf16, #tpu.memory_space<vmem>>, vector<1x64x32xbf16>
    %82 = vector.shape_cast %81 : vector<1x64x32xbf16> to vector<64x32xbf16>
    %c0_47 = arith.constant 0 : index
    %c0_48 = arith.constant 0 : index
    %c352 = arith.constant 352 : index
    %83 = vector.load %arg1[%c0_47, %c0_48, %c352] : memref<1x64x768xbf16, #tpu.memory_space<vmem>>, vector<1x64x32xbf16>
    %84 = vector.shape_cast %83 : vector<1x64x32xbf16> to vector<64x32xbf16>
    %c0_49 = arith.constant 0 : index
    %c0_50 = arith.constant 0 : index
    %c608 = arith.constant 608 : index
    %85 = vector.load %arg1[%c0_49, %c0_50, %c608] : memref<1x64x768xbf16, #tpu.memory_space<vmem>>, vector<1x64x32xbf16>
    %86 = vector.shape_cast %85 : vector<1x64x32xbf16> to vector<64x32xbf16>
    %cst_51 = arith.constant dense<0.000000e+00> : vector<64x64xf32>
    %87 = tpu.matmul %82, %84, %cst_51 {dimension_numbers = #tpu.dot_dimension_numbers<[1], [1], [0], [0], [0, 0, 1, 0], [], []>} : vector<64x32xbf16>, vector<64x32xbf16>, vector<64x64xf32> -> vector<64x64xf32>
    %c3 = arith.constant 3 : index
    %c0_52 = arith.constant 0 : index
    %c0_53 = arith.constant 0 : index
    %88 = vector.load %arg2[%c3, %c0_52, %c0_53] : memref<8x64x64xbf16, #tpu.memory_space<vmem>>, vector<1x64x64xbf16>
    %89 = vector.shape_cast %88 : vector<1x64x64xbf16> to vector<64x64xbf16>
    %90 = arith.extf %89 : vector<64x64xbf16> to vector<64x64xf32>
    %91 = arith.addf %87, %90 : vector<64x64xf32>
    %cst_54 = arith.constant dense<0xFF800000> : vector<64xf32>
    %92 = vector.multi_reduction <maximumf>, %91, %cst_54 [1] : vector<64x64xf32> to vector<64xf32>
    %93 = vector.shape_cast %92 : vector<64xf32> to vector<64x1xf32>
    %94 = vector.broadcast %93 : vector<64x1xf32> to vector<64x64xf32>
    %95 = arith.subf %91, %94 : vector<64x64xf32>
    %96 = math.exp %95 : vector<64x64xf32>
    %cst_55 = arith.constant dense<0.000000e+00> : vector<64xf32>
    %97 = vector.multi_reduction <add>, %96, %cst_55 [1] : vector<64x64xf32> to vector<64xf32>
    %98 = vector.shape_cast %97 : vector<64xf32> to vector<64x1xf32>
    %99 = tpu.reciprocal %98 {approx = true} : vector<64x1xf32> -> vector<64x1xf32>
    %100 = vector.broadcast %99 : vector<64x1xf32> to vector<64x64xf32>
    %101 = arith.mulf %96, %100 : vector<64x64xf32>
    %102 = arith.truncf %101 : vector<64x64xf32> to vector<64x64xbf16>
    %cst_56 = arith.constant dense<0.000000e+00> : vector<64x32xf32>
    %103 = tpu.matmul %102, %86, %cst_56 {dimension_numbers = #tpu.dot_dimension_numbers<[1], [0], [0], [1], [0, 0, 1, 1], [], []>} : vector<64x64xbf16>, vector<64x32xbf16>, vector<64x32xf32> -> vector<64x32xf32>
    %104 = arith.truncf %103 : vector<64x32xf32> to vector<64x32xbf16>
    %c0_57 = arith.constant 0 : index
    %c0_58 = arith.constant 0 : index
    %c96_59 = arith.constant 96 : index
    %105 = vector.load %arg3[%c0_57, %c0_58, %c96_59] : memref<1x64x256xbf16, #tpu.memory_space<vmem>>, vector<1x64x32xbf16>
    %106 = vector.shape_cast %105 : vector<1x64x32xbf16> to vector<64x32xbf16>
    %107 = vector.shape_cast %104 : vector<64x32xbf16> to vector<1x64x32xbf16>
    tpu.vector_store %arg3[%c0_57, %c0_58, %c96_59], %107 {strides = array<i32>} : memref<1x64x256xbf16, #tpu.memory_space<vmem>>, vector<1x64x32xbf16>,
    %c0_60 = arith.constant 0 : index
    %c0_61 = arith.constant 0 : index
    %c128 = arith.constant 128 : index
    %108 = vector.load %arg1[%c0_60, %c0_61, %c128] : memref<1x64x768xbf16, #tpu.memory_space<vmem>>, vector<1x64x32xbf16>
    %109 = vector.shape_cast %108 : vector<1x64x32xbf16> to vector<64x32xbf16>
    %c0_62 = arith.constant 0 : index
    %c0_63 = arith.constant 0 : index
    %c384 = arith.constant 384 : index
    %110 = vector.load %arg1[%c0_62, %c0_63, %c384] : memref<1x64x768xbf16, #tpu.memory_space<vmem>>, vector<1x64x32xbf16>
    %111 = vector.shape_cast %110 : vector<1x64x32xbf16> to vector<64x32xbf16>
    %c0_64 = arith.constant 0 : index
    %c0_65 = arith.constant 0 : index
    %c640 = arith.constant 640 : index
    %112 = vector.load %arg1[%c0_64, %c0_65, %c640] : memref<1x64x768xbf16, #tpu.memory_space<vmem>>, vector<1x64x32xbf16>
    %113 = vector.shape_cast %112 : vector<1x64x32xbf16> to vector<64x32xbf16>
    %cst_66 = arith.constant dense<0.000000e+00> : vector<64x64xf32>
    %114 = tpu.matmul %109, %111, %cst_66 {dimension_numbers = #tpu.dot_dimension_numbers<[1], [1], [0], [0], [0, 0, 1, 0], [], []>} : vector<64x32xbf16>, vector<64x32xbf16>, vector<64x64xf32> -> vector<64x64xf32>
    %c4 = arith.constant 4 : index
    %c0_67 = arith.constant 0 : index
    %c0_68 = arith.constant 0 : index
    %115 = vector.load %arg2[%c4, %c0_67, %c0_68] : memref<8x64x64xbf16, #tpu.memory_space<vmem>>, vector<1x64x64xbf16>
    %116 = vector.shape_cast %115 : vector<1x64x64xbf16> to vector<64x64xbf16>
    %117 = arith.extf %116 : vector<64x64xbf16> to vector<64x64xf32>
    %118 = arith.addf %114, %117 : vector<64x64xf32>
    %cst_69 = arith.constant dense<0xFF800000> : vector<64xf32>
    %119 = vector.multi_reduction <maximumf>, %118, %cst_69 [1] : vector<64x64xf32> to vector<64xf32>
    %120 = vector.shape_cast %119 : vector<64xf32> to vector<64x1xf32>
    %121 = vector.broadcast %120 : vector<64x1xf32> to vector<64x64xf32>
    %122 = arith.subf %118, %121 : vector<64x64xf32>
    %123 = math.exp %122 : vector<64x64xf32>
    %cst_70 = arith.constant dense<0.000000e+00> : vector<64xf32>
    %124 = vector.multi_reduction <add>, %123, %cst_70 [1] : vector<64x64xf32> to vector<64xf32>
    %125 = vector.shape_cast %124 : vector<64xf32> to vector<64x1xf32>
    %126 = tpu.reciprocal %125 {approx = true} : vector<64x1xf32> -> vector<64x1xf32>
    %127 = vector.broadcast %126 : vector<64x1xf32> to vector<64x64xf32>
    %128 = arith.mulf %123, %127 : vector<64x64xf32>
    %129 = arith.truncf %128 : vector<64x64xf32> to vector<64x64xbf16>
    %cst_71 = arith.constant dense<0.000000e+00> : vector<64x32xf32>
    %130 = tpu.matmul %129, %113, %cst_71 {dimension_numbers = #tpu.dot_dimension_numbers<[1], [0], [0], [1], [0, 0, 1, 1], [], []>} : vector<64x64xbf16>, vector<64x32xbf16>, vector<64x32xf32> -> vector<64x32xf32>
    %131 = arith.truncf %130 : vector<64x32xf32> to vector<64x32xbf16>
    %c0_72 = arith.constant 0 : index
    %c0_73 = arith.constant 0 : index
    %c128_74 = arith.constant 128 : index
    %132 = vector.load %arg3[%c0_72, %c0_73, %c128_74] : memref<1x64x256xbf16, #tpu.memory_space<vmem>>, vector<1x64x32xbf16>
    %133 = vector.shape_cast %132 : vector<1x64x32xbf16> to vector<64x32xbf16>
    %134 = vector.shape_cast %131 : vector<64x32xbf16> to vector<1x64x32xbf16>
    tpu.vector_store %arg3[%c0_72, %c0_73, %c128_74], %134 {strides = array<i32>} : memref<1x64x256xbf16, #tpu.memory_space<vmem>>, vector<1x64x32xbf16>,
    %c0_75 = arith.constant 0 : index
    %c0_76 = arith.constant 0 : index
    %c160 = arith.constant 160 : index
    %135 = vector.load %arg1[%c0_75, %c0_76, %c160] : memref<1x64x768xbf16, #tpu.memory_space<vmem>>, vector<1x64x32xbf16>
    %136 = vector.shape_cast %135 : vector<1x64x32xbf16> to vector<64x32xbf16>
    %c0_77 = arith.constant 0 : index
    %c0_78 = arith.constant 0 : index
    %c416 = arith.constant 416 : index
    %137 = vector.load %arg1[%c0_77, %c0_78, %c416] : memref<1x64x768xbf16, #tpu.memory_space<vmem>>, vector<1x64x32xbf16>
    %138 = vector.shape_cast %137 : vector<1x64x32xbf16> to vector<64x32xbf16>
    %c0_79 = arith.constant 0 : index
    %c0_80 = arith.constant 0 : index
    %c672 = arith.constant 672 : index
    %139 = vector.load %arg1[%c0_79, %c0_80, %c672] : memref<1x64x768xbf16, #tpu.memory_space<vmem>>, vector<1x64x32xbf16>
    %140 = vector.shape_cast %139 : vector<1x64x32xbf16> to vector<64x32xbf16>
    %cst_81 = arith.constant dense<0.000000e+00> : vector<64x64xf32>
    %141 = tpu.matmul %136, %138, %cst_81 {dimension_numbers = #tpu.dot_dimension_numbers<[1], [1], [0], [0], [0, 0, 1, 0], [], []>} : vector<64x32xbf16>, vector<64x32xbf16>, vector<64x64xf32> -> vector<64x64xf32>
    %c5 = arith.constant 5 : index
    %c0_82 = arith.constant 0 : index
    %c0_83 = arith.constant 0 : index
    %142 = vector.load %arg2[%c5, %c0_82, %c0_83] : memref<8x64x64xbf16, #tpu.memory_space<vmem>>, vector<1x64x64xbf16>
    %143 = vector.shape_cast %142 : vector<1x64x64xbf16> to vector<64x64xbf16>
    %144 = arith.extf %143 : vector<64x64xbf16> to vector<64x64xf32>
    %145 = arith.addf %141, %144 : vector<64x64xf32>
    %cst_84 = arith.constant dense<0xFF800000> : vector<64xf32>
    %146 = vector.multi_reduction <maximumf>, %145, %cst_84 [1] : vector<64x64xf32> to vector<64xf32>
    %147 = vector.shape_cast %146 : vector<64xf32> to vector<64x1xf32>
    %148 = vector.broadcast %147 : vector<64x1xf32> to vector<64x64xf32>
    %149 = arith.subf %145, %148 : vector<64x64xf32>
    %150 = math.exp %149 : vector<64x64xf32>
    %cst_85 = arith.constant dense<0.000000e+00> : vector<64xf32>
    %151 = vector.multi_reduction <add>, %150, %cst_85 [1] : vector<64x64xf32> to vector<64xf32>
    %152 = vector.shape_cast %151 : vector<64xf32> to vector<64x1xf32>
    %153 = tpu.reciprocal %152 {approx = true} : vector<64x1xf32> -> vector<64x1xf32>
    %154 = vector.broadcast %153 : vector<64x1xf32> to vector<64x64xf32>
    %155 = arith.mulf %150, %154 : vector<64x64xf32>
    %156 = arith.truncf %155 : vector<64x64xf32> to vector<64x64xbf16>
    %cst_86 = arith.constant dense<0.000000e+00> : vector<64x32xf32>
    %157 = tpu.matmul %156, %140, %cst_86 {dimension_numbers = #tpu.dot_dimension_numbers<[1], [0], [0], [1], [0, 0, 1, 1], [], []>} : vector<64x64xbf16>, vector<64x32xbf16>, vector<64x32xf32> -> vector<64x32xf32>
    %158 = arith.truncf %157 : vector<64x32xf32> to vector<64x32xbf16>
    %c0_87 = arith.constant 0 : index
    %c0_88 = arith.constant 0 : index
    %c160_89 = arith.constant 160 : index
    %159 = vector.load %arg3[%c0_87, %c0_88, %c160_89] : memref<1x64x256xbf16, #tpu.memory_space<vmem>>, vector<1x64x32xbf16>
    %160 = vector.shape_cast %159 : vector<1x64x32xbf16> to vector<64x32xbf16>
    %161 = vector.shape_cast %158 : vector<64x32xbf16> to vector<1x64x32xbf16>
    tpu.vector_store %arg3[%c0_87, %c0_88, %c160_89], %161 {strides = array<i32>} : memref<1x64x256xbf16, #tpu.memory_space<vmem>>, vector<1x64x32xbf16>,
    %c0_90 = arith.constant 0 : index
    %c0_91 = arith.constant 0 : index
    %c192 = arith.constant 192 : index
    %162 = vector.load %arg1[%c0_90, %c0_91, %c192] : memref<1x64x768xbf16, #tpu.memory_space<vmem>>, vector<1x64x32xbf16>
    %163 = vector.shape_cast %162 : vector<1x64x32xbf16> to vector<64x32xbf16>
    %c0_92 = arith.constant 0 : index
    %c0_93 = arith.constant 0 : index
    %c448 = arith.constant 448 : index
    %164 = vector.load %arg1[%c0_92, %c0_93, %c448] : memref<1x64x768xbf16, #tpu.memory_space<vmem>>, vector<1x64x32xbf16>
    %165 = vector.shape_cast %164 : vector<1x64x32xbf16> to vector<64x32xbf16>
    %c0_94 = arith.constant 0 : index
    %c0_95 = arith.constant 0 : index
    %c704 = arith.constant 704 : index
    %166 = vector.load %arg1[%c0_94, %c0_95, %c704] : memref<1x64x768xbf16, #tpu.memory_space<vmem>>, vector<1x64x32xbf16>
    %167 = vector.shape_cast %166 : vector<1x64x32xbf16> to vector<64x32xbf16>
    %cst_96 = arith.constant dense<0.000000e+00> : vector<64x64xf32>
    %168 = tpu.matmul %163, %165, %cst_96 {dimension_numbers = #tpu.dot_dimension_numbers<[1], [1], [0], [0], [0, 0, 1, 0], [], []>} : vector<64x32xbf16>, vector<64x32xbf16>, vector<64x64xf32> -> vector<64x64xf32>
    %c6 = arith.constant 6 : index
    %c0_97 = arith.constant 0 : index
    %c0_98 = arith.constant 0 : index
    %169 = vector.load %arg2[%c6, %c0_97, %c0_98] : memref<8x64x64xbf16, #tpu.memory_space<vmem>>, vector<1x64x64xbf16>
    %170 = vector.shape_cast %169 : vector<1x64x64xbf16> to vector<64x64xbf16>
    %171 = arith.extf %170 : vector<64x64xbf16> to vector<64x64xf32>
    %172 = arith.addf %168, %171 : vector<64x64xf32>
    %cst_99 = arith.constant dense<0xFF800000> : vector<64xf32>
    %173 = vector.multi_reduction <maximumf>, %172, %cst_99 [1] : vector<64x64xf32> to vector<64xf32>
    %174 = vector.shape_cast %173 : vector<64xf32> to vector<64x1xf32>
    %175 = vector.broadcast %174 : vector<64x1xf32> to vector<64x64xf32>
    %176 = arith.subf %172, %175 : vector<64x64xf32>
    %177 = math.exp %176 : vector<64x64xf32>
    %cst_100 = arith.constant dense<0.000000e+00> : vector<64xf32>
    %178 = vector.multi_reduction <add>, %177, %cst_100 [1] : vector<64x64xf32> to vector<64xf32>
    %179 = vector.shape_cast %178 : vector<64xf32> to vector<64x1xf32>
    %180 = tpu.reciprocal %179 {approx = true} : vector<64x1xf32> -> vector<64x1xf32>
    %181 = vector.broadcast %180 : vector<64x1xf32> to vector<64x64xf32>
    %182 = arith.mulf %177, %181 : vector<64x64xf32>
    %183 = arith.truncf %182 : vector<64x64xf32> to vector<64x64xbf16>
    %cst_101 = arith.constant dense<0.000000e+00> : vector<64x32xf32>
    %184 = tpu.matmul %183, %167, %cst_101 {dimension_numbers = #tpu.dot_dimension_numbers<[1], [0], [0], [1], [0, 0, 1, 1], [], []>} : vector<64x64xbf16>, vector<64x32xbf16>, vector<64x32xf32> -> vector<64x32xf32>
    %185 = arith.truncf %184 : vector<64x32xf32> to vector<64x32xbf16>
    %c0_102 = arith.constant 0 : index
    %c0_103 = arith.constant 0 : index
    %c192_104 = arith.constant 192 : index
    %186 = vector.load %arg3[%c0_102, %c0_103, %c192_104] : memref<1x64x256xbf16, #tpu.memory_space<vmem>>, vector<1x64x32xbf16>
    %187 = vector.shape_cast %186 : vector<1x64x32xbf16> to vector<64x32xbf16>
    %188 = vector.shape_cast %185 : vector<64x32xbf16> to vector<1x64x32xbf16>
    tpu.vector_store %arg3[%c0_102, %c0_103, %c192_104], %188 {strides = array<i32>} : memref<1x64x256xbf16, #tpu.memory_space<vmem>>, vector<1x64x32xbf16>,
    %c0_105 = arith.constant 0 : index
    %c0_106 = arith.constant 0 : index
    %c224 = arith.constant 224 : index
    %189 = vector.load %arg1[%c0_105, %c0_106, %c224] : memref<1x64x768xbf16, #tpu.memory_space<vmem>>, vector<1x64x32xbf16>
    %190 = vector.shape_cast %189 : vector<1x64x32xbf16> to vector<64x32xbf16>
    %c0_107 = arith.constant 0 : index
    %c0_108 = arith.constant 0 : index
    %c480 = arith.constant 480 : index
    %191 = vector.load %arg1[%c0_107, %c0_108, %c480] : memref<1x64x768xbf16, #tpu.memory_space<vmem>>, vector<1x64x32xbf16>
    %192 = vector.shape_cast %191 : vector<1x64x32xbf16> to vector<64x32xbf16>
    %c0_109 = arith.constant 0 : index
    %c0_110 = arith.constant 0 : index
    %c736 = arith.constant 736 : index
    %193 = vector.load %arg1[%c0_109, %c0_110, %c736] : memref<1x64x768xbf16, #tpu.memory_space<vmem>>, vector<1x64x32xbf16>
    %194 = vector.shape_cast %193 : vector<1x64x32xbf16> to vector<64x32xbf16>
    %cst_111 = arith.constant dense<0.000000e+00> : vector<64x64xf32>
    %195 = tpu.matmul %190, %192, %cst_111 {dimension_numbers = #tpu.dot_dimension_numbers<[1], [1], [0], [0], [0, 0, 1, 0], [], []>} : vector<64x32xbf16>, vector<64x32xbf16>, vector<64x64xf32> -> vector<64x64xf32>
    %c7 = arith.constant 7 : index
    %c0_112 = arith.constant 0 : index
    %c0_113 = arith.constant 0 : index
    %196 = vector.load %arg2[%c7, %c0_112, %c0_113] : memref<8x64x64xbf16, #tpu.memory_space<vmem>>, vector<1x64x64xbf16>
    %197 = vector.shape_cast %196 : vector<1x64x64xbf16> to vector<64x64xbf16>
    %198 = arith.extf %197 : vector<64x64xbf16> to vector<64x64xf32>
    %199 = arith.addf %195, %198 : vector<64x64xf32>
    %cst_114 = arith.constant dense<0xFF800000> : vector<64xf32>
    %200 = vector.multi_reduction <maximumf>, %199, %cst_114 [1] : vector<64x64xf32> to vector<64xf32>
    %201 = vector.shape_cast %200 : vector<64xf32> to vector<64x1xf32>
    %202 = vector.broadcast %201 : vector<64x1xf32> to vector<64x64xf32>
    %203 = arith.subf %199, %202 : vector<64x64xf32>
    %204 = math.exp %203 : vector<64x64xf32>
    %cst_115 = arith.constant dense<0.000000e+00> : vector<64xf32>
    %205 = vector.multi_reduction <add>, %204, %cst_115 [1] : vector<64x64xf32> to vector<64xf32>
    %206 = vector.shape_cast %205 : vector<64xf32> to vector<64x1xf32>
    %207 = tpu.reciprocal %206 {approx = true} : vector<64x1xf32> -> vector<64x1xf32>
    %208 = vector.broadcast %207 : vector<64x1xf32> to vector<64x64xf32>
    %209 = arith.mulf %204, %208 : vector<64x64xf32>
    %210 = arith.truncf %209 : vector<64x64xf32> to vector<64x64xbf16>
    %cst_116 = arith.constant dense<0.000000e+00> : vector<64x32xf32>
    %211 = tpu.matmul %210, %194, %cst_116 {dimension_numbers = #tpu.dot_dimension_numbers<[1], [0], [0], [1], [0, 0, 1, 1], [], []>} : vector<64x64xbf16>, vector<64x32xbf16>, vector<64x32xf32> -> vector<64x32xf32>
    %212 = arith.truncf %211 : vector<64x32xf32> to vector<64x32xbf16>
    %c0_117 = arith.constant 0 : index
    %c0_118 = arith.constant 0 : index
    %c224_119 = arith.constant 224 : index
    %213 = vector.load %arg3[%c0_117, %c0_118, %c224_119] : memref<1x64x256xbf16, #tpu.memory_space<vmem>>, vector<1x64x32xbf16>
    %214 = vector.shape_cast %213 : vector<1x64x32xbf16> to vector<64x32xbf16>
    %215 = vector.shape_cast %212 : vector<64x32xbf16> to vector<1x64x32xbf16>
    tpu.vector_store %arg3[%c0_117, %c0_118, %c224_119], %215 {strides = array<i32>} : memref<1x64x256xbf16, #tpu.memory_space<vmem>>, vector<1x64x32xbf16>,
    return
  }
  func.func @transform_0(%arg0: i32) -> (i32, i32, i32) {
    %c0_i32 = arith.constant 0 : i32
    %c0_i32_0 = arith.constant 0 : i32
    %c0_i32_1 = arith.constant 0 : i32
    return %arg0, %c0_i32, %c0_i32_0 : i32, i32, i32
  }
  func.func @transform_1(%arg0: i32) -> (i32, i32, i32) {
    %c0_i32 = arith.constant 0 : i32
    %c0_i32_0 = arith.constant 0 : i32
    %c0_i32_1 = arith.constant 0 : i32
    %c0_i32_2 = arith.constant 0 : i32
    return %c0_i32, %c0_i32_0, %c0_i32_1 : i32, i32, i32
  }
  func.func @transform_2(%arg0: i32) -> (i32, i32, i32) {
    %c0_i32 = arith.constant 0 : i32
    %c0_i32_0 = arith.constant 0 : i32
    %c0_i32_1 = arith.constant 0 : i32
    return %arg0, %c0_i32, %c0_i32_0 : i32, i32, i32
  }
}

module attributes {stable_mosaic.version = 11 : i64} {
  func.func @kernel(%arg0: i32, %arg1: i32, %arg2: i32, %arg3: memref<64x128xbf16, #tpu.memory_space<vmem>>, %arg4: memref<128x256xbf16, #tpu.memory_space<vmem>>, %arg5: memref<1x128xf32, #tpu.memory_space<vmem>>, %arg6: memref<1x128xf32, #tpu.memory_space<vmem>>, %arg7: memref<64x256xbf16, #tpu.memory_space<vmem>>, %arg8: memref<64x128xbf16, #tpu.memory_space<vmem>>) attributes {dimension_semantics = [#tpu.dimension_semantics<parallel>, #tpu.dimension_semantics<arbitrary>, #tpu.dimension_semantics<arbitrary>], iteration_bounds = array<i64: 2, 3, 1>, scalar_prefetch = 0 : i64, scratch_operands = 1 : i64, tpu.core_type = #tpu.core_type<tc>, window_params = [{transform_indices = @transform_0, window_bounds = array<i64: 64, 128>}, {transform_indices = @transform_1, window_bounds = array<i64: 128, 256>}, {transform_indices = @transform_2, window_bounds = array<i64: 1, 128>}, {transform_indices = @transform_3, window_bounds = array<i64: 1, 128>}, {transform_indices = @transform_4, window_bounds = array<i64: 64, 256>}]} {
    %c0_i32 = arith.constant 0 : i32
    %0 = arith.cmpi eq, %arg1, %c0_i32 : i32
    %1 = arith.extui %0 : i1 to i32
    %c0_i32_0 = arith.constant 0 : i32
    %2 = arith.cmpi ne, %1, %c0_i32_0 : i32
    scf.if %2 {
      %c0_6 = arith.constant 0 : index
      %c0_7 = arith.constant 0 : index
      %8 = vector.load %arg3[%c0_6, %c0_7] : memref<64x128xbf16, #tpu.memory_space<vmem>>, vector<64x128xbf16>
      %9 = arith.extf %8 : vector<64x128xbf16> to vector<64x128xf32>
      %cst_8 = arith.constant dense<0.000000e+00> : vector<64xf32>
      %10 = vector.multi_reduction <add>, %9, %cst_8 [1] : vector<64x128xf32> to vector<64xf32>
      %11 = vector.shape_cast %10 : vector<64xf32> to vector<64x1xf32>
      %cst_9 = arith.constant 1.280000e+02 : f32
      %12 = vector.broadcast %cst_9 : f32 to vector<64x1xf32>
      %13 = arith.divf %11, %12 : vector<64x1xf32>
      %14 = vector.broadcast %13 : vector<64x1xf32> to vector<64x128xf32>
      %15 = arith.subf %9, %14 : vector<64x128xf32>
      %16 = arith.mulf %15, %15 : vector<64x128xf32>
      %cst_10 = arith.constant dense<0.000000e+00> : vector<64xf32>
      %17 = vector.multi_reduction <add>, %16, %cst_10 [1] : vector<64x128xf32> to vector<64xf32>
      %18 = vector.shape_cast %17 : vector<64xf32> to vector<64x1xf32>
      %cst_11 = arith.constant 1.280000e+02 : f32
      %19 = vector.broadcast %cst_11 : f32 to vector<64x1xf32>
      %20 = arith.divf %18, %19 : vector<64x1xf32>
      %cst_12 = arith.constant 9.99999974E-6 : f32
      %21 = vector.broadcast %cst_12 : f32 to vector<64x1xf32>
      %22 = arith.addf %20, %21 : vector<64x1xf32>
      %23 = math.rsqrt %22 : vector<64x1xf32>
      %24 = vector.broadcast %23 : vector<64x1xf32> to vector<64x128xf32>
      %25 = arith.mulf %15, %24 : vector<64x128xf32>
      %c0_13 = arith.constant 0 : index
      %c0_14 = arith.constant 0 : index
      %26 = vector.load %arg5[%c0_13, %c0_14] : memref<1x128xf32, #tpu.memory_space<vmem>>, vector<1x128xf32>
      %27 = vector.broadcast %26 : vector<1x128xf32> to vector<64x128xf32>
      %28 = arith.mulf %25, %27 : vector<64x128xf32>
      %c0_15 = arith.constant 0 : index
      %c0_16 = arith.constant 0 : index
      %29 = vector.load %arg6[%c0_15, %c0_16] : memref<1x128xf32, #tpu.memory_space<vmem>>, vector<1x128xf32>
      %30 = vector.broadcast %29 : vector<1x128xf32> to vector<64x128xf32>
      %31 = arith.addf %28, %30 : vector<64x128xf32>
      %32 = arith.truncf %31 : vector<64x128xf32> to vector<64x128xbf16>
      %c0_17 = arith.constant 0 : index
      %c0_18 = arith.constant 0 : index
      %33 = vector.load %arg8[%c0_17, %c0_18] : memref<64x128xbf16, #tpu.memory_space<vmem>>, vector<64x128xbf16>
      tpu.vector_store %arg8[%c0_17, %c0_18], %32 {strides = array<i32>} : memref<64x128xbf16, #tpu.memory_space<vmem>>, vector<64x128xbf16>,
    } else {
    }
    %c0 = arith.constant 0 : index
    %c0_1 = arith.constant 0 : index
    %3 = vector.load %arg8[%c0, %c0_1] : memref<64x128xbf16, #tpu.memory_space<vmem>>, vector<64x128xbf16>
    %c0_2 = arith.constant 0 : index
    %c0_3 = arith.constant 0 : index
    %4 = vector.load %arg4[%c0_2, %c0_3] : memref<128x256xbf16, #tpu.memory_space<vmem>>, vector<128x256xbf16>
    %cst = arith.constant dense<0.000000e+00> : vector<64x256xf32>
    %5 = tpu.matmul %3, %4, %cst {dimension_numbers = #tpu.dot_dimension_numbers<[1], [0], [0], [1], [0, 0, 1, 1], [], []>} : vector<64x128xbf16>, vector<128x256xbf16>, vector<64x256xf32> -> vector<64x256xf32>
    %6 = arith.truncf %5 : vector<64x256xf32> to vector<64x256xbf16>
    %c0_4 = arith.constant 0 : index
    %c0_5 = arith.constant 0 : index
    %7 = vector.load %arg7[%c0_4, %c0_5] : memref<64x256xbf16, #tpu.memory_space<vmem>>, vector<64x256xbf16>
    tpu.vector_store %arg7[%c0_4, %c0_5], %6 {strides = array<i32>} : memref<64x256xbf16, #tpu.memory_space<vmem>>, vector<64x256xbf16>,
    return
  }
  func.func @transform_0(%arg0: i32, %arg1: i32, %arg2: i32) -> (i32, i32) {
    %c0_i32 = arith.constant 0 : i32
    return %arg0, %arg2 : i32, i32
  }
  func.func @transform_1(%arg0: i32, %arg1: i32, %arg2: i32) -> (i32, i32) {
    %c0_i32 = arith.constant 0 : i32
    return %arg2, %arg1 : i32, i32
  }
  func.func @transform_2(%arg0: i32, %arg1: i32, %arg2: i32) -> (i32, i32) {
    %c0_i32 = arith.constant 0 : i32
    %c0_i32_0 = arith.constant 0 : i32
    return %c0_i32, %arg2 : i32, i32
  }
  func.func @transform_3(%arg0: i32, %arg1: i32, %arg2: i32) -> (i32, i32) {
    %c0_i32 = arith.constant 0 : i32
    %c0_i32_0 = arith.constant 0 : i32
    return %c0_i32, %arg2 : i32, i32
  }
  func.func @transform_4(%arg0: i32, %arg1: i32, %arg2: i32) -> (i32, i32) {
    %c0_i32 = arith.constant 0 : i32
    return %arg0, %arg1 : i32, i32
  }
}

module attributes {stable_mosaic.version = 11 : i64} {
  func.func @_maxpool_kernel(%arg0: i32, %arg1: memref<1x8x8x128xbf16, #tpu.memory_space<vmem>>, %arg2: memref<1x8x8x128xbf16, #tpu.memory_space<vmem>>, %arg3: memref<1x8x8x128xbf16, #tpu.memory_space<vmem>>, %arg4: memref<1x8x8x128xbf16, #tpu.memory_space<vmem>>, %arg5: memref<1x8x8x128xbf16, #tpu.memory_space<vmem>>) attributes {dimension_semantics = [#tpu.dimension_semantics<parallel>], iteration_bounds = array<i64: 2>, scalar_prefetch = 0 : i64, scratch_operands = 0 : i64, tpu.core_type = #tpu.core_type<tc>, window_params = [{transform_indices = @transform_0, window_bounds = array<i64: 1, 8, 8, 128>}, {transform_indices = @transform_1, window_bounds = array<i64: 1, 8, 8, 128>}, {transform_indices = @transform_2, window_bounds = array<i64: 1, 8, 8, 128>}, {transform_indices = @transform_3, window_bounds = array<i64: 1, 8, 8, 128>}, {transform_indices = @transform_4, window_bounds = array<i64: 1, 8, 8, 128>}]} {
    %c0 = arith.constant 0 : index
    %c0_0 = arith.constant 0 : index
    %c0_1 = arith.constant 0 : index
    %c0_2 = arith.constant 0 : index
    %0 = vector.load %arg1[%c0, %c0_0, %c0_1, %c0_2] : memref<1x8x8x128xbf16, #tpu.memory_space<vmem>>, vector<1x8x8x128xbf16>
    %1 = vector.shape_cast %0 : vector<1x8x8x128xbf16> to vector<8x8x128xbf16>
    %c0_3 = arith.constant 0 : index
    %c0_4 = arith.constant 0 : index
    %c0_5 = arith.constant 0 : index
    %c0_6 = arith.constant 0 : index
    %2 = vector.load %arg2[%c0_3, %c0_4, %c0_5, %c0_6] : memref<1x8x8x128xbf16, #tpu.memory_space<vmem>>, vector<1x8x8x128xbf16>
    %3 = vector.shape_cast %2 : vector<1x8x8x128xbf16> to vector<8x8x128xbf16>
    %c0_7 = arith.constant 0 : index
    %c0_8 = arith.constant 0 : index
    %c0_9 = arith.constant 0 : index
    %c0_10 = arith.constant 0 : index
    %4 = vector.load %arg3[%c0_7, %c0_8, %c0_9, %c0_10] : memref<1x8x8x128xbf16, #tpu.memory_space<vmem>>, vector<1x8x8x128xbf16>
    %5 = vector.shape_cast %4 : vector<1x8x8x128xbf16> to vector<8x8x128xbf16>
    %c0_11 = arith.constant 0 : index
    %c0_12 = arith.constant 0 : index
    %c0_13 = arith.constant 0 : index
    %c0_14 = arith.constant 0 : index
    %6 = vector.load %arg4[%c0_11, %c0_12, %c0_13, %c0_14] : memref<1x8x8x128xbf16, #tpu.memory_space<vmem>>, vector<1x8x8x128xbf16>
    %7 = vector.shape_cast %6 : vector<1x8x8x128xbf16> to vector<8x8x128xbf16>
    %8 = vector.extract_strided_slice %3 {offsets = [0, 0, 0], sizes = [8, 1, 128], strides = [1, 1, 1]} : vector<8x8x128xbf16> to vector<8x1x128xbf16>
    %9 = vector.extract_strided_slice %3 {offsets = [0, 0, 0], sizes = [8, 7, 128], strides = [1, 1, 1]} : vector<8x8x128xbf16> to vector<8x7x128xbf16>
    %10 = tpu.concatenate %8, %9 in 1 : vector<8x1x128xbf16>, vector<8x7x128xbf16> -> vector<8x8x128xbf16>
    %11 = vector.extract_strided_slice %7 {offsets = [0, 0, 0], sizes = [8, 1, 128], strides = [1, 1, 1]} : vector<8x8x128xbf16> to vector<8x1x128xbf16>
    %12 = vector.extract_strided_slice %7 {offsets = [0, 0, 0], sizes = [8, 7, 128], strides = [1, 1, 1]} : vector<8x8x128xbf16> to vector<8x7x128xbf16>
    %13 = tpu.concatenate %11, %12 in 1 : vector<8x1x128xbf16>, vector<8x7x128xbf16> -> vector<8x8x128xbf16>
    %14 = arith.maximumf %1, %3 : vector<8x8x128xbf16>
    %15 = arith.maximumf %14, %10 : vector<8x8x128xbf16>
    %16 = arith.maximumf %5, %7 : vector<8x8x128xbf16>
    %17 = arith.maximumf %16, %13 : vector<8x8x128xbf16>
    %18 = vector.extract_strided_slice %17 {offsets = [0, 0, 0], sizes = [1, 8, 128], strides = [1, 1, 1]} : vector<8x8x128xbf16> to vector<1x8x128xbf16>
    %19 = vector.extract_strided_slice %17 {offsets = [0, 0, 0], sizes = [7, 8, 128], strides = [1, 1, 1]} : vector<8x8x128xbf16> to vector<7x8x128xbf16>
    %20 = tpu.concatenate %18, %19 in 0 : vector<1x8x128xbf16>, vector<7x8x128xbf16> -> vector<8x8x128xbf16>
    %21 = arith.maximumf %15, %17 : vector<8x8x128xbf16>
    %22 = arith.maximumf %21, %20 : vector<8x8x128xbf16>
    %c0_15 = arith.constant 0 : index
    %c0_16 = arith.constant 0 : index
    %c0_17 = arith.constant 0 : index
    %c0_18 = arith.constant 0 : index
    %23 = vector.load %arg5[%c0_15, %c0_16, %c0_17, %c0_18] : memref<1x8x8x128xbf16, #tpu.memory_space<vmem>>, vector<1x8x8x128xbf16>
    %24 = vector.shape_cast %23 : vector<1x8x8x128xbf16> to vector<8x8x128xbf16>
    %25 = vector.shape_cast %22 : vector<8x8x128xbf16> to vector<1x8x8x128xbf16>
    tpu.vector_store %arg5[%c0_15, %c0_16, %c0_17, %c0_18], %25 {strides = array<i32>} : memref<1x8x8x128xbf16, #tpu.memory_space<vmem>>, vector<1x8x8x128xbf16>,
    return
  }
  func.func @transform_0(%arg0: i32) -> (i32, i32, i32, i32) {
    %c0_i32 = arith.constant 0 : i32
    %c0_i32_0 = arith.constant 0 : i32
    %c0_i32_1 = arith.constant 0 : i32
    %c0_i32_2 = arith.constant 0 : i32
    return %arg0, %c0_i32, %c0_i32_0, %c0_i32_1 : i32, i32, i32, i32
  }
  func.func @transform_1(%arg0: i32) -> (i32, i32, i32, i32) {
    %c0_i32 = arith.constant 0 : i32
    %c0_i32_0 = arith.constant 0 : i32
    %c0_i32_1 = arith.constant 0 : i32
    %c0_i32_2 = arith.constant 0 : i32
    return %arg0, %c0_i32, %c0_i32_0, %c0_i32_1 : i32, i32, i32, i32
  }
  func.func @transform_2(%arg0: i32) -> (i32, i32, i32, i32) {
    %c0_i32 = arith.constant 0 : i32
    %c0_i32_0 = arith.constant 0 : i32
    %c0_i32_1 = arith.constant 0 : i32
    %c0_i32_2 = arith.constant 0 : i32
    return %arg0, %c0_i32, %c0_i32_0, %c0_i32_1 : i32, i32, i32, i32
  }
  func.func @transform_3(%arg0: i32) -> (i32, i32, i32, i32) {
    %c0_i32 = arith.constant 0 : i32
    %c0_i32_0 = arith.constant 0 : i32
    %c0_i32_1 = arith.constant 0 : i32
    %c0_i32_2 = arith.constant 0 : i32
    return %arg0, %c0_i32, %c0_i32_0, %c0_i32_1 : i32, i32, i32, i32
  }
  func.func @transform_4(%arg0: i32) -> (i32, i32, i32, i32) {
    %c0_i32 = arith.constant 0 : i32
    %c0_i32_0 = arith.constant 0 : i32
    %c0_i32_1 = arith.constant 0 : i32
    %c0_i32_2 = arith.constant 0 : i32
    return %arg0, %c0_i32, %c0_i32_0, %c0_i32_1 : i32, i32, i32, i32
  }
}

module attributes {stable_mosaic.version = 11 : i64} {
  func.func @kernel(%arg0: i32, %arg1: i32, %arg2: i32, %arg3: memref<64x384xbf16, #tpu.memory_space<vmem>>, %arg4: memref<384x128xbf16, #tpu.memory_space<vmem>>, %arg5: memref<1x128xf32, #tpu.memory_space<vmem>>, %arg6: memref<64x128xf32, #tpu.memory_space<vmem>>) attributes {dimension_semantics = [#tpu.dimension_semantics<parallel>, #tpu.dimension_semantics<parallel>, #tpu.dimension_semantics<arbitrary>], iteration_bounds = array<i64: 2, 1, 1>, scalar_prefetch = 0 : i64, scratch_operands = 0 : i64, tpu.core_type = #tpu.core_type<tc>, window_params = [{transform_indices = @transform_0, window_bounds = array<i64: 64, 384>}, {transform_indices = @transform_1, window_bounds = array<i64: 384, 128>}, {transform_indices = @transform_2, window_bounds = array<i64: 1, 128>}, {transform_indices = @transform_3, window_bounds = array<i64: 64, 128>}]} {
    %c0 = arith.constant 0 : index
    %c0_0 = arith.constant 0 : index
    %0 = vector.load %arg3[%c0, %c0_0] : memref<64x384xbf16, #tpu.memory_space<vmem>>, vector<64x384xbf16>
    %c0_1 = arith.constant 0 : index
    %c0_2 = arith.constant 0 : index
    %1 = vector.load %arg4[%c0_1, %c0_2] : memref<384x128xbf16, #tpu.memory_space<vmem>>, vector<384x128xbf16>
    %cst = arith.constant dense<0.000000e+00> : vector<64x128xf32>
    %2 = tpu.matmul %0, %1, %cst {dimension_numbers = #tpu.dot_dimension_numbers<[1], [0], [0], [1], [0, 0, 1, 1], [], []>} : vector<64x384xbf16>, vector<384x128xbf16>, vector<64x128xf32> -> vector<64x128xf32>
    %c0_3 = arith.constant 0 : index
    %c0_4 = arith.constant 0 : index
    %3 = vector.load %arg5[%c0_3, %c0_4] : memref<1x128xf32, #tpu.memory_space<vmem>>, vector<1x128xf32>
    %4 = vector.broadcast %3 : vector<1x128xf32> to vector<64x128xf32>
    %5 = arith.addf %2, %4 : vector<64x128xf32>
    %c0_5 = arith.constant 0 : index
    %c0_6 = arith.constant 0 : index
    %6 = vector.load %arg6[%c0_5, %c0_6] : memref<64x128xf32, #tpu.memory_space<vmem>>, vector<64x128xf32>
    tpu.vector_store %arg6[%c0_5, %c0_6], %5 {strides = array<i32>} : memref<64x128xf32, #tpu.memory_space<vmem>>, vector<64x128xf32>,
    return
  }
  func.func @transform_0(%arg0: i32, %arg1: i32, %arg2: i32) -> (i32, i32) {
    %c0_i32 = arith.constant 0 : i32
    return %arg0, %arg2 : i32, i32
  }
  func.func @transform_1(%arg0: i32, %arg1: i32, %arg2: i32) -> (i32, i32) {
    %c0_i32 = arith.constant 0 : i32
    return %arg2, %arg1 : i32, i32
  }
  func.func @transform_2(%arg0: i32, %arg1: i32, %arg2: i32) -> (i32, i32) {
    %c0_i32 = arith.constant 0 : i32
    %c0_i32_0 = arith.constant 0 : i32
    return %c0_i32, %arg1 : i32, i32
  }
  func.func @transform_3(%arg0: i32, %arg1: i32, %arg2: i32) -> (i32, i32) {
    %c0_i32 = arith.constant 0 : i32
    return %arg0, %arg1 : i32, i32
  }
}

module attributes {stable_mosaic.version = 11 : i64} {
  func.func @kernel(%arg0: i32, %arg1: i32, %arg2: i32, %arg3: memref<64x128xf32, #tpu.memory_space<vmem>>, %arg4: memref<128x512xbf16, #tpu.memory_space<vmem>>, %arg5: memref<1x512xf32, #tpu.memory_space<vmem>>, %arg6: memref<1x128xf32, #tpu.memory_space<vmem>>, %arg7: memref<1x128xf32, #tpu.memory_space<vmem>>, %arg8: memref<64x512xbf16, #tpu.memory_space<vmem>>, %arg9: memref<64x128xbf16, #tpu.memory_space<vmem>>) attributes {dimension_semantics = [#tpu.dimension_semantics<parallel>, #tpu.dimension_semantics<arbitrary>, #tpu.dimension_semantics<arbitrary>], iteration_bounds = array<i64: 2, 1, 1>, scalar_prefetch = 0 : i64, scratch_operands = 1 : i64, tpu.core_type = #tpu.core_type<tc>, window_params = [{transform_indices = @transform_0, window_bounds = array<i64: 64, 128>}, {transform_indices = @transform_1, window_bounds = array<i64: 128, 512>}, {transform_indices = @transform_2, window_bounds = array<i64: 1, 512>}, {transform_indices = @transform_3, window_bounds = array<i64: 1, 128>}, {transform_indices = @transform_4, window_bounds = array<i64: 1, 128>}, {transform_indices = @transform_5, window_bounds = array<i64: 64, 512>}]} {
    %c0_i32 = arith.constant 0 : i32
    %0 = arith.cmpi eq, %arg1, %c0_i32 : i32
    %1 = arith.extui %0 : i1 to i32
    %c0_i32_0 = arith.constant 0 : i32
    %2 = arith.cmpi ne, %1, %c0_i32_0 : i32
    scf.if %2 {
      %c0_12 = arith.constant 0 : index
      %c0_13 = arith.constant 0 : index
      %24 = vector.load %arg3[%c0_12, %c0_13] : memref<64x128xf32, #tpu.memory_space<vmem>>, vector<64x128xf32>
      %cst_14 = arith.constant dense<0.000000e+00> : vector<64xf32>
      %25 = vector.multi_reduction <add>, %24, %cst_14 [1] : vector<64x128xf32> to vector<64xf32>
      %26 = vector.shape_cast %25 : vector<64xf32> to vector<64x1xf32>
      %cst_15 = arith.constant 1.280000e+02 : f32
      %27 = vector.broadcast %cst_15 : f32 to vector<64x1xf32>
      %28 = arith.divf %26, %27 : vector<64x1xf32>
      %29 = vector.broadcast %28 : vector<64x1xf32> to vector<64x128xf32>
      %30 = arith.subf %24, %29 : vector<64x128xf32>
      %31 = arith.mulf %30, %30 : vector<64x128xf32>
      %cst_16 = arith.constant dense<0.000000e+00> : vector<64xf32>
      %32 = vector.multi_reduction <add>, %31, %cst_16 [1] : vector<64x128xf32> to vector<64xf32>
      %33 = vector.shape_cast %32 : vector<64xf32> to vector<64x1xf32>
      %cst_17 = arith.constant 1.280000e+02 : f32
      %34 = vector.broadcast %cst_17 : f32 to vector<64x1xf32>
      %35 = arith.divf %33, %34 : vector<64x1xf32>
      %cst_18 = arith.constant 9.99999974E-6 : f32
      %36 = vector.broadcast %cst_18 : f32 to vector<64x1xf32>
      %37 = arith.addf %35, %36 : vector<64x1xf32>
      %38 = math.rsqrt %37 : vector<64x1xf32>
      %39 = vector.broadcast %38 : vector<64x1xf32> to vector<64x128xf32>
      %40 = arith.mulf %30, %39 : vector<64x128xf32>
      %c0_19 = arith.constant 0 : index
      %c0_20 = arith.constant 0 : index
      %41 = vector.load %arg6[%c0_19, %c0_20] : memref<1x128xf32, #tpu.memory_space<vmem>>, vector<1x128xf32>
      %42 = vector.broadcast %41 : vector<1x128xf32> to vector<64x128xf32>
      %43 = arith.mulf %40, %42 : vector<64x128xf32>
      %c0_21 = arith.constant 0 : index
      %c0_22 = arith.constant 0 : index
      %44 = vector.load %arg7[%c0_21, %c0_22] : memref<1x128xf32, #tpu.memory_space<vmem>>, vector<1x128xf32>
      %45 = vector.broadcast %44 : vector<1x128xf32> to vector<64x128xf32>
      %46 = arith.addf %43, %45 : vector<64x128xf32>
      %47 = arith.truncf %46 : vector<64x128xf32> to vector<64x128xbf16>
      %c0_23 = arith.constant 0 : index
      %c0_24 = arith.constant 0 : index
      %48 = vector.load %arg9[%c0_23, %c0_24] : memref<64x128xbf16, #tpu.memory_space<vmem>>, vector<64x128xbf16>
      tpu.vector_store %arg9[%c0_23, %c0_24], %47 {strides = array<i32>} : memref<64x128xbf16, #tpu.memory_space<vmem>>, vector<64x128xbf16>,
    } else {
    }
    %c0 = arith.constant 0 : index
    %c0_1 = arith.constant 0 : index
    %3 = vector.load %arg9[%c0, %c0_1] : memref<64x128xbf16, #tpu.memory_space<vmem>>, vector<64x128xbf16>
    %c0_2 = arith.constant 0 : index
    %c0_3 = arith.constant 0 : index
    %4 = vector.load %arg4[%c0_2, %c0_3] : memref<128x512xbf16, #tpu.memory_space<vmem>>, vector<128x512xbf16>
    %cst = arith.constant dense<0.000000e+00> : vector<64x512xf32>
    %5 = tpu.matmul %3, %4, %cst {dimension_numbers = #tpu.dot_dimension_numbers<[1], [0], [0], [1], [0, 0, 1, 1], [], []>} : vector<64x128xbf16>, vector<128x512xbf16>, vector<64x512xf32> -> vector<64x512xf32>
    %c0_4 = arith.constant 0 : index
    %c0_5 = arith.constant 0 : index
    %6 = vector.load %arg5[%c0_4, %c0_5] : memref<1x512xf32, #tpu.memory_space<vmem>>, vector<1x512xf32>
    %7 = vector.broadcast %6 : vector<1x512xf32> to vector<64x512xf32>
    %8 = arith.addf %5, %7 : vector<64x512xf32>
    %cst_6 = arith.constant 5.000000e-01 : f32
    %9 = vector.broadcast %cst_6 : f32 to vector<64x512xf32>
    %10 = arith.mulf %9, %8 : vector<64x512xf32>
    %cst_7 = arith.constant 4.471500e-02 : f32
    %11 = vector.broadcast %cst_7 : f32 to vector<64x512xf32>
    %12 = arith.mulf %11, %8 : vector<64x512xf32>
    %13 = arith.mulf %12, %8 : vector<64x512xf32>
    %14 = arith.mulf %13, %8 : vector<64x512xf32>
    %15 = arith.addf %8, %14 : vector<64x512xf32>
    %cst_8 = arith.constant 0.797884583 : f32
    %16 = vector.broadcast %cst_8 : f32 to vector<64x512xf32>
    %17 = arith.mulf %16, %15 : vector<64x512xf32>
    %18 = math.tanh %17 : vector<64x512xf32>
    %cst_9 = arith.constant 1.000000e+00 : f32
    %19 = vector.broadcast %cst_9 : f32 to vector<64x512xf32>
    %20 = arith.addf %19, %18 : vector<64x512xf32>
    %21 = arith.mulf %10, %20 : vector<64x512xf32>
    %22 = arith.truncf %21 : vector<64x512xf32> to vector<64x512xbf16>
    %c0_10 = arith.constant 0 : index
    %c0_11 = arith.constant 0 : index
    %23 = vector.load %arg8[%c0_10, %c0_11] : memref<64x512xbf16, #tpu.memory_space<vmem>>, vector<64x512xbf16>
    tpu.vector_store %arg8[%c0_10, %c0_11], %22 {strides = array<i32>} : memref<64x512xbf16, #tpu.memory_space<vmem>>, vector<64x512xbf16>,
    return
  }
  func.func @transform_0(%arg0: i32, %arg1: i32, %arg2: i32) -> (i32, i32) {
    %c0_i32 = arith.constant 0 : i32
    return %arg0, %arg2 : i32, i32
  }
  func.func @transform_1(%arg0: i32, %arg1: i32, %arg2: i32) -> (i32, i32) {
    %c0_i32 = arith.constant 0 : i32
    return %arg2, %arg1 : i32, i32
  }
  func.func @transform_2(%arg0: i32, %arg1: i32, %arg2: i32) -> (i32, i32) {
    %c0_i32 = arith.constant 0 : i32
    %c0_i32_0 = arith.constant 0 : i32
    return %c0_i32, %arg1 : i32, i32
  }
  func.func @transform_3(%arg0: i32, %arg1: i32, %arg2: i32) -> (i32, i32) {
    %c0_i32 = arith.constant 0 : i32
    %c0_i32_0 = arith.constant 0 : i32
    return %c0_i32, %arg2 : i32, i32
  }
  func.func @transform_4(%arg0: i32, %arg1: i32, %arg2: i32) -> (i32, i32) {
    %c0_i32 = arith.constant 0 : i32
    %c0_i32_0 = arith.constant 0 : i32
    return %c0_i32, %arg2 : i32, i32
  }
  func.func @transform_5(%arg0: i32, %arg1: i32, %arg2: i32) -> (i32, i32) {
    %c0_i32 = arith.constant 0 : i32
    return %arg0, %arg1 : i32, i32
  }
}

module attributes {stable_mosaic.version = 11 : i64} {
  func.func @kernel(%arg0: i32, %arg1: i32, %arg2: i32, %arg3: memref<64x512xbf16, #tpu.memory_space<vmem>>, %arg4: memref<512x128xbf16, #tpu.memory_space<vmem>>, %arg5: memref<1x128xf32, #tpu.memory_space<vmem>>, %arg6: memref<64x128xf32, #tpu.memory_space<vmem>>, %arg7: memref<64x128xf32, #tpu.memory_space<vmem>>) attributes {dimension_semantics = [#tpu.dimension_semantics<parallel>, #tpu.dimension_semantics<parallel>, #tpu.dimension_semantics<arbitrary>], iteration_bounds = array<i64: 2, 1, 1>, scalar_prefetch = 0 : i64, scratch_operands = 0 : i64, tpu.core_type = #tpu.core_type<tc>, window_params = [{transform_indices = @transform_0, window_bounds = array<i64: 64, 512>}, {transform_indices = @transform_1, window_bounds = array<i64: 512, 128>}, {transform_indices = @transform_2, window_bounds = array<i64: 1, 128>}, {transform_indices = @transform_3, window_bounds = array<i64: 64, 128>}, {transform_indices = @transform_4, window_bounds = array<i64: 64, 128>}]} {
    %c0 = arith.constant 0 : index
    %c0_0 = arith.constant 0 : index
    %0 = vector.load %arg3[%c0, %c0_0] : memref<64x512xbf16, #tpu.memory_space<vmem>>, vector<64x512xbf16>
    %c0_1 = arith.constant 0 : index
    %c0_2 = arith.constant 0 : index
    %1 = vector.load %arg4[%c0_1, %c0_2] : memref<512x128xbf16, #tpu.memory_space<vmem>>, vector<512x128xbf16>
    %cst = arith.constant dense<0.000000e+00> : vector<64x128xf32>
    %2 = tpu.matmul %0, %1, %cst {dimension_numbers = #tpu.dot_dimension_numbers<[1], [0], [0], [1], [0, 0, 1, 1], [], []>} : vector<64x512xbf16>, vector<512x128xbf16>, vector<64x128xf32> -> vector<64x128xf32>
    %c0_3 = arith.constant 0 : index
    %c0_4 = arith.constant 0 : index
    %3 = vector.load %arg5[%c0_3, %c0_4] : memref<1x128xf32, #tpu.memory_space<vmem>>, vector<1x128xf32>
    %4 = vector.broadcast %3 : vector<1x128xf32> to vector<64x128xf32>
    %5 = arith.addf %2, %4 : vector<64x128xf32>
    %c0_5 = arith.constant 0 : index
    %c0_6 = arith.constant 0 : index
    %6 = vector.load %arg6[%c0_5, %c0_6] : memref<64x128xf32, #tpu.memory_space<vmem>>, vector<64x128xf32>
    %7 = arith.addf %5, %6 : vector<64x128xf32>
    %c0_7 = arith.constant 0 : index
    %c0_8 = arith.constant 0 : index
    %8 = vector.load %arg7[%c0_7, %c0_8] : memref<64x128xf32, #tpu.memory_space<vmem>>, vector<64x128xf32>
    tpu.vector_store %arg7[%c0_7, %c0_8], %7 {strides = array<i32>} : memref<64x128xf32, #tpu.memory_space<vmem>>, vector<64x128xf32>,
    return
  }
  func.func @transform_0(%arg0: i32, %arg1: i32, %arg2: i32) -> (i32, i32) {
    %c0_i32 = arith.constant 0 : i32
    return %arg0, %arg2 : i32, i32
  }
  func.func @transform_1(%arg0: i32, %arg1: i32, %arg2: i32) -> (i32, i32) {
    %c0_i32 = arith.constant 0 : i32
    return %arg2, %arg1 : i32, i32
  }
  func.func @transform_2(%arg0: i32, %arg1: i32, %arg2: i32) -> (i32, i32) {
    %c0_i32 = arith.constant 0 : i32
    %c0_i32_0 = arith.constant 0 : i32
    return %c0_i32, %arg1 : i32, i32
  }
  func.func @transform_3(%arg0: i32, %arg1: i32, %arg2: i32) -> (i32, i32) {
    %c0_i32 = arith.constant 0 : i32
    return %arg0, %arg1 : i32, i32
  }
  func.func @transform_4(%arg0: i32, %arg1: i32, %arg2: i32) -> (i32, i32) {
    %c0_i32 = arith.constant 0 : i32
    return %arg0, %arg1 : i32, i32
  }
}

</mosaic_0001>

<llo_original>
// kernel: _lambda_.9
$region0: #{_lambda_.9}
  #allocation0 [shape = 'u32[]', space=smem, size = 0x4, offset = 0x4, fixed_abs, tag = 'smem constant byte address 0x4 - core index']
  #allocation1 [shape = 'u32[72,128]{1,0:T(1,128)}', space=vmem, size = 0x9000, scoped, tag = 'internal scratch']
  %s0 = inlined_call_operand.vmem [shape: bf16[128,384], index: 0, kind: input, shape index: {}]
  %s1 = inlined_call_operand.vmem [shape: bf16[384,128], index: 1, kind: input, shape index: {}]
  %s2 = inlined_call_operand.vmem [shape: f32[1,128], index: 2, kind: input, shape index: {}]
  %s3 = inlined_call_operand.vmem [shape: f32[128,128], index: 3, kind: output, shape index: {}]
  %s4 = sld [smem:[#allocation0]]
  $region45: #{_lambda_.9} parent=0
    _
  %s6 = ssub.s32 1, %s4
  %s7 = scalar_select 0, %s6, %s4
  loop: start=0, step=1, limit=4
  $region2: #{_lambda_.9} parent=0 // loop_pre_header
    _
  $region3: #{_lambda_.9} parent=0 // loop_header
    %s9 = sphi 0, %s13
    %p10 = scmp.ge.s32.totalorder %s9, 4
    %s16 = sphi 0, %s35
    %s17 = sphi 0, %s31
    %s18 = sphi 0, %s27
    %s19 = sphi 0, %s16
    %s20 = sphi 0, %s17
    %s21 = sphi 0, %s18
    %s22 = sphi 0, %s19
    %s23 = sphi 0, %s20
    %s24 = sphi 0, %s21
    %s40 = sphi 0, %s42
    %s43 = sphi 0, %s40
    %s44 = sphi 0, %s43
    %s60 = sphi 0, %s44
    %s68 = sphi 0, %s70
    %s71 = sphi 0, %s68
    %s72 = sphi 0, %s71
    %s88 = sphi 0, %s72
    %s94 = sphi 0, %s96
    %s97 = sphi 0, %s94
    %s98 = sphi 0, %s97
    %s114 = sphi 0, %s98
    %s122 = sphi 0, %s124
    %s125 = sphi 0, %s122
    %s126 = sphi 0, %s125
    %s142 = sphi 0, %s126
  $region4: #{_lambda_.9} parent=0 // loop_header_branch
    %12 = sbr.rel (%p10) target = $region8
  $region5: #{_lambda_.9} parent=0 // loop_body
    %s14 = ssub.s32 %s9, 1
    %s15 = ssub.s32 %s9, 2
    %s25 = sadd.s32 1, %s18
    %p26 = scmp.ge.s32.totalorder %s25, 1
    %s27 = scalar_select %p26, 0, %s25
    %s28 = sadd.s32 1, %s17
    %s29 = scalar_select %p26, %s28, %s17
    %p30 = scmp.ge.s32.totalorder %s29, 1
    %s31 = scalar_select %p30, 0, %s29
    %s32 = sadd.s32 1, %s16
    %s33 = scalar_select %p30, %s32, %s16
    %p34 = scmp.ge.s32.totalorder %s33, 2
    %s35 = scalar_select %p34, 0, %s33
    %s36 = ssub.s32 %s16, %s35
    %s37 = ssub.s32 %s18, %s27
    %s38 = sor.u32 %s36, %s37
    %p39 = scmp.eq.s32.totalorder %s38, 0
    %s41 = sadd.s32 %s40, 1
    %s42 = scalar_select %p39, %s40, %s41
    %p45 = pneg %p39
    %p46 = scmp.eq.s32.totalorder %s9, 1
    %p47 = por %p45, %p46
    %p48 = scmp.ne.s32.totalorder %s40, %s43
    %p49 = scmp.eq.s32.totalorder %s9, 0
    %p50 = por %p48, %p49
    %p51 = scmp.ne.s32.totalorder %s40, %s43
    %p52 = scmp.eq.s32.totalorder %s14, 1
    %p53 = por %p51, %p52
    %p54 = scmp.ne.s32.totalorder %s43, %s44
    %p55 = scmp.eq.s32.totalorder %s14, 0
    %p56 = por %p54, %p55
    %p57 = scmp.ne.s32.totalorder %s43, %s44
    %p58 = scmp.eq.s32.totalorder %s15, 1
    %p59 = por %p57, %p58
    %p61 = scmp.ne.s32.totalorder %s44, %s60
    %p62 = scmp.eq.s32.totalorder %s15, 0
    %p63 = por %p61, %p62
    %s64 = ssub.s32 %s18, %s27
    %s65 = ssub.s32 %s17, %s31
    %s66 = sor.u32 %s64, %s65
    %p67 = scmp.eq.s32.totalorder %s66, 0
    %s69 = sadd.s32 %s68, 1
    %s70 = scalar_select %p67, %s68, %s69
    %p73 = pneg %p67
    %p74 = scmp.eq.s32.totalorder %s9, 1
    %p75 = por %p73, %p74
    %p76 = scmp.ne.s32.totalorder %s68, %s71
    %p77 = scmp.eq.s32.totalorder %s9, 0
    %p78 = por %p76, %p77
    %p79 = scmp.ne.s32.totalorder %s68, %s71
    %p80 = scmp.eq.s32.totalorder %s14, 1
    %p81 = por %p79, %p80
    %p82 = scmp.ne.s32.totalorder %s71, %s72
    %p83 = scmp.eq.s32.totalorder %s14, 0
    %p84 = por %p82, %p83
    %p85 = scmp.ne.s32.totalorder %s71, %s72
    %p86 = scmp.eq.s32.totalorder %s15, 1
    %p87 = por %p85, %p86
    %p89 = scmp.ne.s32.totalorder %s72, %s88
    %p90 = scmp.eq.s32.totalorder %s15, 0
    %p91 = por %p89, %p90
    %s92 = ssub.s32 %s17, %s31
    %p93 = scmp.eq.s32.totalorder %s92, 0
    %s95 = sadd.s32 %s94, 1
    %s96 = scalar_select %p93, %s94, %s95
    %p99 = pneg %p93
    %p100 = scmp.eq.s32.totalorder %s9, 1
    %p101 = por %p99, %p100
    %p102 = scmp.ne.s32.totalorder %s94, %s97
    %p103 = scmp.eq.s32.totalorder %s9, 0
    %p104 = por %p102, %p103
    %p105 = scmp.ne.s32.totalorder %s94, %s97
    %p106 = scmp.eq.s32.totalorder %s14, 1
    %p107 = por %p105, %p106
    %p108 = scmp.ne.s32.totalorder %s97, %s98
    %p109 = scmp.eq.s32.totalorder %s14, 0
    %p110 = por %p108, %p109
    %p111 = scmp.ne.s32.totalorder %s97, %s98
    %p112 = scmp.eq.s32.totalorder %s15, 1
    %p113 = por %p111, %p112
    %p115 = scmp.ne.s32.totalorder %s98, %s114
    %p116 = scmp.eq.s32.totalorder %s15, 0
    %p117 = por %p115, %p116
    %s118 = ssub.s32 %s16, %s35
    %s119 = ssub.s32 %s17, %s31
    %s120 = sor.u32 %s118, %s119
    %p121 = scmp.eq.s32.totalorder %s120, 0
    %s123 = sadd.s32 %s122, 1
    %s124 = scalar_select %p121, %s122, %s123
    %p127 = pneg %p121
    %p128 = scmp.eq.s32.totalorder %s9, 1
    %p129 = por %p127, %p128
    %p130 = scmp.ne.s32.totalorder %s122, %s125
    %p131 = scmp.eq.s32.totalorder %s9, 0
    %p132 = por %p130, %p131
    %p133 = scmp.ne.s32.totalorder %s122, %s125
    %p134 = scmp.eq.s32.totalorder %s14, 1
    %p135 = por %p133, %p134
    %p136 = scmp.ne.s32.totalorder %s125, %s126
    %p137 = scmp.eq.s32.totalorder %s14, 0
    %p138 = por %p136, %p137
    %p139 = scmp.ne.s32.totalorder %s125, %s126
    %p140 = scmp.eq.s32.totalorder %s15, 1
    %p141 = por %p139, %p140
    %p143 = scmp.ne.s32.totalorder %s126, %s142
    %p144 = scmp.eq.s32.totalorder %s15, 0
    %p145 = por %p143, %p144
    %p146 = scmp.le.s32.totalorder 1, %s9
    %p147 = scmp.lt.s32.totalorder %s9, 3
    %p148 = pnand %p146, %p147
    %p149 = pneg %p148
    // Predicated region
    $region9: #{_lambda_.9} parent=5 // pred_check
      _
    $region10: #{_lambda_.9} parent=5 // pred_check_branch
      %151 = sbr.rel (%p148) target = $region12
    $region11: #{_lambda_.9} parent=5 // pred_region
      %s152 = ssub.s32 %s9, 1
      // Predicated region
      $region13: #{_lambda_.9} parent=11 // pred_check
        %p153 = pneg %p84
      $region14: #{_lambda_.9} parent=11 // pred_check_branch
        %155 = sbr.rel (%p153) target = $region16
      $region15: #{_lambda_.9} parent=11 // pred_region
        %s156 = smul.u32 48, %s21
        %p157 = scmp.lt.s32.totalorder %s156, 47
        %s158 = scalar_select %p157, %s156, 47
        %p159 = scmp.lt.s32.totalorder %s20, 0
        %s160 = scalar_select %p159, %s20, 0
        %s161 = sadd.s32 %s160, %s158
        %s162 = smul.addr %s161, 4
        %s163 = scalar_lea.vmem %s1, %s162
        %s164 = smul.u32 48, %s21
      $region16: #{_lambda_.9} parent=11 // pred_fallthru
        _
      // Predicated region
      $region17: #{_lambda_.9} parent=11 // pred_check
        %p165 = pneg %p110
      $region18: #{_lambda_.9} parent=11 // pred_check_branch
        %167 = sbr.rel (%p165) target = $region20
      $region19: #{_lambda_.9} parent=11 // pred_region
        %p168 = scmp.lt.s32.totalorder %s20, 0
        %s169 = scalar_select %p168, %s20, 0
        %s170 = scalar_lea.vmem %s2, %s169
      $region20: #{_lambda_.9} parent=11 // pred_fallthru
        _
    $region12: #{_lambda_.9} parent=5 // pred_fallthru
      _
    %p171 = scmp.lt.s32.totalorder %s9, 2
    // Predicated region
    $region21: #{_lambda_.9} parent=5 // pred_check
      %p172 = pneg %p171
    $region22: #{_lambda_.9} parent=5 // pred_check_branch
      %174 = sbr.rel (%p172) target = $region24
    $region23: #{_lambda_.9} parent=5 // pred_region
      // Predicated region
      $region25: #{_lambda_.9} parent=23 // pred_check
        %p175 = pneg %p50
      $region26: #{_lambda_.9} parent=23 // pred_check_branch
        %177 = sbr.rel (%p175) target = $region28
      $region27: #{_lambda_.9} parent=23 // pred_region
        %s178 = smul.u32 8, %s16
        %s179 = smul.u32 3, %s18
        %p180 = scmp.lt.s32.totalorder %s178, 15
        %s181 = scalar_select %p180, %s178, 15
        %p182 = scmp.lt.s32.totalorder %s179, 2
        %s183 = scalar_select %p182, %s179, 2
        %s184 = smul.addr %s181, 3
        %s185 = sadd.s32 %s183, %s184
        %s186 = smul.addr %s185, 4
        %s187 = scalar_lea.vmem %s0, %s186
        %s188 = smul.u32 8, %s16
        %s189 = smul.u32 3, %s18
      $region28: #{_lambda_.9} parent=23 // pred_fallthru
        _
    $region24: #{_lambda_.9} parent=5 // pred_fallthru
      _
    %p190 = scmp.le.s32.totalorder 1, %s9
    %p191 = scmp.lt.s32.totalorder %s9, 3
    %p192 = pnand %p190, %p191
    %p193 = pneg %p192
    // Predicated region
    $region29: #{_lambda_.9} parent=5 // pred_check
      _
    $region30: #{_lambda_.9} parent=5 // pred_check_branch
      %195 = sbr.rel (%p192) target = $region32
    $region31: #{_lambda_.9} parent=5 // pred_region
      %s196 = ssub.s32 %s9, 1
      %s197 = smul.u32 8, %s19
      %s198 = smul.u32 3, %s21
      %p199 = scmp.lt.s32.totalorder %s197, 15
      %s200 = scalar_select %p199, %s197, 15
      %p201 = scmp.lt.s32.totalorder %s198, 2
      %s202 = scalar_select %p201, %s198, 2
      %s203 = smul.addr %s200, 3
      %s204 = sadd.s32 %s202, %s203
      %s205 = smul.addr %s204, 4
      %s206 = scalar_lea.vmem %s0, %s205
      %p207 = pneg %p56
      %p208 = pneg %p53
      %s209 = smul.u32 48, %s21
      %p210 = scmp.lt.s32.totalorder %s209, 47
      %s211 = scalar_select %p210, %s209, 47
      %p212 = scmp.lt.s32.totalorder %s20, 0
      %s213 = scalar_select %p212, %s20, 0
      %s214 = sadd.s32 %s213, %s211
      %s215 = smul.addr %s214, 4
      %s216 = scalar_lea.vmem %s1, %s215
      %p217 = pneg %p84
      %p218 = pneg %p81
      %p219 = scmp.lt.s32.totalorder %s20, 0
      %s220 = scalar_select %p219, %s20, 0
      %s221 = scalar_lea.vmem %s2, %s220
      %p222 = pneg %p110
      %p223 = pneg %p107
      %p224 = pneg %p138
      %p225 = pneg %p135
      %s226 = smul.u32 8, %s19
      %p227 = scmp.lt.s32.totalorder %s226, 15
      %s228 = scalar_select %p227, %s226, 15
      %p229 = scmp.lt.s32.totalorder %s20, 0
      %s230 = scalar_select %p229, %s20, 0
      %s231 = sadd.s32 %s230, %s228
      %s232 = smul.addr %s231, 8
      %s233 = scalar_lea.vmem %s3, %s232
      %s234 = smul.u32 8, %s19
      %s235 = smul.u32 3, %s21
      %p236 = scmp.lt.s32.totalorder %s234, 15
      %s237 = scalar_select %p236, %s234, 15
      %p238 = scmp.lt.s32.totalorder %s235, 2
      %s239 = scalar_select %p238, %s235, 2
      %s240 = smul.addr %s237, 3
      %s241 = sadd.s32 %s239, %s240
      %s242 = smul.addr %s241, 4
      %s243 = scalar_lea.vmem %s0, %s242
      %s244 = smul.u32 8, %s19
      %s245 = smul.u32 3, %s21
      %s246 = smul.u32 48, %s21
      %p247 = scmp.lt.s32.totalorder %s246, 47
      %s248 = scalar_select %p247, %s246, 47
      %p249 = scmp.lt.s32.totalorder %s20, 0
      %s250 = scalar_select %p249, %s20, 0
      %s251 = sadd.s32 %s250, %s248
      %s252 = smul.addr %s251, 4
      %s253 = scalar_lea.vmem %s1, %s252
      %s254 = smul.u32 48, %s21
      %p255 = scmp.lt.s32.totalorder %s20, 0
      %s256 = scalar_select %p255, %s20, 0
      %s257 = scalar_lea.vmem %s2, %s256
      %s258 = smul.u32 8, %s19
      %p259 = scmp.lt.s32.totalorder %s258, 15
      %s260 = scalar_select %p259, %s258, 15
      %p261 = scmp.lt.s32.totalorder %s20, 0
      %s262 = scalar_select %p261, %s20, 0
      %s263 = sadd.s32 %s262, %s260
      %s264 = smul.addr %s263, 8
      %s265 = scalar_lea.vmem %s3, %s264
      %s266 = smul.u32 8, %s19
      %v267 = vld [vmem:[%s243] sm:$0xff]
      %v268 = vld [vmem:[%s243 + $0x8] sm:$0xf]
      %v269 = vld [vmem:[%s243 + $0xc] sm:$0xff]
      %v270 = vld [vmem:[%s243 + $0x14] sm:$0xf]
      %v271 = vld [vmem:[%s243 + $0x18] sm:$0xff]
      %v272 = vld [vmem:[%s243 + $0x20] sm:$0xf]
      %v273 = vld [vmem:[%s243 + $0x24] sm:$0xff]
      %v274 = vld [vmem:[%s243 + $0x2c] sm:$0xf]
      %v275 = vld [vmem:[%s243 + $0x30] sm:$0xff]
      %v276 = vld [vmem:[%s243 + $0x38] sm:$0xf]
      %v277 = vld [vmem:[%s243 + $0x3c] sm:$0xff]
      %v278 = vld [vmem:[%s243 + $0x44] sm:$0xf]
      %v279 = vld [vmem:[%s243 + $0x48] sm:$0xff]
      %v280 = vld [vmem:[%s243 + $0x50] sm:$0xf]
      %v281 = vld [vmem:[%s243 + $0x54] sm:$0xff]
      %v282 = vld [vmem:[%s243 + $0x5c] sm:$0xf]
      %v283 = vld [vmem:[%s253] sm:$0xf]
      %v284 = vld [vmem:[%s253 + $0x4] sm:$0xf]
      %v285 = vld [vmem:[%s253 + $0x8] sm:$0xf]
      %v286 = vld [vmem:[%s253 + $0xc] sm:$0xf]
      %v287 = vld [vmem:[%s253 + $0x10] sm:$0xf]
      %v288 = vld [vmem:[%s253 + $0x14] sm:$0xf]
      %v289 = vld [vmem:[%s253 + $0x18] sm:$0xf]
      %v290 = vld [vmem:[%s253 + $0x1c] sm:$0xf]
      %v291 = vld [vmem:[%s253 + $0x20] sm:$0xf]
      %v292 = vld [vmem:[%s253 + $0x24] sm:$0xf]
      %v293 = vld [vmem:[%s253 + $0x28] sm:$0xf]
      %v294 = vld [vmem:[%s253 + $0x2c] sm:$0xf]
      %v295 = vld [vmem:[%s253 + $0x30] sm:$0xf]
      %v296 = vld [vmem:[%s253 + $0x34] sm:$0xf]
      %v297 = vld [vmem:[%s253 + $0x38] sm:$0xf]
      %v298 = vld [vmem:[%s253 + $0x3c] sm:$0xf]
      %v299 = vld [vmem:[%s253 + $0x40] sm:$0xf]
      %v300 = vld [vmem:[%s253 + $0x44] sm:$0xf]
      %v301 = vld [vmem:[%s253 + $0x48] sm:$0xf]
      %v302 = vld [vmem:[%s253 + $0x4c] sm:$0xf]
      %v303 = vld [vmem:[%s253 + $0x50] sm:$0xf]
      %v304 = vld [vmem:[%s253 + $0x54] sm:$0xf]
      %v305 = vld [vmem:[%s253 + $0x58] sm:$0xf]
      %v306 = vld [vmem:[%s253 + $0x5c] sm:$0xf]
      %v307 = vld [vmem:[%s253 + $0x60] sm:$0xf]
      %v308 = vld [vmem:[%s253 + $0x64] sm:$0xf]
      %v309 = vld [vmem:[%s253 + $0x68] sm:$0xf]
      %v310 = vld [vmem:[%s253 + $0x6c] sm:$0xf]
      %v311 = vld [vmem:[%s253 + $0x70] sm:$0xf]
      %v312 = vld [vmem:[%s253 + $0x74] sm:$0xf]
      %v313 = vld [vmem:[%s253 + $0x78] sm:$0xf]
      %v314 = vld [vmem:[%s253 + $0x7c] sm:$0xf]
      %v315 = vld [vmem:[%s253 + $0x80] sm:$0xf]
      %v316 = vld [vmem:[%s253 + $0x84] sm:$0xf]
      %v317 = vld [vmem:[%s253 + $0x88] sm:$0xf]
      %v318 = vld [vmem:[%s253 + $0x8c] sm:$0xf]
      %v319 = vld [vmem:[%s253 + $0x90] sm:$0xf]
      %v320 = vld [vmem:[%s253 + $0x94] sm:$0xf]
      %v321 = vld [vmem:[%s253 + $0x98] sm:$0xf]
      %v322 = vld [vmem:[%s253 + $0x9c] sm:$0xf]
      %v323 = vld [vmem:[%s253 + $0xa0] sm:$0xf]
      %v324 = vld [vmem:[%s253 + $0xa4] sm:$0xf]
      %v325 = vld [vmem:[%s253 + $0xa8] sm:$0xf]
      %v326 = vld [vmem:[%s253 + $0xac] sm:$0xf]
      %v327 = vld [vmem:[%s253 + $0xb0] sm:$0xf]
      %v328 = vld [vmem:[%s253 + $0xb4] sm:$0xf]
      %v329 = vld [vmem:[%s253 + $0xb8] sm:$0xf]
      %v330 = vld [vmem:[%s253 + $0xbc] sm:$0xf]
      %v331 = vld [vmem:[%s257] sm:$0x1]
      %v333 = vperm.slane %v331, 0
      %v351 = vunpack.c.l.b16 %v267
      %v352 = vunpack.c.h.b16 %v267
      %v353 = vunpack.c.l.b16 %v268
      %v354 = vunpack.c.l.b16 %v269
      %v355 = vunpack.c.h.b16 %v269
      %v356 = vunpack.c.l.b16 %v270
      %v357 = vunpack.c.l.b16 %v271
      %v358 = vunpack.c.h.b16 %v271
      %v359 = vunpack.c.l.b16 %v272
      %v360 = vunpack.c.l.b16 %v273
      %v361 = vunpack.c.h.b16 %v273
      %v362 = vunpack.c.l.b16 %v274
      %v363 = vunpack.c.l.b16 %v275
      %v364 = vunpack.c.h.b16 %v275
      %v365 = vunpack.c.l.b16 %v276
      %v366 = vunpack.c.l.b16 %v277
      %v367 = vunpack.c.h.b16 %v277
      %v368 = vunpack.c.l.b16 %v278
      %v369 = vunpack.c.l.b16 %v279
      %v370 = vunpack.c.h.b16 %v279
      %v371 = vunpack.c.l.b16 %v280
      %v372 = vunpack.c.l.b16 %v281
      %v373 = vunpack.c.h.b16 %v281
      %v374 = vunpack.c.l.b16 %v282
      %v375 = vpack.c.b16 %v354, %v351
      %v376 = vpack.c.b16 %v355, %v352
      %v377 = vpack.c.b16 %v356, %v353
      %v378 = vpack.c.b16 %v360, %v357
      %v379 = vpack.c.b16 %v361, %v358
      %v380 = vpack.c.b16 %v362, %v359
      %v381 = vpack.c.b16 %v366, %v363
      %v382 = vpack.c.b16 %v367, %v364
      %v383 = vpack.c.b16 %v368, %v365
      %v384 = vpack.c.b16 %v372, %v369
      %v385 = vpack.c.b16 %v373, %v370
      %v386 = vpack.c.b16 %v374, %v371
      %v447 = vunpack.c.l.b16 %v283
      %v448 = vunpack.c.l.b16 %v284
      %v449 = vunpack.c.l.b16 %v285
      %v450 = vunpack.c.l.b16 %v286
      %v451 = vunpack.c.l.b16 %v287
      %v452 = vunpack.c.l.b16 %v288
      %v453 = vunpack.c.l.b16 %v289
      %v454 = vunpack.c.l.b16 %v290
      %v455 = vunpack.c.l.b16 %v291
      %v456 = vunpack.c.l.b16 %v292
      %v457 = vunpack.c.l.b16 %v293
      %v458 = vunpack.c.l.b16 %v294
      %v459 = vunpack.c.l.b16 %v295
      %v460 = vunpack.c.l.b16 %v296
      %v461 = vunpack.c.l.b16 %v297
      %v462 = vunpack.c.l.b16 %v298
      %v463 = vunpack.c.l.b16 %v299
      %v464 = vunpack.c.l.b16 %v300
      %v465 = vunpack.c.l.b16 %v301
      %v466 = vunpack.c.l.b16 %v302
      %v467 = vunpack.c.l.b16 %v303
      %v468 = vunpack.c.l.b16 %v304
      %v469 = vunpack.c.l.b16 %v305
      %v470 = vunpack.c.l.b16 %v306
      %v471 = vunpack.c.l.b16 %v307
      %v472 = vunpack.c.l.b16 %v308
      %v473 = vunpack.c.l.b16 %v309
      %v474 = vunpack.c.l.b16 %v310
      %v475 = vunpack.c.l.b16 %v311
      %v476 = vunpack.c.l.b16 %v312
      %v477 = vunpack.c.l.b16 %v313
      %v478 = vunpack.c.l.b16 %v314
      %v479 = vunpack.c.l.b16 %v315
      %v480 = vunpack.c.l.b16 %v316
      %v481 = vunpack.c.l.b16 %v317
      %v482 = vunpack.c.l.b16 %v318
      %v483 = vunpack.c.l.b16 %v319
      %v484 = vunpack.c.l.b16 %v320
      %v485 = vunpack.c.l.b16 %v321
      %v486 = vunpack.c.l.b16 %v322
      %v487 = vunpack.c.l.b16 %v323
      %v488 = vunpack.c.l.b16 %v324
      %v489 = vunpack.c.l.b16 %v325
      %v490 = vunpack.c.l.b16 %v326
      %v491 = vunpack.c.l.b16 %v327
      %v492 = vunpack.c.l.b16 %v328
      %v493 = vunpack.c.l.b16 %v329
      %v494 = vunpack.c.l.b16 %v330
      %v495 = vpack.c.b16 %v448, %v447
      %v496 = vpack.c.b16 %v450, %v449
      %v497 = vpack.c.b16 %v452, %v451
      %v498 = vpack.c.b16 %v454, %v453
      %v499 = vpack.c.b16 %v456, %v455
      %v500 = vpack.c.b16 %v458, %v457
      %v501 = vpack.c.b16 %v460, %v459
      %v502 = vpack.c.b16 %v462, %v461
      %v503 = vpack.c.b16 %v464, %v463
      %v504 = vpack.c.b16 %v466, %v465
      %v505 = vpack.c.b16 %v468, %v467
      %v506 = vpack.c.b16 %v470, %v469
      %v507 = vpack.c.b16 %v472, %v471
      %v508 = vpack.c.b16 %v474, %v473
      %v509 = vpack.c.b16 %v476, %v475
      %v510 = vpack.c.b16 %v478, %v477
      %v511 = vpack.c.b16 %v480, %v479
      %v512 = vpack.c.b16 %v482, %v481
      %v513 = vpack.c.b16 %v484, %v483
      %v514 = vpack.c.b16 %v486, %v485
      %v515 = vpack.c.b16 %v488, %v487
      %v516 = vpack.c.b16 %v490, %v489
      %v517 = vpack.c.b16 %v492, %v491
      %v518 = vpack.c.b16 %v494, %v493
      %543 = vmatpush.bf16.msra.mxu0 %v502
      %544 = vmatpush.bf16.msra.mxu0 %v501
      %545 = vmatpush.bf16.msra.mxu0 %v500
      %546 = vmatpush.bf16.msra.mxu0 %v499
      %547 = vmatpush.bf16.msra.mxu0 %v498
      %548 = vmatpush.bf16.msra.mxu0 %v497
      %549 = vmatpush.bf16.msra.mxu0 %v496
      %550 = vmatpush.bf16.msra.mxu0 %v495
      %551 = vmatmul.bf16.gmra.mxu0 %v375
      %v552 = vpop.f32.mrf.mxu0
      %v553 = vadd.f32 %v333, %v552
      %v554 = vpop.f32.mrf.mxu0
      %v555 = vadd.f32 %v333, %v554
      %556 = vmatmul.bf16.gmra.mxu0 %v378
      %v557 = vpop.f32.mrf.mxu0
      %v558 = vadd.f32 %v333, %v557
      %v559 = vpop.f32.mrf.mxu0
      %v560 = vadd.f32 %v333, %v559
      %561 = vmatmul.bf16.gmra.mxu0 %v381
      %v562 = vpop.f32.mrf.mxu0
      %v563 = vadd.f32 %v333, %v562
      %v564 = vpop.f32.mrf.mxu0
      %v565 = vadd.f32 %v333, %v564
      %566 = vmatmul.bf16.gmra.mxu0 %v384
      %v567 = vpop.f32.mrf.mxu0
      %v568 = vadd.f32 %v333, %v567
      %v569 = vpop.f32.mrf.mxu0
      %v570 = vadd.f32 %v333, %v569
      %571 = vdwg.mxu0
      %572 = vmatpush.bf16.msra.mxu0 %v510
      %573 = vmatpush.bf16.msra.mxu0 %v509
      %574 = vmatpush.bf16.msra.mxu0 %v508
      %575 = vmatpush.bf16.msra.mxu0 %v507
      %576 = vmatpush.bf16.msra.mxu0 %v506
      %577 = vmatpush.bf16.msra.mxu0 %v505
      %578 = vmatpush.bf16.msra.mxu0 %v504
      %579 = vmatpush.bf16.msra.mxu0 %v503
      %580 = vmatmul.bf16.gmra.mxu0 %v376
      %v581 = vpop.f32.mrf.mxu0
      %v582 = vadd.f32 %v553, %v581
      %v583 = vpop.f32.mrf.mxu0
      %v584 = vadd.f32 %v555, %v583
      %585 = vmatmul.bf16.gmra.mxu0 %v379
      %v586 = vpop.f32.mrf.mxu0
      %v587 = vadd.f32 %v558, %v586
      %v588 = vpop.f32.mrf.mxu0
      %v589 = vadd.f32 %v560, %v588
      %590 = vmatmul.bf16.gmra.mxu0 %v382
      %v591 = vpop.f32.mrf.mxu0
      %v592 = vadd.f32 %v563, %v591
      %v593 = vpop.f32.mrf.mxu0
      %v594 = vadd.f32 %v565, %v593
      %595 = vmatmul.bf16.gmra.mxu0 %v385
      %v596 = vpop.f32.mrf.mxu0
      %v597 = vadd.f32 %v568, %v596
      %v598 = vpop.f32.mrf.mxu0
      %v599 = vadd.f32 %v570, %v598
      %600 = vdwg.mxu0
      %601 = vmatpush.bf16.msra.mxu0 %v518
      %602 = vmatpush.bf16.msra.mxu0 %v517
      %603 = vmatpush.bf16.msra.mxu0 %v516
      %604 = vmatpush.bf16.msra.mxu0 %v515
      %605 = vmatpush.bf16.msra.mxu0 %v514
      %606 = vmatpush.bf16.msra.mxu0 %v513
      %607 = vmatpush.bf16.msra.mxu0 %v512
      %608 = vmatpush.bf16.msra.mxu0 %v511
      %609 = vmatmul.bf16.gmra.mxu0 %v377
      %v610 = vpop.f32.mrf.mxu0
      %v611 = vadd.f32 %v582, %v610
      %v612 = vpop.f32.mrf.mxu0
      %v613 = vadd.f32 %v584, %v612
      %614 = vmatmul.bf16.gmra.mxu0 %v380
      %v615 = vpop.f32.mrf.mxu0
      %v616 = vadd.f32 %v587, %v615
      %v617 = vpop.f32.mrf.mxu0
      %v618 = vadd.f32 %v589, %v617
      %619 = vmatmul.bf16.gmra.mxu0 %v383
      %v620 = vpop.f32.mrf.mxu0
      %v621 = vadd.f32 %v592, %v620
      %v622 = vpop.f32.mrf.mxu0
      %v623 = vadd.f32 %v594, %v622
      %624 = vmatmul.bf16.gmra.mxu0 %v386
      %v625 = vpop.f32.mrf.mxu0
      %v626 = vadd.f32 %v597, %v625
      %v627 = vpop.f32.mrf.mxu0
      %v628 = vadd.f32 %v599, %v627
      %629 = vdwg.mxu0
      %630 = vst [vmem:[%s265] sm:$0xff] %v611
      %631 = vst [vmem:[%s265 + $0x8] sm:$0xff] %v613
      %632 = vst [vmem:[%s265 + $0x10] sm:$0xff] %v616
      %633 = vst [vmem:[%s265 + $0x18] sm:$0xff] %v618
      %634 = vst [vmem:[%s265 + $0x20] sm:$0xff] %v621
      %635 = vst [vmem:[%s265 + $0x28] sm:$0xff] %v623
      %636 = vst [vmem:[%s265 + $0x30] sm:$0xff] %v626
      %637 = vst [vmem:[%s265 + $0x38] sm:$0xff] %v628
      %s638 = smul.u32 8, %s19
      %p639 = scmp.lt.s32.totalorder %s638, 15
      %s640 = scalar_select %p639, %s638, 15
      %p641 = scmp.lt.s32.totalorder %s20, 0
      %s642 = scalar_select %p641, %s20, 0
      %s643 = sadd.s32 %s642, %s640
      %s644 = smul.addr %s643, 8
      %s645 = scalar_lea.vmem %s3, %s644
      // Predicated region
      $region33: #{_lambda_.9} parent=31 // pred_check
        %p646 = pneg %p135
      $region34: #{_lambda_.9} parent=31 // pred_check_branch
        %648 = sbr.rel (%p646) target = $region36
      $region35: #{_lambda_.9} parent=31 // pred_region
        %s649 = smul.u32 8, %s19
      $region36: #{_lambda_.9} parent=31 // pred_fallthru
        _
    $region32: #{_lambda_.9} parent=5 // pred_fallthru
      _
    %p650 = scmp.le.s32.totalorder 2, %s9
    // Predicated region
    $region37: #{_lambda_.9} parent=5 // pred_check
      %p651 = pneg %p650
    $region38: #{_lambda_.9} parent=5 // pred_check_branch
      %653 = sbr.rel (%p651) target = $region40
    $region39: #{_lambda_.9} parent=5 // pred_region
      %s654 = ssub.s32 %s9, 2
      // Predicated region
      $region41: #{_lambda_.9} parent=39 // pred_check
        %p655 = pneg %p141
      $region42: #{_lambda_.9} parent=39 // pred_check_branch
        %657 = sbr.rel (%p655) target = $region44
      $region43: #{_lambda_.9} parent=39 // pred_region
        %s658 = smul.u32 8, %s22
        %p659 = scmp.lt.s32.totalorder %s658, 15
        %s660 = scalar_select %p659, %s658, 15
        %p661 = scmp.lt.s32.totalorder %s23, 0
        %s662 = scalar_select %p661, %s23, 0
        %s663 = sadd.s32 %s662, %s660
        %s664 = smul.addr %s663, 8
        %s665 = scalar_lea.vmem %s3, %s664
      $region44: #{_lambda_.9} parent=39 // pred_fallthru
        _
    $region40: #{_lambda_.9} parent=5 // pred_fallthru
      _
  $region6: #{_lambda_.9} parent=0 // loop_footer
    %s13 = sadd.s32 1, %s9
  $region7: #{_lambda_.9} parent=0 // loop_footer_branch
    %8 = sbr.rel target = $region3
  $region8: #{_lambda_.9} parent=0 // loop_exit
    _

// kernel: _lambda_.6
$region0: #{_lambda_.6}
  #allocation0 [shape = 'u32[]', space=smem, size = 0x4, offset = 0x4, fixed_abs, tag = 'smem constant byte address 0x4 - core index']
  #allocation1 [shape = 'u32[72,128]{1,0:T(1,128)}', space=vmem, size = 0x9000, scoped, tag = 'internal scratch']
  %s0 = inlined_call_operand.vmem [shape: bf16[2,8,8,128], index: 0, kind: input, shape index: {}]
  %s1 = inlined_call_operand.vmem [shape: bf16[2,8,8,128], index: 1, kind: input, shape index: {}]
  %s2 = inlined_call_operand.vmem [shape: bf16[2,8,8,128], index: 2, kind: input, shape index: {}]
  %s3 = inlined_call_operand.vmem [shape: bf16[2,8,8,128], index: 3, kind: input, shape index: {}]
  %s4 = inlined_call_operand.vmem [shape: bf16[2,8,8,128], index: 4, kind: output, shape index: {}]
  %s5 = sld [smem:[#allocation0]]
  $region49: #{_lambda_.6} parent=0
    _
  %s7 = ssub.s32 1, %s5
  %s8 = scalar_select 0, %s7, %s5
  loop: start=0, step=1, limit=4
  $region2: #{_lambda_.6} parent=0 // loop_pre_header
    _
  $region3: #{_lambda_.6} parent=0 // loop_header
    %s10 = sphi 0, %s14
    %p11 = scmp.ge.s32.totalorder %s10, 4
    %s20 = sphi 0, %s22
    %s23 = sphi 0, %s20
    %s24 = sphi 0, %s23
    %s40 = sphi 0, %s24
    %s46 = sphi 0, %s48
    %s49 = sphi 0, %s46
    %s50 = sphi 0, %s49
    %s66 = sphi 0, %s50
    %s72 = sphi 0, %s74
    %s75 = sphi 0, %s72
    %s76 = sphi 0, %s75
    %s92 = sphi 0, %s76
    %s98 = sphi 0, %s100
    %s101 = sphi 0, %s98
    %s102 = sphi 0, %s101
    %s118 = sphi 0, %s102
    %s124 = sphi 0, %s126
    %s127 = sphi 0, %s124
    %s128 = sphi 0, %s127
    %s144 = sphi 0, %s128
  $region4: #{_lambda_.6} parent=0 // loop_header_branch
    %13 = sbr.rel (%p11) target = $region8
  $region5: #{_lambda_.6} parent=0 // loop_body
    %s15 = ssub.s32 %s10, 1
    %s16 = ssub.s32 %s10, 2
    %s17 = sadd.s32 %s10, 1
    %s18 = ssub.s32 %s10, %s17
    %p19 = scmp.eq.s32.totalorder %s18, 0
    %s21 = sadd.s32 %s20, 1
    %s22 = scalar_select %p19, %s20, %s21
    %p25 = pneg %p19
    %p26 = scmp.eq.s32.totalorder %s10, 1
    %p27 = por %p25, %p26
    %p28 = scmp.ne.s32.totalorder %s20, %s23
    %p29 = scmp.eq.s32.totalorder %s10, 0
    %p30 = por %p28, %p29
    %p31 = scmp.ne.s32.totalorder %s20, %s23
    %p32 = scmp.eq.s32.totalorder %s15, 1
    %p33 = por %p31, %p32
    %p34 = scmp.ne.s32.totalorder %s23, %s24
    %p35 = scmp.eq.s32.totalorder %s15, 0
    %p36 = por %p34, %p35
    %p37 = scmp.ne.s32.totalorder %s23, %s24
    %p38 = scmp.eq.s32.totalorder %s16, 1
    %p39 = por %p37, %p38
    %p41 = scmp.ne.s32.totalorder %s24, %s40
    %p42 = scmp.eq.s32.totalorder %s16, 0
    %p43 = por %p41, %p42
    %s44 = ssub.s32 %s10, %s17
    %p45 = scmp.eq.s32.totalorder %s44, 0
    %s47 = sadd.s32 %s46, 1
    %s48 = scalar_select %p45, %s46, %s47
    %p51 = pneg %p45
    %p52 = scmp.eq.s32.totalorder %s10, 1
    %p53 = por %p51, %p52
    %p54 = scmp.ne.s32.totalorder %s46, %s49
    %p55 = scmp.eq.s32.totalorder %s10, 0
    %p56 = por %p54, %p55
    %p57 = scmp.ne.s32.totalorder %s46, %s49
    %p58 = scmp.eq.s32.totalorder %s15, 1
    %p59 = por %p57, %p58
    %p60 = scmp.ne.s32.totalorder %s49, %s50
    %p61 = scmp.eq.s32.totalorder %s15, 0
    %p62 = por %p60, %p61
    %p63 = scmp.ne.s32.totalorder %s49, %s50
    %p64 = scmp.eq.s32.totalorder %s16, 1
    %p65 = por %p63, %p64
    %p67 = scmp.ne.s32.totalorder %s50, %s66
    %p68 = scmp.eq.s32.totalorder %s16, 0
    %p69 = por %p67, %p68
    %s70 = ssub.s32 %s10, %s17
    %p71 = scmp.eq.s32.totalorder %s70, 0
    %s73 = sadd.s32 %s72, 1
    %s74 = scalar_select %p71, %s72, %s73
    %p77 = pneg %p71
    %p78 = scmp.eq.s32.totalorder %s10, 1
    %p79 = por %p77, %p78
    %p80 = scmp.ne.s32.totalorder %s72, %s75
    %p81 = scmp.eq.s32.totalorder %s10, 0
    %p82 = por %p80, %p81
    %p83 = scmp.ne.s32.totalorder %s72, %s75
    %p84 = scmp.eq.s32.totalorder %s15, 1
    %p85 = por %p83, %p84
    %p86 = scmp.ne.s32.totalorder %s75, %s76
    %p87 = scmp.eq.s32.totalorder %s15, 0
    %p88 = por %p86, %p87
    %p89 = scmp.ne.s32.totalorder %s75, %s76
    %p90 = scmp.eq.s32.totalorder %s16, 1
    %p91 = por %p89, %p90
    %p93 = scmp.ne.s32.totalorder %s76, %s92
    %p94 = scmp.eq.s32.totalorder %s16, 0
    %p95 = por %p93, %p94
    %s96 = ssub.s32 %s10, %s17
    %p97 = scmp.eq.s32.totalorder %s96, 0
    %s99 = sadd.s32 %s98, 1
    %s100 = scalar_select %p97, %s98, %s99
    %p103 = pneg %p97
    %p104 = scmp.eq.s32.totalorder %s10, 1
    %p105 = por %p103, %p104
    %p106 = scmp.ne.s32.totalorder %s98, %s101
    %p107 = scmp.eq.s32.totalorder %s10, 0
    %p108 = por %p106, %p107
    %p109 = scmp.ne.s32.totalorder %s98, %s101
    %p110 = scmp.eq.s32.totalorder %s15, 1
    %p111 = por %p109, %p110
    %p112 = scmp.ne.s32.totalorder %s101, %s102
    %p113 = scmp.eq.s32.totalorder %s15, 0
    %p114 = por %p112, %p113
    %p115 = scmp.ne.s32.totalorder %s101, %s102
    %p116 = scmp.eq.s32.totalorder %s16, 1
    %p117 = por %p115, %p116
    %p119 = scmp.ne.s32.totalorder %s102, %s118
    %p120 = scmp.eq.s32.totalorder %s16, 0
    %p121 = por %p119, %p120
    %s122 = ssub.s32 %s10, %s17
    %p123 = scmp.eq.s32.totalorder %s122, 0
    %s125 = sadd.s32 %s124, 1
    %s126 = scalar_select %p123, %s124, %s125
    %p129 = pneg %p123
    %p130 = scmp.eq.s32.totalorder %s10, 1
    %p131 = por %p129, %p130
    %p132 = scmp.ne.s32.totalorder %s124, %s127
    %p133 = scmp.eq.s32.totalorder %s10, 0
    %p134 = por %p132, %p133
    %p135 = scmp.ne.s32.totalorder %s124, %s127
    %p136 = scmp.eq.s32.totalorder %s15, 1
    %p137 = por %p135, %p136
    %p138 = scmp.ne.s32.totalorder %s127, %s128
    %p139 = scmp.eq.s32.totalorder %s15, 0
    %p140 = por %p138, %p139
    %p141 = scmp.ne.s32.totalorder %s127, %s128
    %p142 = scmp.eq.s32.totalorder %s16, 1
    %p143 = por %p141, %p142
    %p145 = scmp.ne.s32.totalorder %s128, %s144
    %p146 = scmp.eq.s32.totalorder %s16, 0
    %p147 = por %p145, %p146
    %p148 = scmp.le.s32.totalorder 1, %s10
    %p149 = scmp.lt.s32.totalorder %s10, 3
    %p150 = pnand %p148, %p149
    %p151 = pneg %p150
    // Predicated region
    $region9: #{_lambda_.6} parent=5 // pred_check
      _
    $region10: #{_lambda_.6} parent=5 // pred_check_branch
      %153 = sbr.rel (%p150) target = $region12
    $region11: #{_lambda_.6} parent=5 // pred_region
      %s154 = ssub.s32 %s10, 1
    $region12: #{_lambda_.6} parent=5 // pred_fallthru
      _
    %p155 = scmp.lt.s32.totalorder %s10, 2
    // Predicated region
    $region13: #{_lambda_.6} parent=5 // pred_check
      %p156 = pneg %p155
    $region14: #{_lambda_.6} parent=5 // pred_check_branch
      %158 = sbr.rel (%p156) target = $region16
    $region15: #{_lambda_.6} parent=5 // pred_region
      // Predicated region
      $region17: #{_lambda_.6} parent=15 // pred_check
        %p159 = pneg %p30
      $region18: #{_lambda_.6} parent=15 // pred_check_branch
        %161 = sbr.rel (%p159) target = $region20
      $region19: #{_lambda_.6} parent=15 // pred_region
        %p162 = scmp.lt.s32.totalorder %s10, 1
        %s163 = scalar_select %p162, %s10, 1
        %s164 = smul.addr %s163, 8
        %s165 = smul.addr %s164, 4
        %s166 = scalar_lea.vmem %s0, %s165
      $region20: #{_lambda_.6} parent=15 // pred_fallthru
        _
      // Predicated region
      $region21: #{_lambda_.6} parent=15 // pred_check
        %p167 = pneg %p56
      $region22: #{_lambda_.6} parent=15 // pred_check_branch
        %169 = sbr.rel (%p167) target = $region24
      $region23: #{_lambda_.6} parent=15 // pred_region
        %p170 = scmp.lt.s32.totalorder %s10, 1
        %s171 = scalar_select %p170, %s10, 1
        %s172 = smul.addr %s171, 8
        %s173 = smul.addr %s172, 4
        %s174 = scalar_lea.vmem %s1, %s173
      $region24: #{_lambda_.6} parent=15 // pred_fallthru
        _
      // Predicated region
      $region25: #{_lambda_.6} parent=15 // pred_check
        %p175 = pneg %p82
      $region26: #{_lambda_.6} parent=15 // pred_check_branch
        %177 = sbr.rel (%p175) target = $region28
      $region27: #{_lambda_.6} parent=15 // pred_region
        %p178 = scmp.lt.s32.totalorder %s10, 1
        %s179 = scalar_select %p178, %s10, 1
        %s180 = smul.addr %s179, 8
        %s181 = smul.addr %s180, 4
        %s182 = scalar_lea.vmem %s2, %s181
      $region28: #{_lambda_.6} parent=15 // pred_fallthru
        _
      // Predicated region
      $region29: #{_lambda_.6} parent=15 // pred_check
        %p183 = pneg %p108
      $region30: #{_lambda_.6} parent=15 // pred_check_branch
        %185 = sbr.rel (%p183) target = $region32
      $region31: #{_lambda_.6} parent=15 // pred_region
        %p186 = scmp.lt.s32.totalorder %s10, 1
        %s187 = scalar_select %p186, %s10, 1
        %s188 = smul.addr %s187, 8
        %s189 = smul.addr %s188, 4
        %s190 = scalar_lea.vmem %s3, %s189
      $region32: #{_lambda_.6} parent=15 // pred_fallthru
        _
    $region16: #{_lambda_.6} parent=5 // pred_fallthru
      _
    %p191 = scmp.le.s32.totalorder 1, %s10
    %p192 = scmp.lt.s32.totalorder %s10, 3
    %p193 = pnand %p191, %p192
    %p194 = pneg %p193
    // Predicated region
    $region33: #{_lambda_.6} parent=5 // pred_check
      _
    $region34: #{_lambda_.6} parent=5 // pred_check_branch
      %196 = sbr.rel (%p193) target = $region36
    $region35: #{_lambda_.6} parent=5 // pred_region
      %s197 = ssub.s32 %s10, 1
      %p198 = scmp.lt.s32.totalorder %s15, 1
      %s199 = scalar_select %p198, %s15, 1
      %s200 = smul.addr %s199, 8
      %s201 = smul.addr %s200, 4
      %s202 = scalar_lea.vmem %s0, %s201
      %p203 = pneg %p36
      %p204 = pneg %p33
      %p205 = scmp.lt.s32.totalorder %s15, 1
      %s206 = scalar_select %p205, %s15, 1
      %s207 = smul.addr %s206, 8
      %s208 = smul.addr %s207, 4
      %s209 = scalar_lea.vmem %s1, %s208
      %p210 = pneg %p62
      %p211 = pneg %p59
      %p212 = scmp.lt.s32.totalorder %s15, 1
      %s213 = scalar_select %p212, %s15, 1
      %s214 = smul.addr %s213, 8
      %s215 = smul.addr %s214, 4
      %s216 = scalar_lea.vmem %s2, %s215
      %p217 = pneg %p88
      %p218 = pneg %p85
      %p219 = scmp.lt.s32.totalorder %s15, 1
      %s220 = scalar_select %p219, %s15, 1
      %s221 = smul.addr %s220, 8
      %s222 = smul.addr %s221, 4
      %s223 = scalar_lea.vmem %s3, %s222
      %p224 = pneg %p114
      %p225 = pneg %p111
      %p226 = pneg %p140
      %p227 = pneg %p137
      %p228 = scmp.lt.s32.totalorder %s15, 1
      %s229 = scalar_select %p228, %s15, 1
      %s230 = smul.addr %s229, 8
      %s231 = smul.addr %s230, 4
      %s232 = scalar_lea.vmem %s4, %s231
      %p233 = scmp.lt.s32.totalorder %s15, 1
      %s234 = scalar_select %p233, %s15, 1
      %s235 = smul.addr %s234, 8
      %s236 = smul.addr %s235, 4
      %s237 = scalar_lea.vmem %s0, %s236
      %p238 = scmp.lt.s32.totalorder %s15, 1
      %s239 = scalar_select %p238, %s15, 1
      %s240 = smul.addr %s239, 8
      %s241 = smul.addr %s240, 4
      %s242 = scalar_lea.vmem %s1, %s241
      %p243 = scmp.lt.s32.totalorder %s15, 1
      %s244 = scalar_select %p243, %s15, 1
      %s245 = smul.addr %s244, 8
      %s246 = smul.addr %s245, 4
      %s247 = scalar_lea.vmem %s2, %s246
      %p248 = scmp.lt.s32.totalorder %s15, 1
      %s249 = scalar_select %p248, %s15, 1
      %s250 = smul.addr %s249, 8
      %s251 = smul.addr %s250, 4
      %s252 = scalar_lea.vmem %s3, %s251
      %p253 = scmp.lt.s32.totalorder %s15, 1
      %s254 = scalar_select %p253, %s15, 1
      %s255 = smul.addr %s254, 8
      %s256 = smul.addr %s255, 4
      %s257 = scalar_lea.vmem %s4, %s256
      %v258 = vld [vmem:[%s237] sm:$0xf]
      %v259 = vld [vmem:[%s237 + $0x4] sm:$0xf]
      %v260 = vld [vmem:[%s237 + $0x8] sm:$0xf]
      %v261 = vld [vmem:[%s237 + $0xc] sm:$0xf]
      %v262 = vld [vmem:[%s237 + $0x10] sm:$0xf]
      %v263 = vld [vmem:[%s237 + $0x14] sm:$0xf]
      %v264 = vld [vmem:[%s237 + $0x18] sm:$0xf]
      %v265 = vld [vmem:[%s237 + $0x1c] sm:$0xf]
      %v266 = vld [vmem:[%s242] sm:$0xf]
      %v267 = vld [vmem:[%s242 + $0x4] sm:$0xf]
      %v268 = vld [vmem:[%s242 + $0x8] sm:$0xf]
      %v269 = vld [vmem:[%s242 + $0xc] sm:$0xf]
      %v270 = vld [vmem:[%s242 + $0x10] sm:$0xf]
      %v271 = vld [vmem:[%s242 + $0x14] sm:$0xf]
      %v272 = vld [vmem:[%s242 + $0x18] sm:$0xf]
      %v273 = vld [vmem:[%s242 + $0x1c] sm:$0xf]
      %v274 = vld [vmem:[%s247] sm:$0xf]
      %v275 = vld [vmem:[%s247 + $0x4] sm:$0xf]
      %v276 = vld [vmem:[%s247 + $0x8] sm:$0xf]
      %v277 = vld [vmem:[%s247 + $0xc] sm:$0xf]
      %v278 = vld [vmem:[%s247 + $0x10] sm:$0xf]
      %v279 = vld [vmem:[%s247 + $0x14] sm:$0xf]
      %v280 = vld [vmem:[%s247 + $0x18] sm:$0xf]
      %v281 = vld [vmem:[%s247 + $0x1c] sm:$0xf]
      %v282 = vld [vmem:[%s252] sm:$0xf]
      %v283 = vld [vmem:[%s252 + $0x4] sm:$0xf]
      %v284 = vld [vmem:[%s252 + $0x8] sm:$0xf]
      %v285 = vld [vmem:[%s252 + $0xc] sm:$0xf]
      %v286 = vld [vmem:[%s252 + $0x10] sm:$0xf]
      %v287 = vld [vmem:[%s252 + $0x14] sm:$0xf]
      %v288 = vld [vmem:[%s252 + $0x18] sm:$0xf]
      %v289 = vld [vmem:[%s252 + $0x1c] sm:$0xf]
      %v298 = vunpack.c.l.b16 %v266
      %v299 = vunpack.c.l.b16 %v267
      %v300 = vunpack.c.l.b16 %v268
      %v301 = vunpack.c.l.b16 %v269
      %v302 = vunpack.c.l.b16 %v270
      %v303 = vunpack.c.l.b16 %v271
      %v304 = vunpack.c.l.b16 %v272
      %v305 = vunpack.c.l.b16 %v273
      %v306 = vpack.c.b16 %v298, %v298
      %v307 = vpack.c.b16 %v299, %v299
      %v308 = vpack.c.b16 %v300, %v300
      %v309 = vpack.c.b16 %v301, %v301
      %v310 = vpack.c.b16 %v302, %v302
      %v311 = vpack.c.b16 %v303, %v303
      %v312 = vpack.c.b16 %v304, %v304
      %v313 = vpack.c.b16 %v305, %v305
      %v315 = vshrl.u32 %v306, 16
      %v317 = vrot.slane %v315, 7
      %v318 = vshll.u32 %v306, 16
      %v320 = vor.u32 %v317, %v318
      %v322 = vshrl.u32 %v307, 16
      %v324 = vrot.slane %v322, 7
      %v325 = vshll.u32 %v307, 16
      %v327 = vor.u32 %v324, %v325
      %v329 = vshrl.u32 %v308, 16
      %v331 = vrot.slane %v329, 7
      %v332 = vshll.u32 %v308, 16
      %v334 = vor.u32 %v331, %v332
      %v336 = vshrl.u32 %v309, 16
      %v338 = vrot.slane %v336, 7
      %v339 = vshll.u32 %v309, 16
      %v341 = vor.u32 %v338, %v339
      %v343 = vshrl.u32 %v310, 16
      %v345 = vrot.slane %v343, 7
      %v346 = vshll.u32 %v310, 16
      %v348 = vor.u32 %v345, %v346
      %v350 = vshrl.u32 %v311, 16
      %v352 = vrot.slane %v350, 7
      %v353 = vshll.u32 %v311, 16
      %v355 = vor.u32 %v352, %v353
      %v357 = vshrl.u32 %v312, 16
      %v359 = vrot.slane %v357, 7
      %v360 = vshll.u32 %v312, 16
      %v362 = vor.u32 %v359, %v360
      %v364 = vshrl.u32 %v313, 16
      %v366 = vrot.slane %v364, 7
      %v367 = vshll.u32 %v313, 16
      %v369 = vor.u32 %v366, %v367
      %vm378 = vcmask 1040384
      %vm379 = vsmask.f32 256
      %vm380 = vmand %vm378, %vm379
      %v381 = vsel %vm380, %v266, %v320
      %v382 = vsel %vm380, %v267, %v327
      %v383 = vsel %vm380, %v268, %v334
      %v384 = vsel %vm380, %v269, %v341
      %v385 = vsel %vm380, %v270, %v348
      %v386 = vsel %vm380, %v271, %v355
      %v387 = vsel %vm380, %v272, %v362
      %v388 = vsel %vm380, %v273, %v369
      %v397 = vunpack.c.l.b16 %v282
      %v398 = vunpack.c.l.b16 %v283
      %v399 = vunpack.c.l.b16 %v284
      %v400 = vunpack.c.l.b16 %v285
      %v401 = vunpack.c.l.b16 %v286
      %v402 = vunpack.c.l.b16 %v287
      %v403 = vunpack.c.l.b16 %v288
      %v404 = vunpack.c.l.b16 %v289
      %v405 = vpack.c.b16 %v397, %v397
      %v406 = vpack.c.b16 %v398, %v398
      %v407 = vpack.c.b16 %v399, %v399
      %v408 = vpack.c.b16 %v400, %v400
      %v409 = vpack.c.b16 %v401, %v401
      %v410 = vpack.c.b16 %v402, %v402
      %v411 = vpack.c.b16 %v403, %v403
      %v412 = vpack.c.b16 %v404, %v404
      %v414 = vshrl.u32 %v405, 16
      %v416 = vrot.slane %v414, 7
      %v417 = vshll.u32 %v405, 16
      %v419 = vor.u32 %v416, %v417
      %v421 = vshrl.u32 %v406, 16
      %v423 = vrot.slane %v421, 7
      %v424 = vshll.u32 %v406, 16
      %v426 = vor.u32 %v423, %v424
      %v428 = vshrl.u32 %v407, 16
      %v430 = vrot.slane %v428, 7
      %v431 = vshll.u32 %v407, 16
      %v433 = vor.u32 %v430, %v431
      %v435 = vshrl.u32 %v408, 16
      %v437 = vrot.slane %v435, 7
      %v438 = vshll.u32 %v408, 16
      %v440 = vor.u32 %v437, %v438
      %v442 = vshrl.u32 %v409, 16
      %v444 = vrot.slane %v442, 7
      %v445 = vshll.u32 %v409, 16
      %v447 = vor.u32 %v444, %v445
      %v449 = vshrl.u32 %v410, 16
      %v451 = vrot.slane %v449, 7
      %v452 = vshll.u32 %v410, 16
      %v454 = vor.u32 %v451, %v452
      %v456 = vshrl.u32 %v411, 16
      %v458 = vrot.slane %v456, 7
      %v459 = vshll.u32 %v411, 16
      %v461 = vor.u32 %v458, %v459
      %v463 = vshrl.u32 %v412, 16
      %v465 = vrot.slane %v463, 7
      %v466 = vshll.u32 %v412, 16
      %v468 = vor.u32 %v465, %v466
      %v477 = vsel %vm380, %v282, %v419
      %v478 = vsel %vm380, %v283, %v426
      %v479 = vsel %vm380, %v284, %v433
      %v480 = vsel %vm380, %v285, %v440
      %v481 = vsel %vm380, %v286, %v447
      %v482 = vsel %vm380, %v287, %v454
      %v483 = vsel %vm380, %v288, %v461
      %v484 = vsel %vm380, %v289, %v468
      %v485 = vunpack.c.l.bf16 %v258
      %v486 = vunpack.c.l.bf16 %v259
      %v487 = vunpack.c.l.bf16 %v260
      %v488 = vunpack.c.l.bf16 %v261
      %v489 = vunpack.c.l.bf16 %v262
      %v490 = vunpack.c.l.bf16 %v263
      %v491 = vunpack.c.l.bf16 %v264
      %v492 = vunpack.c.l.bf16 %v265
      %v493 = vunpack.c.l.bf16 %v266
      %v494 = vunpack.c.l.bf16 %v267
      %v495 = vunpack.c.l.bf16 %v268
      %v496 = vunpack.c.l.bf16 %v269
      %v497 = vunpack.c.l.bf16 %v270
      %v498 = vunpack.c.l.bf16 %v271
      %v499 = vunpack.c.l.bf16 %v272
      %v500 = vunpack.c.l.bf16 %v273
      %v501 = vmax.f32 %v485, %v493
      %v502 = vmax.f32 %v486, %v494
      %v503 = vmax.f32 %v487, %v495
      %v504 = vmax.f32 %v488, %v496
      %v505 = vmax.f32 %v489, %v497
      %v506 = vmax.f32 %v490, %v498
      %v507 = vmax.f32 %v491, %v499
      %v508 = vmax.f32 %v492, %v500
      %v509 = vpack.c.bf16 %v501, %v501
      %v510 = vpack.c.bf16 %v502, %v502
      %v511 = vpack.c.bf16 %v503, %v503
      %v512 = vpack.c.bf16 %v504, %v504
      %v513 = vpack.c.bf16 %v505, %v505
      %v514 = vpack.c.bf16 %v506, %v506
      %v515 = vpack.c.bf16 %v507, %v507
      %v516 = vpack.c.bf16 %v508, %v508
      %v517 = vunpack.c.l.bf16 %v509
      %v518 = vunpack.c.l.bf16 %v510
      %v519 = vunpack.c.l.bf16 %v511
      %v520 = vunpack.c.l.bf16 %v512
      %v521 = vunpack.c.l.bf16 %v513
      %v522 = vunpack.c.l.bf16 %v514
      %v523 = vunpack.c.l.bf16 %v515
      %v524 = vunpack.c.l.bf16 %v516
      %v525 = vunpack.c.l.bf16 %v381
      %v526 = vunpack.c.l.bf16 %v382
      %v527 = vunpack.c.l.bf16 %v383
      %v528 = vunpack.c.l.bf16 %v384
      %v529 = vunpack.c.l.bf16 %v385
      %v530 = vunpack.c.l.bf16 %v386
      %v531 = vunpack.c.l.bf16 %v387
      %v532 = vunpack.c.l.bf16 %v388
      %v533 = vmax.f32 %v517, %v525
      %v534 = vmax.f32 %v518, %v526
      %v535 = vmax.f32 %v519, %v527
      %v536 = vmax.f32 %v520, %v528
      %v537 = vmax.f32 %v521, %v529
      %v538 = vmax.f32 %v522, %v530
      %v539 = vmax.f32 %v523, %v531
      %v540 = vmax.f32 %v524, %v532
      %v541 = vpack.c.bf16 %v533, %v533
      %v542 = vpack.c.bf16 %v534, %v534
      %v543 = vpack.c.bf16 %v535, %v535
      %v544 = vpack.c.bf16 %v536, %v536
      %v545 = vpack.c.bf16 %v537, %v537
      %v546 = vpack.c.bf16 %v538, %v538
      %v547 = vpack.c.bf16 %v539, %v539
      %v548 = vpack.c.bf16 %v540, %v540
      %v549 = vunpack.c.l.bf16 %v274
      %v550 = vunpack.c.l.bf16 %v275
      %v551 = vunpack.c.l.bf16 %v276
      %v552 = vunpack.c.l.bf16 %v277
      %v553 = vunpack.c.l.bf16 %v278
      %v554 = vunpack.c.l.bf16 %v279
      %v555 = vunpack.c.l.bf16 %v280
      %v556 = vunpack.c.l.bf16 %v281
      %v557 = vunpack.c.l.bf16 %v282
      %v558 = vunpack.c.l.bf16 %v283
      %v559 = vunpack.c.l.bf16 %v284
      %v560 = vunpack.c.l.bf16 %v285
      %v561 = vunpack.c.l.bf16 %v286
      %v562 = vunpack.c.l.bf16 %v287
      %v563 = vunpack.c.l.bf16 %v288
      %v564 = vunpack.c.l.bf16 %v289
      %v565 = vmax.f32 %v549, %v557
      %v566 = vmax.f32 %v550, %v558
      %v567 = vmax.f32 %v551, %v559
      %v568 = vmax.f32 %v552, %v560
      %v569 = vmax.f32 %v553, %v561
      %v570 = vmax.f32 %v554, %v562
      %v571 = vmax.f32 %v555, %v563
      %v572 = vmax.f32 %v556, %v564
      %v573 = vpack.c.bf16 %v565, %v565
      %v574 = vpack.c.bf16 %v566, %v566
      %v575 = vpack.c.bf16 %v567, %v567
      %v576 = vpack.c.bf16 %v568, %v568
      %v577 = vpack.c.bf16 %v569, %v569
      %v578 = vpack.c.bf16 %v570, %v570
      %v579 = vpack.c.bf16 %v571, %v571
      %v580 = vpack.c.bf16 %v572, %v572
      %v581 = vunpack.c.l.bf16 %v573
      %v582 = vunpack.c.l.bf16 %v574
      %v583 = vunpack.c.l.bf16 %v575
      %v584 = vunpack.c.l.bf16 %v576
      %v585 = vunpack.c.l.bf16 %v577
      %v586 = vunpack.c.l.bf16 %v578
      %v587 = vunpack.c.l.bf16 %v579
      %v588 = vunpack.c.l.bf16 %v580
      %v589 = vunpack.c.l.bf16 %v477
      %v590 = vunpack.c.l.bf16 %v478
      %v591 = vunpack.c.l.bf16 %v479
      %v592 = vunpack.c.l.bf16 %v480
      %v593 = vunpack.c.l.bf16 %v481
      %v594 = vunpack.c.l.bf16 %v482
      %v595 = vunpack.c.l.bf16 %v483
      %v596 = vunpack.c.l.bf16 %v484
      %v597 = vmax.f32 %v581, %v589
      %v598 = vmax.f32 %v582, %v590
      %v599 = vmax.f32 %v583, %v591
      %v600 = vmax.f32 %v584, %v592
      %v601 = vmax.f32 %v585, %v593
      %v602 = vmax.f32 %v586, %v594
      %v603 = vmax.f32 %v587, %v595
      %v604 = vmax.f32 %v588, %v596
      %v605 = vpack.c.bf16 %v597, %v597
      %v606 = vpack.c.bf16 %v598, %v598
      %v607 = vpack.c.bf16 %v599, %v599
      %v608 = vpack.c.bf16 %v600, %v600
      %v609 = vpack.c.bf16 %v601, %v601
      %v610 = vpack.c.bf16 %v602, %v602
      %v611 = vpack.c.bf16 %v603, %v603
      %v612 = vpack.c.bf16 %v604, %v604
      %v613 = vunpack.c.l.bf16 %v541
      %v614 = vunpack.c.l.bf16 %v542
      %v615 = vunpack.c.l.bf16 %v543
      %v616 = vunpack.c.l.bf16 %v544
      %v617 = vunpack.c.l.bf16 %v545
      %v618 = vunpack.c.l.bf16 %v546
      %v619 = vunpack.c.l.bf16 %v547
      %v620 = vunpack.c.l.bf16 %v548
      %v621 = vunpack.c.l.bf16 %v605
      %v622 = vunpack.c.l.bf16 %v606
      %v623 = vunpack.c.l.bf16 %v607
      %v624 = vunpack.c.l.bf16 %v608
      %v625 = vunpack.c.l.bf16 %v609
      %v626 = vunpack.c.l.bf16 %v610
      %v627 = vunpack.c.l.bf16 %v611
      %v628 = vunpack.c.l.bf16 %v612
      %v629 = vmax.f32 %v613, %v621
      %v630 = vmax.f32 %v614, %v622
      %v631 = vmax.f32 %v615, %v623
      %v632 = vmax.f32 %v616, %v624
      %v633 = vmax.f32 %v617, %v625
      %v634 = vmax.f32 %v618, %v626
      %v635 = vmax.f32 %v619, %v627
      %v636 = vmax.f32 %v620, %v628
      %v637 = vpack.c.bf16 %v629, %v629
      %v638 = vpack.c.bf16 %v630, %v630
      %v639 = vpack.c.bf16 %v631, %v631
      %v640 = vpack.c.bf16 %v632, %v632
      %v641 = vpack.c.bf16 %v633, %v633
      %v642 = vpack.c.bf16 %v634, %v634
      %v643 = vpack.c.bf16 %v635, %v635
      %v644 = vpack.c.bf16 %v636, %v636
      %v645 = vunpack.c.l.bf16 %v637
      %v646 = vunpack.c.l.bf16 %v638
      %v647 = vunpack.c.l.bf16 %v639
      %v648 = vunpack.c.l.bf16 %v640
      %v649 = vunpack.c.l.bf16 %v641
      %v650 = vunpack.c.l.bf16 %v642
      %v651 = vunpack.c.l.bf16 %v643
      %v652 = vunpack.c.l.bf16 %v644
      %v653 = vmax.f32 %v645, %v621
      %v654 = vmax.f32 %v646, %v621
      %v655 = vmax.f32 %v647, %v622
      %v656 = vmax.f32 %v648, %v623
      %v657 = vmax.f32 %v649, %v624
      %v658 = vmax.f32 %v650, %v625
      %v659 = vmax.f32 %v651, %v626
      %v660 = vmax.f32 %v652, %v627
      %v661 = vpack.c.bf16 %v653, %v653
      %v662 = vpack.c.bf16 %v654, %v654
      %v663 = vpack.c.bf16 %v655, %v655
      %v664 = vpack.c.bf16 %v656, %v656
      %v665 = vpack.c.bf16 %v657, %v657
      %v666 = vpack.c.bf16 %v658, %v658
      %v667 = vpack.c.bf16 %v659, %v659
      %v668 = vpack.c.bf16 %v660, %v660
      %669 = vst [vmem:[%s257] sm:$0xf] %v661
      %670 = vst [vmem:[%s257 + $0x4] sm:$0xf] %v662
      %671 = vst [vmem:[%s257 + $0x8] sm:$0xf] %v663
      %672 = vst [vmem:[%s257 + $0xc] sm:$0xf] %v664
      %673 = vst [vmem:[%s257 + $0x10] sm:$0xf] %v665
      %674 = vst [vmem:[%s257 + $0x14] sm:$0xf] %v666
      %675 = vst [vmem:[%s257 + $0x18] sm:$0xf] %v667
      %676 = vst [vmem:[%s257 + $0x1c] sm:$0xf] %v668
      %p677 = scmp.lt.s32.totalorder %s15, 1
      %s678 = scalar_select %p677, %s15, 1
      %s679 = smul.addr %s678, 8
      %s680 = smul.addr %s679, 4
      %s681 = scalar_lea.vmem %s4, %s680
      // Predicated region
      $region37: #{_lambda_.6} parent=35 // pred_check
        %p682 = pneg %p137
      $region38: #{_lambda_.6} parent=35 // pred_check_branch
        %684 = sbr.rel (%p682) target = $region40
      $region39: #{_lambda_.6} parent=35 // pred_region
        _
      $region40: #{_lambda_.6} parent=35 // pred_fallthru
        _
    $region36: #{_lambda_.6} parent=5 // pred_fallthru
      _
    %p685 = scmp.le.s32.totalorder 2, %s10
    // Predicated region
    $region41: #{_lambda_.6} parent=5 // pred_check
      %p686 = pneg %p685
    $region42: #{_lambda_.6} parent=5 // pred_check_branch
      %688 = sbr.rel (%p686) target = $region44
    $region43: #{_lambda_.6} parent=5 // pred_region
      %s689 = ssub.s32 %s10, 2
      // Predicated region
      $region45: #{_lambda_.6} parent=43 // pred_check
        %p690 = pneg %p143
      $region46: #{_lambda_.6} parent=43 // pred_check_branch
        %692 = sbr.rel (%p690) target = $region48
      $region47: #{_lambda_.6} parent=43 // pred_region
        %p693 = scmp.lt.s32.totalorder %s16, 1
        %s694 = scalar_select %p693, %s16, 1
        %s695 = smul.addr %s694, 8
        %s696 = smul.addr %s695, 4
        %s697 = scalar_lea.vmem %s4, %s696
      $region48: #{_lambda_.6} parent=43 // pred_fallthru
        _
    $region44: #{_lambda_.6} parent=5 // pred_fallthru
      _
  $region6: #{_lambda_.6} parent=0 // loop_footer
    %s14 = sadd.s32 1, %s10
  $region7: #{_lambda_.6} parent=0 // loop_footer_branch
    %9 = sbr.rel target = $region3
  $region8: #{_lambda_.6} parent=0 // loop_exit
    _

// kernel: _lambda_.7
$region0: #{_lambda_.7}
  #allocation0 [shape = 'u32[]', space=smem, size = 0x4, offset = 0x4, fixed_abs, tag = 'smem constant byte address 0x4 - core index']
  #allocation1 [shape = 'u32[72,128]{1,0:T(1,128)}', space=vmem, size = 0x9000, scoped, tag = 'internal scratch']
  #allocation2 [shape = 'bf16[64,128]{1,0:T(8,128)(2,1)}', space=vmem, size = 0x4000, scoped, tag = 'scratch operand']
  %s0 = inlined_call_operand.vmem [shape: bf16[128,128], index: 0, kind: input, shape index: {}]
  %s1 = inlined_call_operand.vmem [shape: bf16[128,768], index: 1, kind: input, shape index: {}]
  %s2 = inlined_call_operand.vmem [shape: f32[1,128], index: 2, kind: input, shape index: {}]
  %s3 = inlined_call_operand.vmem [shape: f32[1,128], index: 3, kind: input, shape index: {}]
  %s4 = inlined_call_operand.vmem [shape: bf16[128,768], index: 4, kind: output, shape index: {}]
  %s5 = sld [smem:[#allocation0]]
  $region125: #{_lambda_.7} parent=0
    _
  %s7 = ssub.s32 1, %s5
  %s8 = scalar_select 0, %s7, %s5
  $region1: #{_lambda_.7} parent=0
    #allocation3 [shape = 'u8[131072]{0}', space=vmem, size = 0x20000, scoped, tag = 'input window, operand 1']
    #allocation4 [shape = 'u8[65536]{0}', space=vmem, size = 0x10000, scoped, tag = 'output window, operand 0']
    loop: start=0, step=1, limit=8
    $region2: #{_lambda_.7} parent=1 // loop_pre_header
      _
    $region3: #{_lambda_.7} parent=1 // loop_header
      %s10 = sphi 0, %s14
      %p11 = scmp.ge.s32.totalorder %s10, 8
      %s17 = sphi 0, %s36
      %s18 = sphi 0, %s32
      %s19 = sphi 0, %s28
      %s20 = sphi 0, %s17
      %s21 = sphi 0, %s18
      %s22 = sphi 0, %s19
      %s23 = sphi 0, %s20
      %s24 = sphi 0, %s21
      %s25 = sphi 0, %s22
      %s41 = sphi 0, %s43
      %s44 = sphi 0, %s41
      %s45 = sphi 0, %s44
      %s61 = sphi 0, %s45
      %s69 = sphi 0, %s71
      %s72 = sphi 0, %s69
      %s73 = sphi 0, %s72
      %s89 = sphi 0, %s73
      %s95 = sphi 0, %s97
      %s98 = sphi 0, %s95
      %s99 = sphi 0, %s98
      %s115 = sphi 0, %s99
      %s121 = sphi 0, %s123
      %s124 = sphi 0, %s121
      %s125 = sphi 0, %s124
      %s141 = sphi 0, %s125
      %s149 = sphi 0, %s151
      %s152 = sphi 0, %s149
      %s153 = sphi 0, %s152
      %s169 = sphi 0, %s153
    $region4: #{_lambda_.7} parent=1 // loop_header_branch
      %13 = sbr.rel (%p11) target = $region8
    $region5: #{_lambda_.7} parent=1 // loop_body
      %s15 = ssub.s32 %s10, 1
      %s16 = ssub.s32 %s10, 2
      %s26 = sadd.s32 1, %s19
      %p27 = scmp.ge.s32.totalorder %s26, 1
      %s28 = scalar_select %p27, 0, %s26
      %s29 = sadd.s32 1, %s18
      %s30 = scalar_select %p27, %s29, %s18
      %p31 = scmp.ge.s32.totalorder %s30, 3
      %s32 = scalar_select %p31, 0, %s30
      %s33 = sadd.s32 1, %s17
      %s34 = scalar_select %p31, %s33, %s17
      %p35 = scmp.ge.s32.totalorder %s34, 2
      %s36 = scalar_select %p35, 0, %s34
      %s37 = ssub.s32 %s17, %s36
      %s38 = ssub.s32 %s19, %s28
      %s39 = sor.u32 %s37, %s38
      %p40 = scmp.eq.s32.totalorder %s39, 0
      %s42 = sadd.s32 %s41, 1
      %s43 = scalar_select %p40, %s41, %s42
      %p46 = pneg %p40
      %p47 = scmp.eq.s32.totalorder %s10, 5
      %p48 = por %p46, %p47
      %p49 = scmp.ne.s32.totalorder %s41, %s44
      %p50 = scmp.eq.s32.totalorder %s10, 0
      %p51 = por %p49, %p50
      %p52 = scmp.ne.s32.totalorder %s41, %s44
      %p53 = scmp.eq.s32.totalorder %s15, 5
      %p54 = por %p52, %p53
      %p55 = scmp.ne.s32.totalorder %s44, %s45
      %p56 = scmp.eq.s32.totalorder %s15, 0
      %p57 = por %p55, %p56
      %p58 = scmp.ne.s32.totalorder %s44, %s45
      %p59 = scmp.eq.s32.totalorder %s16, 5
      %p60 = por %p58, %p59
      %p62 = scmp.ne.s32.totalorder %s45, %s61
      %p63 = scmp.eq.s32.totalorder %s16, 0
      %p64 = por %p62, %p63
      %s65 = ssub.s32 %s19, %s28
      %s66 = ssub.s32 %s18, %s32
      %s67 = sor.u32 %s65, %s66
      %p68 = scmp.eq.s32.totalorder %s67, 0
      %s70 = sadd.s32 %s69, 1
      %s71 = scalar_select %p68, %s69, %s70
      %p74 = pneg %p68
      %p75 = scmp.eq.s32.totalorder %s10, 5
      %p76 = por %p74, %p75
      %p77 = scmp.ne.s32.totalorder %s69, %s72
      %p78 = scmp.eq.s32.totalorder %s10, 0
      %p79 = por %p77, %p78
      %p80 = scmp.ne.s32.totalorder %s69, %s72
      %p81 = scmp.eq.s32.totalorder %s15, 5
      %p82 = por %p80, %p81
      %p83 = scmp.ne.s32.totalorder %s72, %s73
      %p84 = scmp.eq.s32.totalorder %s15, 0
      %p85 = por %p83, %p84
      %p86 = scmp.ne.s32.totalorder %s72, %s73
      %p87 = scmp.eq.s32.totalorder %s16, 5
      %p88 = por %p86, %p87
      %p90 = scmp.ne.s32.totalorder %s73, %s89
      %p91 = scmp.eq.s32.totalorder %s16, 0
      %p92 = por %p90, %p91
      %s93 = ssub.s32 %s19, %s28
      %p94 = scmp.eq.s32.totalorder %s93, 0
      %s96 = sadd.s32 %s95, 1
      %s97 = scalar_select %p94, %s95, %s96
      %p100 = pneg %p94
      %p101 = scmp.eq.s32.totalorder %s10, 5
      %p102 = por %p100, %p101
      %p103 = scmp.ne.s32.totalorder %s95, %s98
      %p104 = scmp.eq.s32.totalorder %s10, 0
      %p105 = por %p103, %p104
      %p106 = scmp.ne.s32.totalorder %s95, %s98
      %p107 = scmp.eq.s32.totalorder %s15, 5
      %p108 = por %p106, %p107
      %p109 = scmp.ne.s32.totalorder %s98, %s99
      %p110 = scmp.eq.s32.totalorder %s15, 0
      %p111 = por %p109, %p110
      %p112 = scmp.ne.s32.totalorder %s98, %s99
      %p113 = scmp.eq.s32.totalorder %s16, 5
      %p114 = por %p112, %p113
      %p116 = scmp.ne.s32.totalorder %s99, %s115
      %p117 = scmp.eq.s32.totalorder %s16, 0
      %p118 = por %p116, %p117
      %s119 = ssub.s32 %s19, %s28
      %p120 = scmp.eq.s32.totalorder %s119, 0
      %s122 = sadd.s32 %s121, 1
      %s123 = scalar_select %p120, %s121, %s122
      %p126 = pneg %p120
      %p127 = scmp.eq.s32.totalorder %s10, 5
      %p128 = por %p126, %p127
      %p129 = scmp.ne.s32.totalorder %s121, %s124
      %p130 = scmp.eq.s32.totalorder %s10, 0
      %p131 = por %p129, %p130
      %p132 = scmp.ne.s32.totalorder %s121, %s124
      %p133 = scmp.eq.s32.totalorder %s15, 5
      %p134 = por %p132, %p133
      %p135 = scmp.ne.s32.totalorder %s124, %s125
      %p136 = scmp.eq.s32.totalorder %s15, 0
      %p137 = por %p135, %p136
      %p138 = scmp.ne.s32.totalorder %s124, %s125
      %p139 = scmp.eq.s32.totalorder %s16, 5
      %p140 = por %p138, %p139
      %p142 = scmp.ne.s32.totalorder %s125, %s141
      %p143 = scmp.eq.s32.totalorder %s16, 0
      %p144 = por %p142, %p143
      %s145 = ssub.s32 %s17, %s36
      %s146 = ssub.s32 %s18, %s32
      %s147 = sor.u32 %s145, %s146
      %p148 = scmp.eq.s32.totalorder %s147, 0
      %s150 = sadd.s32 %s149, 1
      %s151 = scalar_select %p148, %s149, %s150
      %p154 = pneg %p148
      %p155 = scmp.eq.s32.totalorder %s10, 5
      %p156 = por %p154, %p155
      %p157 = scmp.ne.s32.totalorder %s149, %s152
      %p158 = scmp.eq.s32.totalorder %s10, 0
      %p159 = por %p157, %p158
      %p160 = scmp.ne.s32.totalorder %s149, %s152
      %p161 = scmp.eq.s32.totalorder %s15, 5
      %p162 = por %p160, %p161
      %p163 = scmp.ne.s32.totalorder %s152, %s153
      %p164 = scmp.eq.s32.totalorder %s15, 0
      %p165 = por %p163, %p164
      %p166 = scmp.ne.s32.totalorder %s152, %s153
      %p167 = scmp.eq.s32.totalorder %s16, 5
      %p168 = por %p166, %p167
      %p170 = scmp.ne.s32.totalorder %s153, %s169
      %p171 = scmp.eq.s32.totalorder %s16, 0
      %p172 = por %p170, %p171
      %p173 = scmp.le.s32.totalorder 1, %s10
      %p174 = scmp.lt.s32.totalorder %s10, 7
      %p175 = pnand %p173, %p174
      %p176 = pneg %p175
      // Predicated region
      $region9: #{_lambda_.7} parent=5 // pred_check
        _
      $region10: #{_lambda_.7} parent=5 // pred_check_branch
        %178 = sbr.rel (%p175) target = $region12
      $region11: #{_lambda_.7} parent=5 // pred_region
        %s179 = ssub.s32 %s10, 1
        // Predicated region
        $region13: #{_lambda_.7} parent=11 // pred_check
          %p180 = pneg %p111
        $region14: #{_lambda_.7} parent=11 // pred_check_branch
          %182 = sbr.rel (%p180) target = $region16
        $region15: #{_lambda_.7} parent=11 // pred_region
          %p183 = scmp.lt.s32.totalorder %s22, 0
          %s184 = scalar_select %p183, %s22, 0
          %s185 = scalar_lea.vmem %s2, %s184
        $region16: #{_lambda_.7} parent=11 // pred_fallthru
          _
        // Predicated region
        $region17: #{_lambda_.7} parent=11 // pred_check
          %p186 = pneg %p137
        $region18: #{_lambda_.7} parent=11 // pred_check_branch
          %188 = sbr.rel (%p186) target = $region20
        $region19: #{_lambda_.7} parent=11 // pred_region
          %p189 = scmp.lt.s32.totalorder %s22, 0
          %s190 = scalar_select %p189, %s22, 0
          %s191 = scalar_lea.vmem %s3, %s190
        $region20: #{_lambda_.7} parent=11 // pred_fallthru
          _
      $region12: #{_lambda_.7} parent=5 // pred_fallthru
        _
      %p192 = scmp.lt.s32.totalorder %s10, 6
      // Predicated region
      $region21: #{_lambda_.7} parent=5 // pred_check
        %p193 = pneg %p192
      $region22: #{_lambda_.7} parent=5 // pred_check_branch
        %195 = sbr.rel (%p193) target = $region24
      $region23: #{_lambda_.7} parent=5 // pred_region
        // Predicated region
        $region25: #{_lambda_.7} parent=23 // pred_check
          %p196 = pneg %p51
        $region26: #{_lambda_.7} parent=23 // pred_check_branch
          %198 = sbr.rel (%p196) target = $region28
        $region27: #{_lambda_.7} parent=23 // pred_region
          %s199 = smul.u32 8, %s17
          %p200 = scmp.lt.s32.totalorder %s199, 15
          %s201 = scalar_select %p200, %s199, 15
          %p202 = scmp.lt.s32.totalorder %s19, 0
          %s203 = scalar_select %p202, %s19, 0
          %s204 = sadd.s32 %s203, %s201
          %s205 = smul.addr %s204, 4
          %s206 = scalar_lea.vmem %s0, %s205
          %s207 = smul.u32 8, %s17
        $region28: #{_lambda_.7} parent=23 // pred_fallthru
          _
        // Predicated region
        $region29: #{_lambda_.7} parent=23 // pred_check
          %p208 = pneg %p79
        $region30: #{_lambda_.7} parent=23 // pred_check_branch
          %210 = sbr.rel (%p208) target = $region32
        $region31: #{_lambda_.7} parent=23 // pred_region
          %s211 = sand.u32 %s69, 1
          %s212 = sand.u32 %s69, 1
          %s213 = smul.addr %s212, 128
          %s214 = scalar_lea.vmem [#allocation3], %s213
          %s215 = smul.u32 16, %s19
          %s216 = smul.u32 2, %s18
          %s217 = smul.addr %s215, 6
          %s218 = sadd.s32 %s216, %s217
          %s219 = smul.addr %s218, 4
          %s220 = scalar_lea.vmem %s1, %s219
          // Predicated region
          $region33: #{_lambda_.7} parent=31 // pred_check
            _
          $region34: #{_lambda_.7} parent=31 // pred_check_branch
            %222 = sbr.rel (0) target = $region36
          $region35: #{_lambda_.7} parent=31 // pred_region
            // Predicated region
            $region37: #{_lambda_.7} parent=35 // pred_check
              _
            $region38: #{_lambda_.7} parent=35 // pred_check_branch
              %224 = sbr.rel (0) target = $region40
            $region39: #{_lambda_.7} parent=35 // pred_region
              // Predicated region
              $region52: #{_lambda_.7} parent=39 // pred_check
                _
              $region53: #{_lambda_.7} parent=39 // pred_check_branch
                %270 = sbr.rel (0) target = $region55
              $region54: #{_lambda_.7} parent=39 // pred_region
                loop: start=0, step=1, limit=1
                $region56: #{_lambda_.7} parent=54 // loop_pre_header
                  _
                $region57: #{_lambda_.7} parent=54 // loop_header
                  %s272 = sphi 0, %s276
                  %p273 = scmp.ge.s32.totalorder %s272, 1
                  %s277 = sphi %s220, %s220
                  %s278 = sphi %s214, %s214
                $region58: #{_lambda_.7} parent=54 // loop_header_branch
                  %275 = sbr.rel (%p273) target = $region62
                $region59: #{_lambda_.7} parent=54 // loop_body
                  %v279 = vld [vmem:[%s277] sm:$0xff]
                  %280 = vst [vmem:[%s278] sm:$0xff] %v279
                  %v281 = vld [vmem:[%s277 + $0x18] sm:$0xff]
                  %282 = vst [vmem:[%s278 + $0x8] sm:$0xff] %v281
                  %v283 = vld [vmem:[%s277 + $0x30] sm:$0xff]
                  %284 = vst [vmem:[%s278 + $0x10] sm:$0xff] %v283
                  %v285 = vld [vmem:[%s277 + $0x48] sm:$0xff]
                  %286 = vst [vmem:[%s278 + $0x18] sm:$0xff] %v285
                  %v287 = vld [vmem:[%s277 + $0x60] sm:$0xff]
                  %288 = vst [vmem:[%s278 + $0x20] sm:$0xff] %v287
                  %v289 = vld [vmem:[%s277 + $0x78] sm:$0xff]
                  %290 = vst [vmem:[%s278 + $0x28] sm:$0xff] %v289
                  %v291 = vld [vmem:[%s277 + $0x90] sm:$0xff]
                  %292 = vst [vmem:[%s278 + $0x30] sm:$0xff] %v291
                  %v293 = vld [vmem:[%s277 + $0xa8] sm:$0xff]
                  %294 = vst [vmem:[%s278 + $0x38] sm:$0xff] %v293
                  %v295 = vld [vmem:[%s277 + $0xc0] sm:$0xff]
                  %296 = vst [vmem:[%s278 + $0x40] sm:$0xff] %v295
                  %v297 = vld [vmem:[%s277 + $0xd8] sm:$0xff]
                  %298 = vst [vmem:[%s278 + $0x48] sm:$0xff] %v297
                  %v299 = vld [vmem:[%s277 + $0xf0] sm:$0xff]
                  %300 = vst [vmem:[%s278 + $0x50] sm:$0xff] %v299
                  %v301 = vld [vmem:[%s277 + $0x108] sm:$0xff]
                  %302 = vst [vmem:[%s278 + $0x58] sm:$0xff] %v301
                  %v303 = vld [vmem:[%s277 + $0x120] sm:$0xff]
                  %304 = vst [vmem:[%s278 + $0x60] sm:$0xff] %v303
                  %v305 = vld [vmem:[%s277 + $0x138] sm:$0xff]
                  %306 = vst [vmem:[%s278 + $0x68] sm:$0xff] %v305
                  %v307 = vld [vmem:[%s277 + $0x150] sm:$0xff]
                  %308 = vst [vmem:[%s278 + $0x70] sm:$0xff] %v307
                  %v309 = vld [vmem:[%s277 + $0x168] sm:$0xff]
                  %310 = vst [vmem:[%s278 + $0x78] sm:$0xff] %v309
                $region60: #{_lambda_.7} parent=54 // loop_footer
                  %s276 = sadd.s32 1, %s272
                $region61: #{_lambda_.7} parent=54 // loop_footer_branch
                  %271 = sbr.rel target = $region57
                $region62: #{_lambda_.7} parent=54 // loop_exit
                  _
              $region55: #{_lambda_.7} parent=39 // pred_fallthru
                _
              // Predicated region
              $region63: #{_lambda_.7} parent=39 // pred_check
                _
              $region64: #{_lambda_.7} parent=39 // pred_check_branch
                %312 = sbr.rel target = $region66
              $region65: #{_lambda_.7} parent=39 // pred_region
                _
              $region66: #{_lambda_.7} parent=39 // pred_fallthru
                _
            $region40: #{_lambda_.7} parent=35 // pred_fallthru
              _
            // Predicated region
            $region41: #{_lambda_.7} parent=35 // pred_check
              _
            $region42: #{_lambda_.7} parent=35 // pred_check_branch
              %226 = sbr.rel target = $region44
            $region43: #{_lambda_.7} parent=35 // pred_region
              %s228 = ssub.s32 256, 1
              loop: start=0, step=1, limit=1
              $region45: #{_lambda_.7} parent=43 // loop_pre_header
                _
              $region46: #{_lambda_.7} parent=43 // loop_header
                %s230 = sphi 0, %s234
                %p231 = scmp.ge.s32.totalorder %s230, 1
                %s235 = sphi %s220, %s220
                %s236 = sphi %s214, %s214
              $region47: #{_lambda_.7} parent=43 // loop_header_branch
                %233 = sbr.rel (%p231) target = $region51
              $region48: #{_lambda_.7} parent=43 // loop_body
                %v237 = vld [vmem:[%s235] sm:%s228]
                %238 = vst [vmem:[%s236] sm:%s228] %v237
                %v239 = vld [vmem:[%s235 + $0x18] sm:%s228]
                %240 = vst [vmem:[%s236 + $0x8] sm:%s228] %v239
                %v241 = vld [vmem:[%s235 + $0x30] sm:%s228]
                %242 = vst [vmem:[%s236 + $0x10] sm:%s228] %v241
                %v243 = vld [vmem:[%s235 + $0x48] sm:%s228]
                %244 = vst [vmem:[%s236 + $0x18] sm:%s228] %v243
                %v245 = vld [vmem:[%s235 + $0x60] sm:%s228]
                %246 = vst [vmem:[%s236 + $0x20] sm:%s228] %v245
                %v247 = vld [vmem:[%s235 + $0x78] sm:%s228]
                %248 = vst [vmem:[%s236 + $0x28] sm:%s228] %v247
                %v249 = vld [vmem:[%s235 + $0x90] sm:%s228]
                %250 = vst [vmem:[%s236 + $0x30] sm:%s228] %v249
                %v251 = vld [vmem:[%s235 + $0xa8] sm:%s228]
                %252 = vst [vmem:[%s236 + $0x38] sm:%s228] %v251
                %v253 = vld [vmem:[%s235 + $0xc0] sm:%s228]
                %254 = vst [vmem:[%s236 + $0x40] sm:%s228] %v253
                %v255 = vld [vmem:[%s235 + $0xd8] sm:%s228]
                %256 = vst [vmem:[%s236 + $0x48] sm:%s228] %v255
                %v257 = vld [vmem:[%s235 + $0xf0] sm:%s228]
                %258 = vst [vmem:[%s236 + $0x50] sm:%s228] %v257
                %v259 = vld [vmem:[%s235 + $0x108] sm:%s228]
                %260 = vst [vmem:[%s236 + $0x58] sm:%s228] %v259
                %v261 = vld [vmem:[%s235 + $0x120] sm:%s228]
                %262 = vst [vmem:[%s236 + $0x60] sm:%s228] %v261
                %v263 = vld [vmem:[%s235 + $0x138] sm:%s228]
                %264 = vst [vmem:[%s236 + $0x68] sm:%s228] %v263
                %v265 = vld [vmem:[%s235 + $0x150] sm:%s228]
                %266 = vst [vmem:[%s236 + $0x70] sm:%s228] %v265
                %v267 = vld [vmem:[%s235 + $0x168] sm:%s228]
                %268 = vst [vmem:[%s236 + $0x78] sm:%s228] %v267
              $region49: #{_lambda_.7} parent=43 // loop_footer
                %s234 = sadd.s32 1, %s230
              $region50: #{_lambda_.7} parent=43 // loop_footer_branch
                %229 = sbr.rel target = $region46
              $region51: #{_lambda_.7} parent=43 // loop_exit
                _
            $region44: #{_lambda_.7} parent=35 // pred_fallthru
              _
          $region36: #{_lambda_.7} parent=31 // pred_fallthru
            _
          %313 = vnop
        $region32: #{_lambda_.7} parent=23 // pred_fallthru
          _
      $region24: #{_lambda_.7} parent=5 // pred_fallthru
        _
      %p314 = scmp.le.s32.totalorder 1, %s10
      %p315 = scmp.lt.s32.totalorder %s10, 7
      %p316 = pnand %p314, %p315
      %p317 = pneg %p316
      // Predicated region
      $region67: #{_lambda_.7} parent=5 // pred_check
        _
      $region68: #{_lambda_.7} parent=5 // pred_check_branch
        %319 = sbr.rel (%p316) target = $region70
      $region69: #{_lambda_.7} parent=5 // pred_region
        %s320 = ssub.s32 %s10, 1
        %s321 = sand.u32 %s72, 1
        %s322 = sand.u32 %s72, 1
        %s323 = smul.addr %s322, 128
        %s324 = scalar_lea.vmem [#allocation3], %s323
        // Predicated region
        $region71: #{_lambda_.7} parent=69 // pred_check
          %p325 = pneg %p85
        $region72: #{_lambda_.7} parent=69 // pred_check_branch
          %327 = sbr.rel (%p325) target = $region74
        $region73: #{_lambda_.7} parent=69 // pred_region
          _
        $region74: #{_lambda_.7} parent=69 // pred_fallthru
          _
        %s328 = smul.u32 8, %s20
        %p329 = scmp.lt.s32.totalorder %s328, 15
        %s330 = scalar_select %p329, %s328, 15
        %p331 = scmp.lt.s32.totalorder %s22, 0
        %s332 = scalar_select %p331, %s22, 0
        %s333 = sadd.s32 %s332, %s330
        %s334 = smul.addr %s333, 4
        %s335 = scalar_lea.vmem %s0, %s334
        %p336 = pneg %p57
        %p337 = pneg %p54
        %s338 = sand.u32 %s72, 1
        %s339 = sand.u32 %s72, 1
        %s340 = smul.addr %s339, 128
        %s341 = scalar_lea.vmem [#allocation3], %s340
        %p342 = pneg %p85
        %p343 = pneg %p82
        %p344 = scmp.lt.s32.totalorder %s22, 0
        %s345 = scalar_select %p344, %s22, 0
        %s346 = scalar_lea.vmem %s2, %s345
        %p347 = pneg %p111
        %p348 = pneg %p108
        %p349 = scmp.lt.s32.totalorder %s22, 0
        %s350 = scalar_select %p349, %s22, 0
        %s351 = scalar_lea.vmem %s3, %s350
        %p352 = pneg %p137
        %p353 = pneg %p134
        %p354 = pneg %p165
        %p355 = pneg %p162
        %s356 = sand.u32 %s152, 1
        %s357 = sand.u32 %s152, 1
        %s358 = smul.addr %s357, 64
        %s359 = scalar_lea.vmem [#allocation4], %s358
        %s360 = smul.u32 8, %s20
        %p361 = scmp.lt.s32.totalorder %s360, 15
        %s362 = scalar_select %p361, %s360, 15
        %p363 = scmp.lt.s32.totalorder %s22, 0
        %s364 = scalar_select %p363, %s22, 0
        %s365 = sadd.s32 %s364, %s362
        %s366 = smul.addr %s365, 4
        %s367 = scalar_lea.vmem %s0, %s366
        %s368 = smul.u32 8, %s20
        %s369 = smul.u32 16, %s22
        %s370 = smul.u32 2, %s21
        %p371 = scmp.lt.s32.totalorder %s22, 0
        %s372 = scalar_select %p371, %s22, 0
        %s373 = scalar_lea.vmem %s2, %s372
        %p374 = scmp.lt.s32.totalorder %s22, 0
        %s375 = scalar_select %p374, %s22, 0
        %s376 = scalar_lea.vmem %s3, %s375
        %s377 = smul.u32 8, %s20
        %s378 = smul.u32 2, %s21
        %p379 = scmp.eq.s32.totalorder %s21, 0
        // Predicated region
        $region75: #{_lambda_.7} parent=69 // pred_check
          %p380 = pneg %p379
        $region76: #{_lambda_.7} parent=69 // pred_check_branch
          %382 = sbr.rel (%p380) target = $region78
        $region77: #{_lambda_.7} parent=69 // pred_region
          %v383 = vld [vmem:[%s367] sm:$0xf]
          %v384 = vld [vmem:[%s367 + $0x4] sm:$0xf]
          %v385 = vld [vmem:[%s367 + $0x8] sm:$0xf]
          %v386 = vld [vmem:[%s367 + $0xc] sm:$0xf]
          %v387 = vld [vmem:[%s367 + $0x10] sm:$0xf]
          %v388 = vld [vmem:[%s367 + $0x14] sm:$0xf]
          %v389 = vld [vmem:[%s367 + $0x18] sm:$0xf]
          %v390 = vld [vmem:[%s367 + $0x1c] sm:$0xf]
          %v391 = vunpack.c.l.bf16 %v383
          %v392 = vunpack.c.l.bf16 %v384
          %v393 = vunpack.c.l.bf16 %v385
          %v394 = vunpack.c.l.bf16 %v386
          %v395 = vunpack.c.l.bf16 %v387
          %v396 = vunpack.c.l.bf16 %v388
          %v397 = vunpack.c.l.bf16 %v389
          %v398 = vunpack.c.l.bf16 %v390
          %399 = vadd.xlane.f32.xlu0 %v391
          %v400 = vpop.xlane.xlu0 %399
          %401 = vadd.xlane.f32.xlu0 %v392
          %v402 = vpop.xlane.xlu0 %401
          %403 = vadd.xlane.f32.xlu0 %v393
          %v404 = vpop.xlane.xlu0 %403
          %405 = vadd.xlane.f32.xlu0 %v394
          %v406 = vpop.xlane.xlu0 %405
          %407 = vadd.xlane.f32.xlu0 %v395
          %v408 = vpop.xlane.xlu0 %407
          %409 = vadd.xlane.f32.xlu0 %v396
          %v410 = vpop.xlane.xlu0 %409
          %411 = vadd.xlane.f32.xlu0 %v397
          %v412 = vpop.xlane.xlu0 %411
          %413 = vadd.xlane.f32.xlu0 %v398
          %v414 = vpop.xlane.xlu0 %413
          %v415 = vrcp.pop 128.0
          %v416 = vmul.f32 128.0, %v415
          %v417 = vsub.f32 1.0, %v416
          %v418 = vmul.f32 %v415, %v417
          %v419 = vadd.f32 %v415, %v418
          %vm420 = vweird.f32 %v415
          %v421 = vsel %vm420, %v415, %v419
          %v422 = vmul.f32 %v400, %v421
          %v423 = vmul.f32 %v402, %v421
          %v424 = vmul.f32 %v404, %v421
          %v425 = vmul.f32 %v406, %v421
          %v426 = vmul.f32 %v408, %v421
          %v427 = vmul.f32 %v410, %v421
          %v428 = vmul.f32 %v412, %v421
          %v429 = vmul.f32 %v414, %v421
          %v430 = vsub.f32 %v391, %v422
          %v431 = vsub.f32 %v392, %v423
          %v432 = vsub.f32 %v393, %v424
          %v433 = vsub.f32 %v394, %v425
          %v434 = vsub.f32 %v395, %v426
          %v435 = vsub.f32 %v396, %v427
          %v436 = vsub.f32 %v397, %v428
          %v437 = vsub.f32 %v398, %v429
          %v438 = vmul.f32 %v430, %v430
          %v439 = vmul.f32 %v431, %v431
          %v440 = vmul.f32 %v432, %v432
          %v441 = vmul.f32 %v433, %v433
          %v442 = vmul.f32 %v434, %v434
          %v443 = vmul.f32 %v435, %v435
          %v444 = vmul.f32 %v436, %v436
          %v445 = vmul.f32 %v437, %v437
          %446 = vadd.xlane.f32.xlu0 %v438
          %v447 = vpop.xlane.xlu0 %446
          %448 = vadd.xlane.f32.xlu0 %v439
          %v449 = vpop.xlane.xlu0 %448
          %450 = vadd.xlane.f32.xlu0 %v440
          %v451 = vpop.xlane.xlu0 %450
          %452 = vadd.xlane.f32.xlu0 %v441
          %v453 = vpop.xlane.xlu0 %452
          %454 = vadd.xlane.f32.xlu0 %v442
          %v455 = vpop.xlane.xlu0 %454
          %456 = vadd.xlane.f32.xlu0 %v443
          %v457 = vpop.xlane.xlu0 %456
          %458 = vadd.xlane.f32.xlu0 %v444
          %v459 = vpop.xlane.xlu0 %458
          %460 = vadd.xlane.f32.xlu0 %v445
          %v461 = vpop.xlane.xlu0 %460
          %v462 = vmul.f32 %v447, %v421
          %v463 = vmul.f32 %v449, %v421
          %v464 = vmul.f32 %v451, %v421
          %v465 = vmul.f32 %v453, %v421
          %v466 = vmul.f32 %v455, %v421
          %v467 = vmul.f32 %v457, %v421
          %v468 = vmul.f32 %v459, %v421
          %v469 = vmul.f32 %v461, %v421
          %v470 = vadd.f32 %v462, 1e-05
          %v471 = vadd.f32 %v463, 1e-05
          %v472 = vadd.f32 %v464, 1e-05
          %v473 = vadd.f32 %v465, 1e-05
          %v474 = vadd.f32 %v466, 1e-05
          %v475 = vadd.f32 %v467, 1e-05
          %v476 = vadd.f32 %v468, 1e-05
          %v477 = vadd.f32 %v469, 1e-05
          %v478 = vrsqrt.pop %v470
          %v479 = vmul.f32 %v478, %v470
          %v480 = vmul.f32 %v479, %v478
          %v481 = vmul.f32 0.5, %v480
          %v482 = vsub.f32 1.5, %v481
          %v483 = vmul.f32 %v478, %v482
          %vm484 = vweird.f32 %v470
          %vm485 = vweird.f32 %v478
          %vm486 = vmor %vm484, %vm485
          %v487 = vsel %vm486, %v478, %v483
          %v488 = vrsqrt.pop %v471
          %v489 = vmul.f32 %v488, %v471
          %v490 = vmul.f32 %v489, %v488
          %v491 = vmul.f32 0.5, %v490
          %v492 = vsub.f32 1.5, %v491
          %v493 = vmul.f32 %v488, %v492
          %vm494 = vweird.f32 %v471
          %vm495 = vweird.f32 %v488
          %vm496 = vmor %vm494, %vm495
          %v497 = vsel %vm496, %v488, %v493
          %v498 = vrsqrt.pop %v472
          %v499 = vmul.f32 %v498, %v472
          %v500 = vmul.f32 %v499, %v498
          %v501 = vmul.f32 0.5, %v500
          %v502 = vsub.f32 1.5, %v501
          %v503 = vmul.f32 %v498, %v502
          %vm504 = vweird.f32 %v472
          %vm505 = vweird.f32 %v498
          %vm506 = vmor %vm504, %vm505
          %v507 = vsel %vm506, %v498, %v503
          %v508 = vrsqrt.pop %v473
          %v509 = vmul.f32 %v508, %v473
          %v510 = vmul.f32 %v509, %v508
          %v511 = vmul.f32 0.5, %v510
          %v512 = vsub.f32 1.5, %v511
          %v513 = vmul.f32 %v508, %v512
          %vm514 = vweird.f32 %v473
          %vm515 = vweird.f32 %v508
          %vm516 = vmor %vm514, %vm515
          %v517 = vsel %vm516, %v508, %v513
          %v518 = vrsqrt.pop %v474
          %v519 = vmul.f32 %v518, %v474
          %v520 = vmul.f32 %v519, %v518
          %v521 = vmul.f32 0.5, %v520
          %v522 = vsub.f32 1.5, %v521
          %v523 = vmul.f32 %v518, %v522
          %vm524 = vweird.f32 %v474
          %vm525 = vweird.f32 %v518
          %vm526 = vmor %vm524, %vm525
          %v527 = vsel %vm526, %v518, %v523
          %v528 = vrsqrt.pop %v475
          %v529 = vmul.f32 %v528, %v475
          %v530 = vmul.f32 %v529, %v528
          %v531 = vmul.f32 0.5, %v530
          %v532 = vsub.f32 1.5, %v531
          %v533 = vmul.f32 %v528, %v532
          %vm534 = vweird.f32 %v475
          %vm535 = vweird.f32 %v528
          %vm536 = vmor %vm534, %vm535
          %v537 = vsel %vm536, %v528, %v533
          %v538 = vrsqrt.pop %v476
          %v539 = vmul.f32 %v538, %v476
          %v540 = vmul.f32 %v539, %v538
          %v541 = vmul.f32 0.5, %v540
          %v542 = vsub.f32 1.5, %v541
          %v543 = vmul.f32 %v538, %v542
          %vm544 = vweird.f32 %v476
          %vm545 = vweird.f32 %v538
          %vm546 = vmor %vm544, %vm545
          %v547 = vsel %vm546, %v538, %v543
          %v548 = vrsqrt.pop %v477
          %v549 = vmul.f32 %v548, %v477
          %v550 = vmul.f32 %v549, %v548
          %v551 = vmul.f32 0.5, %v550
          %v552 = vsub.f32 1.5, %v551
          %v553 = vmul.f32 %v548, %v552
          %vm554 = vweird.f32 %v477
          %vm555 = vweird.f32 %v548
          %vm556 = vmor %vm554, %vm555
          %v557 = vsel %vm556, %v548, %v553
          %v558 = vmul.f32 %v430, %v487
          %v559 = vmul.f32 %v431, %v497
          %v560 = vmul.f32 %v432, %v507
          %v561 = vmul.f32 %v433, %v517
          %v562 = vmul.f32 %v434, %v527
          %v563 = vmul.f32 %v435, %v537
          %v564 = vmul.f32 %v436, %v547
          %v565 = vmul.f32 %v437, %v557
          %v566 = vld [vmem:[%s373] sm:$0x1]
          %v568 = vperm.slane %v566, 0
          %v570 = vmul.f32 %v558, %v568
          %v571 = vmul.f32 %v559, %v568
          %v572 = vmul.f32 %v560, %v568
          %v573 = vmul.f32 %v561, %v568
          %v574 = vmul.f32 %v562, %v568
          %v575 = vmul.f32 %v563, %v568
          %v576 = vmul.f32 %v564, %v568
          %v577 = vmul.f32 %v565, %v568
          %v578 = vld [vmem:[%s376] sm:$0x1]
          %v580 = vperm.slane %v578, 0
          %v582 = vadd.f32 %v570, %v580
          %v583 = vadd.f32 %v571, %v580
          %v584 = vadd.f32 %v572, %v580
          %v585 = vadd.f32 %v573, %v580
          %v586 = vadd.f32 %v574, %v580
          %v587 = vadd.f32 %v575, %v580
          %v588 = vadd.f32 %v576, %v580
          %v589 = vadd.f32 %v577, %v580
          %v590 = vpack.c.bf16 %v582, %v582
          %v591 = vpack.c.bf16 %v583, %v583
          %v592 = vpack.c.bf16 %v584, %v584
          %v593 = vpack.c.bf16 %v585, %v585
          %v594 = vpack.c.bf16 %v586, %v586
          %v595 = vpack.c.bf16 %v587, %v587
          %v596 = vpack.c.bf16 %v588, %v588
          %v597 = vpack.c.bf16 %v589, %v589
          %598 = vst [vmem:[#allocation2] sm:$0xf] %v590
          %599 = vst [vmem:[#allocation2 + $0x4] sm:$0xf] %v591
          %600 = vst [vmem:[#allocation2 + $0x8] sm:$0xf] %v592
          %601 = vst [vmem:[#allocation2 + $0xc] sm:$0xf] %v593
          %602 = vst [vmem:[#allocation2 + $0x10] sm:$0xf] %v594
          %603 = vst [vmem:[#allocation2 + $0x14] sm:$0xf] %v595
          %604 = vst [vmem:[#allocation2 + $0x18] sm:$0xf] %v596
          %605 = vst [vmem:[#allocation2 + $0x1c] sm:$0xf] %v597
        $region78: #{_lambda_.7} parent=69 // pred_fallthru
          _
        %v606 = vld [vmem:[#allocation2] sm:$0xf]
        %v607 = vld [vmem:[#allocation2 + $0x4] sm:$0xf]
        %v608 = vld [vmem:[#allocation2 + $0x8] sm:$0xf]
        %v609 = vld [vmem:[#allocation2 + $0xc] sm:$0xf]
        %v610 = vld [vmem:[#allocation2 + $0x10] sm:$0xf]
        %v611 = vld [vmem:[#allocation2 + $0x14] sm:$0xf]
        %v612 = vld [vmem:[#allocation2 + $0x18] sm:$0xf]
        %v613 = vld [vmem:[#allocation2 + $0x1c] sm:$0xf]
        %v614 = vld [vmem:[%s324] sm:$0xff]
        %v615 = vld [vmem:[%s324 + $0x8] sm:$0xff]
        %v616 = vld [vmem:[%s324 + $0x10] sm:$0xff]
        %v617 = vld [vmem:[%s324 + $0x18] sm:$0xff]
        %v618 = vld [vmem:[%s324 + $0x20] sm:$0xff]
        %v619 = vld [vmem:[%s324 + $0x28] sm:$0xff]
        %v620 = vld [vmem:[%s324 + $0x30] sm:$0xff]
        %v621 = vld [vmem:[%s324 + $0x38] sm:$0xff]
        %v622 = vld [vmem:[%s324 + $0x40] sm:$0xff]
        %v623 = vld [vmem:[%s324 + $0x48] sm:$0xff]
        %v624 = vld [vmem:[%s324 + $0x50] sm:$0xff]
        %v625 = vld [vmem:[%s324 + $0x58] sm:$0xff]
        %v626 = vld [vmem:[%s324 + $0x60] sm:$0xff]
        %v627 = vld [vmem:[%s324 + $0x68] sm:$0xff]
        %v628 = vld [vmem:[%s324 + $0x70] sm:$0xff]
        %v629 = vld [vmem:[%s324 + $0x78] sm:$0xff]
        %v638 = vunpack.c.l.b16 %v606
        %v639 = vunpack.c.l.b16 %v607
        %v640 = vunpack.c.l.b16 %v608
        %v641 = vunpack.c.l.b16 %v609
        %v642 = vunpack.c.l.b16 %v610
        %v643 = vunpack.c.l.b16 %v611
        %v644 = vunpack.c.l.b16 %v612
        %v645 = vunpack.c.l.b16 %v613
        %v646 = vpack.c.b16 %v639, %v638
        %v647 = vpack.c.b16 %v641, %v640
        %v648 = vpack.c.b16 %v643, %v642
        %v649 = vpack.c.b16 %v645, %v644
        %v670 = vunpack.c.l.b16 %v614
        %v671 = vunpack.c.h.b16 %v614
        %v672 = vunpack.c.l.b16 %v615
        %v673 = vunpack.c.h.b16 %v615
        %v674 = vunpack.c.l.b16 %v616
        %v675 = vunpack.c.h.b16 %v616
        %v676 = vunpack.c.l.b16 %v617
        %v677 = vunpack.c.h.b16 %v617
        %v678 = vunpack.c.l.b16 %v618
        %v679 = vunpack.c.h.b16 %v618
        %v680 = vunpack.c.l.b16 %v619
        %v681 = vunpack.c.h.b16 %v619
        %v682 = vunpack.c.l.b16 %v620
        %v683 = vunpack.c.h.b16 %v620
        %v684 = vunpack.c.l.b16 %v621
        %v685 = vunpack.c.h.b16 %v621
        %v686 = vunpack.c.l.b16 %v622
        %v687 = vunpack.c.h.b16 %v622
        %v688 = vunpack.c.l.b16 %v623
        %v689 = vunpack.c.h.b16 %v623
        %v690 = vunpack.c.l.b16 %v624
        %v691 = vunpack.c.h.b16 %v624
        %v692 = vunpack.c.l.b16 %v625
        %v693 = vunpack.c.h.b16 %v625
        %v694 = vunpack.c.l.b16 %v626
        %v695 = vunpack.c.h.b16 %v626
        %v696 = vunpack.c.l.b16 %v627
        %v697 = vunpack.c.h.b16 %v627
        %v698 = vunpack.c.l.b16 %v628
        %v699 = vunpack.c.h.b16 %v628
        %v700 = vunpack.c.l.b16 %v629
        %v701 = vunpack.c.h.b16 %v629
        %v702 = vpack.c.b16 %v672, %v670
        %v703 = vpack.c.b16 %v673, %v671
        %v704 = vpack.c.b16 %v676, %v674
        %v705 = vpack.c.b16 %v677, %v675
        %v706 = vpack.c.b16 %v680, %v678
        %v707 = vpack.c.b16 %v681, %v679
        %v708 = vpack.c.b16 %v684, %v682
        %v709 = vpack.c.b16 %v685, %v683
        %v710 = vpack.c.b16 %v688, %v686
        %v711 = vpack.c.b16 %v689, %v687
        %v712 = vpack.c.b16 %v692, %v690
        %v713 = vpack.c.b16 %v693, %v691
        %v714 = vpack.c.b16 %v696, %v694
        %v715 = vpack.c.b16 %v697, %v695
        %v716 = vpack.c.b16 %v700, %v698
        %v717 = vpack.c.b16 %v701, %v699
        %734 = vmatpush.bf16.msra.mxu0 %v716
        %735 = vmatpush.bf16.msra.mxu0 %v714
        %736 = vmatpush.bf16.msra.mxu0 %v712
        %737 = vmatpush.bf16.msra.mxu0 %v710
        %738 = vmatpush.bf16.msra.mxu0 %v708
        %739 = vmatpush.bf16.msra.mxu0 %v706
        %740 = vmatpush.bf16.msra.mxu0 %v704
        %741 = vmatpush.bf16.msra.mxu0 %v702
        %742 = vmatmul.bf16.gmra.mxu0 %v646
        %v743 = vpop.f32.mrf.mxu0
        %v744 = vadd.f32 0.0, %v743
        %v745 = vpop.f32.mrf.mxu0
        %v746 = vadd.f32 0.0, %v745
        %747 = vmatmul.bf16.gmra.mxu0 %v647
        %v748 = vpop.f32.mrf.mxu0
        %v749 = vadd.f32 0.0, %v748
        %v750 = vpop.f32.mrf.mxu0
        %v751 = vadd.f32 0.0, %v750
        %752 = vmatmul.bf16.gmra.mxu0 %v648
        %v753 = vpop.f32.mrf.mxu0
        %v754 = vadd.f32 0.0, %v753
        %v755 = vpop.f32.mrf.mxu0
        %v756 = vadd.f32 0.0, %v755
        %757 = vmatmul.bf16.gmra.mxu0 %v649
        %v758 = vpop.f32.mrf.mxu0
        %v759 = vadd.f32 0.0, %v758
        %v760 = vpop.f32.mrf.mxu0
        %v761 = vadd.f32 0.0, %v760
        %762 = vdwg.mxu0
        %763 = vmatpush.bf16.msra.mxu0 %v717
        %764 = vmatpush.bf16.msra.mxu0 %v715
        %765 = vmatpush.bf16.msra.mxu0 %v713
        %766 = vmatpush.bf16.msra.mxu0 %v711
        %767 = vmatpush.bf16.msra.mxu0 %v709
        %768 = vmatpush.bf16.msra.mxu0 %v707
        %769 = vmatpush.bf16.msra.mxu0 %v705
        %770 = vmatpush.bf16.msra.mxu0 %v703
        %771 = vmatmul.bf16.gmra.mxu0 %v646
        %v772 = vpop.f32.mrf.mxu0
        %v773 = vadd.f32 0.0, %v772
        %v774 = vpop.f32.mrf.mxu0
        %v775 = vadd.f32 0.0, %v774
        %776 = vmatmul.bf16.gmra.mxu0 %v647
        %v777 = vpop.f32.mrf.mxu0
        %v778 = vadd.f32 0.0, %v777
        %v779 = vpop.f32.mrf.mxu0
        %v780 = vadd.f32 0.0, %v779
        %781 = vmatmul.bf16.gmra.mxu0 %v648
        %v782 = vpop.f32.mrf.mxu0
        %v783 = vadd.f32 0.0, %v782
        %v784 = vpop.f32.mrf.mxu0
        %v785 = vadd.f32 0.0, %v784
        %786 = vmatmul.bf16.gmra.mxu0 %v649
        %v787 = vpop.f32.mrf.mxu0
        %v788 = vadd.f32 0.0, %v787
        %v789 = vpop.f32.mrf.mxu0
        %v790 = vadd.f32 0.0, %v789
        %791 = vdwg.mxu0
        %v792 = vpack.c.bf16 %v773, %v744
        %v793 = vpack.c.bf16 %v775, %v746
        %v794 = vpack.c.bf16 %v778, %v749
        %v795 = vpack.c.bf16 %v780, %v751
        %v796 = vpack.c.bf16 %v783, %v754
        %v797 = vpack.c.bf16 %v785, %v756
        %v798 = vpack.c.bf16 %v788, %v759
        %v799 = vpack.c.bf16 %v790, %v761
        %800 = vst [vmem:[%s359] sm:$0xff] %v792
        %801 = vst [vmem:[%s359 + $0x8] sm:$0xff] %v793
        %802 = vst [vmem:[%s359 + $0x10] sm:$0xff] %v794
        %803 = vst [vmem:[%s359 + $0x18] sm:$0xff] %v795
        %804 = vst [vmem:[%s359 + $0x20] sm:$0xff] %v796
        %805 = vst [vmem:[%s359 + $0x28] sm:$0xff] %v797
        %806 = vst [vmem:[%s359 + $0x30] sm:$0xff] %v798
        %807 = vst [vmem:[%s359 + $0x38] sm:$0xff] %v799
        %s808 = sand.u32 %s152, 1
        %s809 = sand.u32 %s152, 1
        %s810 = smul.addr %s809, 64
        %s811 = scalar_lea.vmem [#allocation4], %s810
        // Predicated region
        $region79: #{_lambda_.7} parent=69 // pred_check
          %p812 = pneg %p162
        $region80: #{_lambda_.7} parent=69 // pred_check_branch
          %814 = sbr.rel (%p812) target = $region82
        $region81: #{_lambda_.7} parent=69 // pred_region
          %s815 = smul.u32 8, %s20
          %s816 = smul.u32 2, %s21
          %s817 = smul.addr %s815, 6
          %s818 = sadd.s32 %s816, %s817
          %s819 = smul.addr %s818, 4
          %s820 = scalar_lea.vmem %s4, %s819
          // Predicated region
          $region83: #{_lambda_.7} parent=81 // pred_check
            _
          $region84: #{_lambda_.7} parent=81 // pred_check_branch
            %822 = sbr.rel (0) target = $region86
          $region85: #{_lambda_.7} parent=81 // pred_region
            // Predicated region
            $region87: #{_lambda_.7} parent=85 // pred_check
              _
            $region88: #{_lambda_.7} parent=85 // pred_check_branch
              %824 = sbr.rel (0) target = $region90
            $region89: #{_lambda_.7} parent=85 // pred_region
              // Predicated region
              $region102: #{_lambda_.7} parent=89 // pred_check
                _
              $region103: #{_lambda_.7} parent=89 // pred_check_branch
                %854 = sbr.rel (0) target = $region105
              $region104: #{_lambda_.7} parent=89 // pred_region
                loop: start=0, step=1, limit=1
                $region106: #{_lambda_.7} parent=104 // loop_pre_header
                  _
                $region107: #{_lambda_.7} parent=104 // loop_header
                  %s856 = sphi 0, %s860
                  %p857 = scmp.ge.s32.totalorder %s856, 1
                  %s861 = sphi %s811, %s811
                  %s862 = sphi %s820, %s820
                $region108: #{_lambda_.7} parent=104 // loop_header_branch
                  %859 = sbr.rel (%p857) target = $region112
                $region109: #{_lambda_.7} parent=104 // loop_body
                  %v863 = vld [vmem:[%s861] sm:$0xff]
                  %864 = vst [vmem:[%s862] sm:$0xff] %v863
                  %v865 = vld [vmem:[%s861 + $0x8] sm:$0xff]
                  %866 = vst [vmem:[%s862 + $0x18] sm:$0xff] %v865
                  %v867 = vld [vmem:[%s861 + $0x10] sm:$0xff]
                  %868 = vst [vmem:[%s862 + $0x30] sm:$0xff] %v867
                  %v869 = vld [vmem:[%s861 + $0x18] sm:$0xff]
                  %870 = vst [vmem:[%s862 + $0x48] sm:$0xff] %v869
                  %v871 = vld [vmem:[%s861 + $0x20] sm:$0xff]
                  %872 = vst [vmem:[%s862 + $0x60] sm:$0xff] %v871
                  %v873 = vld [vmem:[%s861 + $0x28] sm:$0xff]
                  %874 = vst [vmem:[%s862 + $0x78] sm:$0xff] %v873
                  %v875 = vld [vmem:[%s861 + $0x30] sm:$0xff]
                  %876 = vst [vmem:[%s862 + $0x90] sm:$0xff] %v875
                  %v877 = vld [vmem:[%s861 + $0x38] sm:$0xff]
                  %878 = vst [vmem:[%s862 + $0xa8] sm:$0xff] %v877
                $region110: #{_lambda_.7} parent=104 // loop_footer
                  %s860 = sadd.s32 1, %s856
                $region111: #{_lambda_.7} parent=104 // loop_footer_branch
                  %855 = sbr.rel target = $region107
                $region112: #{_lambda_.7} parent=104 // loop_exit
                  _
              $region105: #{_lambda_.7} parent=89 // pred_fallthru
                _
              // Predicated region
              $region113: #{_lambda_.7} parent=89 // pred_check
                _
              $region114: #{_lambda_.7} parent=89 // pred_check_branch
                %880 = sbr.rel target = $region116
              $region115: #{_lambda_.7} parent=89 // pred_region
                _
              $region116: #{_lambda_.7} parent=89 // pred_fallthru
                _
            $region90: #{_lambda_.7} parent=85 // pred_fallthru
              _
            // Predicated region
            $region91: #{_lambda_.7} parent=85 // pred_check
              _
            $region92: #{_lambda_.7} parent=85 // pred_check_branch
              %826 = sbr.rel target = $region94
            $region93: #{_lambda_.7} parent=85 // pred_region
              %s828 = ssub.s32 256, 1
              loop: start=0, step=1, limit=1
              $region95: #{_lambda_.7} parent=93 // loop_pre_header
                _
              $region96: #{_lambda_.7} parent=93 // loop_header
                %s830 = sphi 0, %s834
                %p831 = scmp.ge.s32.totalorder %s830, 1
                %s835 = sphi %s811, %s811
                %s836 = sphi %s820, %s820
              $region97: #{_lambda_.7} parent=93 // loop_header_branch
                %833 = sbr.rel (%p831) target = $region101
              $region98: #{_lambda_.7} parent=93 // loop_body
                %v837 = vld [vmem:[%s835] sm:%s828]
                %838 = vst [vmem:[%s836] sm:%s828] %v837
                %v839 = vld [vmem:[%s835 + $0x8] sm:%s828]
                %840 = vst [vmem:[%s836 + $0x18] sm:%s828] %v839
                %v841 = vld [vmem:[%s835 + $0x10] sm:%s828]
                %842 = vst [vmem:[%s836 + $0x30] sm:%s828] %v841
                %v843 = vld [vmem:[%s835 + $0x18] sm:%s828]
                %844 = vst [vmem:[%s836 + $0x48] sm:%s828] %v843
                %v845 = vld [vmem:[%s835 + $0x20] sm:%s828]
                %846 = vst [vmem:[%s836 + $0x60] sm:%s828] %v845
                %v847 = vld [vmem:[%s835 + $0x28] sm:%s828]
                %848 = vst [vmem:[%s836 + $0x78] sm:%s828] %v847
                %v849 = vld [vmem:[%s835 + $0x30] sm:%s828]
                %850 = vst [vmem:[%s836 + $0x90] sm:%s828] %v849
                %v851 = vld [vmem:[%s835 + $0x38] sm:%s828]
                %852 = vst [vmem:[%s836 + $0xa8] sm:%s828] %v851
              $region99: #{_lambda_.7} parent=93 // loop_footer
                %s834 = sadd.s32 1, %s830
              $region100: #{_lambda_.7} parent=93 // loop_footer_branch
                %829 = sbr.rel target = $region96
              $region101: #{_lambda_.7} parent=93 // loop_exit
                _
            $region94: #{_lambda_.7} parent=85 // pred_fallthru
              _
          $region86: #{_lambda_.7} parent=81 // pred_fallthru
            _
          %881 = vnop
        $region82: #{_lambda_.7} parent=69 // pred_fallthru
          _
      $region70: #{_lambda_.7} parent=5 // pred_fallthru
        _
      %p882 = scmp.le.s32.totalorder 2, %s10
      // Predicated region
      $region117: #{_lambda_.7} parent=5 // pred_check
        %p883 = pneg %p882
      $region118: #{_lambda_.7} parent=5 // pred_check_branch
        %885 = sbr.rel (%p883) target = $region120
      $region119: #{_lambda_.7} parent=5 // pred_region
        %s886 = ssub.s32 %s10, 2
        // Predicated region
        $region121: #{_lambda_.7} parent=119 // pred_check
          %p887 = pneg %p168
        $region122: #{_lambda_.7} parent=119 // pred_check_branch
          %889 = sbr.rel (%p887) target = $region124
        $region123: #{_lambda_.7} parent=119 // pred_region
          %s890 = sand.u32 %s153, 1
          %s891 = sand.u32 %s153, 1
          %s892 = smul.addr %s891, 64
          %s893 = scalar_lea.vmem [#allocation4], %s892
        $region124: #{_lambda_.7} parent=119 // pred_fallthru
          _
      $region120: #{_lambda_.7} parent=5 // pred_fallthru
        _
    $region6: #{_lambda_.7} parent=1 // loop_footer
      %s14 = sadd.s32 1, %s10
    $region7: #{_lambda_.7} parent=1 // loop_footer_branch
      %9 = sbr.rel target = $region3
    $region8: #{_lambda_.7} parent=1 // loop_exit
      _

// kernel: _lambda_.10
$region0: #{_lambda_.10}
  #allocation0 [shape = 'u32[]', space=smem, size = 0x4, offset = 0x4, fixed_abs, tag = 'smem constant byte address 0x4 - core index']
  #allocation1 [shape = 'u32[72,128]{1,0:T(1,128)}', space=vmem, size = 0x9000, scoped, tag = 'internal scratch']
  #allocation2 [shape = 'bf16[64,128]{1,0:T(8,128)(2,1)}', space=vmem, size = 0x4000, scoped, tag = 'scratch operand']
  %s0 = inlined_call_operand.vmem [shape: f32[128,128], index: 0, kind: input, shape index: {}]
  %s1 = inlined_call_operand.vmem [shape: bf16[128,512], index: 1, kind: input, shape index: {}]
  %s2 = inlined_call_operand.vmem [shape: f32[1,512], index: 2, kind: input, shape index: {}]
  %s3 = inlined_call_operand.vmem [shape: f32[1,128], index: 3, kind: input, shape index: {}]
  %s4 = inlined_call_operand.vmem [shape: f32[1,128], index: 4, kind: input, shape index: {}]
  %s5 = inlined_call_operand.vmem [shape: bf16[128,512], index: 5, kind: output, shape index: {}]
  %s6 = sld [smem:[#allocation0]]
  $region57: #{_lambda_.10} parent=0
    _
  %s8 = ssub.s32 1, %s6
  %s9 = scalar_select 0, %s8, %s6
  loop: start=0, step=1, limit=4
  $region2: #{_lambda_.10} parent=0 // loop_pre_header
    _
  $region3: #{_lambda_.10} parent=0 // loop_header
    %s11 = sphi 0, %s15
    %p12 = scmp.ge.s32.totalorder %s11, 4
    %s18 = sphi 0, %s37
    %s19 = sphi 0, %s33
    %s20 = sphi 0, %s29
    %s21 = sphi 0, %s18
    %s22 = sphi 0, %s19
    %s23 = sphi 0, %s20
    %s24 = sphi 0, %s21
    %s25 = sphi 0, %s22
    %s26 = sphi 0, %s23
    %s42 = sphi 0, %s44
    %s45 = sphi 0, %s42
    %s46 = sphi 0, %s45
    %s62 = sphi 0, %s46
    %s70 = sphi 0, %s72
    %s73 = sphi 0, %s70
    %s74 = sphi 0, %s73
    %s90 = sphi 0, %s74
    %s96 = sphi 0, %s98
    %s99 = sphi 0, %s96
    %s100 = sphi 0, %s99
    %s116 = sphi 0, %s100
    %s122 = sphi 0, %s124
    %s125 = sphi 0, %s122
    %s126 = sphi 0, %s125
    %s142 = sphi 0, %s126
    %s148 = sphi 0, %s150
    %s151 = sphi 0, %s148
    %s152 = sphi 0, %s151
    %s168 = sphi 0, %s152
    %s176 = sphi 0, %s178
    %s179 = sphi 0, %s176
    %s180 = sphi 0, %s179
    %s196 = sphi 0, %s180
  $region4: #{_lambda_.10} parent=0 // loop_header_branch
    %14 = sbr.rel (%p12) target = $region8
  $region5: #{_lambda_.10} parent=0 // loop_body
    %s16 = ssub.s32 %s11, 1
    %s17 = ssub.s32 %s11, 2
    %s27 = sadd.s32 1, %s20
    %p28 = scmp.ge.s32.totalorder %s27, 1
    %s29 = scalar_select %p28, 0, %s27
    %s30 = sadd.s32 1, %s19
    %s31 = scalar_select %p28, %s30, %s19
    %p32 = scmp.ge.s32.totalorder %s31, 1
    %s33 = scalar_select %p32, 0, %s31
    %s34 = sadd.s32 1, %s18
    %s35 = scalar_select %p32, %s34, %s18
    %p36 = scmp.ge.s32.totalorder %s35, 2
    %s37 = scalar_select %p36, 0, %s35
    %s38 = ssub.s32 %s18, %s37
    %s39 = ssub.s32 %s20, %s29
    %s40 = sor.u32 %s38, %s39
    %p41 = scmp.eq.s32.totalorder %s40, 0
    %s43 = sadd.s32 %s42, 1
    %s44 = scalar_select %p41, %s42, %s43
    %p47 = pneg %p41
    %p48 = scmp.eq.s32.totalorder %s11, 1
    %p49 = por %p47, %p48
    %p50 = scmp.ne.s32.totalorder %s42, %s45
    %p51 = scmp.eq.s32.totalorder %s11, 0
    %p52 = por %p50, %p51
    %p53 = scmp.ne.s32.totalorder %s42, %s45
    %p54 = scmp.eq.s32.totalorder %s16, 1
    %p55 = por %p53, %p54
    %p56 = scmp.ne.s32.totalorder %s45, %s46
    %p57 = scmp.eq.s32.totalorder %s16, 0
    %p58 = por %p56, %p57
    %p59 = scmp.ne.s32.totalorder %s45, %s46
    %p60 = scmp.eq.s32.totalorder %s17, 1
    %p61 = por %p59, %p60
    %p63 = scmp.ne.s32.totalorder %s46, %s62
    %p64 = scmp.eq.s32.totalorder %s17, 0
    %p65 = por %p63, %p64
    %s66 = ssub.s32 %s20, %s29
    %s67 = ssub.s32 %s19, %s33
    %s68 = sor.u32 %s66, %s67
    %p69 = scmp.eq.s32.totalorder %s68, 0
    %s71 = sadd.s32 %s70, 1
    %s72 = scalar_select %p69, %s70, %s71
    %p75 = pneg %p69
    %p76 = scmp.eq.s32.totalorder %s11, 1
    %p77 = por %p75, %p76
    %p78 = scmp.ne.s32.totalorder %s70, %s73
    %p79 = scmp.eq.s32.totalorder %s11, 0
    %p80 = por %p78, %p79
    %p81 = scmp.ne.s32.totalorder %s70, %s73
    %p82 = scmp.eq.s32.totalorder %s16, 1
    %p83 = por %p81, %p82
    %p84 = scmp.ne.s32.totalorder %s73, %s74
    %p85 = scmp.eq.s32.totalorder %s16, 0
    %p86 = por %p84, %p85
    %p87 = scmp.ne.s32.totalorder %s73, %s74
    %p88 = scmp.eq.s32.totalorder %s17, 1
    %p89 = por %p87, %p88
    %p91 = scmp.ne.s32.totalorder %s74, %s90
    %p92 = scmp.eq.s32.totalorder %s17, 0
    %p93 = por %p91, %p92
    %s94 = ssub.s32 %s19, %s33
    %p95 = scmp.eq.s32.totalorder %s94, 0
    %s97 = sadd.s32 %s96, 1
    %s98 = scalar_select %p95, %s96, %s97
    %p101 = pneg %p95
    %p102 = scmp.eq.s32.totalorder %s11, 1
    %p103 = por %p101, %p102
    %p104 = scmp.ne.s32.totalorder %s96, %s99
    %p105 = scmp.eq.s32.totalorder %s11, 0
    %p106 = por %p104, %p105
    %p107 = scmp.ne.s32.totalorder %s96, %s99
    %p108 = scmp.eq.s32.totalorder %s16, 1
    %p109 = por %p107, %p108
    %p110 = scmp.ne.s32.totalorder %s99, %s100
    %p111 = scmp.eq.s32.totalorder %s16, 0
    %p112 = por %p110, %p111
    %p113 = scmp.ne.s32.totalorder %s99, %s100
    %p114 = scmp.eq.s32.totalorder %s17, 1
    %p115 = por %p113, %p114
    %p117 = scmp.ne.s32.totalorder %s100, %s116
    %p118 = scmp.eq.s32.totalorder %s17, 0
    %p119 = por %p117, %p118
    %s120 = ssub.s32 %s20, %s29
    %p121 = scmp.eq.s32.totalorder %s120, 0
    %s123 = sadd.s32 %s122, 1
    %s124 = scalar_select %p121, %s122, %s123
    %p127 = pneg %p121
    %p128 = scmp.eq.s32.totalorder %s11, 1
    %p129 = por %p127, %p128
    %p130 = scmp.ne.s32.totalorder %s122, %s125
    %p131 = scmp.eq.s32.totalorder %s11, 0
    %p132 = por %p130, %p131
    %p133 = scmp.ne.s32.totalorder %s122, %s125
    %p134 = scmp.eq.s32.totalorder %s16, 1
    %p135 = por %p133, %p134
    %p136 = scmp.ne.s32.totalorder %s125, %s126
    %p137 = scmp.eq.s32.totalorder %s16, 0
    %p138 = por %p136, %p137
    %p139 = scmp.ne.s32.totalorder %s125, %s126
    %p140 = scmp.eq.s32.totalorder %s17, 1
    %p141 = por %p139, %p140
    %p143 = scmp.ne.s32.totalorder %s126, %s142
    %p144 = scmp.eq.s32.totalorder %s17, 0
    %p145 = por %p143, %p144
    %s146 = ssub.s32 %s20, %s29
    %p147 = scmp.eq.s32.totalorder %s146, 0
    %s149 = sadd.s32 %s148, 1
    %s150 = scalar_select %p147, %s148, %s149
    %p153 = pneg %p147
    %p154 = scmp.eq.s32.totalorder %s11, 1
    %p155 = por %p153, %p154
    %p156 = scmp.ne.s32.totalorder %s148, %s151
    %p157 = scmp.eq.s32.totalorder %s11, 0
    %p158 = por %p156, %p157
    %p159 = scmp.ne.s32.totalorder %s148, %s151
    %p160 = scmp.eq.s32.totalorder %s16, 1
    %p161 = por %p159, %p160
    %p162 = scmp.ne.s32.totalorder %s151, %s152
    %p163 = scmp.eq.s32.totalorder %s16, 0
    %p164 = por %p162, %p163
    %p165 = scmp.ne.s32.totalorder %s151, %s152
    %p166 = scmp.eq.s32.totalorder %s17, 1
    %p167 = por %p165, %p166
    %p169 = scmp.ne.s32.totalorder %s152, %s168
    %p170 = scmp.eq.s32.totalorder %s17, 0
    %p171 = por %p169, %p170
    %s172 = ssub.s32 %s18, %s37
    %s173 = ssub.s32 %s19, %s33
    %s174 = sor.u32 %s172, %s173
    %p175 = scmp.eq.s32.totalorder %s174, 0
    %s177 = sadd.s32 %s176, 1
    %s178 = scalar_select %p175, %s176, %s177
    %p181 = pneg %p175
    %p182 = scmp.eq.s32.totalorder %s11, 1
    %p183 = por %p181, %p182
    %p184 = scmp.ne.s32.totalorder %s176, %s179
    %p185 = scmp.eq.s32.totalorder %s11, 0
    %p186 = por %p184, %p185
    %p187 = scmp.ne.s32.totalorder %s176, %s179
    %p188 = scmp.eq.s32.totalorder %s16, 1
    %p189 = por %p187, %p188
    %p190 = scmp.ne.s32.totalorder %s179, %s180
    %p191 = scmp.eq.s32.totalorder %s16, 0
    %p192 = por %p190, %p191
    %p193 = scmp.ne.s32.totalorder %s179, %s180
    %p194 = scmp.eq.s32.totalorder %s17, 1
    %p195 = por %p193, %p194
    %p197 = scmp.ne.s32.totalorder %s180, %s196
    %p198 = scmp.eq.s32.totalorder %s17, 0
    %p199 = por %p197, %p198
    %p200 = scmp.le.s32.totalorder 1, %s11
    %p201 = scmp.lt.s32.totalorder %s11, 3
    %p202 = pnand %p200, %p201
    %p203 = pneg %p202
    // Predicated region
    $region9: #{_lambda_.10} parent=5 // pred_check
      _
    $region10: #{_lambda_.10} parent=5 // pred_check_branch
      %205 = sbr.rel (%p202) target = $region12
    $region11: #{_lambda_.10} parent=5 // pred_region
      %s206 = ssub.s32 %s11, 1
      // Predicated region
      $region13: #{_lambda_.10} parent=11 // pred_check
        %p207 = pneg %p86
      $region14: #{_lambda_.10} parent=11 // pred_check_branch
        %209 = sbr.rel (%p207) target = $region16
      $region15: #{_lambda_.10} parent=11 // pred_region
        %s210 = smul.u32 16, %s23
        %s211 = smul.u32 4, %s22
        %p212 = scmp.lt.s32.totalorder %s210, 15
        %s213 = scalar_select %p212, %s210, 15
        %p214 = scmp.lt.s32.totalorder %s211, 3
        %s215 = scalar_select %p214, %s211, 3
        %s216 = smul.addr %s213, 4
        %s217 = sadd.s32 %s215, %s216
        %s218 = smul.addr %s217, 4
        %s219 = scalar_lea.vmem %s1, %s218
        %s220 = smul.u32 16, %s23
        %s221 = smul.u32 4, %s22
      $region16: #{_lambda_.10} parent=11 // pred_fallthru
        _
      // Predicated region
      $region17: #{_lambda_.10} parent=11 // pred_check
        %p222 = pneg %p112
      $region18: #{_lambda_.10} parent=11 // pred_check_branch
        %224 = sbr.rel (%p222) target = $region20
      $region19: #{_lambda_.10} parent=11 // pred_region
        %s225 = smul.u32 4, %s22
        %p226 = scmp.lt.s32.totalorder %s225, 3
        %s227 = scalar_select %p226, %s225, 3
        %s228 = scalar_lea.vmem %s2, %s227
        %s229 = smul.u32 4, %s22
      $region20: #{_lambda_.10} parent=11 // pred_fallthru
        _
      // Predicated region
      $region21: #{_lambda_.10} parent=11 // pred_check
        %p230 = pneg %p138
      $region22: #{_lambda_.10} parent=11 // pred_check_branch
        %232 = sbr.rel (%p230) target = $region24
      $region23: #{_lambda_.10} parent=11 // pred_region
        %p233 = scmp.lt.s32.totalorder %s23, 0
        %s234 = scalar_select %p233, %s23, 0
        %s235 = scalar_lea.vmem %s3, %s234
      $region24: #{_lambda_.10} parent=11 // pred_fallthru
        _
      // Predicated region
      $region25: #{_lambda_.10} parent=11 // pred_check
        %p236 = pneg %p164
      $region26: #{_lambda_.10} parent=11 // pred_check_branch
        %238 = sbr.rel (%p236) target = $region28
      $region27: #{_lambda_.10} parent=11 // pred_region
        %p239 = scmp.lt.s32.totalorder %s23, 0
        %s240 = scalar_select %p239, %s23, 0
        %s241 = scalar_lea.vmem %s4, %s240
      $region28: #{_lambda_.10} parent=11 // pred_fallthru
        _
    $region12: #{_lambda_.10} parent=5 // pred_fallthru
      _
    %p242 = scmp.lt.s32.totalorder %s11, 2
    // Predicated region
    $region29: #{_lambda_.10} parent=5 // pred_check
      %p243 = pneg %p242
    $region30: #{_lambda_.10} parent=5 // pred_check_branch
      %245 = sbr.rel (%p243) target = $region32
    $region31: #{_lambda_.10} parent=5 // pred_region
      // Predicated region
      $region33: #{_lambda_.10} parent=31 // pred_check
        %p246 = pneg %p52
      $region34: #{_lambda_.10} parent=31 // pred_check_branch
        %248 = sbr.rel (%p246) target = $region36
      $region35: #{_lambda_.10} parent=31 // pred_region
        %s249 = smul.u32 8, %s18
        %p250 = scmp.lt.s32.totalorder %s249, 15
        %s251 = scalar_select %p250, %s249, 15
        %p252 = scmp.lt.s32.totalorder %s20, 0
        %s253 = scalar_select %p252, %s20, 0
        %s254 = sadd.s32 %s253, %s251
        %s255 = smul.addr %s254, 8
        %s256 = scalar_lea.vmem %s0, %s255
        %s257 = smul.u32 8, %s18
      $region36: #{_lambda_.10} parent=31 // pred_fallthru
        _
    $region32: #{_lambda_.10} parent=5 // pred_fallthru
      _
    %p258 = scmp.le.s32.totalorder 1, %s11
    %p259 = scmp.lt.s32.totalorder %s11, 3
    %p260 = pnand %p258, %p259
    %p261 = pneg %p260
    // Predicated region
    $region37: #{_lambda_.10} parent=5 // pred_check
      _
    $region38: #{_lambda_.10} parent=5 // pred_check_branch
      %263 = sbr.rel (%p260) target = $region40
    $region39: #{_lambda_.10} parent=5 // pred_region
      %s264 = ssub.s32 %s11, 1
      %s265 = smul.u32 8, %s21
      %p266 = scmp.lt.s32.totalorder %s265, 15
      %s267 = scalar_select %p266, %s265, 15
      %p268 = scmp.lt.s32.totalorder %s23, 0
      %s269 = scalar_select %p268, %s23, 0
      %s270 = sadd.s32 %s269, %s267
      %s271 = smul.addr %s270, 8
      %s272 = scalar_lea.vmem %s0, %s271
      %p273 = pneg %p58
      %p274 = pneg %p55
      %s275 = smul.u32 16, %s23
      %s276 = smul.u32 4, %s22
      %p277 = scmp.lt.s32.totalorder %s275, 15
      %s278 = scalar_select %p277, %s275, 15
      %p279 = scmp.lt.s32.totalorder %s276, 3
      %s280 = scalar_select %p279, %s276, 3
      %s281 = smul.addr %s278, 4
      %s282 = sadd.s32 %s280, %s281
      %s283 = smul.addr %s282, 4
      %s284 = scalar_lea.vmem %s1, %s283
      %p285 = pneg %p86
      %p286 = pneg %p83
      %s287 = smul.u32 4, %s22
      %p288 = scmp.lt.s32.totalorder %s287, 3
      %s289 = scalar_select %p288, %s287, 3
      %s290 = scalar_lea.vmem %s2, %s289
      %p291 = pneg %p112
      %p292 = pneg %p109
      %p293 = scmp.lt.s32.totalorder %s23, 0
      %s294 = scalar_select %p293, %s23, 0
      %s295 = scalar_lea.vmem %s3, %s294
      %p296 = pneg %p138
      %p297 = pneg %p135
      %p298 = scmp.lt.s32.totalorder %s23, 0
      %s299 = scalar_select %p298, %s23, 0
      %s300 = scalar_lea.vmem %s4, %s299
      %p301 = pneg %p164
      %p302 = pneg %p161
      %p303 = pneg %p192
      %p304 = pneg %p189
      %s305 = smul.u32 8, %s21
      %s306 = smul.u32 4, %s22
      %p307 = scmp.lt.s32.totalorder %s305, 15
      %s308 = scalar_select %p307, %s305, 15
      %p309 = scmp.lt.s32.totalorder %s306, 3
      %s310 = scalar_select %p309, %s306, 3
      %s311 = smul.addr %s308, 4
      %s312 = sadd.s32 %s310, %s311
      %s313 = smul.addr %s312, 4
      %s314 = scalar_lea.vmem %s5, %s313
      %s315 = smul.u32 8, %s21
      %p316 = scmp.lt.s32.totalorder %s315, 15
      %s317 = scalar_select %p316, %s315, 15
      %p318 = scmp.lt.s32.totalorder %s23, 0
      %s319 = scalar_select %p318, %s23, 0
      %s320 = sadd.s32 %s319, %s317
      %s321 = smul.addr %s320, 8
      %s322 = scalar_lea.vmem %s0, %s321
      %s323 = smul.u32 8, %s21
      %s324 = smul.u32 16, %s23
      %s325 = smul.u32 4, %s22
      %p326 = scmp.lt.s32.totalorder %s324, 15
      %s327 = scalar_select %p326, %s324, 15
      %p328 = scmp.lt.s32.totalorder %s325, 3
      %s329 = scalar_select %p328, %s325, 3
      %s330 = smul.addr %s327, 4
      %s331 = sadd.s32 %s329, %s330
      %s332 = smul.addr %s331, 4
      %s333 = scalar_lea.vmem %s1, %s332
      %s334 = smul.u32 16, %s23
      %s335 = smul.u32 4, %s22
      %s336 = smul.u32 4, %s22
      %p337 = scmp.lt.s32.totalorder %s336, 3
      %s338 = scalar_select %p337, %s336, 3
      %s339 = scalar_lea.vmem %s2, %s338
      %s340 = smul.u32 4, %s22
      %p341 = scmp.lt.s32.totalorder %s23, 0
      %s342 = scalar_select %p341, %s23, 0
      %s343 = scalar_lea.vmem %s3, %s342
      %p344 = scmp.lt.s32.totalorder %s23, 0
      %s345 = scalar_select %p344, %s23, 0
      %s346 = scalar_lea.vmem %s4, %s345
      %s347 = smul.u32 8, %s21
      %s348 = smul.u32 4, %s22
      %p349 = scmp.lt.s32.totalorder %s347, 15
      %s350 = scalar_select %p349, %s347, 15
      %p351 = scmp.lt.s32.totalorder %s348, 3
      %s352 = scalar_select %p351, %s348, 3
      %s353 = smul.addr %s350, 4
      %s354 = sadd.s32 %s352, %s353
      %s355 = smul.addr %s354, 4
      %s356 = scalar_lea.vmem %s5, %s355
      %s357 = smul.u32 8, %s21
      %s358 = smul.u32 4, %s22
      %p359 = scmp.eq.s32.totalorder %s22, 0
      // Predicated region
      $region41: #{_lambda_.10} parent=39 // pred_check
        %p360 = pneg %p359
      $region42: #{_lambda_.10} parent=39 // pred_check_branch
        %362 = sbr.rel (%p360) target = $region44
      $region43: #{_lambda_.10} parent=39 // pred_region
        %v363 = vld [vmem:[%s322] sm:$0xff]
        %v364 = vld [vmem:[%s322 + $0x8] sm:$0xff]
        %v365 = vld [vmem:[%s322 + $0x10] sm:$0xff]
        %v366 = vld [vmem:[%s322 + $0x18] sm:$0xff]
        %v367 = vld [vmem:[%s322 + $0x20] sm:$0xff]
        %v368 = vld [vmem:[%s322 + $0x28] sm:$0xff]
        %v369 = vld [vmem:[%s322 + $0x30] sm:$0xff]
        %v370 = vld [vmem:[%s322 + $0x38] sm:$0xff]
        %371 = vadd.xlane.f32.xlu0 %v363
        %v372 = vpop.xlane.xlu0 %371
        %373 = vadd.xlane.f32.xlu0 %v364
        %v374 = vpop.xlane.xlu0 %373
        %375 = vadd.xlane.f32.xlu0 %v365
        %v376 = vpop.xlane.xlu0 %375
        %377 = vadd.xlane.f32.xlu0 %v366
        %v378 = vpop.xlane.xlu0 %377
        %379 = vadd.xlane.f32.xlu0 %v367
        %v380 = vpop.xlane.xlu0 %379
        %381 = vadd.xlane.f32.xlu0 %v368
        %v382 = vpop.xlane.xlu0 %381
        %383 = vadd.xlane.f32.xlu0 %v369
        %v384 = vpop.xlane.xlu0 %383
        %385 = vadd.xlane.f32.xlu0 %v370
        %v386 = vpop.xlane.xlu0 %385
        %v387 = vrcp.pop 128.0
        %v388 = vmul.f32 128.0, %v387
        %v389 = vsub.f32 1.0, %v388
        %v390 = vmul.f32 %v387, %v389
        %v391 = vadd.f32 %v387, %v390
        %vm392 = vweird.f32 %v387
        %v393 = vsel %vm392, %v387, %v391
        %v394 = vmul.f32 %v372, %v393
        %v395 = vmul.f32 %v374, %v393
        %v396 = vmul.f32 %v376, %v393
        %v397 = vmul.f32 %v378, %v393
        %v398 = vmul.f32 %v380, %v393
        %v399 = vmul.f32 %v382, %v393
        %v400 = vmul.f32 %v384, %v393
        %v401 = vmul.f32 %v386, %v393
        %v402 = vsub.f32 %v363, %v394
        %v403 = vsub.f32 %v364, %v395
        %v404 = vsub.f32 %v365, %v396
        %v405 = vsub.f32 %v366, %v397
        %v406 = vsub.f32 %v367, %v398
        %v407 = vsub.f32 %v368, %v399
        %v408 = vsub.f32 %v369, %v400
        %v409 = vsub.f32 %v370, %v401
        %v410 = vmul.f32 %v402, %v402
        %v411 = vmul.f32 %v403, %v403
        %v412 = vmul.f32 %v404, %v404
        %v413 = vmul.f32 %v405, %v405
        %v414 = vmul.f32 %v406, %v406
        %v415 = vmul.f32 %v407, %v407
        %v416 = vmul.f32 %v408, %v408
        %v417 = vmul.f32 %v409, %v409
        %418 = vadd.xlane.f32.xlu0 %v410
        %v419 = vpop.xlane.xlu0 %418
        %420 = vadd.xlane.f32.xlu0 %v411
        %v421 = vpop.xlane.xlu0 %420
        %422 = vadd.xlane.f32.xlu0 %v412
        %v423 = vpop.xlane.xlu0 %422
        %424 = vadd.xlane.f32.xlu0 %v413
        %v425 = vpop.xlane.xlu0 %424
        %426 = vadd.xlane.f32.xlu0 %v414
        %v427 = vpop.xlane.xlu0 %426
        %428 = vadd.xlane.f32.xlu0 %v415
        %v429 = vpop.xlane.xlu0 %428
        %430 = vadd.xlane.f32.xlu0 %v416
        %v431 = vpop.xlane.xlu0 %430
        %432 = vadd.xlane.f32.xlu0 %v417
        %v433 = vpop.xlane.xlu0 %432
        %v434 = vmul.f32 %v419, %v393
        %v435 = vmul.f32 %v421, %v393
        %v436 = vmul.f32 %v423, %v393
        %v437 = vmul.f32 %v425, %v393
        %v438 = vmul.f32 %v427, %v393
        %v439 = vmul.f32 %v429, %v393
        %v440 = vmul.f32 %v431, %v393
        %v441 = vmul.f32 %v433, %v393
        %v442 = vadd.f32 %v434, 1e-05
        %v443 = vadd.f32 %v435, 1e-05
        %v444 = vadd.f32 %v436, 1e-05
        %v445 = vadd.f32 %v437, 1e-05
        %v446 = vadd.f32 %v438, 1e-05
        %v447 = vadd.f32 %v439, 1e-05
        %v448 = vadd.f32 %v440, 1e-05
        %v449 = vadd.f32 %v441, 1e-05
        %v450 = vrsqrt.pop %v442
        %v451 = vmul.f32 %v450, %v442
        %v452 = vmul.f32 %v451, %v450
        %v453 = vmul.f32 0.5, %v452
        %v454 = vsub.f32 1.5, %v453
        %v455 = vmul.f32 %v450, %v454
        %vm456 = vweird.f32 %v442
        %vm457 = vweird.f32 %v450
        %vm458 = vmor %vm456, %vm457
        %v459 = vsel %vm458, %v450, %v455
        %v460 = vrsqrt.pop %v443
        %v461 = vmul.f32 %v460, %v443
        %v462 = vmul.f32 %v461, %v460
        %v463 = vmul.f32 0.5, %v462
        %v464 = vsub.f32 1.5, %v463
        %v465 = vmul.f32 %v460, %v464
        %vm466 = vweird.f32 %v443
        %vm467 = vweird.f32 %v460
        %vm468 = vmor %vm466, %vm467
        %v469 = vsel %vm468, %v460, %v465
        %v470 = vrsqrt.pop %v444
        %v471 = vmul.f32 %v470, %v444
        %v472 = vmul.f32 %v471, %v470
        %v473 = vmul.f32 0.5, %v472
        %v474 = vsub.f32 1.5, %v473
        %v475 = vmul.f32 %v470, %v474
        %vm476 = vweird.f32 %v444
        %vm477 = vweird.f32 %v470
        %vm478 = vmor %vm476, %vm477
        %v479 = vsel %vm478, %v470, %v475
        %v480 = vrsqrt.pop %v445
        %v481 = vmul.f32 %v480, %v445
        %v482 = vmul.f32 %v481, %v480
        %v483 = vmul.f32 0.5, %v482
        %v484 = vsub.f32 1.5, %v483
        %v485 = vmul.f32 %v480, %v484
        %vm486 = vweird.f32 %v445
        %vm487 = vweird.f32 %v480
        %vm488 = vmor %vm486, %vm487
        %v489 = vsel %vm488, %v480, %v485
        %v490 = vrsqrt.pop %v446
        %v491 = vmul.f32 %v490, %v446
        %v492 = vmul.f32 %v491, %v490
        %v493 = vmul.f32 0.5, %v492
        %v494 = vsub.f32 1.5, %v493
        %v495 = vmul.f32 %v490, %v494
        %vm496 = vweird.f32 %v446
        %vm497 = vweird.f32 %v490
        %vm498 = vmor %vm496, %vm497
        %v499 = vsel %vm498, %v490, %v495
        %v500 = vrsqrt.pop %v447
        %v501 = vmul.f32 %v500, %v447
        %v502 = vmul.f32 %v501, %v500
        %v503 = vmul.f32 0.5, %v502
        %v504 = vsub.f32 1.5, %v503
        %v505 = vmul.f32 %v500, %v504
        %vm506 = vweird.f32 %v447
        %vm507 = vweird.f32 %v500
        %vm508 = vmor %vm506, %vm507
        %v509 = vsel %vm508, %v500, %v505
        %v510 = vrsqrt.pop %v448
        %v511 = vmul.f32 %v510, %v448
        %v512 = vmul.f32 %v511, %v510
        %v513 = vmul.f32 0.5, %v512
        %v514 = vsub.f32 1.5, %v513
        %v515 = vmul.f32 %v510, %v514
        %vm516 = vweird.f32 %v448
        %vm517 = vweird.f32 %v510
        %vm518 = vmor %vm516, %vm517
        %v519 = vsel %vm518, %v510, %v515
        %v520 = vrsqrt.pop %v449
        %v521 = vmul.f32 %v520, %v449
        %v522 = vmul.f32 %v521, %v520
        %v523 = vmul.f32 0.5, %v522
        %v524 = vsub.f32 1.5, %v523
        %v525 = vmul.f32 %v520, %v524
        %vm526 = vweird.f32 %v449
        %vm527 = vweird.f32 %v520
        %vm528 = vmor %vm526, %vm527
        %v529 = vsel %vm528, %v520, %v525
        %v530 = vmul.f32 %v402, %v459
        %v531 = vmul.f32 %v403, %v469
        %v532 = vmul.f32 %v404, %v479
        %v533 = vmul.f32 %v405, %v489
        %v534 = vmul.f32 %v406, %v499
        %v535 = vmul.f32 %v407, %v509
        %v536 = vmul.f32 %v408, %v519
        %v537 = vmul.f32 %v409, %v529
        %v538 = vld [vmem:[%s343] sm:$0x1]
        %v540 = vperm.slane %v538, 0
        %v542 = vmul.f32 %v530, %v540
        %v543 = vmul.f32 %v531, %v540
        %v544 = vmul.f32 %v532, %v540
        %v545 = vmul.f32 %v533, %v540
        %v546 = vmul.f32 %v534, %v540
        %v547 = vmul.f32 %v535, %v540
        %v548 = vmul.f32 %v536, %v540
        %v549 = vmul.f32 %v537, %v540
        %v550 = vld [vmem:[%s346] sm:$0x1]
        %v552 = vperm.slane %v550, 0
        %v554 = vadd.f32 %v542, %v552
        %v555 = vadd.f32 %v543, %v552
        %v556 = vadd.f32 %v544, %v552
        %v557 = vadd.f32 %v545, %v552
        %v558 = vadd.f32 %v546, %v552
        %v559 = vadd.f32 %v547, %v552
        %v560 = vadd.f32 %v548, %v552
        %v561 = vadd.f32 %v549, %v552
        %v562 = vpack.c.bf16 %v554, %v554
        %v563 = vpack.c.bf16 %v555, %v555
        %v564 = vpack.c.bf16 %v556, %v556
        %v565 = vpack.c.bf16 %v557, %v557
        %v566 = vpack.c.bf16 %v558, %v558
        %v567 = vpack.c.bf16 %v559, %v559
        %v568 = vpack.c.bf16 %v560, %v560
        %v569 = vpack.c.bf16 %v561, %v561
        %570 = vst [vmem:[#allocation2] sm:$0xf] %v562
        %571 = vst [vmem:[#allocation2 + $0x4] sm:$0xf] %v563
        %572 = vst [vmem:[#allocation2 + $0x8] sm:$0xf] %v564
        %573 = vst [vmem:[#allocation2 + $0xc] sm:$0xf] %v565
        %574 = vst [vmem:[#allocation2 + $0x10] sm:$0xf] %v566
        %575 = vst [vmem:[#allocation2 + $0x14] sm:$0xf] %v567
        %576 = vst [vmem:[#allocation2 + $0x18] sm:$0xf] %v568
        %577 = vst [vmem:[#allocation2 + $0x1c] sm:$0xf] %v569
      $region44: #{_lambda_.10} parent=39 // pred_fallthru
        _
      %v578 = vld [vmem:[#allocation2] sm:$0xf]
      %v579 = vld [vmem:[#allocation2 + $0x4] sm:$0xf]
      %v580 = vld [vmem:[#allocation2 + $0x8] sm:$0xf]
      %v581 = vld [vmem:[#allocation2 + $0xc] sm:$0xf]
      %v582 = vld [vmem:[#allocation2 + $0x10] sm:$0xf]
      %v583 = vld [vmem:[#allocation2 + $0x14] sm:$0xf]
      %v584 = vld [vmem:[#allocation2 + $0x18] sm:$0xf]
      %v585 = vld [vmem:[#allocation2 + $0x1c] sm:$0xf]
      %v586 = vld [vmem:[%s333] sm:$0xff]
      %v587 = vld [vmem:[%s333 + $0x8] sm:$0xff]
      %v588 = vld [vmem:[%s333 + $0x10] sm:$0xff]
      %v589 = vld [vmem:[%s333 + $0x18] sm:$0xff]
      %v590 = vld [vmem:[%s333 + $0x20] sm:$0xff]
      %v591 = vld [vmem:[%s333 + $0x28] sm:$0xff]
      %v592 = vld [vmem:[%s333 + $0x30] sm:$0xff]
      %v593 = vld [vmem:[%s333 + $0x38] sm:$0xff]
      %v594 = vld [vmem:[%s333 + $0x40] sm:$0xff]
      %v595 = vld [vmem:[%s333 + $0x48] sm:$0xff]
      %v596 = vld [vmem:[%s333 + $0x50] sm:$0xff]
      %v597 = vld [vmem:[%s333 + $0x58] sm:$0xff]
      %v598 = vld [vmem:[%s333 + $0x60] sm:$0xff]
      %v599 = vld [vmem:[%s333 + $0x68] sm:$0xff]
      %v600 = vld [vmem:[%s333 + $0x70] sm:$0xff]
      %v601 = vld [vmem:[%s333 + $0x78] sm:$0xff]
      %v602 = vld [vmem:[%s333 + $0x80] sm:$0xff]
      %v603 = vld [vmem:[%s333 + $0x88] sm:$0xff]
      %v604 = vld [vmem:[%s333 + $0x90] sm:$0xff]
      %v605 = vld [vmem:[%s333 + $0x98] sm:$0xff]
      %v606 = vld [vmem:[%s333 + $0xa0] sm:$0xff]
      %v607 = vld [vmem:[%s333 + $0xa8] sm:$0xff]
      %v608 = vld [vmem:[%s333 + $0xb0] sm:$0xff]
      %v609 = vld [vmem:[%s333 + $0xb8] sm:$0xff]
      %v610 = vld [vmem:[%s333 + $0xc0] sm:$0xff]
      %v611 = vld [vmem:[%s333 + $0xc8] sm:$0xff]
      %v612 = vld [vmem:[%s333 + $0xd0] sm:$0xff]
      %v613 = vld [vmem:[%s333 + $0xd8] sm:$0xff]
      %v614 = vld [vmem:[%s333 + $0xe0] sm:$0xff]
      %v615 = vld [vmem:[%s333 + $0xe8] sm:$0xff]
      %v616 = vld [vmem:[%s333 + $0xf0] sm:$0xff]
      %v617 = vld [vmem:[%s333 + $0xf8] sm:$0xff]
      %v618 = vld [vmem:[%s339] sm:$0xf]
      %v620 = vperm.slane %v618, 0
      %v621 = vperm.slane %v618, 1
      %v622 = vperm.slane %v618, 2
      %v623 = vperm.slane %v618, 3
      %v636 = vunpack.c.l.b16 %v578
      %v637 = vunpack.c.l.b16 %v579
      %v638 = vunpack.c.l.b16 %v580
      %v639 = vunpack.c.l.b16 %v581
      %v640 = vunpack.c.l.b16 %v582
      %v641 = vunpack.c.l.b16 %v583
      %v642 = vunpack.c.l.b16 %v584
      %v643 = vunpack.c.l.b16 %v585
      %v644 = vpack.c.b16 %v637, %v636
      %v645 = vpack.c.b16 %v639, %v638
      %v646 = vpack.c.b16 %v641, %v640
      %v647 = vpack.c.b16 %v643, %v642
      %v684 = vunpack.c.l.b16 %v586
      %v685 = vunpack.c.h.b16 %v586
      %v686 = vunpack.c.l.b16 %v587
      %v687 = vunpack.c.h.b16 %v587
      %v688 = vunpack.c.l.b16 %v588
      %v689 = vunpack.c.h.b16 %v588
      %v690 = vunpack.c.l.b16 %v589
      %v691 = vunpack.c.h.b16 %v589
      %v692 = vunpack.c.l.b16 %v590
      %v693 = vunpack.c.h.b16 %v590
      %v694 = vunpack.c.l.b16 %v591
      %v695 = vunpack.c.h.b16 %v591
      %v696 = vunpack.c.l.b16 %v592
      %v697 = vunpack.c.h.b16 %v592
      %v698 = vunpack.c.l.b16 %v593
      %v699 = vunpack.c.h.b16 %v593
      %v700 = vunpack.c.l.b16 %v594
      %v701 = vunpack.c.h.b16 %v594
      %v702 = vunpack.c.l.b16 %v595
      %v703 = vunpack.c.h.b16 %v595
      %v704 = vunpack.c.l.b16 %v596
      %v705 = vunpack.c.h.b16 %v596
      %v706 = vunpack.c.l.b16 %v597
      %v707 = vunpack.c.h.b16 %v597
      %v708 = vunpack.c.l.b16 %v598
      %v709 = vunpack.c.h.b16 %v598
      %v710 = vunpack.c.l.b16 %v599
      %v711 = vunpack.c.h.b16 %v599
      %v712 = vunpack.c.l.b16 %v600
      %v713 = vunpack.c.h.b16 %v600
      %v714 = vunpack.c.l.b16 %v601
      %v715 = vunpack.c.h.b16 %v601
      %v716 = vunpack.c.l.b16 %v602
      %v717 = vunpack.c.h.b16 %v602
      %v718 = vunpack.c.l.b16 %v603
      %v719 = vunpack.c.h.b16 %v603
      %v720 = vunpack.c.l.b16 %v604
      %v721 = vunpack.c.h.b16 %v604
      %v722 = vunpack.c.l.b16 %v605
      %v723 = vunpack.c.h.b16 %v605
      %v724 = vunpack.c.l.b16 %v606
      %v725 = vunpack.c.h.b16 %v606
      %v726 = vunpack.c.l.b16 %v607
      %v727 = vunpack.c.h.b16 %v607
      %v728 = vunpack.c.l.b16 %v608
      %v729 = vunpack.c.h.b16 %v608
      %v730 = vunpack.c.l.b16 %v609
      %v731 = vunpack.c.h.b16 %v609
      %v732 = vunpack.c.l.b16 %v610
      %v733 = vunpack.c.h.b16 %v610
      %v734 = vunpack.c.l.b16 %v611
      %v735 = vunpack.c.h.b16 %v611
      %v736 = vunpack.c.l.b16 %v612
      %v737 = vunpack.c.h.b16 %v612
      %v738 = vunpack.c.l.b16 %v613
      %v739 = vunpack.c.h.b16 %v613
      %v740 = vunpack.c.l.b16 %v614
      %v741 = vunpack.c.h.b16 %v614
      %v742 = vunpack.c.l.b16 %v615
      %v743 = vunpack.c.h.b16 %v615
      %v744 = vunpack.c.l.b16 %v616
      %v745 = vunpack.c.h.b16 %v616
      %v746 = vunpack.c.l.b16 %v617
      %v747 = vunpack.c.h.b16 %v617
      %v748 = vpack.c.b16 %v688, %v684
      %v749 = vpack.c.b16 %v689, %v685
      %v750 = vpack.c.b16 %v690, %v686
      %v751 = vpack.c.b16 %v691, %v687
      %v752 = vpack.c.b16 %v696, %v692
      %v753 = vpack.c.b16 %v697, %v693
      %v754 = vpack.c.b16 %v698, %v694
      %v755 = vpack.c.b16 %v699, %v695
      %v756 = vpack.c.b16 %v704, %v700
      %v757 = vpack.c.b16 %v705, %v701
      %v758 = vpack.c.b16 %v706, %v702
      %v759 = vpack.c.b16 %v707, %v703
      %v760 = vpack.c.b16 %v712, %v708
      %v761 = vpack.c.b16 %v713, %v709
      %v762 = vpack.c.b16 %v714, %v710
      %v763 = vpack.c.b16 %v715, %v711
      %v764 = vpack.c.b16 %v720, %v716
      %v765 = vpack.c.b16 %v721, %v717
      %v766 = vpack.c.b16 %v722, %v718
      %v767 = vpack.c.b16 %v723, %v719
      %v768 = vpack.c.b16 %v728, %v724
      %v769 = vpack.c.b16 %v729, %v725
      %v770 = vpack.c.b16 %v730, %v726
      %v771 = vpack.c.b16 %v731, %v727
      %v772 = vpack.c.b16 %v736, %v732
      %v773 = vpack.c.b16 %v737, %v733
      %v774 = vpack.c.b16 %v738, %v734
      %v775 = vpack.c.b16 %v739, %v735
      %v776 = vpack.c.b16 %v744, %v740
      %v777 = vpack.c.b16 %v745, %v741
      %v778 = vpack.c.b16 %v746, %v742
      %v779 = vpack.c.b16 %v747, %v743
      %812 = vmatpush.bf16.msra.mxu0 %v776
      %813 = vmatpush.bf16.msra.mxu0 %v772
      %814 = vmatpush.bf16.msra.mxu0 %v768
      %815 = vmatpush.bf16.msra.mxu0 %v764
      %816 = vmatpush.bf16.msra.mxu0 %v760
      %817 = vmatpush.bf16.msra.mxu0 %v756
      %818 = vmatpush.bf16.msra.mxu0 %v752
      %819 = vmatpush.bf16.msra.mxu0 %v748
      %820 = vmatmul.bf16.gmra.mxu0 %v644
      %v821 = vpop.f32.mrf.mxu0
      %v822 = vadd.f32 %v620, %v821
      %v823 = vpop.f32.mrf.mxu0
      %v824 = vadd.f32 %v620, %v823
      %825 = vmatmul.bf16.gmra.mxu0 %v645
      %v826 = vpop.f32.mrf.mxu0
      %v827 = vadd.f32 %v620, %v826
      %v828 = vpop.f32.mrf.mxu0
      %v829 = vadd.f32 %v620, %v828
      %830 = vmatmul.bf16.gmra.mxu0 %v646
      %v831 = vpop.f32.mrf.mxu0
      %v832 = vadd.f32 %v620, %v831
      %v833 = vpop.f32.mrf.mxu0
      %v834 = vadd.f32 %v620, %v833
      %835 = vmatmul.bf16.gmra.mxu0 %v647
      %v836 = vpop.f32.mrf.mxu0
      %v837 = vadd.f32 %v620, %v836
      %v838 = vpop.f32.mrf.mxu0
      %v839 = vadd.f32 %v620, %v838
      %840 = vdwg.mxu0
      %841 = vmatpush.bf16.msra.mxu0 %v777
      %842 = vmatpush.bf16.msra.mxu0 %v773
      %843 = vmatpush.bf16.msra.mxu0 %v769
      %844 = vmatpush.bf16.msra.mxu0 %v765
      %845 = vmatpush.bf16.msra.mxu0 %v761
      %846 = vmatpush.bf16.msra.mxu0 %v757
      %847 = vmatpush.bf16.msra.mxu0 %v753
      %848 = vmatpush.bf16.msra.mxu0 %v749
      %849 = vmatmul.bf16.gmra.mxu0 %v644
      %v850 = vpop.f32.mrf.mxu0
      %v851 = vadd.f32 %v621, %v850
      %v852 = vpop.f32.mrf.mxu0
      %v853 = vadd.f32 %v621, %v852
      %854 = vmatmul.bf16.gmra.mxu0 %v645
      %v855 = vpop.f32.mrf.mxu0
      %v856 = vadd.f32 %v621, %v855
      %v857 = vpop.f32.mrf.mxu0
      %v858 = vadd.f32 %v621, %v857
      %859 = vmatmul.bf16.gmra.mxu0 %v646
      %v860 = vpop.f32.mrf.mxu0
      %v861 = vadd.f32 %v621, %v860
      %v862 = vpop.f32.mrf.mxu0
      %v863 = vadd.f32 %v621, %v862
      %864 = vmatmul.bf16.gmra.mxu0 %v647
      %v865 = vpop.f32.mrf.mxu0
      %v866 = vadd.f32 %v621, %v865
      %v867 = vpop.f32.mrf.mxu0
      %v868 = vadd.f32 %v621, %v867
      %869 = vdwg.mxu0
      %870 = vmatpush.bf16.msra.mxu0 %v778
      %871 = vmatpush.bf16.msra.mxu0 %v774
      %872 = vmatpush.bf16.msra.mxu0 %v770
      %873 = vmatpush.bf16.msra.mxu0 %v766
      %874 = vmatpush.bf16.msra.mxu0 %v762
      %875 = vmatpush.bf16.msra.mxu0 %v758
      %876 = vmatpush.bf16.msra.mxu0 %v754
      %877 = vmatpush.bf16.msra.mxu0 %v750
      %878 = vmatmul.bf16.gmra.mxu0 %v644
      %v879 = vpop.f32.mrf.mxu0
      %v880 = vadd.f32 %v622, %v879
      %v881 = vpop.f32.mrf.mxu0
      %v882 = vadd.f32 %v622, %v881
      %883 = vmatmul.bf16.gmra.mxu0 %v645
      %v884 = vpop.f32.mrf.mxu0
      %v885 = vadd.f32 %v622, %v884
      %v886 = vpop.f32.mrf.mxu0
      %v887 = vadd.f32 %v622, %v886
      %888 = vmatmul.bf16.gmra.mxu0 %v646
      %v889 = vpop.f32.mrf.mxu0
      %v890 = vadd.f32 %v622, %v889
      %v891 = vpop.f32.mrf.mxu0
      %v892 = vadd.f32 %v622, %v891
      %893 = vmatmul.bf16.gmra.mxu0 %v647
      %v894 = vpop.f32.mrf.mxu0
      %v895 = vadd.f32 %v622, %v894
      %v896 = vpop.f32.mrf.mxu0
      %v897 = vadd.f32 %v622, %v896
      %898 = vdwg.mxu0
      %899 = vmatpush.bf16.msra.mxu0 %v779
      %900 = vmatpush.bf16.msra.mxu0 %v775
      %901 = vmatpush.bf16.msra.mxu0 %v771
      %902 = vmatpush.bf16.msra.mxu0 %v767
      %903 = vmatpush.bf16.msra.mxu0 %v763
      %904 = vmatpush.bf16.msra.mxu0 %v759
      %905 = vmatpush.bf16.msra.mxu0 %v755
      %906 = vmatpush.bf16.msra.mxu0 %v751
      %907 = vmatmul.bf16.gmra.mxu0 %v644
      %v908 = vpop.f32.mrf.mxu0
      %v909 = vadd.f32 %v623, %v908
      %v910 = vpop.f32.mrf.mxu0
      %v911 = vadd.f32 %v623, %v910
      %912 = vmatmul.bf16.gmra.mxu0 %v645
      %v913 = vpop.f32.mrf.mxu0
      %v914 = vadd.f32 %v623, %v913
      %v915 = vpop.f32.mrf.mxu0
      %v916 = vadd.f32 %v623, %v915
      %917 = vmatmul.bf16.gmra.mxu0 %v646
      %v918 = vpop.f32.mrf.mxu0
      %v919 = vadd.f32 %v623, %v918
      %v920 = vpop.f32.mrf.mxu0
      %v921 = vadd.f32 %v623, %v920
      %922 = vmatmul.bf16.gmra.mxu0 %v647
      %v923 = vpop.f32.mrf.mxu0
      %v924 = vadd.f32 %v623, %v923
      %v925 = vpop.f32.mrf.mxu0
      %v926 = vadd.f32 %v623, %v925
      %927 = vdwg.mxu0
      %v928 = vmul.f32 %v822, 0.5
      %v929 = vmul.f32 %v851, 0.5
      %v930 = vmul.f32 %v880, 0.5
      %v931 = vmul.f32 %v909, 0.5
      %v932 = vmul.f32 %v824, 0.5
      %v933 = vmul.f32 %v853, 0.5
      %v934 = vmul.f32 %v882, 0.5
      %v935 = vmul.f32 %v911, 0.5
      %v936 = vmul.f32 %v827, 0.5
      %v937 = vmul.f32 %v856, 0.5
      %v938 = vmul.f32 %v885, 0.5
      %v939 = vmul.f32 %v914, 0.5
      %v940 = vmul.f32 %v829, 0.5
      %v941 = vmul.f32 %v858, 0.5
      %v942 = vmul.f32 %v887, 0.5
      %v943 = vmul.f32 %v916, 0.5
      %v944 = vmul.f32 %v832, 0.5
      %v945 = vmul.f32 %v861, 0.5
      %v946 = vmul.f32 %v890, 0.5
      %v947 = vmul.f32 %v919, 0.5
      %v948 = vmul.f32 %v834, 0.5
      %v949 = vmul.f32 %v863, 0.5
      %v950 = vmul.f32 %v892, 0.5
      %v951 = vmul.f32 %v921, 0.5
      %v952 = vmul.f32 %v837, 0.5
      %v953 = vmul.f32 %v866, 0.5
      %v954 = vmul.f32 %v895, 0.5
      %v955 = vmul.f32 %v924, 0.5
      %v956 = vmul.f32 %v839, 0.5
      %v957 = vmul.f32 %v868, 0.5
      %v958 = vmul.f32 %v897, 0.5
      %v959 = vmul.f32 %v926, 0.5
      %v960 = vmul.f32 %v822, 0.044715
      %v961 = vmul.f32 %v851, 0.044715
      %v962 = vmul.f32 %v880, 0.044715
      %v963 = vmul.f32 %v909, 0.044715
      %v964 = vmul.f32 %v824, 0.044715
      %v965 = vmul.f32 %v853, 0.044715
      %v966 = vmul.f32 %v882, 0.044715
      %v967 = vmul.f32 %v911, 0.044715
      %v968 = vmul.f32 %v827, 0.044715
      %v969 = vmul.f32 %v856, 0.044715
      %v970 = vmul.f32 %v885, 0.044715
      %v971 = vmul.f32 %v914, 0.044715
      %v972 = vmul.f32 %v829, 0.044715
      %v973 = vmul.f32 %v858, 0.044715
      %v974 = vmul.f32 %v887, 0.044715
      %v975 = vmul.f32 %v916, 0.044715
      %v976 = vmul.f32 %v832, 0.044715
      %v977 = vmul.f32 %v861, 0.044715
      %v978 = vmul.f32 %v890, 0.044715
      %v979 = vmul.f32 %v919, 0.044715
      %v980 = vmul.f32 %v834, 0.044715
      %v981 = vmul.f32 %v863, 0.044715
      %v982 = vmul.f32 %v892, 0.044715
      %v983 = vmul.f32 %v921, 0.044715
      %v984 = vmul.f32 %v837, 0.044715
      %v985 = vmul.f32 %v866, 0.044715
      %v986 = vmul.f32 %v895, 0.044715
      %v987 = vmul.f32 %v924, 0.044715
      %v988 = vmul.f32 %v839, 0.044715
      %v989 = vmul.f32 %v868, 0.044715
      %v990 = vmul.f32 %v897, 0.044715
      %v991 = vmul.f32 %v926, 0.044715
      %v992 = vmul.f32 %v960, %v822
      %v993 = vmul.f32 %v961, %v851
      %v994 = vmul.f32 %v962, %v880
      %v995 = vmul.f32 %v963, %v909
      %v996 = vmul.f32 %v964, %v824
      %v997 = vmul.f32 %v965, %v853
      %v998 = vmul.f32 %v966, %v882
      %v999 = vmul.f32 %v967, %v911
      %v1000 = vmul.f32 %v968, %v827
      %v1001 = vmul.f32 %v969, %v856
      %v1002 = vmul.f32 %v970, %v885
      %v1003 = vmul.f32 %v971, %v914
      %v1004 = vmul.f32 %v972, %v829
      %v1005 = vmul.f32 %v973, %v858
      %v1006 = vmul.f32 %v974, %v887
      %v1007 = vmul.f32 %v975, %v916
      %v1008 = vmul.f32 %v976, %v832
      %v1009 = vmul.f32 %v977, %v861
      %v1010 = vmul.f32 %v978, %v890
      %v1011 = vmul.f32 %v979, %v919
      %v1012 = vmul.f32 %v980, %v834
      %v1013 = vmul.f32 %v981, %v863
      %v1014 = vmul.f32 %v982, %v892
      %v1015 = vmul.f32 %v983, %v921
      %v1016 = vmul.f32 %v984, %v837
      %v1017 = vmul.f32 %v985, %v866
      %v1018 = vmul.f32 %v986, %v895
      %v1019 = vmul.f32 %v987, %v924
      %v1020 = vmul.f32 %v988, %v839
      %v1021 = vmul.f32 %v989, %v868
      %v1022 = vmul.f32 %v990, %v897
      %v1023 = vmul.f32 %v991, %v926
      %v1024 = vmul.f32 %v992, %v822
      %v1025 = vmul.f32 %v993, %v851
      %v1026 = vmul.f32 %v994, %v880
      %v1027 = vmul.f32 %v995, %v909
      %v1028 = vmul.f32 %v996, %v824
      %v1029 = vmul.f32 %v997, %v853
      %v1030 = vmul.f32 %v998, %v882
      %v1031 = vmul.f32 %v999, %v911
      %v1032 = vmul.f32 %v1000, %v827
      %v1033 = vmul.f32 %v1001, %v856
      %v1034 = vmul.f32 %v1002, %v885
      %v1035 = vmul.f32 %v1003, %v914
      %v1036 = vmul.f32 %v1004, %v829
      %v1037 = vmul.f32 %v1005, %v858
      %v1038 = vmul.f32 %v1006, %v887
      %v1039 = vmul.f32 %v1007, %v916
      %v1040 = vmul.f32 %v1008, %v832
      %v1041 = vmul.f32 %v1009, %v861
      %v1042 = vmul.f32 %v1010, %v890
      %v1043 = vmul.f32 %v1011, %v919
      %v1044 = vmul.f32 %v1012, %v834
      %v1045 = vmul.f32 %v1013, %v863
      %v1046 = vmul.f32 %v1014, %v892
      %v1047 = vmul.f32 %v1015, %v921
      %v1048 = vmul.f32 %v1016, %v837
      %v1049 = vmul.f32 %v1017, %v866
      %v1050 = vmul.f32 %v1018, %v895
      %v1051 = vmul.f32 %v1019, %v924
      %v1052 = vmul.f32 %v1020, %v839
      %v1053 = vmul.f32 %v1021, %v868
      %v1054 = vmul.f32 %v1022, %v897
      %v1055 = vmul.f32 %v1023, %v926
      %v1056 = vadd.f32 %v822, %v1024
      %v1057 = vadd.f32 %v851, %v1025
      %v1058 = vadd.f32 %v880, %v1026
      %v1059 = vadd.f32 %v909, %v1027
      %v1060 = vadd.f32 %v824, %v1028
      %v1061 = vadd.f32 %v853, %v1029
      %v1062 = vadd.f32 %v882, %v1030
      %v1063 = vadd.f32 %v911, %v1031
      %v1064 = vadd.f32 %v827, %v1032
      %v1065 = vadd.f32 %v856, %v1033
      %v1066 = vadd.f32 %v885, %v1034
      %v1067 = vadd.f32 %v914, %v1035
      %v1068 = vadd.f32 %v829, %v1036
      %v1069 = vadd.f32 %v858, %v1037
      %v1070 = vadd.f32 %v887, %v1038
      %v1071 = vadd.f32 %v916, %v1039
      %v1072 = vadd.f32 %v832, %v1040
      %v1073 = vadd.f32 %v861, %v1041
      %v1074 = vadd.f32 %v890, %v1042
      %v1075 = vadd.f32 %v919, %v1043
      %v1076 = vadd.f32 %v834, %v1044
      %v1077 = vadd.f32 %v863, %v1045
      %v1078 = vadd.f32 %v892, %v1046
      %v1079 = vadd.f32 %v921, %v1047
      %v1080 = vadd.f32 %v837, %v1048
      %v1081 = vadd.f32 %v866, %v1049
      %v1082 = vadd.f32 %v895, %v1050
      %v1083 = vadd.f32 %v924, %v1051
      %v1084 = vadd.f32 %v839, %v1052
      %v1085 = vadd.f32 %v868, %v1053
      %v1086 = vadd.f32 %v897, %v1054
      %v1087 = vadd.f32 %v926, %v1055
      %v1088 = vmul.f32 %v1056, 0.7978846
      %v1089 = vmul.f32 %v1057, 0.7978846
      %v1090 = vmul.f32 %v1058, 0.7978846
      %v1091 = vmul.f32 %v1059, 0.7978846
      %v1092 = vmul.f32 %v1060, 0.7978846
      %v1093 = vmul.f32 %v1061, 0.7978846
      %v1094 = vmul.f32 %v1062, 0.7978846
      %v1095 = vmul.f32 %v1063, 0.7978846
      %v1096 = vmul.f32 %v1064, 0.7978846
      %v1097 = vmul.f32 %v1065, 0.7978846
      %v1098 = vmul.f32 %v1066, 0.7978846
      %v1099 = vmul.f32 %v1067, 0.7978846
      %v1100 = vmul.f32 %v1068, 0.7978846
      %v1101 = vmul.f32 %v1069, 0.7978846
      %v1102 = vmul.f32 %v1070, 0.7978846
      %v1103 = vmul.f32 %v1071, 0.7978846
      %v1104 = vmul.f32 %v1072, 0.7978846
      %v1105 = vmul.f32 %v1073, 0.7978846
      %v1106 = vmul.f32 %v1074, 0.7978846
      %v1107 = vmul.f32 %v1075, 0.7978846
      %v1108 = vmul.f32 %v1076, 0.7978846
      %v1109 = vmul.f32 %v1077, 0.7978846
      %v1110 = vmul.f32 %v1078, 0.7978846
      %v1111 = vmul.f32 %v1079, 0.7978846
      %v1112 = vmul.f32 %v1080, 0.7978846
      %v1113 = vmul.f32 %v1081, 0.7978846
      %v1114 = vmul.f32 %v1082, 0.7978846
      %v1115 = vmul.f32 %v1083, 0.7978846
      %v1116 = vmul.f32 %v1084, 0.7978846
      %v1117 = vmul.f32 %v1085, 0.7978846
      %v1118 = vmul.f32 %v1086, 0.7978846
      %v1119 = vmul.f32 %v1087, 0.7978846
      %v1120 = vtanh.pop %v1088
      %v1121 = vtanh.pop %v1089
      %v1122 = vtanh.pop %v1090
      %v1123 = vtanh.pop %v1091
      %v1124 = vtanh.pop %v1092
      %v1125 = vtanh.pop %v1093
      %v1126 = vtanh.pop %v1094
      %v1127 = vtanh.pop %v1095
      %v1128 = vtanh.pop %v1096
      %v1129 = vtanh.pop %v1097
      %v1130 = vtanh.pop %v1098
      %v1131 = vtanh.pop %v1099
      %v1132 = vtanh.pop %v1100
      %v1133 = vtanh.pop %v1101
      %v1134 = vtanh.pop %v1102
      %v1135 = vtanh.pop %v1103
      %v1136 = vtanh.pop %v1104
      %v1137 = vtanh.pop %v1105
      %v1138 = vtanh.pop %v1106
      %v1139 = vtanh.pop %v1107
      %v1140 = vtanh.pop %v1108
      %v1141 = vtanh.pop %v1109
      %v1142 = vtanh.pop %v1110
      %v1143 = vtanh.pop %v1111
      %v1144 = vtanh.pop %v1112
      %v1145 = vtanh.pop %v1113
      %v1146 = vtanh.pop %v1114
      %v1147 = vtanh.pop %v1115
      %v1148 = vtanh.pop %v1116
      %v1149 = vtanh.pop %v1117
      %v1150 = vtanh.pop %v1118
      %v1151 = vtanh.pop %v1119
      %v1152 = vadd.f32 %v1120, 1.0
      %v1153 = vadd.f32 %v1121, 1.0
      %v1154 = vadd.f32 %v1122, 1.0
      %v1155 = vadd.f32 %v1123, 1.0
      %v1156 = vadd.f32 %v1124, 1.0
      %v1157 = vadd.f32 %v1125, 1.0
      %v1158 = vadd.f32 %v1126, 1.0
      %v1159 = vadd.f32 %v1127, 1.0
      %v1160 = vadd.f32 %v1128, 1.0
      %v1161 = vadd.f32 %v1129, 1.0
      %v1162 = vadd.f32 %v1130, 1.0
      %v1163 = vadd.f32 %v1131, 1.0
      %v1164 = vadd.f32 %v1132, 1.0
      %v1165 = vadd.f32 %v1133, 1.0
      %v1166 = vadd.f32 %v1134, 1.0
      %v1167 = vadd.f32 %v1135, 1.0
      %v1168 = vadd.f32 %v1136, 1.0
      %v1169 = vadd.f32 %v1137, 1.0
      %v1170 = vadd.f32 %v1138, 1.0
      %v1171 = vadd.f32 %v1139, 1.0
      %v1172 = vadd.f32 %v1140, 1.0
      %v1173 = vadd.f32 %v1141, 1.0
      %v1174 = vadd.f32 %v1142, 1.0
      %v1175 = vadd.f32 %v1143, 1.0
      %v1176 = vadd.f32 %v1144, 1.0
      %v1177 = vadd.f32 %v1145, 1.0
      %v1178 = vadd.f32 %v1146, 1.0
      %v1179 = vadd.f32 %v1147, 1.0
      %v1180 = vadd.f32 %v1148, 1.0
      %v1181 = vadd.f32 %v1149, 1.0
      %v1182 = vadd.f32 %v1150, 1.0
      %v1183 = vadd.f32 %v1151, 1.0
      %v1184 = vmul.f32 %v928, %v1152
      %v1185 = vmul.f32 %v929, %v1153
      %v1186 = vmul.f32 %v930, %v1154
      %v1187 = vmul.f32 %v931, %v1155
      %v1188 = vmul.f32 %v932, %v1156
      %v1189 = vmul.f32 %v933, %v1157
      %v1190 = vmul.f32 %v934, %v1158
      %v1191 = vmul.f32 %v935, %v1159
      %v1192 = vmul.f32 %v936, %v1160
      %v1193 = vmul.f32 %v937, %v1161
      %v1194 = vmul.f32 %v938, %v1162
      %v1195 = vmul.f32 %v939, %v1163
      %v1196 = vmul.f32 %v940, %v1164
      %v1197 = vmul.f32 %v941, %v1165
      %v1198 = vmul.f32 %v942, %v1166
      %v1199 = vmul.f32 %v943, %v1167
      %v1200 = vmul.f32 %v944, %v1168
      %v1201 = vmul.f32 %v945, %v1169
      %v1202 = vmul.f32 %v946, %v1170
      %v1203 = vmul.f32 %v947, %v1171
      %v1204 = vmul.f32 %v948, %v1172
      %v1205 = vmul.f32 %v949, %v1173
      %v1206 = vmul.f32 %v950, %v1174
      %v1207 = vmul.f32 %v951, %v1175
      %v1208 = vmul.f32 %v952, %v1176
      %v1209 = vmul.f32 %v953, %v1177
      %v1210 = vmul.f32 %v954, %v1178
      %v1211 = vmul.f32 %v955, %v1179
      %v1212 = vmul.f32 %v956, %v1180
      %v1213 = vmul.f32 %v957, %v1181
      %v1214 = vmul.f32 %v958, %v1182
      %v1215 = vmul.f32 %v959, %v1183
      %v1216 = vpack.c.bf16 %v1185, %v1184
      %v1217 = vpack.c.bf16 %v1187, %v1186
      %v1218 = vpack.c.bf16 %v1189, %v1188
      %v1219 = vpack.c.bf16 %v1191, %v1190
      %v1220 = vpack.c.bf16 %v1193, %v1192
      %v1221 = vpack.c.bf16 %v1195, %v1194
      %v1222 = vpack.c.bf16 %v1197, %v1196
      %v1223 = vpack.c.bf16 %v1199, %v1198
      %v1224 = vpack.c.bf16 %v1201, %v1200
      %v1225 = vpack.c.bf16 %v1203, %v1202
      %v1226 = vpack.c.bf16 %v1205, %v1204
      %v1227 = vpack.c.bf16 %v1207, %v1206
      %v1228 = vpack.c.bf16 %v1209, %v1208
      %v1229 = vpack.c.bf16 %v1211, %v1210
      %v1230 = vpack.c.bf16 %v1213, %v1212
      %v1231 = vpack.c.bf16 %v1215, %v1214
      %1232 = vst [vmem:[%s356] sm:$0xff] %v1216
      %1233 = vst [vmem:[%s356 + $0x8] sm:$0xff] %v1217
      %1234 = vst [vmem:[%s356 + $0x10] sm:$0xff] %v1218
      %1235 = vst [vmem:[%s356 + $0x18] sm:$0xff] %v1219
      %1236 = vst [vmem:[%s356 + $0x20] sm:$0xff] %v1220
      %1237 = vst [vmem:[%s356 + $0x28] sm:$0xff] %v1221
      %1238 = vst [vmem:[%s356 + $0x30] sm:$0xff] %v1222
      %1239 = vst [vmem:[%s356 + $0x38] sm:$0xff] %v1223
      %1240 = vst [vmem:[%s356 + $0x40] sm:$0xff] %v1224
      %1241 = vst [vmem:[%s356 + $0x48] sm:$0xff] %v1225
      %1242 = vst [vmem:[%s356 + $0x50] sm:$0xff] %v1226
      %1243 = vst [vmem:[%s356 + $0x58] sm:$0xff] %v1227
      %1244 = vst [vmem:[%s356 + $0x60] sm:$0xff] %v1228
      %1245 = vst [vmem:[%s356 + $0x68] sm:$0xff] %v1229
      %1246 = vst [vmem:[%s356 + $0x70] sm:$0xff] %v1230
      %1247 = vst [vmem:[%s356 + $0x78] sm:$0xff] %v1231
      %s1248 = smul.u32 8, %s21
      %s1249 = smul.u32 4, %s22
      %p1250 = scmp.lt.s32.totalorder %s1248, 15
      %s1251 = scalar_select %p1250, %s1248, 15
      %p1252 = scmp.lt.s32.totalorder %s1249, 3
      %s1253 = scalar_select %p1252, %s1249, 3
      %s1254 = smul.addr %s1251, 4
      %s1255 = sadd.s32 %s1253, %s1254
      %s1256 = smul.addr %s1255, 4
      %s1257 = scalar_lea.vmem %s5, %s1256
      // Predicated region
      $region45: #{_lambda_.10} parent=39 // pred_check
        %p1258 = pneg %p189
      $region46: #{_lambda_.10} parent=39 // pred_check_branch
        %1260 = sbr.rel (%p1258) target = $region48
      $region47: #{_lambda_.10} parent=39 // pred_region
        %s1261 = smul.u32 8, %s21
        %s1262 = smul.u32 4, %s22
      $region48: #{_lambda_.10} parent=39 // pred_fallthru
        _
    $region40: #{_lambda_.10} parent=5 // pred_fallthru
      _
    %p1263 = scmp.le.s32.totalorder 2, %s11
    // Predicated region
    $region49: #{_lambda_.10} parent=5 // pred_check
      %p1264 = pneg %p1263
    $region50: #{_lambda_.10} parent=5 // pred_check_branch
      %1266 = sbr.rel (%p1264) target = $region52
    $region51: #{_lambda_.10} parent=5 // pred_region
      %s1267 = ssub.s32 %s11, 2
      // Predicated region
      $region53: #{_lambda_.10} parent=51 // pred_check
        %p1268 = pneg %p195
      $region54: #{_lambda_.10} parent=51 // pred_check_branch
        %1270 = sbr.rel (%p1268) target = $region56
      $region55: #{_lambda_.10} parent=51 // pred_region
        %s1271 = smul.u32 8, %s24
        %s1272 = smul.u32 4, %s25
        %p1273 = scmp.lt.s32.totalorder %s1271, 15
        %s1274 = scalar_select %p1273, %s1271, 15
        %p1275 = scmp.lt.s32.totalorder %s1272, 3
        %s1276 = scalar_select %p1275, %s1272, 3
        %s1277 = smul.addr %s1274, 4
        %s1278 = sadd.s32 %s1276, %s1277
        %s1279 = smul.addr %s1278, 4
        %s1280 = scalar_lea.vmem %s5, %s1279
      $region56: #{_lambda_.10} parent=51 // pred_fallthru
        _
    $region52: #{_lambda_.10} parent=5 // pred_fallthru
      _
  $region6: #{_lambda_.10} parent=0 // loop_footer
    %s15 = sadd.s32 1, %s11
  $region7: #{_lambda_.10} parent=0 // loop_footer_branch
    %10 = sbr.rel target = $region3
  $region8: #{_lambda_.10} parent=0 // loop_exit
    _

// kernel: _lambda_.11
$region0: #{_lambda_.11}
  #allocation0 [shape = 'u32[]', space=smem, size = 0x4, offset = 0x4, fixed_abs, tag = 'smem constant byte address 0x4 - core index']
  #allocation1 [shape = 'u32[72,128]{1,0:T(1,128)}', space=vmem, size = 0x9000, scoped, tag = 'internal scratch']
  %s0 = inlined_call_operand.vmem [shape: bf16[128,512], index: 0, kind: input, shape index: {}]
  %s1 = inlined_call_operand.vmem [shape: bf16[512,128], index: 1, kind: input, shape index: {}]
  %s2 = inlined_call_operand.vmem [shape: f32[1,128], index: 2, kind: input, shape index: {}]
  %s3 = inlined_call_operand.vmem [shape: f32[128,128], index: 3, kind: input, shape index: {}]
  %s4 = inlined_call_operand.hbm [shape: f32[128,128], index: 4, kind: output, shape index: {}]
  %s5 = sld [smem:[#allocation0]]
  $region49: #{_lambda_.11} parent=0
    _
  %s7 = ssub.s32 1, %s5
  %s8 = scalar_select 0, %s7, %s5
  $region1: #{_lambda_.11} parent=0
    #allocation2 [shape = 'u8[65536]{0}', space=vmem, size = 0x10000, scoped, tag = 'output window, operand 0']
    #allocation3 [shape = 's32[2]{0}', space=sflag, size = 0x8, scoped, tag = 'scoped memory for _lambda_.11']
    %9 = vsyncpa [#allocation3], 0
    %s10 = scalar_lea.sflag [#allocation3], 1
    %11 = vsyncpa %s10, 0
    loop: start=0, step=1, limit=4
    $region2: #{_lambda_.11} parent=1 // loop_pre_header
      _
    $region3: #{_lambda_.11} parent=1 // loop_header
      %s13 = sphi 0, %s17
      %p14 = scmp.ge.s32.totalorder %s13, 4
      %s20 = sphi 0, %s39
      %s21 = sphi 0, %s35
      %s22 = sphi 0, %s31
      %s23 = sphi 0, %s20
      %s24 = sphi 0, %s21
      %s25 = sphi 0, %s22
      %s26 = sphi 0, %s23
      %s27 = sphi 0, %s24
      %s28 = sphi 0, %s25
      %s44 = sphi 0, %s46
      %s47 = sphi 0, %s44
      %s48 = sphi 0, %s47
      %s64 = sphi 0, %s48
      %s72 = sphi 0, %s74
      %s75 = sphi 0, %s72
      %s76 = sphi 0, %s75
      %s92 = sphi 0, %s76
      %s98 = sphi 0, %s100
      %s101 = sphi 0, %s98
      %s102 = sphi 0, %s101
      %s118 = sphi 0, %s102
      %s126 = sphi 0, %s128
      %s129 = sphi 0, %s126
      %s130 = sphi 0, %s129
      %s146 = sphi 0, %s130
      %s154 = sphi 0, %s156
      %s157 = sphi 0, %s154
      %s158 = sphi 0, %s157
      %s174 = sphi 0, %s158
    $region4: #{_lambda_.11} parent=1 // loop_header_branch
      %16 = sbr.rel (%p14) target = $region8
    $region5: #{_lambda_.11} parent=1 // loop_body
      %s18 = ssub.s32 %s13, 1
      %s19 = ssub.s32 %s13, 2
      %s29 = sadd.s32 1, %s22
      %p30 = scmp.ge.s32.totalorder %s29, 1
      %s31 = scalar_select %p30, 0, %s29
      %s32 = sadd.s32 1, %s21
      %s33 = scalar_select %p30, %s32, %s21
      %p34 = scmp.ge.s32.totalorder %s33, 1
      %s35 = scalar_select %p34, 0, %s33
      %s36 = sadd.s32 1, %s20
      %s37 = scalar_select %p34, %s36, %s20
      %p38 = scmp.ge.s32.totalorder %s37, 2
      %s39 = scalar_select %p38, 0, %s37
      %s40 = ssub.s32 %s20, %s39
      %s41 = ssub.s32 %s22, %s31
      %s42 = sor.u32 %s40, %s41
      %p43 = scmp.eq.s32.totalorder %s42, 0
      %s45 = sadd.s32 %s44, 1
      %s46 = scalar_select %p43, %s44, %s45
      %p49 = pneg %p43
      %p50 = scmp.eq.s32.totalorder %s13, 1
      %p51 = por %p49, %p50
      %p52 = scmp.ne.s32.totalorder %s44, %s47
      %p53 = scmp.eq.s32.totalorder %s13, 0
      %p54 = por %p52, %p53
      %p55 = scmp.ne.s32.totalorder %s44, %s47
      %p56 = scmp.eq.s32.totalorder %s18, 1
      %p57 = por %p55, %p56
      %p58 = scmp.ne.s32.totalorder %s47, %s48
      %p59 = scmp.eq.s32.totalorder %s18, 0
      %p60 = por %p58, %p59
      %p61 = scmp.ne.s32.totalorder %s47, %s48
      %p62 = scmp.eq.s32.totalorder %s19, 1
      %p63 = por %p61, %p62
      %p65 = scmp.ne.s32.totalorder %s48, %s64
      %p66 = scmp.eq.s32.totalorder %s19, 0
      %p67 = por %p65, %p66
      %s68 = ssub.s32 %s22, %s31
      %s69 = ssub.s32 %s21, %s35
      %s70 = sor.u32 %s68, %s69
      %p71 = scmp.eq.s32.totalorder %s70, 0
      %s73 = sadd.s32 %s72, 1
      %s74 = scalar_select %p71, %s72, %s73
      %p77 = pneg %p71
      %p78 = scmp.eq.s32.totalorder %s13, 1
      %p79 = por %p77, %p78
      %p80 = scmp.ne.s32.totalorder %s72, %s75
      %p81 = scmp.eq.s32.totalorder %s13, 0
      %p82 = por %p80, %p81
      %p83 = scmp.ne.s32.totalorder %s72, %s75
      %p84 = scmp.eq.s32.totalorder %s18, 1
      %p85 = por %p83, %p84
      %p86 = scmp.ne.s32.totalorder %s75, %s76
      %p87 = scmp.eq.s32.totalorder %s18, 0
      %p88 = por %p86, %p87
      %p89 = scmp.ne.s32.totalorder %s75, %s76
      %p90 = scmp.eq.s32.totalorder %s19, 1
      %p91 = por %p89, %p90
      %p93 = scmp.ne.s32.totalorder %s76, %s92
      %p94 = scmp.eq.s32.totalorder %s19, 0
      %p95 = por %p93, %p94
      %s96 = ssub.s32 %s21, %s35
      %p97 = scmp.eq.s32.totalorder %s96, 0
      %s99 = sadd.s32 %s98, 1
      %s100 = scalar_select %p97, %s98, %s99
      %p103 = pneg %p97
      %p104 = scmp.eq.s32.totalorder %s13, 1
      %p105 = por %p103, %p104
      %p106 = scmp.ne.s32.totalorder %s98, %s101
      %p107 = scmp.eq.s32.totalorder %s13, 0
      %p108 = por %p106, %p107
      %p109 = scmp.ne.s32.totalorder %s98, %s101
      %p110 = scmp.eq.s32.totalorder %s18, 1
      %p111 = por %p109, %p110
      %p112 = scmp.ne.s32.totalorder %s101, %s102
      %p113 = scmp.eq.s32.totalorder %s18, 0
      %p114 = por %p112, %p113
      %p115 = scmp.ne.s32.totalorder %s101, %s102
      %p116 = scmp.eq.s32.totalorder %s19, 1
      %p117 = por %p115, %p116
      %p119 = scmp.ne.s32.totalorder %s102, %s118
      %p120 = scmp.eq.s32.totalorder %s19, 0
      %p121 = por %p119, %p120
      %s122 = ssub.s32 %s20, %s39
      %s123 = ssub.s32 %s21, %s35
      %s124 = sor.u32 %s122, %s123
      %p125 = scmp.eq.s32.totalorder %s124, 0
      %s127 = sadd.s32 %s126, 1
      %s128 = scalar_select %p125, %s126, %s127
      %p131 = pneg %p125
      %p132 = scmp.eq.s32.totalorder %s13, 1
      %p133 = por %p131, %p132
      %p134 = scmp.ne.s32.totalorder %s126, %s129
      %p135 = scmp.eq.s32.totalorder %s13, 0
      %p136 = por %p134, %p135
      %p137 = scmp.ne.s32.totalorder %s126, %s129
      %p138 = scmp.eq.s32.totalorder %s18, 1
      %p139 = por %p137, %p138
      %p140 = scmp.ne.s32.totalorder %s129, %s130
      %p141 = scmp.eq.s32.totalorder %s18, 0
      %p142 = por %p140, %p141
      %p143 = scmp.ne.s32.totalorder %s129, %s130
      %p144 = scmp.eq.s32.totalorder %s19, 1
      %p145 = por %p143, %p144
      %p147 = scmp.ne.s32.totalorder %s130, %s146
      %p148 = scmp.eq.s32.totalorder %s19, 0
      %p149 = por %p147, %p148
      %s150 = ssub.s32 %s20, %s39
      %s151 = ssub.s32 %s21, %s35
      %s152 = sor.u32 %s150, %s151
      %p153 = scmp.eq.s32.totalorder %s152, 0
      %s155 = sadd.s32 %s154, 1
      %s156 = scalar_select %p153, %s154, %s155
      %p159 = pneg %p153
      %p160 = scmp.eq.s32.totalorder %s13, 1
      %p161 = por %p159, %p160
      %p162 = scmp.ne.s32.totalorder %s154, %s157
      %p163 = scmp.eq.s32.totalorder %s13, 0
      %p164 = por %p162, %p163
      %p165 = scmp.ne.s32.totalorder %s154, %s157
      %p166 = scmp.eq.s32.totalorder %s18, 1
      %p167 = por %p165, %p166
      %p168 = scmp.ne.s32.totalorder %s157, %s158
      %p169 = scmp.eq.s32.totalorder %s18, 0
      %p170 = por %p168, %p169
      %p171 = scmp.ne.s32.totalorder %s157, %s158
      %p172 = scmp.eq.s32.totalorder %s19, 1
      %p173 = por %p171, %p172
      %p175 = scmp.ne.s32.totalorder %s158, %s174
      %p176 = scmp.eq.s32.totalorder %s19, 0
      %p177 = por %p175, %p176
      %p178 = scmp.le.s32.totalorder 1, %s13
      %p179 = scmp.lt.s32.totalorder %s13, 3
      %p180 = pnand %p178, %p179
      %p181 = pneg %p180
      // Predicated region
      $region9: #{_lambda_.11} parent=5 // pred_check
        _
      $region10: #{_lambda_.11} parent=5 // pred_check_branch
        %183 = sbr.rel (%p180) target = $region12
      $region11: #{_lambda_.11} parent=5 // pred_region
        %s184 = ssub.s32 %s13, 1
        // Predicated region
        $region13: #{_lambda_.11} parent=11 // pred_check
          %p185 = pneg %p88
        $region14: #{_lambda_.11} parent=11 // pred_check_branch
          %187 = sbr.rel (%p185) target = $region16
        $region15: #{_lambda_.11} parent=11 // pred_region
          %s188 = smul.u32 64, %s25
          %p189 = scmp.lt.s32.totalorder %s188, 63
          %s190 = scalar_select %p189, %s188, 63
          %p191 = scmp.lt.s32.totalorder %s24, 0
          %s192 = scalar_select %p191, %s24, 0
          %s193 = sadd.s32 %s192, %s190
          %s194 = smul.addr %s193, 4
          %s195 = scalar_lea.vmem %s1, %s194
          %s196 = smul.u32 64, %s25
        $region16: #{_lambda_.11} parent=11 // pred_fallthru
          _
        // Predicated region
        $region17: #{_lambda_.11} parent=11 // pred_check
          %p197 = pneg %p114
        $region18: #{_lambda_.11} parent=11 // pred_check_branch
          %199 = sbr.rel (%p197) target = $region20
        $region19: #{_lambda_.11} parent=11 // pred_region
          %p200 = scmp.lt.s32.totalorder %s24, 0
          %s201 = scalar_select %p200, %s24, 0
          %s202 = scalar_lea.vmem %s2, %s201
        $region20: #{_lambda_.11} parent=11 // pred_fallthru
          _
      $region12: #{_lambda_.11} parent=5 // pred_fallthru
        _
      %p203 = scmp.lt.s32.totalorder %s13, 2
      // Predicated region
      $region21: #{_lambda_.11} parent=5 // pred_check
        %p204 = pneg %p203
      $region22: #{_lambda_.11} parent=5 // pred_check_branch
        %206 = sbr.rel (%p204) target = $region24
      $region23: #{_lambda_.11} parent=5 // pred_region
        // Predicated region
        $region25: #{_lambda_.11} parent=23 // pred_check
          %p207 = pneg %p54
        $region26: #{_lambda_.11} parent=23 // pred_check_branch
          %209 = sbr.rel (%p207) target = $region28
        $region27: #{_lambda_.11} parent=23 // pred_region
          %s210 = smul.u32 8, %s20
          %s211 = smul.u32 4, %s22
          %p212 = scmp.lt.s32.totalorder %s210, 15
          %s213 = scalar_select %p212, %s210, 15
          %p214 = scmp.lt.s32.totalorder %s211, 3
          %s215 = scalar_select %p214, %s211, 3
          %s216 = smul.addr %s213, 4
          %s217 = sadd.s32 %s215, %s216
          %s218 = smul.addr %s217, 4
          %s219 = scalar_lea.vmem %s0, %s218
          %s220 = smul.u32 8, %s20
          %s221 = smul.u32 4, %s22
        $region28: #{_lambda_.11} parent=23 // pred_fallthru
          _
        // Predicated region
        $region29: #{_lambda_.11} parent=23 // pred_check
          %p222 = pneg %p136
        $region30: #{_lambda_.11} parent=23 // pred_check_branch
          %224 = sbr.rel (%p222) target = $region32
        $region31: #{_lambda_.11} parent=23 // pred_region
          %s225 = smul.u32 8, %s20
          %p226 = scmp.lt.s32.totalorder %s225, 15
          %s227 = scalar_select %p226, %s225, 15
          %p228 = scmp.lt.s32.totalorder %s21, 0
          %s229 = scalar_select %p228, %s21, 0
          %s230 = sadd.s32 %s229, %s227
          %s231 = smul.addr %s230, 8
          %s232 = scalar_lea.vmem %s3, %s231
          %s233 = smul.u32 8, %s20
        $region32: #{_lambda_.11} parent=23 // pred_fallthru
          _
      $region24: #{_lambda_.11} parent=5 // pred_fallthru
        _
      %p234 = scmp.le.s32.totalorder 1, %s13
      %p235 = scmp.lt.s32.totalorder %s13, 3
      %p236 = pnand %p234, %p235
      %p237 = pneg %p236
      // Predicated region
      $region33: #{_lambda_.11} parent=5 // pred_check
        _
      $region34: #{_lambda_.11} parent=5 // pred_check_branch
        %239 = sbr.rel (%p236) target = $region36
      $region35: #{_lambda_.11} parent=5 // pred_region
        %s240 = ssub.s32 %s13, 1
        %s241 = smul.u32 8, %s23
        %s242 = smul.u32 4, %s25
        %p243 = scmp.lt.s32.totalorder %s241, 15
        %s244 = scalar_select %p243, %s241, 15
        %p245 = scmp.lt.s32.totalorder %s242, 3
        %s246 = scalar_select %p245, %s242, 3
        %s247 = smul.addr %s244, 4
        %s248 = sadd.s32 %s246, %s247
        %s249 = smul.addr %s248, 4
        %s250 = scalar_lea.vmem %s0, %s249
        %p251 = pneg %p60
        %p252 = pneg %p57
        %s253 = smul.u32 64, %s25
        %p254 = scmp.lt.s32.totalorder %s253, 63
        %s255 = scalar_select %p254, %s253, 63
        %p256 = scmp.lt.s32.totalorder %s24, 0
        %s257 = scalar_select %p256, %s24, 0
        %s258 = sadd.s32 %s257, %s255
        %s259 = smul.addr %s258, 4
        %s260 = scalar_lea.vmem %s1, %s259
        %p261 = pneg %p88
        %p262 = pneg %p85
        %p263 = scmp.lt.s32.totalorder %s24, 0
        %s264 = scalar_select %p263, %s24, 0
        %s265 = scalar_lea.vmem %s2, %s264
        %p266 = pneg %p114
        %p267 = pneg %p111
        %s268 = smul.u32 8, %s23
        %p269 = scmp.lt.s32.totalorder %s268, 15
        %s270 = scalar_select %p269, %s268, 15
        %p271 = scmp.lt.s32.totalorder %s24, 0
        %s272 = scalar_select %p271, %s24, 0
        %s273 = sadd.s32 %s272, %s270
        %s274 = smul.addr %s273, 8
        %s275 = scalar_lea.vmem %s3, %s274
        %p276 = pneg %p142
        %p277 = pneg %p139
        %p278 = pneg %p170
        %p279 = pneg %p167
        %s280 = sand.u32 %s157, 1
        %s281 = scalar_lea.sflag [#allocation3], %s280
        %s282 = sand.u32 %s157, 1
        %s283 = smul.addr %s282, 64
        %s284 = scalar_lea.vmem [#allocation2], %s283
        %s285 = smul.u32 8, %s23
        %s286 = smul.u32 4, %s25
        %p287 = scmp.lt.s32.totalorder %s285, 15
        %s288 = scalar_select %p287, %s285, 15
        %p289 = scmp.lt.s32.totalorder %s286, 3
        %s290 = scalar_select %p289, %s286, 3
        %s291 = smul.addr %s288, 4
        %s292 = sadd.s32 %s290, %s291
        %s293 = smul.addr %s292, 4
        %s294 = scalar_lea.vmem %s0, %s293
        %s295 = smul.u32 8, %s23
        %s296 = smul.u32 4, %s25
        %s297 = smul.u32 64, %s25
        %p298 = scmp.lt.s32.totalorder %s297, 63
        %s299 = scalar_select %p298, %s297, 63
        %p300 = scmp.lt.s32.totalorder %s24, 0
        %s301 = scalar_select %p300, %s24, 0
        %s302 = sadd.s32 %s301, %s299
        %s303 = smul.addr %s302, 4
        %s304 = scalar_lea.vmem %s1, %s303
        %s305 = smul.u32 64, %s25
        %p306 = scmp.lt.s32.totalorder %s24, 0
        %s307 = scalar_select %p306, %s24, 0
        %s308 = scalar_lea.vmem %s2, %s307
        %s309 = smul.u32 8, %s23
        %p310 = scmp.lt.s32.totalorder %s309, 15
        %s311 = scalar_select %p310, %s309, 15
        %p312 = scmp.lt.s32.totalorder %s24, 0
        %s313 = scalar_select %p312, %s24, 0
        %s314 = sadd.s32 %s313, %s311
        %s315 = smul.addr %s314, 8
        %s316 = scalar_lea.vmem %s3, %s315
        %s317 = smul.u32 8, %s23
        %s318 = smul.u32 8, %s23
        %v319 = vld [vmem:[%s294] sm:$0xff]
        %v320 = vld [vmem:[%s294 + $0x8] sm:$0xff]
        %v321 = vld [vmem:[%s294 + $0x10] sm:$0xff]
        %v322 = vld [vmem:[%s294 + $0x18] sm:$0xff]
        %v323 = vld [vmem:[%s294 + $0x20] sm:$0xff]
        %v324 = vld [vmem:[%s294 + $0x28] sm:$0xff]
        %v325 = vld [vmem:[%s294 + $0x30] sm:$0xff]
        %v326 = vld [vmem:[%s294 + $0x38] sm:$0xff]
        %v327 = vld [vmem:[%s294 + $0x40] sm:$0xff]
        %v328 = vld [vmem:[%s294 + $0x48] sm:$0xff]
        %v329 = vld [vmem:[%s294 + $0x50] sm:$0xff]
        %v330 = vld [vmem:[%s294 + $0x58] sm:$0xff]
        %v331 = vld [vmem:[%s294 + $0x60] sm:$0xff]
        %v332 = vld [vmem:[%s294 + $0x68] sm:$0xff]
        %v333 = vld [vmem:[%s294 + $0x70] sm:$0xff]
        %v334 = vld [vmem:[%s294 + $0x78] sm:$0xff]
        %v335 = vld [vmem:[%s304] sm:$0xf]
        %v336 = vld [vmem:[%s304 + $0x4] sm:$0xf]
        %v337 = vld [vmem:[%s304 + $0x8] sm:$0xf]
        %v338 = vld [vmem:[%s304 + $0xc] sm:$0xf]
        %v339 = vld [vmem:[%s304 + $0x10] sm:$0xf]
        %v340 = vld [vmem:[%s304 + $0x14] sm:$0xf]
        %v341 = vld [vmem:[%s304 + $0x18] sm:$0xf]
        %v342 = vld [vmem:[%s304 + $0x1c] sm:$0xf]
        %v343 = vld [vmem:[%s304 + $0x20] sm:$0xf]
        %v344 = vld [vmem:[%s304 + $0x24] sm:$0xf]
        %v345 = vld [vmem:[%s304 + $0x28] sm:$0xf]
        %v346 = vld [vmem:[%s304 + $0x2c] sm:$0xf]
        %v347 = vld [vmem:[%s304 + $0x30] sm:$0xf]
        %v348 = vld [vmem:[%s304 + $0x34] sm:$0xf]
        %v349 = vld [vmem:[%s304 + $0x38] sm:$0xf]
        %v350 = vld [vmem:[%s304 + $0x3c] sm:$0xf]
        %v351 = vld [vmem:[%s304 + $0x40] sm:$0xf]
        %v352 = vld [vmem:[%s304 + $0x44] sm:$0xf]
        %v353 = vld [vmem:[%s304 + $0x48] sm:$0xf]
        %v354 = vld [vmem:[%s304 + $0x4c] sm:$0xf]
        %v355 = vld [vmem:[%s304 + $0x50] sm:$0xf]
        %v356 = vld [vmem:[%s304 + $0x54] sm:$0xf]
        %v357 = vld [vmem:[%s304 + $0x58] sm:$0xf]
        %v358 = vld [vmem:[%s304 + $0x5c] sm:$0xf]
        %v359 = vld [vmem:[%s304 + $0x60] sm:$0xf]
        %v360 = vld [vmem:[%s304 + $0x64] sm:$0xf]
        %v361 = vld [vmem:[%s304 + $0x68] sm:$0xf]
        %v362 = vld [vmem:[%s304 + $0x6c] sm:$0xf]
        %v363 = vld [vmem:[%s304 + $0x70] sm:$0xf]
        %v364 = vld [vmem:[%s304 + $0x74] sm:$0xf]
        %v365 = vld [vmem:[%s304 + $0x78] sm:$0xf]
        %v366 = vld [vmem:[%s304 + $0x7c] sm:$0xf]
        %v367 = vld [vmem:[%s304 + $0x80] sm:$0xf]
        %v368 = vld [vmem:[%s304 + $0x84] sm:$0xf]
        %v369 = vld [vmem:[%s304 + $0x88] sm:$0xf]
        %v370 = vld [vmem:[%s304 + $0x8c] sm:$0xf]
        %v371 = vld [vmem:[%s304 + $0x90] sm:$0xf]
        %v372 = vld [vmem:[%s304 + $0x94] sm:$0xf]
        %v373 = vld [vmem:[%s304 + $0x98] sm:$0xf]
        %v374 = vld [vmem:[%s304 + $0x9c] sm:$0xf]
        %v375 = vld [vmem:[%s304 + $0xa0] sm:$0xf]
        %v376 = vld [vmem:[%s304 + $0xa4] sm:$0xf]
        %v377 = vld [vmem:[%s304 + $0xa8] sm:$0xf]
        %v378 = vld [vmem:[%s304 + $0xac] sm:$0xf]
        %v379 = vld [vmem:[%s304 + $0xb0] sm:$0xf]
        %v380 = vld [vmem:[%s304 + $0xb4] sm:$0xf]
        %v381 = vld [vmem:[%s304 + $0xb8] sm:$0xf]
        %v382 = vld [vmem:[%s304 + $0xbc] sm:$0xf]
        %v383 = vld [vmem:[%s304 + $0xc0] sm:$0xf]
        %v384 = vld [vmem:[%s304 + $0xc4] sm:$0xf]
        %v385 = vld [vmem:[%s304 + $0xc8] sm:$0xf]
        %v386 = vld [vmem:[%s304 + $0xcc] sm:$0xf]
        %v387 = vld [vmem:[%s304 + $0xd0] sm:$0xf]
        %v388 = vld [vmem:[%s304 + $0xd4] sm:$0xf]
        %v389 = vld [vmem:[%s304 + $0xd8] sm:$0xf]
        %v390 = vld [vmem:[%s304 + $0xdc] sm:$0xf]
        %v391 = vld [vmem:[%s304 + $0xe0] sm:$0xf]
        %v392 = vld [vmem:[%s304 + $0xe4] sm:$0xf]
        %v393 = vld [vmem:[%s304 + $0xe8] sm:$0xf]
        %v394 = vld [vmem:[%s304 + $0xec] sm:$0xf]
        %v395 = vld [vmem:[%s304 + $0xf0] sm:$0xf]
        %v396 = vld [vmem:[%s304 + $0xf4] sm:$0xf]
        %v397 = vld [vmem:[%s304 + $0xf8] sm:$0xf]
        %v398 = vld [vmem:[%s304 + $0xfc] sm:$0xf]
        %v399 = vld [vmem:[%s308] sm:$0x1]
        %v401 = vperm.slane %v399, 0
        %v419 = vunpack.c.l.b16 %v319
        %v420 = vunpack.c.h.b16 %v319
        %v421 = vunpack.c.l.b16 %v320
        %v422 = vunpack.c.h.b16 %v320
        %v423 = vunpack.c.l.b16 %v321
        %v424 = vunpack.c.h.b16 %v321
        %v425 = vunpack.c.l.b16 %v322
        %v426 = vunpack.c.h.b16 %v322
        %v427 = vunpack.c.l.b16 %v323
        %v428 = vunpack.c.h.b16 %v323
        %v429 = vunpack.c.l.b16 %v324
        %v430 = vunpack.c.h.b16 %v324
        %v431 = vunpack.c.l.b16 %v325
        %v432 = vunpack.c.h.b16 %v325
        %v433 = vunpack.c.l.b16 %v326
        %v434 = vunpack.c.h.b16 %v326
        %v435 = vunpack.c.l.b16 %v327
        %v436 = vunpack.c.h.b16 %v327
        %v437 = vunpack.c.l.b16 %v328
        %v438 = vunpack.c.h.b16 %v328
        %v439 = vunpack.c.l.b16 %v329
        %v440 = vunpack.c.h.b16 %v329
        %v441 = vunpack.c.l.b16 %v330
        %v442 = vunpack.c.h.b16 %v330
        %v443 = vunpack.c.l.b16 %v331
        %v444 = vunpack.c.h.b16 %v331
        %v445 = vunpack.c.l.b16 %v332
        %v446 = vunpack.c.h.b16 %v332
        %v447 = vunpack.c.l.b16 %v333
        %v448 = vunpack.c.h.b16 %v333
        %v449 = vunpack.c.l.b16 %v334
        %v450 = vunpack.c.h.b16 %v334
        %v451 = vpack.c.b16 %v423, %v419
        %v452 = vpack.c.b16 %v424, %v420
        %v453 = vpack.c.b16 %v425, %v421
        %v454 = vpack.c.b16 %v426, %v422
        %v455 = vpack.c.b16 %v431, %v427
        %v456 = vpack.c.b16 %v432, %v428
        %v457 = vpack.c.b16 %v433, %v429
        %v458 = vpack.c.b16 %v434, %v430
        %v459 = vpack.c.b16 %v439, %v435
        %v460 = vpack.c.b16 %v440, %v436
        %v461 = vpack.c.b16 %v441, %v437
        %v462 = vpack.c.b16 %v442, %v438
        %v463 = vpack.c.b16 %v447, %v443
        %v464 = vpack.c.b16 %v448, %v444
        %v465 = vpack.c.b16 %v449, %v445
        %v466 = vpack.c.b16 %v450, %v446
        %v547 = vunpack.c.l.b16 %v335
        %v548 = vunpack.c.l.b16 %v336
        %v549 = vunpack.c.l.b16 %v337
        %v550 = vunpack.c.l.b16 %v338
        %v551 = vunpack.c.l.b16 %v339
        %v552 = vunpack.c.l.b16 %v340
        %v553 = vunpack.c.l.b16 %v341
        %v554 = vunpack.c.l.b16 %v342
        %v555 = vunpack.c.l.b16 %v343
        %v556 = vunpack.c.l.b16 %v344
        %v557 = vunpack.c.l.b16 %v345
        %v558 = vunpack.c.l.b16 %v346
        %v559 = vunpack.c.l.b16 %v347
        %v560 = vunpack.c.l.b16 %v348
        %v561 = vunpack.c.l.b16 %v349
        %v562 = vunpack.c.l.b16 %v350
        %v563 = vunpack.c.l.b16 %v351
        %v564 = vunpack.c.l.b16 %v352
        %v565 = vunpack.c.l.b16 %v353
        %v566 = vunpack.c.l.b16 %v354
        %v567 = vunpack.c.l.b16 %v355
        %v568 = vunpack.c.l.b16 %v356
        %v569 = vunpack.c.l.b16 %v357
        %v570 = vunpack.c.l.b16 %v358
        %v571 = vunpack.c.l.b16 %v359
        %v572 = vunpack.c.l.b16 %v360
        %v573 = vunpack.c.l.b16 %v361
        %v574 = vunpack.c.l.b16 %v362
        %v575 = vunpack.c.l.b16 %v363
        %v576 = vunpack.c.l.b16 %v364
        %v577 = vunpack.c.l.b16 %v365
        %v578 = vunpack.c.l.b16 %v366
        %v579 = vunpack.c.l.b16 %v367
        %v580 = vunpack.c.l.b16 %v368
        %v581 = vunpack.c.l.b16 %v369
        %v582 = vunpack.c.l.b16 %v370
        %v583 = vunpack.c.l.b16 %v371
        %v584 = vunpack.c.l.b16 %v372
        %v585 = vunpack.c.l.b16 %v373
        %v586 = vunpack.c.l.b16 %v374
        %v587 = vunpack.c.l.b16 %v375
        %v588 = vunpack.c.l.b16 %v376
        %v589 = vunpack.c.l.b16 %v377
        %v590 = vunpack.c.l.b16 %v378
        %v591 = vunpack.c.l.b16 %v379
        %v592 = vunpack.c.l.b16 %v380
        %v593 = vunpack.c.l.b16 %v381
        %v594 = vunpack.c.l.b16 %v382
        %v595 = vunpack.c.l.b16 %v383
        %v596 = vunpack.c.l.b16 %v384
        %v597 = vunpack.c.l.b16 %v385
        %v598 = vunpack.c.l.b16 %v386
        %v599 = vunpack.c.l.b16 %v387
        %v600 = vunpack.c.l.b16 %v388
        %v601 = vunpack.c.l.b16 %v389
        %v602 = vunpack.c.l.b16 %v390
        %v603 = vunpack.c.l.b16 %v391
        %v604 = vunpack.c.l.b16 %v392
        %v605 = vunpack.c.l.b16 %v393
        %v606 = vunpack.c.l.b16 %v394
        %v607 = vunpack.c.l.b16 %v395
        %v608 = vunpack.c.l.b16 %v396
        %v609 = vunpack.c.l.b16 %v397
        %v610 = vunpack.c.l.b16 %v398
        %v611 = vpack.c.b16 %v548, %v547
        %v612 = vpack.c.b16 %v550, %v549
        %v613 = vpack.c.b16 %v552, %v551
        %v614 = vpack.c.b16 %v554, %v553
        %v615 = vpack.c.b16 %v556, %v555
        %v616 = vpack.c.b16 %v558, %v557
        %v617 = vpack.c.b16 %v560, %v559
        %v618 = vpack.c.b16 %v562, %v561
        %v619 = vpack.c.b16 %v564, %v563
        %v620 = vpack.c.b16 %v566, %v565
        %v621 = vpack.c.b16 %v568, %v567
        %v622 = vpack.c.b16 %v570, %v569
        %v623 = vpack.c.b16 %v572, %v571
        %v624 = vpack.c.b16 %v574, %v573
        %v625 = vpack.c.b16 %v576, %v575
        %v626 = vpack.c.b16 %v578, %v577
        %v627 = vpack.c.b16 %v580, %v579
        %v628 = vpack.c.b16 %v582, %v581
        %v629 = vpack.c.b16 %v584, %v583
        %v630 = vpack.c.b16 %v586, %v585
        %v631 = vpack.c.b16 %v588, %v587
        %v632 = vpack.c.b16 %v590, %v589
        %v633 = vpack.c.b16 %v592, %v591
        %v634 = vpack.c.b16 %v594, %v593
        %v635 = vpack.c.b16 %v596, %v595
        %v636 = vpack.c.b16 %v598, %v597
        %v637 = vpack.c.b16 %v600, %v599
        %v638 = vpack.c.b16 %v602, %v601
        %v639 = vpack.c.b16 %v604, %v603
        %v640 = vpack.c.b16 %v606, %v605
        %v641 = vpack.c.b16 %v608, %v607
        %v642 = vpack.c.b16 %v610, %v609
        %675 = vmatpush.bf16.msra.mxu0 %v618
        %676 = vmatpush.bf16.msra.mxu0 %v617
        %677 = vmatpush.bf16.msra.mxu0 %v616
        %678 = vmatpush.bf16.msra.mxu0 %v615
        %679 = vmatpush.bf16.msra.mxu0 %v614
        %680 = vmatpush.bf16.msra.mxu0 %v613
        %681 = vmatpush.bf16.msra.mxu0 %v612
        %682 = vmatpush.bf16.msra.mxu0 %v611
        %683 = vmatmul.bf16.gmra.mxu0 %v451
        %v684 = vpop.f32.mrf.mxu0
        %v685 = vadd.f32 %v401, %v684
        %v686 = vpop.f32.mrf.mxu0
        %v687 = vadd.f32 %v401, %v686
        %688 = vmatmul.bf16.gmra.mxu0 %v455
        %v689 = vpop.f32.mrf.mxu0
        %v690 = vadd.f32 %v401, %v689
        %v691 = vpop.f32.mrf.mxu0
        %v692 = vadd.f32 %v401, %v691
        %693 = vmatmul.bf16.gmra.mxu0 %v459
        %v694 = vpop.f32.mrf.mxu0
        %v695 = vadd.f32 %v401, %v694
        %v696 = vpop.f32.mrf.mxu0
        %v697 = vadd.f32 %v401, %v696
        %698 = vmatmul.bf16.gmra.mxu0 %v463
        %v699 = vpop.f32.mrf.mxu0
        %v700 = vadd.f32 %v401, %v699
        %v701 = vpop.f32.mrf.mxu0
        %v702 = vadd.f32 %v401, %v701
        %703 = vdwg.mxu0
        %704 = vmatpush.bf16.msra.mxu0 %v626
        %705 = vmatpush.bf16.msra.mxu0 %v625
        %706 = vmatpush.bf16.msra.mxu0 %v624
        %707 = vmatpush.bf16.msra.mxu0 %v623
        %708 = vmatpush.bf16.msra.mxu0 %v622
        %709 = vmatpush.bf16.msra.mxu0 %v621
        %710 = vmatpush.bf16.msra.mxu0 %v620
        %711 = vmatpush.bf16.msra.mxu0 %v619
        %712 = vmatmul.bf16.gmra.mxu0 %v452
        %v713 = vpop.f32.mrf.mxu0
        %v714 = vadd.f32 %v685, %v713
        %v715 = vpop.f32.mrf.mxu0
        %v716 = vadd.f32 %v687, %v715
        %717 = vmatmul.bf16.gmra.mxu0 %v456
        %v718 = vpop.f32.mrf.mxu0
        %v719 = vadd.f32 %v690, %v718
        %v720 = vpop.f32.mrf.mxu0
        %v721 = vadd.f32 %v692, %v720
        %722 = vmatmul.bf16.gmra.mxu0 %v460
        %v723 = vpop.f32.mrf.mxu0
        %v724 = vadd.f32 %v695, %v723
        %v725 = vpop.f32.mrf.mxu0
        %v726 = vadd.f32 %v697, %v725
        %727 = vmatmul.bf16.gmra.mxu0 %v464
        %v728 = vpop.f32.mrf.mxu0
        %v729 = vadd.f32 %v700, %v728
        %v730 = vpop.f32.mrf.mxu0
        %v731 = vadd.f32 %v702, %v730
        %732 = vdwg.mxu0
        %733 = vmatpush.bf16.msra.mxu0 %v634
        %734 = vmatpush.bf16.msra.mxu0 %v633
        %735 = vmatpush.bf16.msra.mxu0 %v632
        %736 = vmatpush.bf16.msra.mxu0 %v631
        %737 = vmatpush.bf16.msra.mxu0 %v630
        %738 = vmatpush.bf16.msra.mxu0 %v629
        %739 = vmatpush.bf16.msra.mxu0 %v628
        %740 = vmatpush.bf16.msra.mxu0 %v627
        %741 = vmatmul.bf16.gmra.mxu0 %v453
        %v742 = vpop.f32.mrf.mxu0
        %v743 = vadd.f32 %v714, %v742
        %v744 = vpop.f32.mrf.mxu0
        %v745 = vadd.f32 %v716, %v744
        %746 = vmatmul.bf16.gmra.mxu0 %v457
        %v747 = vpop.f32.mrf.mxu0
        %v748 = vadd.f32 %v719, %v747
        %v749 = vpop.f32.mrf.mxu0
        %v750 = vadd.f32 %v721, %v749
        %751 = vmatmul.bf16.gmra.mxu0 %v461
        %v752 = vpop.f32.mrf.mxu0
        %v753 = vadd.f32 %v724, %v752
        %v754 = vpop.f32.mrf.mxu0
        %v755 = vadd.f32 %v726, %v754
        %756 = vmatmul.bf16.gmra.mxu0 %v465
        %v757 = vpop.f32.mrf.mxu0
        %v758 = vadd.f32 %v729, %v757
        %v759 = vpop.f32.mrf.mxu0
        %v760 = vadd.f32 %v731, %v759
        %761 = vdwg.mxu0
        %762 = vmatpush.bf16.msra.mxu0 %v642
        %763 = vmatpush.bf16.msra.mxu0 %v641
        %764 = vmatpush.bf16.msra.mxu0 %v640
        %765 = vmatpush.bf16.msra.mxu0 %v639
        %766 = vmatpush.bf16.msra.mxu0 %v638
        %767 = vmatpush.bf16.msra.mxu0 %v637
        %768 = vmatpush.bf16.msra.mxu0 %v636
        %769 = vmatpush.bf16.msra.mxu0 %v635
        %770 = vmatmul.bf16.gmra.mxu0 %v454
        %v771 = vpop.f32.mrf.mxu0
        %v772 = vadd.f32 %v743, %v771
        %v773 = vpop.f32.mrf.mxu0
        %v774 = vadd.f32 %v745, %v773
        %775 = vmatmul.bf16.gmra.mxu0 %v458
        %v776 = vpop.f32.mrf.mxu0
        %v777 = vadd.f32 %v748, %v776
        %v778 = vpop.f32.mrf.mxu0
        %v779 = vadd.f32 %v750, %v778
        %780 = vmatmul.bf16.gmra.mxu0 %v462
        %v781 = vpop.f32.mrf.mxu0
        %v782 = vadd.f32 %v753, %v781
        %v783 = vpop.f32.mrf.mxu0
        %v784 = vadd.f32 %v755, %v783
        %785 = vmatmul.bf16.gmra.mxu0 %v466
        %v786 = vpop.f32.mrf.mxu0
        %v787 = vadd.f32 %v758, %v786
        %v788 = vpop.f32.mrf.mxu0
        %v789 = vadd.f32 %v760, %v788
        %790 = vdwg.mxu0
        %v791 = vld [vmem:[%s316] sm:$0xff]
        %v792 = vld [vmem:[%s316 + $0x8] sm:$0xff]
        %v793 = vld [vmem:[%s316 + $0x10] sm:$0xff]
        %v794 = vld [vmem:[%s316 + $0x18] sm:$0xff]
        %v795 = vld [vmem:[%s316 + $0x20] sm:$0xff]
        %v796 = vld [vmem:[%s316 + $0x28] sm:$0xff]
        %v797 = vld [vmem:[%s316 + $0x30] sm:$0xff]
        %v798 = vld [vmem:[%s316 + $0x38] sm:$0xff]
        %v799 = vadd.f32 %v772, %v791
        %v800 = vadd.f32 %v774, %v792
        %v801 = vadd.f32 %v777, %v793
        %v802 = vadd.f32 %v779, %v794
        %v803 = vadd.f32 %v782, %v795
        %v804 = vadd.f32 %v784, %v796
        %v805 = vadd.f32 %v787, %v797
        %v806 = vadd.f32 %v789, %v798
        %807 = vst [vmem:[%s284] sm:$0xff] %v799
        %808 = vst [vmem:[%s284 + $0x8] sm:$0xff] %v800
        %809 = vst [vmem:[%s284 + $0x10] sm:$0xff] %v801
        %810 = vst [vmem:[%s284 + $0x18] sm:$0xff] %v802
        %811 = vst [vmem:[%s284 + $0x20] sm:$0xff] %v803
        %812 = vst [vmem:[%s284 + $0x28] sm:$0xff] %v804
        %813 = vst [vmem:[%s284 + $0x30] sm:$0xff] %v805
        %814 = vst [vmem:[%s284 + $0x38] sm:$0xff] %v806
        %s815 = sand.u32 %s157, 1
        %s816 = scalar_lea.sflag [#allocation3], %s815
        %s817 = sand.u32 %s157, 1
        %s818 = smul.addr %s817, 64
        %s819 = scalar_lea.vmem [#allocation2], %s818
        // Predicated region
        $region37: #{_lambda_.11} parent=35 // pred_check
          %p820 = pneg %p167
        $region38: #{_lambda_.11} parent=35 // pred_check_branch
          %822 = sbr.rel (%p820) target = $region40
        $region39: #{_lambda_.11} parent=35 // pred_region
          %s823 = smul.u32 8, %s23
          %825 = vsyncadd %s816, 0
          %s826 = sadd.s32 %s24, %s823
          %s827 = smul.addr %s826, 8
          %s828 = scalar_lea.hbm %s4, %s827
          %s829 = sshll.u32 %s819, 4
          %s830 = int_to_ptr.vmem [resolvable:$true] %s829
          %s831 = sshll.u32 %s828, 4
          %s832 = int_to_ptr.hbm [resolvable:$true] %s831
          %837 = dma.vmem_to_hbm [thread:$0]  %s830, 1024, %s832, %s816, 128, 128, 8
        $region40: #{_lambda_.11} parent=35 // pred_fallthru
          _
      $region36: #{_lambda_.11} parent=5 // pred_fallthru
        _
      %p838 = scmp.le.s32.totalorder 2, %s13
      // Predicated region
      $region41: #{_lambda_.11} parent=5 // pred_check
        %p839 = pneg %p838
      $region42: #{_lambda_.11} parent=5 // pred_check_branch
        %841 = sbr.rel (%p839) target = $region44
      $region43: #{_lambda_.11} parent=5 // pred_region
        %s842 = ssub.s32 %s13, 2
        // Predicated region
        $region45: #{_lambda_.11} parent=43 // pred_check
          %p843 = pneg %p173
        $region46: #{_lambda_.11} parent=43 // pred_check_branch
          %845 = sbr.rel (%p843) target = $region48
        $region47: #{_lambda_.11} parent=43 // pred_region
          %s846 = sand.u32 %s158, 1
          %s847 = scalar_lea.sflag [#allocation3], %s846
          %s848 = sand.u32 %s158, 1
          %s849 = smul.addr %s848, 64
          %s850 = scalar_lea.vmem [#allocation2], %s849
          %852 = dma.done %s847, 1024
        $region48: #{_lambda_.11} parent=43 // pred_fallthru
          _
      $region44: #{_lambda_.11} parent=5 // pred_fallthru
        _
    $region6: #{_lambda_.11} parent=1 // loop_footer
      %s17 = sadd.s32 1, %s13
    $region7: #{_lambda_.11} parent=1 // loop_footer_branch
      %12 = sbr.rel target = $region3
    $region8: #{_lambda_.11} parent=1 // loop_exit
      _
    %853 = vsyncpa [#allocation3], 1
    %s854 = scalar_lea.sflag [#allocation3], 1
    %855 = vsyncpa %s854, 1

// kernel: _lambda_.8
$region0: #{_lambda_.8}
  #allocation0 [shape = 'u32[]', space=smem, size = 0x4, offset = 0x4, fixed_abs, tag = 'smem constant byte address 0x4 - core index']
  #allocation1 [shape = 'u32[72,128]{1,0:T(1,128)}', space=vmem, size = 0x9000, scoped, tag = 'internal scratch']
  %s0 = inlined_call_operand.vmem [shape: bf16[2,64,768], index: 0, kind: input, shape index: {}]
  %s1 = inlined_call_operand.vmem [shape: bf16[8,64,64], index: 1, kind: input, shape index: {}]
  %s2 = inlined_call_operand.vmem [shape: bf16[2,64,256], index: 2, kind: output, shape index: {}]
  %s3 = sld [smem:[#allocation0]]
  $region41: #{_lambda_.8} parent=0
    _
  %s5 = ssub.s32 1, %s3
  %s6 = scalar_select 0, %s5, %s3
  loop: start=0, step=1, limit=4
  $region2: #{_lambda_.8} parent=0 // loop_pre_header
    _
  $region3: #{_lambda_.8} parent=0 // loop_header
    %s8 = sphi 0, %s12
    %p9 = scmp.ge.s32.totalorder %s8, 4
    %s18 = sphi 0, %s20
    %s21 = sphi 0, %s18
    %s22 = sphi 0, %s21
    %s38 = sphi 0, %s22
    %s42 = sphi 0, %s42
    %s44 = sphi 0, %s42
    %s45 = sphi 0, %s44
    %s59 = sphi 0, %s45
    %s65 = sphi 0, %s67
    %s68 = sphi 0, %s65
    %s69 = sphi 0, %s68
    %s85 = sphi 0, %s69
  $region4: #{_lambda_.8} parent=0 // loop_header_branch
    %11 = sbr.rel (%p9) target = $region8
  $region5: #{_lambda_.8} parent=0 // loop_body
    %s13 = ssub.s32 %s8, 1
    %s14 = ssub.s32 %s8, 2
    %s15 = sadd.s32 %s8, 1
    %s16 = ssub.s32 %s8, %s15
    %p17 = scmp.eq.s32.totalorder %s16, 0
    %s19 = sadd.s32 %s18, 1
    %s20 = scalar_select %p17, %s18, %s19
    %p23 = pneg %p17
    %p24 = scmp.eq.s32.totalorder %s8, 1
    %p25 = por %p23, %p24
    %p26 = scmp.ne.s32.totalorder %s18, %s21
    %p27 = scmp.eq.s32.totalorder %s8, 0
    %p28 = por %p26, %p27
    %p29 = scmp.ne.s32.totalorder %s18, %s21
    %p30 = scmp.eq.s32.totalorder %s13, 1
    %p31 = por %p29, %p30
    %p32 = scmp.ne.s32.totalorder %s21, %s22
    %p33 = scmp.eq.s32.totalorder %s13, 0
    %p34 = por %p32, %p33
    %p35 = scmp.ne.s32.totalorder %s21, %s22
    %p36 = scmp.eq.s32.totalorder %s14, 1
    %p37 = por %p35, %p36
    %p39 = scmp.ne.s32.totalorder %s22, %s38
    %p40 = scmp.eq.s32.totalorder %s14, 0
    %p41 = por %p39, %p40
    %s43 = sadd.s32 %s42, 1
    %p46 = scmp.eq.s32.totalorder %s8, 1
    %p47 = scmp.ne.s32.totalorder %s42, %s44
    %p48 = scmp.eq.s32.totalorder %s8, 0
    %p49 = por %p47, %p48
    %p50 = scmp.ne.s32.totalorder %s42, %s44
    %p51 = scmp.eq.s32.totalorder %s13, 1
    %p52 = por %p50, %p51
    %p53 = scmp.ne.s32.totalorder %s44, %s45
    %p54 = scmp.eq.s32.totalorder %s13, 0
    %p55 = por %p53, %p54
    %p56 = scmp.ne.s32.totalorder %s44, %s45
    %p57 = scmp.eq.s32.totalorder %s14, 1
    %p58 = por %p56, %p57
    %p60 = scmp.ne.s32.totalorder %s45, %s59
    %p61 = scmp.eq.s32.totalorder %s14, 0
    %p62 = por %p60, %p61
    %s63 = ssub.s32 %s8, %s15
    %p64 = scmp.eq.s32.totalorder %s63, 0
    %s66 = sadd.s32 %s65, 1
    %s67 = scalar_select %p64, %s65, %s66
    %p70 = pneg %p64
    %p71 = scmp.eq.s32.totalorder %s8, 1
    %p72 = por %p70, %p71
    %p73 = scmp.ne.s32.totalorder %s65, %s68
    %p74 = scmp.eq.s32.totalorder %s8, 0
    %p75 = por %p73, %p74
    %p76 = scmp.ne.s32.totalorder %s65, %s68
    %p77 = scmp.eq.s32.totalorder %s13, 1
    %p78 = por %p76, %p77
    %p79 = scmp.ne.s32.totalorder %s68, %s69
    %p80 = scmp.eq.s32.totalorder %s13, 0
    %p81 = por %p79, %p80
    %p82 = scmp.ne.s32.totalorder %s68, %s69
    %p83 = scmp.eq.s32.totalorder %s14, 1
    %p84 = por %p82, %p83
    %p86 = scmp.ne.s32.totalorder %s69, %s85
    %p87 = scmp.eq.s32.totalorder %s14, 0
    %p88 = por %p86, %p87
    %p89 = scmp.le.s32.totalorder 1, %s8
    %p90 = scmp.lt.s32.totalorder %s8, 3
    %p91 = pnand %p89, %p90
    %p92 = pneg %p91
    // Predicated region
    $region9: #{_lambda_.8} parent=5 // pred_check
      _
    $region10: #{_lambda_.8} parent=5 // pred_check_branch
      %94 = sbr.rel (%p91) target = $region12
    $region11: #{_lambda_.8} parent=5 // pred_region
      %s95 = ssub.s32 %s8, 1
      // Predicated region
      $region13: #{_lambda_.8} parent=11 // pred_check
        %p96 = pneg %p55
      $region14: #{_lambda_.8} parent=11 // pred_check_branch
        %98 = sbr.rel (%p96) target = $region16
      $region15: #{_lambda_.8} parent=11 // pred_region
        _
      $region16: #{_lambda_.8} parent=11 // pred_fallthru
        _
    $region12: #{_lambda_.8} parent=5 // pred_fallthru
      _
    %p99 = scmp.lt.s32.totalorder %s8, 2
    // Predicated region
    $region17: #{_lambda_.8} parent=5 // pred_check
      %p100 = pneg %p99
    $region18: #{_lambda_.8} parent=5 // pred_check_branch
      %102 = sbr.rel (%p100) target = $region20
    $region19: #{_lambda_.8} parent=5 // pred_region
      // Predicated region
      $region21: #{_lambda_.8} parent=19 // pred_check
        %p103 = pneg %p28
      $region22: #{_lambda_.8} parent=19 // pred_check_branch
        %105 = sbr.rel (%p103) target = $region24
      $region23: #{_lambda_.8} parent=19 // pred_region
        %p106 = scmp.lt.s32.totalorder %s8, 1
        %s107 = scalar_select %p106, %s8, 1
        %s108 = smul.addr %s107, 48
        %s109 = smul.addr %s108, 4
        %s110 = scalar_lea.vmem %s0, %s109
      $region24: #{_lambda_.8} parent=19 // pred_fallthru
        _
    $region20: #{_lambda_.8} parent=5 // pred_fallthru
      _
    %p111 = scmp.le.s32.totalorder 1, %s8
    %p112 = scmp.lt.s32.totalorder %s8, 3
    %p113 = pnand %p111, %p112
    %p114 = pneg %p113
    // Predicated region
    $region25: #{_lambda_.8} parent=5 // pred_check
      _
    $region26: #{_lambda_.8} parent=5 // pred_check_branch
      %116 = sbr.rel (%p113) target = $region28
    $region27: #{_lambda_.8} parent=5 // pred_region
      %s117 = ssub.s32 %s8, 1
      %p118 = scmp.lt.s32.totalorder %s13, 1
      %s119 = scalar_select %p118, %s13, 1
      %s120 = smul.addr %s119, 48
      %s121 = smul.addr %s120, 4
      %s122 = scalar_lea.vmem %s0, %s121
      %p123 = pneg %p34
      %p124 = pneg %p31
      %p125 = pneg %p55
      %p126 = pneg %p52
      %p127 = pneg %p81
      %p128 = pneg %p78
      %p129 = scmp.lt.s32.totalorder %s13, 1
      %s130 = scalar_select %p129, %s13, 1
      %s131 = smul.addr %s130, 16
      %s132 = smul.addr %s131, 4
      %s133 = scalar_lea.vmem %s2, %s132
      %p134 = scmp.lt.s32.totalorder %s13, 1
      %s135 = scalar_select %p134, %s13, 1
      %s136 = smul.addr %s135, 48
      %s137 = smul.addr %s136, 4
      %s138 = scalar_lea.vmem %s0, %s137
      %p139 = scmp.lt.s32.totalorder %s13, 1
      %s140 = scalar_select %p139, %s13, 1
      %s141 = smul.addr %s140, 16
      %s142 = smul.addr %s141, 4
      %s143 = scalar_lea.vmem %s2, %s142
      %v145 = vld [vmem:[%s138] sm:$0xf]
      %v146 = vld [vmem:[%s138 + $0x18] sm:$0xf]
      %v147 = vld [vmem:[%s138 + $0x30] sm:$0xf]
      %v148 = vld [vmem:[%s138 + $0x48] sm:$0xf]
      %v149 = vld [vmem:[%s138 + $0x60] sm:$0xf]
      %v150 = vld [vmem:[%s138 + $0x78] sm:$0xf]
      %v151 = vld [vmem:[%s138 + $0x90] sm:$0xf]
      %v152 = vld [vmem:[%s138 + $0xa8] sm:$0xf]
      %v153 = vld [vmem:[%s138 + $0x8] sm:$0xf]
      %v154 = vld [vmem:[%s138 + $0x20] sm:$0xf]
      %v155 = vld [vmem:[%s138 + $0x38] sm:$0xf]
      %v156 = vld [vmem:[%s138 + $0x50] sm:$0xf]
      %v157 = vld [vmem:[%s138 + $0x68] sm:$0xf]
      %v158 = vld [vmem:[%s138 + $0x80] sm:$0xf]
      %v159 = vld [vmem:[%s138 + $0x98] sm:$0xf]
      %v160 = vld [vmem:[%s138 + $0xb0] sm:$0xf]
      %v161 = vld [vmem:[%s138 + $0x10] sm:$0xf]
      %v162 = vld [vmem:[%s138 + $0x28] sm:$0xf]
      %v163 = vld [vmem:[%s138 + $0x40] sm:$0xf]
      %v164 = vld [vmem:[%s138 + $0x58] sm:$0xf]
      %v165 = vld [vmem:[%s138 + $0x70] sm:$0xf]
      %v166 = vld [vmem:[%s138 + $0x88] sm:$0xf]
      %v167 = vld [vmem:[%s138 + $0xa0] sm:$0xf]
      %v168 = vld [vmem:[%s138 + $0xb8] sm:$0xf]
      %v169 = vld [vmem:[%s1] sm:$0xf]
      %v170 = vld [vmem:[%s1 + $0x4] sm:$0xf]
      %v171 = vld [vmem:[%s1 + $0x8] sm:$0xf]
      %v172 = vld [vmem:[%s1 + $0xc] sm:$0xf]
      %v173 = vld [vmem:[%s1 + $0x10] sm:$0xf]
      %v174 = vld [vmem:[%s1 + $0x14] sm:$0xf]
      %v175 = vld [vmem:[%s1 + $0x18] sm:$0xf]
      %v176 = vld [vmem:[%s1 + $0x1c] sm:$0xf]
      %v177 = vunpack.c.l.bf16 %v169
      %v178 = vunpack.c.l.bf16 %v170
      %v179 = vunpack.c.l.bf16 %v171
      %v180 = vunpack.c.l.bf16 %v172
      %v181 = vunpack.c.l.bf16 %v173
      %v182 = vunpack.c.l.bf16 %v174
      %v183 = vunpack.c.l.bf16 %v175
      %v184 = vunpack.c.l.bf16 %v176
      %v193 = vunpack.c.l.b16 %v145
      %v194 = vunpack.c.l.b16 %v146
      %v195 = vunpack.c.l.b16 %v147
      %v196 = vunpack.c.l.b16 %v148
      %v197 = vunpack.c.l.b16 %v149
      %v198 = vunpack.c.l.b16 %v150
      %v199 = vunpack.c.l.b16 %v151
      %v200 = vunpack.c.l.b16 %v152
      %v201 = vpack.c.b16 %v194, %v193
      %v202 = vpack.c.b16 %v196, %v195
      %v203 = vpack.c.b16 %v198, %v197
      %v204 = vpack.c.b16 %v200, %v199
      %v213 = vunpack.c.l.b16 %v153
      %v214 = vunpack.c.l.b16 %v154
      %v215 = vunpack.c.l.b16 %v155
      %v216 = vunpack.c.l.b16 %v156
      %v217 = vunpack.c.l.b16 %v157
      %v218 = vunpack.c.l.b16 %v158
      %v219 = vunpack.c.l.b16 %v159
      %v220 = vunpack.c.l.b16 %v160
      %v221 = vpack.c.b16 %v214, %v213
      %v222 = vpack.c.b16 %v216, %v215
      %v223 = vpack.c.b16 %v218, %v217
      %v224 = vpack.c.b16 %v220, %v219
      %vm225 = vcmask 261120
      %v227 = vsel %vm225, %v201, 0
      %v230 = vsel %vm225, %v202, 0
      %v233 = vsel %vm225, %v203, 0
      %v236 = vsel %vm225, %v204, 0
      %v239 = vsel %vm225, %v221, 0
      %v242 = vsel %vm225, %v222, 0
      %v245 = vsel %vm225, %v223, 0
      %v248 = vsel %vm225, %v224, 0
      %250 = vmatpush.bf16.xpose.msra.mxu0 0
      %251 = vmatpush.bf16.xpose.msra.mxu0 0
      %252 = vmatpush.bf16.xpose.msra.mxu0 0
      %253 = vmatpush.bf16.xpose.msra.mxu0 0
      %254 = vmatpush.bf16.xpose.msra.mxu0 %v248
      %255 = vmatpush.bf16.xpose.msra.mxu0 %v245
      %256 = vmatpush.bf16.xpose.msra.mxu0 %v242
      %257 = vmatpush.bf16.xpose.msra.mxu0 %v239
      %258 = vmatmul.bf16.gmra.mxu0 %v227
      %v259 = vpop.f32.mrf.mxu0
      %v260 = vadd.f32 %v177, %v259
      %v261 = vpop.f32.mrf.mxu0
      %v262 = vadd.f32 %v178, %v261
      %263 = vmatmul.bf16.gmra.mxu0 %v230
      %v264 = vpop.f32.mrf.mxu0
      %v265 = vadd.f32 %v179, %v264
      %v266 = vpop.f32.mrf.mxu0
      %v267 = vadd.f32 %v180, %v266
      %268 = vmatmul.bf16.gmra.mxu0 %v233
      %v269 = vpop.f32.mrf.mxu0
      %v270 = vadd.f32 %v181, %v269
      %v271 = vpop.f32.mrf.mxu0
      %v272 = vadd.f32 %v182, %v271
      %273 = vmatmul.bf16.gmra.mxu0 %v236
      %v274 = vpop.f32.mrf.mxu0
      %v275 = vadd.f32 %v183, %v274
      %v276 = vpop.f32.mrf.mxu0
      %v277 = vadd.f32 %v184, %v276
      %278 = vdwg.mxu0
      %vm279 = vcmask 523264
      %v280 = vsel %vm279, %v260, -inf
      %281 = vmax.xlane.f32.xlu0 %v280
      %v282 = vpop.xlane.xlu0 %281
      %v283 = vsel %vm279, %v262, -inf
      %284 = vmax.xlane.f32.xlu0 %v283
      %v285 = vpop.xlane.xlu0 %284
      %v286 = vsel %vm279, %v265, -inf
      %287 = vmax.xlane.f32.xlu0 %v286
      %v288 = vpop.xlane.xlu0 %287
      %v289 = vsel %vm279, %v267, -inf
      %290 = vmax.xlane.f32.xlu0 %v289
      %v291 = vpop.xlane.xlu0 %290
      %v292 = vsel %vm279, %v270, -inf
      %293 = vmax.xlane.f32.xlu0 %v292
      %v294 = vpop.xlane.xlu0 %293
      %v295 = vsel %vm279, %v272, -inf
      %296 = vmax.xlane.f32.xlu0 %v295
      %v297 = vpop.xlane.xlu0 %296
      %v298 = vsel %vm279, %v275, -inf
      %299 = vmax.xlane.f32.xlu0 %v298
      %v300 = vpop.xlane.xlu0 %299
      %v301 = vsel %vm279, %v277, -inf
      %302 = vmax.xlane.f32.xlu0 %v301
      %v303 = vpop.xlane.xlu0 %302
      %v304 = vsub.f32 %v260, %v282
      %v305 = vsub.f32 %v262, %v285
      %v306 = vsub.f32 %v265, %v288
      %v307 = vsub.f32 %v267, %v291
      %v308 = vsub.f32 %v270, %v294
      %v309 = vsub.f32 %v272, %v297
      %v310 = vsub.f32 %v275, %v300
      %v311 = vsub.f32 %v277, %v303
      %v312 = vmul.f32 %v304, 1.442695
      %v313 = vpow.pop %v312
      %v314 = vmul.f32 %v305, 1.442695
      %v315 = vpow.pop %v314
      %v316 = vmul.f32 %v306, 1.442695
      %v317 = vpow.pop %v316
      %v318 = vmul.f32 %v307, 1.442695
      %v319 = vpow.pop %v318
      %v320 = vmul.f32 %v308, 1.442695
      %v321 = vpow.pop %v320
      %v322 = vmul.f32 %v309, 1.442695
      %v323 = vpow.pop %v322
      %v324 = vmul.f32 %v310, 1.442695
      %v325 = vpow.pop %v324
      %v326 = vmul.f32 %v311, 1.442695
      %v327 = vpow.pop %v326
      %v328 = vsel %vm279, %v313, 0.0
      %329 = vadd.xlane.f32.xlu0 %v328
      %v330 = vpop.xlane.xlu0 %329
      %v331 = vsel %vm279, %v315, 0.0
      %332 = vadd.xlane.f32.xlu0 %v331
      %v333 = vpop.xlane.xlu0 %332
      %v334 = vsel %vm279, %v317, 0.0
      %335 = vadd.xlane.f32.xlu0 %v334
      %v336 = vpop.xlane.xlu0 %335
      %v337 = vsel %vm279, %v319, 0.0
      %338 = vadd.xlane.f32.xlu0 %v337
      %v339 = vpop.xlane.xlu0 %338
      %v340 = vsel %vm279, %v321, 0.0
      %341 = vadd.xlane.f32.xlu0 %v340
      %v342 = vpop.xlane.xlu0 %341
      %v343 = vsel %vm279, %v323, 0.0
      %344 = vadd.xlane.f32.xlu0 %v343
      %v345 = vpop.xlane.xlu0 %344
      %v346 = vsel %vm279, %v325, 0.0
      %347 = vadd.xlane.f32.xlu0 %v346
      %v348 = vpop.xlane.xlu0 %347
      %v349 = vsel %vm279, %v327, 0.0
      %350 = vadd.xlane.f32.xlu0 %v349
      %v351 = vpop.xlane.xlu0 %350
      %v352 = vrcp.pop %v330
      %v353 = vrcp.pop %v333
      %v354 = vrcp.pop %v336
      %v355 = vrcp.pop %v339
      %v356 = vrcp.pop %v342
      %v357 = vrcp.pop %v345
      %v358 = vrcp.pop %v348
      %v359 = vrcp.pop %v351
      %v360 = vmul.f32 %v313, %v352
      %v361 = vmul.f32 %v315, %v353
      %v362 = vmul.f32 %v317, %v354
      %v363 = vmul.f32 %v319, %v355
      %v364 = vmul.f32 %v321, %v356
      %v365 = vmul.f32 %v323, %v357
      %v366 = vmul.f32 %v325, %v358
      %v367 = vmul.f32 %v327, %v359
      %v368 = vpack.c.bf16 %v361, %v360
      %v369 = vpack.c.bf16 %v363, %v362
      %v370 = vpack.c.bf16 %v365, %v364
      %v371 = vpack.c.bf16 %v367, %v366
      %v380 = vunpack.c.l.b16 %v161
      %v381 = vunpack.c.l.b16 %v162
      %v382 = vunpack.c.l.b16 %v163
      %v383 = vunpack.c.l.b16 %v164
      %v384 = vunpack.c.l.b16 %v165
      %v385 = vunpack.c.l.b16 %v166
      %v386 = vunpack.c.l.b16 %v167
      %v387 = vunpack.c.l.b16 %v168
      %v388 = vpack.c.b16 %v381, %v380
      %v389 = vpack.c.b16 %v383, %v382
      %v390 = vpack.c.b16 %v385, %v384
      %v391 = vpack.c.b16 %v387, %v386
      %v397 = vsel %vm279, %v368, 0
      %v400 = vsel %vm279, %v369, 0
      %v403 = vsel %vm279, %v370, 0
      %v406 = vsel %vm279, %v371, 0
      %408 = vmatpush.bf16.msra.mxu0 0
      %409 = vmatpush.bf16.msra.mxu0 0
      %410 = vmatpush.bf16.msra.mxu0 0
      %411 = vmatpush.bf16.msra.mxu0 0
      %412 = vmatpush.bf16.msra.mxu0 %v391
      %413 = vmatpush.bf16.msra.mxu0 %v390
      %414 = vmatpush.bf16.msra.mxu0 %v389
      %415 = vmatpush.bf16.msra.mxu0 %v388
      %416 = vmatmul.bf16.gmra.mxu0 %v397
      %v417 = vpop.f32.mrf.mxu0
      %v418 = vadd.f32 0.0, %v417
      %v419 = vpop.f32.mrf.mxu0
      %v420 = vadd.f32 0.0, %v419
      %421 = vmatmul.bf16.gmra.mxu0 %v400
      %v422 = vpop.f32.mrf.mxu0
      %v423 = vadd.f32 0.0, %v422
      %v424 = vpop.f32.mrf.mxu0
      %v425 = vadd.f32 0.0, %v424
      %426 = vmatmul.bf16.gmra.mxu0 %v403
      %v427 = vpop.f32.mrf.mxu0
      %v428 = vadd.f32 0.0, %v427
      %v429 = vpop.f32.mrf.mxu0
      %v430 = vadd.f32 0.0, %v429
      %431 = vmatmul.bf16.gmra.mxu0 %v406
      %v432 = vpop.f32.mrf.mxu0
      %v433 = vadd.f32 0.0, %v432
      %v434 = vpop.f32.mrf.mxu0
      %v435 = vadd.f32 0.0, %v434
      %436 = vdwg.mxu0
      %v437 = vpack.c.bf16 %v418, %v418
      %v438 = vpack.c.bf16 %v420, %v420
      %v439 = vpack.c.bf16 %v423, %v423
      %v440 = vpack.c.bf16 %v425, %v425
      %v441 = vpack.c.bf16 %v428, %v428
      %v442 = vpack.c.bf16 %v430, %v430
      %v443 = vpack.c.bf16 %v433, %v433
      %v444 = vpack.c.bf16 %v435, %v435
      %vm445 = vcmask 257024
      %446 = vst.msk [vmem:[%s143] sm:$0xf] %vm445, %v437
      %447 = vst.msk [vmem:[%s143 + $0x8] sm:$0xf] %vm445, %v438
      %448 = vst.msk [vmem:[%s143 + $0x10] sm:$0xf] %vm445, %v439
      %449 = vst.msk [vmem:[%s143 + $0x18] sm:$0xf] %vm445, %v440
      %450 = vst.msk [vmem:[%s143 + $0x20] sm:$0xf] %vm445, %v441
      %451 = vst.msk [vmem:[%s143 + $0x28] sm:$0xf] %vm445, %v442
      %452 = vst.msk [vmem:[%s143 + $0x30] sm:$0xf] %vm445, %v443
      %453 = vst.msk [vmem:[%s143 + $0x38] sm:$0xf] %vm445, %v444
      %v454 = vld [vmem:[%s138] sm:$0xf]
      %v455 = vld [vmem:[%s138 + $0x18] sm:$0xf]
      %v456 = vld [vmem:[%s138 + $0x30] sm:$0xf]
      %v457 = vld [vmem:[%s138 + $0x48] sm:$0xf]
      %v458 = vld [vmem:[%s138 + $0x60] sm:$0xf]
      %v459 = vld [vmem:[%s138 + $0x78] sm:$0xf]
      %v460 = vld [vmem:[%s138 + $0x90] sm:$0xf]
      %v461 = vld [vmem:[%s138 + $0xa8] sm:$0xf]
      %v462 = vld [vmem:[%s138 + $0x8] sm:$0xf]
      %v463 = vld [vmem:[%s138 + $0x20] sm:$0xf]
      %v464 = vld [vmem:[%s138 + $0x38] sm:$0xf]
      %v465 = vld [vmem:[%s138 + $0x50] sm:$0xf]
      %v466 = vld [vmem:[%s138 + $0x68] sm:$0xf]
      %v467 = vld [vmem:[%s138 + $0x80] sm:$0xf]
      %v468 = vld [vmem:[%s138 + $0x98] sm:$0xf]
      %v469 = vld [vmem:[%s138 + $0xb0] sm:$0xf]
      %v470 = vld [vmem:[%s138 + $0x10] sm:$0xf]
      %v471 = vld [vmem:[%s138 + $0x28] sm:$0xf]
      %v472 = vld [vmem:[%s138 + $0x40] sm:$0xf]
      %v473 = vld [vmem:[%s138 + $0x58] sm:$0xf]
      %v474 = vld [vmem:[%s138 + $0x70] sm:$0xf]
      %v475 = vld [vmem:[%s138 + $0x88] sm:$0xf]
      %v476 = vld [vmem:[%s138 + $0xa0] sm:$0xf]
      %v477 = vld [vmem:[%s138 + $0xb8] sm:$0xf]
      %s478 = scalar_lea.vmem %s1, 32
      %v479 = vld [vmem:[%s478] sm:$0xf]
      %v480 = vld [vmem:[%s478 + $0x4] sm:$0xf]
      %v481 = vld [vmem:[%s478 + $0x8] sm:$0xf]
      %v482 = vld [vmem:[%s478 + $0xc] sm:$0xf]
      %v483 = vld [vmem:[%s478 + $0x10] sm:$0xf]
      %v484 = vld [vmem:[%s478 + $0x14] sm:$0xf]
      %v485 = vld [vmem:[%s478 + $0x18] sm:$0xf]
      %v486 = vld [vmem:[%s478 + $0x1c] sm:$0xf]
      %v487 = vunpack.c.l.bf16 %v479
      %v488 = vunpack.c.l.bf16 %v480
      %v489 = vunpack.c.l.bf16 %v481
      %v490 = vunpack.c.l.bf16 %v482
      %v491 = vunpack.c.l.bf16 %v483
      %v492 = vunpack.c.l.bf16 %v484
      %v493 = vunpack.c.l.bf16 %v485
      %v494 = vunpack.c.l.bf16 %v486
      %v503 = vunpack.c.l.b16 %v454
      %v504 = vunpack.c.l.b16 %v455
      %v505 = vunpack.c.l.b16 %v456
      %v506 = vunpack.c.l.b16 %v457
      %v507 = vunpack.c.l.b16 %v458
      %v508 = vunpack.c.l.b16 %v459
      %v509 = vunpack.c.l.b16 %v460
      %v510 = vunpack.c.l.b16 %v461
      %v511 = vpack.c.b16 %v504, %v503
      %v512 = vpack.c.b16 %v506, %v505
      %v513 = vpack.c.b16 %v508, %v507
      %v514 = vpack.c.b16 %v510, %v509
      %515 = vrot.lane.b32.xlu0 %v511, 96
      %v516 = vpop.permute.xlu0 %515
      %517 = vrot.lane.b32.xlu0 %v512, 96
      %v518 = vpop.permute.xlu0 %517
      %519 = vrot.lane.b32.xlu0 %v513, 96
      %v520 = vpop.permute.xlu0 %519
      %521 = vrot.lane.b32.xlu0 %v514, 96
      %v522 = vpop.permute.xlu0 %521
      %v531 = vunpack.c.l.b16 %v462
      %v532 = vunpack.c.l.b16 %v463
      %v533 = vunpack.c.l.b16 %v464
      %v534 = vunpack.c.l.b16 %v465
      %v535 = vunpack.c.l.b16 %v466
      %v536 = vunpack.c.l.b16 %v467
      %v537 = vunpack.c.l.b16 %v468
      %v538 = vunpack.c.l.b16 %v469
      %v539 = vpack.c.b16 %v532, %v531
      %v540 = vpack.c.b16 %v534, %v533
      %v541 = vpack.c.b16 %v536, %v535
      %v542 = vpack.c.b16 %v538, %v537
      %543 = vrot.lane.b32.xlu0 %v539, 96
      %v544 = vpop.permute.xlu0 %543
      %545 = vrot.lane.b32.xlu0 %v540, 96
      %v546 = vpop.permute.xlu0 %545
      %547 = vrot.lane.b32.xlu0 %v541, 96
      %v548 = vpop.permute.xlu0 %547
      %549 = vrot.lane.b32.xlu0 %v542, 96
      %v550 = vpop.permute.xlu0 %549
      %v552 = vsel %vm225, %v516, 0
      %v555 = vsel %vm225, %v518, 0
      %v558 = vsel %vm225, %v520, 0
      %v561 = vsel %vm225, %v522, 0
      %v564 = vsel %vm225, %v544, 0
      %v567 = vsel %vm225, %v546, 0
      %v570 = vsel %vm225, %v548, 0
      %v573 = vsel %vm225, %v550, 0
      %575 = vmatpush.bf16.xpose.msra.mxu0 0
      %576 = vmatpush.bf16.xpose.msra.mxu0 0
      %577 = vmatpush.bf16.xpose.msra.mxu0 0
      %578 = vmatpush.bf16.xpose.msra.mxu0 0
      %579 = vmatpush.bf16.xpose.msra.mxu0 %v573
      %580 = vmatpush.bf16.xpose.msra.mxu0 %v570
      %581 = vmatpush.bf16.xpose.msra.mxu0 %v567
      %582 = vmatpush.bf16.xpose.msra.mxu0 %v564
      %583 = vmatmul.bf16.gmra.mxu0 %v552
      %v584 = vpop.f32.mrf.mxu0
      %v585 = vadd.f32 %v487, %v584
      %v586 = vpop.f32.mrf.mxu0
      %v587 = vadd.f32 %v488, %v586
      %588 = vmatmul.bf16.gmra.mxu0 %v555
      %v589 = vpop.f32.mrf.mxu0
      %v590 = vadd.f32 %v489, %v589
      %v591 = vpop.f32.mrf.mxu0
      %v592 = vadd.f32 %v490, %v591
      %593 = vmatmul.bf16.gmra.mxu0 %v558
      %v594 = vpop.f32.mrf.mxu0
      %v595 = vadd.f32 %v491, %v594
      %v596 = vpop.f32.mrf.mxu0
      %v597 = vadd.f32 %v492, %v596
      %598 = vmatmul.bf16.gmra.mxu0 %v561
      %v599 = vpop.f32.mrf.mxu0
      %v600 = vadd.f32 %v493, %v599
      %v601 = vpop.f32.mrf.mxu0
      %v602 = vadd.f32 %v494, %v601
      %603 = vdwg.mxu0
      %v604 = vsel %vm279, %v585, -inf
      %605 = vmax.xlane.f32.xlu0 %v604
      %v606 = vpop.xlane.xlu0 %605
      %v607 = vsel %vm279, %v587, -inf
      %608 = vmax.xlane.f32.xlu0 %v607
      %v609 = vpop.xlane.xlu0 %608
      %v610 = vsel %vm279, %v590, -inf
      %611 = vmax.xlane.f32.xlu0 %v610
      %v612 = vpop.xlane.xlu0 %611
      %v613 = vsel %vm279, %v592, -inf
      %614 = vmax.xlane.f32.xlu0 %v613
      %v615 = vpop.xlane.xlu0 %614
      %v616 = vsel %vm279, %v595, -inf
      %617 = vmax.xlane.f32.xlu0 %v616
      %v618 = vpop.xlane.xlu0 %617
      %v619 = vsel %vm279, %v597, -inf
      %620 = vmax.xlane.f32.xlu0 %v619
      %v621 = vpop.xlane.xlu0 %620
      %v622 = vsel %vm279, %v600, -inf
      %623 = vmax.xlane.f32.xlu0 %v622
      %v624 = vpop.xlane.xlu0 %623
      %v625 = vsel %vm279, %v602, -inf
      %626 = vmax.xlane.f32.xlu0 %v625
      %v627 = vpop.xlane.xlu0 %626
      %v628 = vsub.f32 %v585, %v606
      %v629 = vsub.f32 %v587, %v609
      %v630 = vsub.f32 %v590, %v612
      %v631 = vsub.f32 %v592, %v615
      %v632 = vsub.f32 %v595, %v618
      %v633 = vsub.f32 %v597, %v621
      %v634 = vsub.f32 %v600, %v624
      %v635 = vsub.f32 %v602, %v627
      %v636 = vmul.f32 %v628, 1.442695
      %v637 = vpow.pop %v636
      %v638 = vmul.f32 %v629, 1.442695
      %v639 = vpow.pop %v638
      %v640 = vmul.f32 %v630, 1.442695
      %v641 = vpow.pop %v640
      %v642 = vmul.f32 %v631, 1.442695
      %v643 = vpow.pop %v642
      %v644 = vmul.f32 %v632, 1.442695
      %v645 = vpow.pop %v644
      %v646 = vmul.f32 %v633, 1.442695
      %v647 = vpow.pop %v646
      %v648 = vmul.f32 %v634, 1.442695
      %v649 = vpow.pop %v648
      %v650 = vmul.f32 %v635, 1.442695
      %v651 = vpow.pop %v650
      %v652 = vsel %vm279, %v637, 0.0
      %653 = vadd.xlane.f32.xlu0 %v652
      %v654 = vpop.xlane.xlu0 %653
      %v655 = vsel %vm279, %v639, 0.0
      %656 = vadd.xlane.f32.xlu0 %v655
      %v657 = vpop.xlane.xlu0 %656
      %v658 = vsel %vm279, %v641, 0.0
      %659 = vadd.xlane.f32.xlu0 %v658
      %v660 = vpop.xlane.xlu0 %659
      %v661 = vsel %vm279, %v643, 0.0
      %662 = vadd.xlane.f32.xlu0 %v661
      %v663 = vpop.xlane.xlu0 %662
      %v664 = vsel %vm279, %v645, 0.0
      %665 = vadd.xlane.f32.xlu0 %v664
      %v666 = vpop.xlane.xlu0 %665
      %v667 = vsel %vm279, %v647, 0.0
      %668 = vadd.xlane.f32.xlu0 %v667
      %v669 = vpop.xlane.xlu0 %668
      %v670 = vsel %vm279, %v649, 0.0
      %671 = vadd.xlane.f32.xlu0 %v670
      %v672 = vpop.xlane.xlu0 %671
      %v673 = vsel %vm279, %v651, 0.0
      %674 = vadd.xlane.f32.xlu0 %v673
      %v675 = vpop.xlane.xlu0 %674
      %v676 = vrcp.pop %v654
      %v677 = vrcp.pop %v657
      %v678 = vrcp.pop %v660
      %v679 = vrcp.pop %v663
      %v680 = vrcp.pop %v666
      %v681 = vrcp.pop %v669
      %v682 = vrcp.pop %v672
      %v683 = vrcp.pop %v675
      %v684 = vmul.f32 %v637, %v676
      %v685 = vmul.f32 %v639, %v677
      %v686 = vmul.f32 %v641, %v678
      %v687 = vmul.f32 %v643, %v679
      %v688 = vmul.f32 %v645, %v680
      %v689 = vmul.f32 %v647, %v681
      %v690 = vmul.f32 %v649, %v682
      %v691 = vmul.f32 %v651, %v683
      %v692 = vpack.c.bf16 %v685, %v684
      %v693 = vpack.c.bf16 %v687, %v686
      %v694 = vpack.c.bf16 %v689, %v688
      %v695 = vpack.c.bf16 %v691, %v690
      %v704 = vunpack.c.l.b16 %v470
      %v705 = vunpack.c.l.b16 %v471
      %v706 = vunpack.c.l.b16 %v472
      %v707 = vunpack.c.l.b16 %v473
      %v708 = vunpack.c.l.b16 %v474
      %v709 = vunpack.c.l.b16 %v475
      %v710 = vunpack.c.l.b16 %v476
      %v711 = vunpack.c.l.b16 %v477
      %v712 = vpack.c.b16 %v705, %v704
      %v713 = vpack.c.b16 %v707, %v706
      %v714 = vpack.c.b16 %v709, %v708
      %v715 = vpack.c.b16 %v711, %v710
      %716 = vrot.lane.b32.xlu0 %v712, 96
      %v717 = vpop.permute.xlu0 %716
      %718 = vrot.lane.b32.xlu0 %v713, 96
      %v719 = vpop.permute.xlu0 %718
      %720 = vrot.lane.b32.xlu0 %v714, 96
      %v721 = vpop.permute.xlu0 %720
      %722 = vrot.lane.b32.xlu0 %v715, 96
      %v723 = vpop.permute.xlu0 %722
      %v729 = vsel %vm279, %v692, 0
      %v732 = vsel %vm279, %v693, 0
      %v735 = vsel %vm279, %v694, 0
      %v738 = vsel %vm279, %v695, 0
      %740 = vmatpush.bf16.msra.mxu0 0
      %741 = vmatpush.bf16.msra.mxu0 0
      %742 = vmatpush.bf16.msra.mxu0 0
      %743 = vmatpush.bf16.msra.mxu0 0
      %744 = vmatpush.bf16.msra.mxu0 %v723
      %745 = vmatpush.bf16.msra.mxu0 %v721
      %746 = vmatpush.bf16.msra.mxu0 %v719
      %747 = vmatpush.bf16.msra.mxu0 %v717
      %748 = vmatmul.bf16.gmra.mxu0 %v729
      %v749 = vpop.f32.mrf.mxu0
      %v750 = vadd.f32 0.0, %v749
      %v751 = vpop.f32.mrf.mxu0
      %v752 = vadd.f32 0.0, %v751
      %753 = vmatmul.bf16.gmra.mxu0 %v732
      %v754 = vpop.f32.mrf.mxu0
      %v755 = vadd.f32 0.0, %v754
      %v756 = vpop.f32.mrf.mxu0
      %v757 = vadd.f32 0.0, %v756
      %758 = vmatmul.bf16.gmra.mxu0 %v735
      %v759 = vpop.f32.mrf.mxu0
      %v760 = vadd.f32 0.0, %v759
      %v761 = vpop.f32.mrf.mxu0
      %v762 = vadd.f32 0.0, %v761
      %763 = vmatmul.bf16.gmra.mxu0 %v738
      %v764 = vpop.f32.mrf.mxu0
      %v765 = vadd.f32 0.0, %v764
      %v766 = vpop.f32.mrf.mxu0
      %v767 = vadd.f32 0.0, %v766
      %768 = vdwg.mxu0
      %v769 = vpack.c.bf16 %v750, %v750
      %v770 = vpack.c.bf16 %v752, %v752
      %v771 = vpack.c.bf16 %v755, %v755
      %v772 = vpack.c.bf16 %v757, %v757
      %v773 = vpack.c.bf16 %v760, %v760
      %v774 = vpack.c.bf16 %v762, %v762
      %v775 = vpack.c.bf16 %v765, %v765
      %v776 = vpack.c.bf16 %v767, %v767
      %785 = vrot.lane.b32.xlu0 %v769, 32
      %v786 = vpop.permute.xlu0 %785
      %787 = vrot.lane.b32.xlu0 %v770, 32
      %v788 = vpop.permute.xlu0 %787
      %789 = vrot.lane.b32.xlu0 %v771, 32
      %v790 = vpop.permute.xlu0 %789
      %791 = vrot.lane.b32.xlu0 %v772, 32
      %v792 = vpop.permute.xlu0 %791
      %793 = vrot.lane.b32.xlu0 %v773, 32
      %v794 = vpop.permute.xlu0 %793
      %795 = vrot.lane.b32.xlu0 %v774, 32
      %v796 = vpop.permute.xlu0 %795
      %797 = vrot.lane.b32.xlu0 %v775, 32
      %v798 = vpop.permute.xlu0 %797
      %799 = vrot.lane.b32.xlu0 %v776, 32
      %v800 = vpop.permute.xlu0 %799
      %vm809 = vcmask 519424
      %810 = vst.msk [vmem:[%s143] sm:$0xf] %vm809, %v786
      %811 = vst.msk [vmem:[%s143 + $0x8] sm:$0xf] %vm809, %v788
      %812 = vst.msk [vmem:[%s143 + $0x10] sm:$0xf] %vm809, %v790
      %813 = vst.msk [vmem:[%s143 + $0x18] sm:$0xf] %vm809, %v792
      %814 = vst.msk [vmem:[%s143 + $0x20] sm:$0xf] %vm809, %v794
      %815 = vst.msk [vmem:[%s143 + $0x28] sm:$0xf] %vm809, %v796
      %816 = vst.msk [vmem:[%s143 + $0x30] sm:$0xf] %vm809, %v798
      %817 = vst.msk [vmem:[%s143 + $0x38] sm:$0xf] %vm809, %v800
      %v818 = vld [vmem:[%s138] sm:$0xf]
      %v819 = vld [vmem:[%s138 + $0x18] sm:$0xf]
      %v820 = vld [vmem:[%s138 + $0x30] sm:$0xf]
      %v821 = vld [vmem:[%s138 + $0x48] sm:$0xf]
      %v822 = vld [vmem:[%s138 + $0x60] sm:$0xf]
      %v823 = vld [vmem:[%s138 + $0x78] sm:$0xf]
      %v824 = vld [vmem:[%s138 + $0x90] sm:$0xf]
      %v825 = vld [vmem:[%s138 + $0xa8] sm:$0xf]
      %v826 = vld [vmem:[%s138 + $0x8] sm:$0xf]
      %v827 = vld [vmem:[%s138 + $0x20] sm:$0xf]
      %v828 = vld [vmem:[%s138 + $0x38] sm:$0xf]
      %v829 = vld [vmem:[%s138 + $0x50] sm:$0xf]
      %v830 = vld [vmem:[%s138 + $0x68] sm:$0xf]
      %v831 = vld [vmem:[%s138 + $0x80] sm:$0xf]
      %v832 = vld [vmem:[%s138 + $0x98] sm:$0xf]
      %v833 = vld [vmem:[%s138 + $0xb0] sm:$0xf]
      %v834 = vld [vmem:[%s138 + $0x10] sm:$0xf]
      %v835 = vld [vmem:[%s138 + $0x28] sm:$0xf]
      %v836 = vld [vmem:[%s138 + $0x40] sm:$0xf]
      %v837 = vld [vmem:[%s138 + $0x58] sm:$0xf]
      %v838 = vld [vmem:[%s138 + $0x70] sm:$0xf]
      %v839 = vld [vmem:[%s138 + $0x88] sm:$0xf]
      %v840 = vld [vmem:[%s138 + $0xa0] sm:$0xf]
      %v841 = vld [vmem:[%s138 + $0xb8] sm:$0xf]
      %s842 = scalar_lea.vmem %s1, 64
      %v843 = vld [vmem:[%s842] sm:$0xf]
      %v844 = vld [vmem:[%s842 + $0x4] sm:$0xf]
      %v845 = vld [vmem:[%s842 + $0x8] sm:$0xf]
      %v846 = vld [vmem:[%s842 + $0xc] sm:$0xf]
      %v847 = vld [vmem:[%s842 + $0x10] sm:$0xf]
      %v848 = vld [vmem:[%s842 + $0x14] sm:$0xf]
      %v849 = vld [vmem:[%s842 + $0x18] sm:$0xf]
      %v850 = vld [vmem:[%s842 + $0x1c] sm:$0xf]
      %v851 = vunpack.c.l.bf16 %v843
      %v852 = vunpack.c.l.bf16 %v844
      %v853 = vunpack.c.l.bf16 %v845
      %v854 = vunpack.c.l.bf16 %v846
      %v855 = vunpack.c.l.bf16 %v847
      %v856 = vunpack.c.l.bf16 %v848
      %v857 = vunpack.c.l.bf16 %v849
      %v858 = vunpack.c.l.bf16 %v850
      %v867 = vunpack.c.l.b16 %v818
      %v868 = vunpack.c.l.b16 %v819
      %v869 = vunpack.c.l.b16 %v820
      %v870 = vunpack.c.l.b16 %v821
      %v871 = vunpack.c.l.b16 %v822
      %v872 = vunpack.c.l.b16 %v823
      %v873 = vunpack.c.l.b16 %v824
      %v874 = vunpack.c.l.b16 %v825
      %v875 = vpack.c.b16 %v868, %v867
      %v876 = vpack.c.b16 %v870, %v869
      %v877 = vpack.c.b16 %v872, %v871
      %v878 = vpack.c.b16 %v874, %v873
      %879 = vrot.lane.b32.xlu0 %v875, 64
      %v880 = vpop.permute.xlu0 %879
      %881 = vrot.lane.b32.xlu0 %v876, 64
      %v882 = vpop.permute.xlu0 %881
      %883 = vrot.lane.b32.xlu0 %v877, 64
      %v884 = vpop.permute.xlu0 %883
      %885 = vrot.lane.b32.xlu0 %v878, 64
      %v886 = vpop.permute.xlu0 %885
      %v895 = vunpack.c.l.b16 %v826
      %v896 = vunpack.c.l.b16 %v827
      %v897 = vunpack.c.l.b16 %v828
      %v898 = vunpack.c.l.b16 %v829
      %v899 = vunpack.c.l.b16 %v830
      %v900 = vunpack.c.l.b16 %v831
      %v901 = vunpack.c.l.b16 %v832
      %v902 = vunpack.c.l.b16 %v833
      %v903 = vpack.c.b16 %v896, %v895
      %v904 = vpack.c.b16 %v898, %v897
      %v905 = vpack.c.b16 %v900, %v899
      %v906 = vpack.c.b16 %v902, %v901
      %907 = vrot.lane.b32.xlu0 %v903, 64
      %v908 = vpop.permute.xlu0 %907
      %909 = vrot.lane.b32.xlu0 %v904, 64
      %v910 = vpop.permute.xlu0 %909
      %911 = vrot.lane.b32.xlu0 %v905, 64
      %v912 = vpop.permute.xlu0 %911
      %913 = vrot.lane.b32.xlu0 %v906, 64
      %v914 = vpop.permute.xlu0 %913
      %v916 = vsel %vm225, %v880, 0
      %v919 = vsel %vm225, %v882, 0
      %v922 = vsel %vm225, %v884, 0
      %v925 = vsel %vm225, %v886, 0
      %v928 = vsel %vm225, %v908, 0
      %v931 = vsel %vm225, %v910, 0
      %v934 = vsel %vm225, %v912, 0
      %v937 = vsel %vm225, %v914, 0
      %939 = vmatpush.bf16.xpose.msra.mxu0 0
      %940 = vmatpush.bf16.xpose.msra.mxu0 0
      %941 = vmatpush.bf16.xpose.msra.mxu0 0
      %942 = vmatpush.bf16.xpose.msra.mxu0 0
      %943 = vmatpush.bf16.xpose.msra.mxu0 %v937
      %944 = vmatpush.bf16.xpose.msra.mxu0 %v934
      %945 = vmatpush.bf16.xpose.msra.mxu0 %v931
      %946 = vmatpush.bf16.xpose.msra.mxu0 %v928
      %947 = vmatmul.bf16.gmra.mxu0 %v916
      %v948 = vpop.f32.mrf.mxu0
      %v949 = vadd.f32 %v851, %v948
      %v950 = vpop.f32.mrf.mxu0
      %v951 = vadd.f32 %v852, %v950
      %952 = vmatmul.bf16.gmra.mxu0 %v919
      %v953 = vpop.f32.mrf.mxu0
      %v954 = vadd.f32 %v853, %v953
      %v955 = vpop.f32.mrf.mxu0
      %v956 = vadd.f32 %v854, %v955
      %957 = vmatmul.bf16.gmra.mxu0 %v922
      %v958 = vpop.f32.mrf.mxu0
      %v959 = vadd.f32 %v855, %v958
      %v960 = vpop.f32.mrf.mxu0
      %v961 = vadd.f32 %v856, %v960
      %962 = vmatmul.bf16.gmra.mxu0 %v925
      %v963 = vpop.f32.mrf.mxu0
      %v964 = vadd.f32 %v857, %v963
      %v965 = vpop.f32.mrf.mxu0
      %v966 = vadd.f32 %v858, %v965
      %967 = vdwg.mxu0
      %v968 = vsel %vm279, %v949, -inf
      %969 = vmax.xlane.f32.xlu0 %v968
      %v970 = vpop.xlane.xlu0 %969
      %v971 = vsel %vm279, %v951, -inf
      %972 = vmax.xlane.f32.xlu0 %v971
      %v973 = vpop.xlane.xlu0 %972
      %v974 = vsel %vm279, %v954, -inf
      %975 = vmax.xlane.f32.xlu0 %v974
      %v976 = vpop.xlane.xlu0 %975
      %v977 = vsel %vm279, %v956, -inf
      %978 = vmax.xlane.f32.xlu0 %v977
      %v979 = vpop.xlane.xlu0 %978
      %v980 = vsel %vm279, %v959, -inf
      %981 = vmax.xlane.f32.xlu0 %v980
      %v982 = vpop.xlane.xlu0 %981
      %v983 = vsel %vm279, %v961, -inf
      %984 = vmax.xlane.f32.xlu0 %v983
      %v985 = vpop.xlane.xlu0 %984
      %v986 = vsel %vm279, %v964, -inf
      %987 = vmax.xlane.f32.xlu0 %v986
      %v988 = vpop.xlane.xlu0 %987
      %v989 = vsel %vm279, %v966, -inf
      %990 = vmax.xlane.f32.xlu0 %v989
      %v991 = vpop.xlane.xlu0 %990
      %v992 = vsub.f32 %v949, %v970
      %v993 = vsub.f32 %v951, %v973
      %v994 = vsub.f32 %v954, %v976
      %v995 = vsub.f32 %v956, %v979
      %v996 = vsub.f32 %v959, %v982
      %v997 = vsub.f32 %v961, %v985
      %v998 = vsub.f32 %v964, %v988
      %v999 = vsub.f32 %v966, %v991
      %v1000 = vmul.f32 %v992, 1.442695
      %v1001 = vpow.pop %v1000
      %v1002 = vmul.f32 %v993, 1.442695
      %v1003 = vpow.pop %v1002
      %v1004 = vmul.f32 %v994, 1.442695
      %v1005 = vpow.pop %v1004
      %v1006 = vmul.f32 %v995, 1.442695
      %v1007 = vpow.pop %v1006
      %v1008 = vmul.f32 %v996, 1.442695
      %v1009 = vpow.pop %v1008
      %v1010 = vmul.f32 %v997, 1.442695
      %v1011 = vpow.pop %v1010
      %v1012 = vmul.f32 %v998, 1.442695
      %v1013 = vpow.pop %v1012
      %v1014 = vmul.f32 %v999, 1.442695
      %v1015 = vpow.pop %v1014
      %v1016 = vsel %vm279, %v1001, 0.0
      %1017 = vadd.xlane.f32.xlu0 %v1016
      %v1018 = vpop.xlane.xlu0 %1017
      %v1019 = vsel %vm279, %v1003, 0.0
      %1020 = vadd.xlane.f32.xlu0 %v1019
      %v1021 = vpop.xlane.xlu0 %1020
      %v1022 = vsel %vm279, %v1005, 0.0
      %1023 = vadd.xlane.f32.xlu0 %v1022
      %v1024 = vpop.xlane.xlu0 %1023
      %v1025 = vsel %vm279, %v1007, 0.0
      %1026 = vadd.xlane.f32.xlu0 %v1025
      %v1027 = vpop.xlane.xlu0 %1026
      %v1028 = vsel %vm279, %v1009, 0.0
      %1029 = vadd.xlane.f32.xlu0 %v1028
      %v1030 = vpop.xlane.xlu0 %1029
      %v1031 = vsel %vm279, %v1011, 0.0
      %1032 = vadd.xlane.f32.xlu0 %v1031
      %v1033 = vpop.xlane.xlu0 %1032
      %v1034 = vsel %vm279, %v1013, 0.0
      %1035 = vadd.xlane.f32.xlu0 %v1034
      %v1036 = vpop.xlane.xlu0 %1035
      %v1037 = vsel %vm279, %v1015, 0.0
      %1038 = vadd.xlane.f32.xlu0 %v1037
      %v1039 = vpop.xlane.xlu0 %1038
      %v1040 = vrcp.pop %v1018
      %v1041 = vrcp.pop %v1021
      %v1042 = vrcp.pop %v1024
      %v1043 = vrcp.pop %v1027
      %v1044 = vrcp.pop %v1030
      %v1045 = vrcp.pop %v1033
      %v1046 = vrcp.pop %v1036
      %v1047 = vrcp.pop %v1039
      %v1048 = vmul.f32 %v1001, %v1040
      %v1049 = vmul.f32 %v1003, %v1041
      %v1050 = vmul.f32 %v1005, %v1042
      %v1051 = vmul.f32 %v1007, %v1043
      %v1052 = vmul.f32 %v1009, %v1044
      %v1053 = vmul.f32 %v1011, %v1045
      %v1054 = vmul.f32 %v1013, %v1046
      %v1055 = vmul.f32 %v1015, %v1047
      %v1056 = vpack.c.bf16 %v1049, %v1048
      %v1057 = vpack.c.bf16 %v1051, %v1050
      %v1058 = vpack.c.bf16 %v1053, %v1052
      %v1059 = vpack.c.bf16 %v1055, %v1054
      %v1068 = vunpack.c.l.b16 %v834
      %v1069 = vunpack.c.l.b16 %v835
      %v1070 = vunpack.c.l.b16 %v836
      %v1071 = vunpack.c.l.b16 %v837
      %v1072 = vunpack.c.l.b16 %v838
      %v1073 = vunpack.c.l.b16 %v839
      %v1074 = vunpack.c.l.b16 %v840
      %v1075 = vunpack.c.l.b16 %v841
      %v1076 = vpack.c.b16 %v1069, %v1068
      %v1077 = vpack.c.b16 %v1071, %v1070
      %v1078 = vpack.c.b16 %v1073, %v1072
      %v1079 = vpack.c.b16 %v1075, %v1074
      %1080 = vrot.lane.b32.xlu0 %v1076, 64
      %v1081 = vpop.permute.xlu0 %1080
      %1082 = vrot.lane.b32.xlu0 %v1077, 64
      %v1083 = vpop.permute.xlu0 %1082
      %1084 = vrot.lane.b32.xlu0 %v1078, 64
      %v1085 = vpop.permute.xlu0 %1084
      %1086 = vrot.lane.b32.xlu0 %v1079, 64
      %v1087 = vpop.permute.xlu0 %1086
      %v1093 = vsel %vm279, %v1056, 0
      %v1096 = vsel %vm279, %v1057, 0
      %v1099 = vsel %vm279, %v1058, 0
      %v1102 = vsel %vm279, %v1059, 0
      %1104 = vmatpush.bf16.msra.mxu0 0
      %1105 = vmatpush.bf16.msra.mxu0 0
      %1106 = vmatpush.bf16.msra.mxu0 0
      %1107 = vmatpush.bf16.msra.mxu0 0
      %1108 = vmatpush.bf16.msra.mxu0 %v1087
      %1109 = vmatpush.bf16.msra.mxu0 %v1085
      %1110 = vmatpush.bf16.msra.mxu0 %v1083
      %1111 = vmatpush.bf16.msra.mxu0 %v1081
      %1112 = vmatmul.bf16.gmra.mxu0 %v1093
      %v1113 = vpop.f32.mrf.mxu0
      %v1114 = vadd.f32 0.0, %v1113
      %v1115 = vpop.f32.mrf.mxu0
      %v1116 = vadd.f32 0.0, %v1115
      %1117 = vmatmul.bf16.gmra.mxu0 %v1096
      %v1118 = vpop.f32.mrf.mxu0
      %v1119 = vadd.f32 0.0, %v1118
      %v1120 = vpop.f32.mrf.mxu0
      %v1121 = vadd.f32 0.0, %v1120
      %1122 = vmatmul.bf16.gmra.mxu0 %v1099
      %v1123 = vpop.f32.mrf.mxu0
      %v1124 = vadd.f32 0.0, %v1123
      %v1125 = vpop.f32.mrf.mxu0
      %v1126 = vadd.f32 0.0, %v1125
      %1127 = vmatmul.bf16.gmra.mxu0 %v1102
      %v1128 = vpop.f32.mrf.mxu0
      %v1129 = vadd.f32 0.0, %v1128
      %v1130 = vpop.f32.mrf.mxu0
      %v1131 = vadd.f32 0.0, %v1130
      %1132 = vdwg.mxu0
      %v1133 = vpack.c.bf16 %v1114, %v1114
      %v1134 = vpack.c.bf16 %v1116, %v1116
      %v1135 = vpack.c.bf16 %v1119, %v1119
      %v1136 = vpack.c.bf16 %v1121, %v1121
      %v1137 = vpack.c.bf16 %v1124, %v1124
      %v1138 = vpack.c.bf16 %v1126, %v1126
      %v1139 = vpack.c.bf16 %v1129, %v1129
      %v1140 = vpack.c.bf16 %v1131, %v1131
      %1149 = vrot.lane.b32.xlu0 %v1133, 64
      %v1150 = vpop.permute.xlu0 %1149
      %1151 = vrot.lane.b32.xlu0 %v1134, 64
      %v1152 = vpop.permute.xlu0 %1151
      %1153 = vrot.lane.b32.xlu0 %v1135, 64
      %v1154 = vpop.permute.xlu0 %1153
      %1155 = vrot.lane.b32.xlu0 %v1136, 64
      %v1156 = vpop.permute.xlu0 %1155
      %1157 = vrot.lane.b32.xlu0 %v1137, 64
      %v1158 = vpop.permute.xlu0 %1157
      %1159 = vrot.lane.b32.xlu0 %v1138, 64
      %v1160 = vpop.permute.xlu0 %1159
      %1161 = vrot.lane.b32.xlu0 %v1139, 64
      %v1162 = vpop.permute.xlu0 %1161
      %1163 = vrot.lane.b32.xlu0 %v1140, 64
      %v1164 = vpop.permute.xlu0 %1163
      %vm1173 = vcmask 781824
      %1174 = vst.msk [vmem:[%s143] sm:$0xf] %vm1173, %v1150
      %1175 = vst.msk [vmem:[%s143 + $0x8] sm:$0xf] %vm1173, %v1152
      %1176 = vst.msk [vmem:[%s143 + $0x10] sm:$0xf] %vm1173, %v1154
      %1177 = vst.msk [vmem:[%s143 + $0x18] sm:$0xf] %vm1173, %v1156
      %1178 = vst.msk [vmem:[%s143 + $0x20] sm:$0xf] %vm1173, %v1158
      %1179 = vst.msk [vmem:[%s143 + $0x28] sm:$0xf] %vm1173, %v1160
      %1180 = vst.msk [vmem:[%s143 + $0x30] sm:$0xf] %vm1173, %v1162
      %1181 = vst.msk [vmem:[%s143 + $0x38] sm:$0xf] %vm1173, %v1164
      %v1182 = vld [vmem:[%s138] sm:$0xf]
      %v1183 = vld [vmem:[%s138 + $0x18] sm:$0xf]
      %v1184 = vld [vmem:[%s138 + $0x30] sm:$0xf]
      %v1185 = vld [vmem:[%s138 + $0x48] sm:$0xf]
      %v1186 = vld [vmem:[%s138 + $0x60] sm:$0xf]
      %v1187 = vld [vmem:[%s138 + $0x78] sm:$0xf]
      %v1188 = vld [vmem:[%s138 + $0x90] sm:$0xf]
      %v1189 = vld [vmem:[%s138 + $0xa8] sm:$0xf]
      %v1190 = vld [vmem:[%s138 + $0x8] sm:$0xf]
      %v1191 = vld [vmem:[%s138 + $0x20] sm:$0xf]
      %v1192 = vld [vmem:[%s138 + $0x38] sm:$0xf]
      %v1193 = vld [vmem:[%s138 + $0x50] sm:$0xf]
      %v1194 = vld [vmem:[%s138 + $0x68] sm:$0xf]
      %v1195 = vld [vmem:[%s138 + $0x80] sm:$0xf]
      %v1196 = vld [vmem:[%s138 + $0x98] sm:$0xf]
      %v1197 = vld [vmem:[%s138 + $0xb0] sm:$0xf]
      %v1198 = vld [vmem:[%s138 + $0x10] sm:$0xf]
      %v1199 = vld [vmem:[%s138 + $0x28] sm:$0xf]
      %v1200 = vld [vmem:[%s138 + $0x40] sm:$0xf]
      %v1201 = vld [vmem:[%s138 + $0x58] sm:$0xf]
      %v1202 = vld [vmem:[%s138 + $0x70] sm:$0xf]
      %v1203 = vld [vmem:[%s138 + $0x88] sm:$0xf]
      %v1204 = vld [vmem:[%s138 + $0xa0] sm:$0xf]
      %v1205 = vld [vmem:[%s138 + $0xb8] sm:$0xf]
      %s1206 = scalar_lea.vmem %s1, 96
      %v1207 = vld [vmem:[%s1206] sm:$0xf]
      %v1208 = vld [vmem:[%s1206 + $0x4] sm:$0xf]
      %v1209 = vld [vmem:[%s1206 + $0x8] sm:$0xf]
      %v1210 = vld [vmem:[%s1206 + $0xc] sm:$0xf]
      %v1211 = vld [vmem:[%s1206 + $0x10] sm:$0xf]
      %v1212 = vld [vmem:[%s1206 + $0x14] sm:$0xf]
      %v1213 = vld [vmem:[%s1206 + $0x18] sm:$0xf]
      %v1214 = vld [vmem:[%s1206 + $0x1c] sm:$0xf]
      %v1215 = vunpack.c.l.bf16 %v1207
      %v1216 = vunpack.c.l.bf16 %v1208
      %v1217 = vunpack.c.l.bf16 %v1209
      %v1218 = vunpack.c.l.bf16 %v1210
      %v1219 = vunpack.c.l.bf16 %v1211
      %v1220 = vunpack.c.l.bf16 %v1212
      %v1221 = vunpack.c.l.bf16 %v1213
      %v1222 = vunpack.c.l.bf16 %v1214
      %v1231 = vunpack.c.l.b16 %v1182
      %v1232 = vunpack.c.l.b16 %v1183
      %v1233 = vunpack.c.l.b16 %v1184
      %v1234 = vunpack.c.l.b16 %v1185
      %v1235 = vunpack.c.l.b16 %v1186
      %v1236 = vunpack.c.l.b16 %v1187
      %v1237 = vunpack.c.l.b16 %v1188
      %v1238 = vunpack.c.l.b16 %v1189
      %v1239 = vpack.c.b16 %v1232, %v1231
      %v1240 = vpack.c.b16 %v1234, %v1233
      %v1241 = vpack.c.b16 %v1236, %v1235
      %v1242 = vpack.c.b16 %v1238, %v1237
      %1243 = vrot.lane.b32.xlu0 %v1239, 32
      %v1244 = vpop.permute.xlu0 %1243
      %1245 = vrot.lane.b32.xlu0 %v1240, 32
      %v1246 = vpop.permute.xlu0 %1245
      %1247 = vrot.lane.b32.xlu0 %v1241, 32
      %v1248 = vpop.permute.xlu0 %1247
      %1249 = vrot.lane.b32.xlu0 %v1242, 32
      %v1250 = vpop.permute.xlu0 %1249
      %v1259 = vunpack.c.l.b16 %v1190
      %v1260 = vunpack.c.l.b16 %v1191
      %v1261 = vunpack.c.l.b16 %v1192
      %v1262 = vunpack.c.l.b16 %v1193
      %v1263 = vunpack.c.l.b16 %v1194
      %v1264 = vunpack.c.l.b16 %v1195
      %v1265 = vunpack.c.l.b16 %v1196
      %v1266 = vunpack.c.l.b16 %v1197
      %v1267 = vpack.c.b16 %v1260, %v1259
      %v1268 = vpack.c.b16 %v1262, %v1261
      %v1269 = vpack.c.b16 %v1264, %v1263
      %v1270 = vpack.c.b16 %v1266, %v1265
      %1271 = vrot.lane.b32.xlu0 %v1267, 32
      %v1272 = vpop.permute.xlu0 %1271
      %1273 = vrot.lane.b32.xlu0 %v1268, 32
      %v1274 = vpop.permute.xlu0 %1273
      %1275 = vrot.lane.b32.xlu0 %v1269, 32
      %v1276 = vpop.permute.xlu0 %1275
      %1277 = vrot.lane.b32.xlu0 %v1270, 32
      %v1278 = vpop.permute.xlu0 %1277
      %v1280 = vsel %vm225, %v1244, 0
      %v1283 = vsel %vm225, %v1246, 0
      %v1286 = vsel %vm225, %v1248, 0
      %v1289 = vsel %vm225, %v1250, 0
      %v1292 = vsel %vm225, %v1272, 0
      %v1295 = vsel %vm225, %v1274, 0
      %v1298 = vsel %vm225, %v1276, 0
      %v1301 = vsel %vm225, %v1278, 0
      %1303 = vmatpush.bf16.xpose.msra.mxu0 0
      %1304 = vmatpush.bf16.xpose.msra.mxu0 0
      %1305 = vmatpush.bf16.xpose.msra.mxu0 0
      %1306 = vmatpush.bf16.xpose.msra.mxu0 0
      %1307 = vmatpush.bf16.xpose.msra.mxu0 %v1301
      %1308 = vmatpush.bf16.xpose.msra.mxu0 %v1298
      %1309 = vmatpush.bf16.xpose.msra.mxu0 %v1295
      %1310 = vmatpush.bf16.xpose.msra.mxu0 %v1292
      %1311 = vmatmul.bf16.gmra.mxu0 %v1280
      %v1312 = vpop.f32.mrf.mxu0
      %v1313 = vadd.f32 %v1215, %v1312
      %v1314 = vpop.f32.mrf.mxu0
      %v1315 = vadd.f32 %v1216, %v1314
      %1316 = vmatmul.bf16.gmra.mxu0 %v1283
      %v1317 = vpop.f32.mrf.mxu0
      %v1318 = vadd.f32 %v1217, %v1317
      %v1319 = vpop.f32.mrf.mxu0
      %v1320 = vadd.f32 %v1218, %v1319
      %1321 = vmatmul.bf16.gmra.mxu0 %v1286
      %v1322 = vpop.f32.mrf.mxu0
      %v1323 = vadd.f32 %v1219, %v1322
      %v1324 = vpop.f32.mrf.mxu0
      %v1325 = vadd.f32 %v1220, %v1324
      %1326 = vmatmul.bf16.gmra.mxu0 %v1289
      %v1327 = vpop.f32.mrf.mxu0
      %v1328 = vadd.f32 %v1221, %v1327
      %v1329 = vpop.f32.mrf.mxu0
      %v1330 = vadd.f32 %v1222, %v1329
      %1331 = vdwg.mxu0
      %v1332 = vsel %vm279, %v1313, -inf
      %1333 = vmax.xlane.f32.xlu0 %v1332
      %v1334 = vpop.xlane.xlu0 %1333
      %v1335 = vsel %vm279, %v1315, -inf
      %1336 = vmax.xlane.f32.xlu0 %v1335
      %v1337 = vpop.xlane.xlu0 %1336
      %v1338 = vsel %vm279, %v1318, -inf
      %1339 = vmax.xlane.f32.xlu0 %v1338
      %v1340 = vpop.xlane.xlu0 %1339
      %v1341 = vsel %vm279, %v1320, -inf
      %1342 = vmax.xlane.f32.xlu0 %v1341
      %v1343 = vpop.xlane.xlu0 %1342
      %v1344 = vsel %vm279, %v1323, -inf
      %1345 = vmax.xlane.f32.xlu0 %v1344
      %v1346 = vpop.xlane.xlu0 %1345
      %v1347 = vsel %vm279, %v1325, -inf
      %1348 = vmax.xlane.f32.xlu0 %v1347
      %v1349 = vpop.xlane.xlu0 %1348
      %v1350 = vsel %vm279, %v1328, -inf
      %1351 = vmax.xlane.f32.xlu0 %v1350
      %v1352 = vpop.xlane.xlu0 %1351
      %v1353 = vsel %vm279, %v1330, -inf
      %1354 = vmax.xlane.f32.xlu0 %v1353
      %v1355 = vpop.xlane.xlu0 %1354
      %v1356 = vsub.f32 %v1313, %v1334
      %v1357 = vsub.f32 %v1315, %v1337
      %v1358 = vsub.f32 %v1318, %v1340
      %v1359 = vsub.f32 %v1320, %v1343
      %v1360 = vsub.f32 %v1323, %v1346
      %v1361 = vsub.f32 %v1325, %v1349
      %v1362 = vsub.f32 %v1328, %v1352
      %v1363 = vsub.f32 %v1330, %v1355
      %v1364 = vmul.f32 %v1356, 1.442695
      %v1365 = vpow.pop %v1364
      %v1366 = vmul.f32 %v1357, 1.442695
      %v1367 = vpow.pop %v1366
      %v1368 = vmul.f32 %v1358, 1.442695
      %v1369 = vpow.pop %v1368
      %v1370 = vmul.f32 %v1359, 1.442695
      %v1371 = vpow.pop %v1370
      %v1372 = vmul.f32 %v1360, 1.442695
      %v1373 = vpow.pop %v1372
      %v1374 = vmul.f32 %v1361, 1.442695
      %v1375 = vpow.pop %v1374
      %v1376 = vmul.f32 %v1362, 1.442695
      %v1377 = vpow.pop %v1376
      %v1378 = vmul.f32 %v1363, 1.442695
      %v1379 = vpow.pop %v1378
      %v1380 = vsel %vm279, %v1365, 0.0
      %1381 = vadd.xlane.f32.xlu0 %v1380
      %v1382 = vpop.xlane.xlu0 %1381
      %v1383 = vsel %vm279, %v1367, 0.0
      %1384 = vadd.xlane.f32.xlu0 %v1383
      %v1385 = vpop.xlane.xlu0 %1384
      %v1386 = vsel %vm279, %v1369, 0.0
      %1387 = vadd.xlane.f32.xlu0 %v1386
      %v1388 = vpop.xlane.xlu0 %1387
      %v1389 = vsel %vm279, %v1371, 0.0
      %1390 = vadd.xlane.f32.xlu0 %v1389
      %v1391 = vpop.xlane.xlu0 %1390
      %v1392 = vsel %vm279, %v1373, 0.0
      %1393 = vadd.xlane.f32.xlu0 %v1392
      %v1394 = vpop.xlane.xlu0 %1393
      %v1395 = vsel %vm279, %v1375, 0.0
      %1396 = vadd.xlane.f32.xlu0 %v1395
      %v1397 = vpop.xlane.xlu0 %1396
      %v1398 = vsel %vm279, %v1377, 0.0
      %1399 = vadd.xlane.f32.xlu0 %v1398
      %v1400 = vpop.xlane.xlu0 %1399
      %v1401 = vsel %vm279, %v1379, 0.0
      %1402 = vadd.xlane.f32.xlu0 %v1401
      %v1403 = vpop.xlane.xlu0 %1402
      %v1404 = vrcp.pop %v1382
      %v1405 = vrcp.pop %v1385
      %v1406 = vrcp.pop %v1388
      %v1407 = vrcp.pop %v1391
      %v1408 = vrcp.pop %v1394
      %v1409 = vrcp.pop %v1397
      %v1410 = vrcp.pop %v1400
      %v1411 = vrcp.pop %v1403
      %v1412 = vmul.f32 %v1365, %v1404
      %v1413 = vmul.f32 %v1367, %v1405
      %v1414 = vmul.f32 %v1369, %v1406
      %v1415 = vmul.f32 %v1371, %v1407
      %v1416 = vmul.f32 %v1373, %v1408
      %v1417 = vmul.f32 %v1375, %v1409
      %v1418 = vmul.f32 %v1377, %v1410
      %v1419 = vmul.f32 %v1379, %v1411
      %v1420 = vpack.c.bf16 %v1413, %v1412
      %v1421 = vpack.c.bf16 %v1415, %v1414
      %v1422 = vpack.c.bf16 %v1417, %v1416
      %v1423 = vpack.c.bf16 %v1419, %v1418
      %v1432 = vunpack.c.l.b16 %v1198
      %v1433 = vunpack.c.l.b16 %v1199
      %v1434 = vunpack.c.l.b16 %v1200
      %v1435 = vunpack.c.l.b16 %v1201
      %v1436 = vunpack.c.l.b16 %v1202
      %v1437 = vunpack.c.l.b16 %v1203
      %v1438 = vunpack.c.l.b16 %v1204
      %v1439 = vunpack.c.l.b16 %v1205
      %v1440 = vpack.c.b16 %v1433, %v1432
      %v1441 = vpack.c.b16 %v1435, %v1434
      %v1442 = vpack.c.b16 %v1437, %v1436
      %v1443 = vpack.c.b16 %v1439, %v1438
      %1444 = vrot.lane.b32.xlu0 %v1440, 32
      %v1445 = vpop.permute.xlu0 %1444
      %1446 = vrot.lane.b32.xlu0 %v1441, 32
      %v1447 = vpop.permute.xlu0 %1446
      %1448 = vrot.lane.b32.xlu0 %v1442, 32
      %v1449 = vpop.permute.xlu0 %1448
      %1450 = vrot.lane.b32.xlu0 %v1443, 32
      %v1451 = vpop.permute.xlu0 %1450
      %v1457 = vsel %vm279, %v1420, 0
      %v1460 = vsel %vm279, %v1421, 0
      %v1463 = vsel %vm279, %v1422, 0
      %v1466 = vsel %vm279, %v1423, 0
      %1468 = vmatpush.bf16.msra.mxu0 0
      %1469 = vmatpush.bf16.msra.mxu0 0
      %1470 = vmatpush.bf16.msra.mxu0 0
      %1471 = vmatpush.bf16.msra.mxu0 0
      %1472 = vmatpush.bf16.msra.mxu0 %v1451
      %1473 = vmatpush.bf16.msra.mxu0 %v1449
      %1474 = vmatpush.bf16.msra.mxu0 %v1447
      %1475 = vmatpush.bf16.msra.mxu0 %v1445
      %1476 = vmatmul.bf16.gmra.mxu0 %v1457
      %v1477 = vpop.f32.mrf.mxu0
      %v1478 = vadd.f32 0.0, %v1477
      %v1479 = vpop.f32.mrf.mxu0
      %v1480 = vadd.f32 0.0, %v1479
      %1481 = vmatmul.bf16.gmra.mxu0 %v1460
      %v1482 = vpop.f32.mrf.mxu0
      %v1483 = vadd.f32 0.0, %v1482
      %v1484 = vpop.f32.mrf.mxu0
      %v1485 = vadd.f32 0.0, %v1484
      %1486 = vmatmul.bf16.gmra.mxu0 %v1463
      %v1487 = vpop.f32.mrf.mxu0
      %v1488 = vadd.f32 0.0, %v1487
      %v1489 = vpop.f32.mrf.mxu0
      %v1490 = vadd.f32 0.0, %v1489
      %1491 = vmatmul.bf16.gmra.mxu0 %v1466
      %v1492 = vpop.f32.mrf.mxu0
      %v1493 = vadd.f32 0.0, %v1492
      %v1494 = vpop.f32.mrf.mxu0
      %v1495 = vadd.f32 0.0, %v1494
      %1496 = vdwg.mxu0
      %v1497 = vpack.c.bf16 %v1478, %v1478
      %v1498 = vpack.c.bf16 %v1480, %v1480
      %v1499 = vpack.c.bf16 %v1483, %v1483
      %v1500 = vpack.c.bf16 %v1485, %v1485
      %v1501 = vpack.c.bf16 %v1488, %v1488
      %v1502 = vpack.c.bf16 %v1490, %v1490
      %v1503 = vpack.c.bf16 %v1493, %v1493
      %v1504 = vpack.c.bf16 %v1495, %v1495
      %1513 = vrot.lane.b32.xlu0 %v1497, 96
      %v1514 = vpop.permute.xlu0 %1513
      %1515 = vrot.lane.b32.xlu0 %v1498, 96
      %v1516 = vpop.permute.xlu0 %1515
      %1517 = vrot.lane.b32.xlu0 %v1499, 96
      %v1518 = vpop.permute.xlu0 %1517
      %1519 = vrot.lane.b32.xlu0 %v1500, 96
      %v1520 = vpop.permute.xlu0 %1519
      %1521 = vrot.lane.b32.xlu0 %v1501, 96
      %v1522 = vpop.permute.xlu0 %1521
      %1523 = vrot.lane.b32.xlu0 %v1502, 96
      %v1524 = vpop.permute.xlu0 %1523
      %1525 = vrot.lane.b32.xlu0 %v1503, 96
      %v1526 = vpop.permute.xlu0 %1525
      %1527 = vrot.lane.b32.xlu0 %v1504, 96
      %v1528 = vpop.permute.xlu0 %1527
      %vm1537 = vcmask 1044224
      %1538 = vst.msk [vmem:[%s143] sm:$0xf] %vm1537, %v1514
      %1539 = vst.msk [vmem:[%s143 + $0x8] sm:$0xf] %vm1537, %v1516
      %1540 = vst.msk [vmem:[%s143 + $0x10] sm:$0xf] %vm1537, %v1518
      %1541 = vst.msk [vmem:[%s143 + $0x18] sm:$0xf] %vm1537, %v1520
      %1542 = vst.msk [vmem:[%s143 + $0x20] sm:$0xf] %vm1537, %v1522
      %1543 = vst.msk [vmem:[%s143 + $0x28] sm:$0xf] %vm1537, %v1524
      %1544 = vst.msk [vmem:[%s143 + $0x30] sm:$0xf] %vm1537, %v1526
      %1545 = vst.msk [vmem:[%s143 + $0x38] sm:$0xf] %vm1537, %v1528
      %v1546 = vld [vmem:[%s138 + $0x4] sm:$0xf]
      %v1547 = vld [vmem:[%s138 + $0x1c] sm:$0xf]
      %v1548 = vld [vmem:[%s138 + $0x34] sm:$0xf]
      %v1549 = vld [vmem:[%s138 + $0x4c] sm:$0xf]
      %v1550 = vld [vmem:[%s138 + $0x64] sm:$0xf]
      %v1551 = vld [vmem:[%s138 + $0x7c] sm:$0xf]
      %v1552 = vld [vmem:[%s138 + $0x94] sm:$0xf]
      %v1553 = vld [vmem:[%s138 + $0xac] sm:$0xf]
      %v1554 = vld [vmem:[%s138 + $0xc] sm:$0xf]
      %v1555 = vld [vmem:[%s138 + $0x24] sm:$0xf]
      %v1556 = vld [vmem:[%s138 + $0x3c] sm:$0xf]
      %v1557 = vld [vmem:[%s138 + $0x54] sm:$0xf]
      %v1558 = vld [vmem:[%s138 + $0x6c] sm:$0xf]
      %v1559 = vld [vmem:[%s138 + $0x84] sm:$0xf]
      %v1560 = vld [vmem:[%s138 + $0x9c] sm:$0xf]
      %v1561 = vld [vmem:[%s138 + $0xb4] sm:$0xf]
      %v1562 = vld [vmem:[%s138 + $0x14] sm:$0xf]
      %v1563 = vld [vmem:[%s138 + $0x2c] sm:$0xf]
      %v1564 = vld [vmem:[%s138 + $0x44] sm:$0xf]
      %v1565 = vld [vmem:[%s138 + $0x5c] sm:$0xf]
      %v1566 = vld [vmem:[%s138 + $0x74] sm:$0xf]
      %v1567 = vld [vmem:[%s138 + $0x8c] sm:$0xf]
      %v1568 = vld [vmem:[%s138 + $0xa4] sm:$0xf]
      %v1569 = vld [vmem:[%s138 + $0xbc] sm:$0xf]
      %s1570 = scalar_lea.vmem %s1, 128
      %v1571 = vld [vmem:[%s1570] sm:$0xf]
      %v1572 = vld [vmem:[%s1570 + $0x4] sm:$0xf]
      %v1573 = vld [vmem:[%s1570 + $0x8] sm:$0xf]
      %v1574 = vld [vmem:[%s1570 + $0xc] sm:$0xf]
      %v1575 = vld [vmem:[%s1570 + $0x10] sm:$0xf]
      %v1576 = vld [vmem:[%s1570 + $0x14] sm:$0xf]
      %v1577 = vld [vmem:[%s1570 + $0x18] sm:$0xf]
      %v1578 = vld [vmem:[%s1570 + $0x1c] sm:$0xf]
      %v1579 = vunpack.c.l.bf16 %v1571
      %v1580 = vunpack.c.l.bf16 %v1572
      %v1581 = vunpack.c.l.bf16 %v1573
      %v1582 = vunpack.c.l.bf16 %v1574
      %v1583 = vunpack.c.l.bf16 %v1575
      %v1584 = vunpack.c.l.bf16 %v1576
      %v1585 = vunpack.c.l.bf16 %v1577
      %v1586 = vunpack.c.l.bf16 %v1578
      %v1595 = vunpack.c.l.b16 %v1546
      %v1596 = vunpack.c.l.b16 %v1547
      %v1597 = vunpack.c.l.b16 %v1548
      %v1598 = vunpack.c.l.b16 %v1549
      %v1599 = vunpack.c.l.b16 %v1550
      %v1600 = vunpack.c.l.b16 %v1551
      %v1601 = vunpack.c.l.b16 %v1552
      %v1602 = vunpack.c.l.b16 %v1553
      %v1603 = vpack.c.b16 %v1596, %v1595
      %v1604 = vpack.c.b16 %v1598, %v1597
      %v1605 = vpack.c.b16 %v1600, %v1599
      %v1606 = vpack.c.b16 %v1602, %v1601
      %v1615 = vunpack.c.l.b16 %v1554
      %v1616 = vunpack.c.l.b16 %v1555
      %v1617 = vunpack.c.l.b16 %v1556
      %v1618 = vunpack.c.l.b16 %v1557
      %v1619 = vunpack.c.l.b16 %v1558
      %v1620 = vunpack.c.l.b16 %v1559
      %v1621 = vunpack.c.l.b16 %v1560
      %v1622 = vunpack.c.l.b16 %v1561
      %v1623 = vpack.c.b16 %v1616, %v1615
      %v1624 = vpack.c.b16 %v1618, %v1617
      %v1625 = vpack.c.b16 %v1620, %v1619
      %v1626 = vpack.c.b16 %v1622, %v1621
      %v1628 = vsel %vm225, %v1603, 0
      %v1631 = vsel %vm225, %v1604, 0
      %v1634 = vsel %vm225, %v1605, 0
      %v1637 = vsel %vm225, %v1606, 0
      %v1640 = vsel %vm225, %v1623, 0
      %v1643 = vsel %vm225, %v1624, 0
      %v1646 = vsel %vm225, %v1625, 0
      %v1649 = vsel %vm225, %v1626, 0
      %1651 = vmatpush.bf16.xpose.msra.mxu0 0
      %1652 = vmatpush.bf16.xpose.msra.mxu0 0
      %1653 = vmatpush.bf16.xpose.msra.mxu0 0
      %1654 = vmatpush.bf16.xpose.msra.mxu0 0
      %1655 = vmatpush.bf16.xpose.msra.mxu0 %v1649
      %1656 = vmatpush.bf16.xpose.msra.mxu0 %v1646
      %1657 = vmatpush.bf16.xpose.msra.mxu0 %v1643
      %1658 = vmatpush.bf16.xpose.msra.mxu0 %v1640
      %1659 = vmatmul.bf16.gmra.mxu0 %v1628
      %v1660 = vpop.f32.mrf.mxu0
      %v1661 = vadd.f32 %v1579, %v1660
      %v1662 = vpop.f32.mrf.mxu0
      %v1663 = vadd.f32 %v1580, %v1662
      %1664 = vmatmul.bf16.gmra.mxu0 %v1631
      %v1665 = vpop.f32.mrf.mxu0
      %v1666 = vadd.f32 %v1581, %v1665
      %v1667 = vpop.f32.mrf.mxu0
      %v1668 = vadd.f32 %v1582, %v1667
      %1669 = vmatmul.bf16.gmra.mxu0 %v1634
      %v1670 = vpop.f32.mrf.mxu0
      %v1671 = vadd.f32 %v1583, %v1670
      %v1672 = vpop.f32.mrf.mxu0
      %v1673 = vadd.f32 %v1584, %v1672
      %1674 = vmatmul.bf16.gmra.mxu0 %v1637
      %v1675 = vpop.f32.mrf.mxu0
      %v1676 = vadd.f32 %v1585, %v1675
      %v1677 = vpop.f32.mrf.mxu0
      %v1678 = vadd.f32 %v1586, %v1677
      %1679 = vdwg.mxu0
      %v1680 = vsel %vm279, %v1661, -inf
      %1681 = vmax.xlane.f32.xlu0 %v1680
      %v1682 = vpop.xlane.xlu0 %1681
      %v1683 = vsel %vm279, %v1663, -inf
      %1684 = vmax.xlane.f32.xlu0 %v1683
      %v1685 = vpop.xlane.xlu0 %1684
      %v1686 = vsel %vm279, %v1666, -inf
      %1687 = vmax.xlane.f32.xlu0 %v1686
      %v1688 = vpop.xlane.xlu0 %1687
      %v1689 = vsel %vm279, %v1668, -inf
      %1690 = vmax.xlane.f32.xlu0 %v1689
      %v1691 = vpop.xlane.xlu0 %1690
      %v1692 = vsel %vm279, %v1671, -inf
      %1693 = vmax.xlane.f32.xlu0 %v1692
      %v1694 = vpop.xlane.xlu0 %1693
      %v1695 = vsel %vm279, %v1673, -inf
      %1696 = vmax.xlane.f32.xlu0 %v1695
      %v1697 = vpop.xlane.xlu0 %1696
      %v1698 = vsel %vm279, %v1676, -inf
      %1699 = vmax.xlane.f32.xlu0 %v1698
      %v1700 = vpop.xlane.xlu0 %1699
      %v1701 = vsel %vm279, %v1678, -inf
      %1702 = vmax.xlane.f32.xlu0 %v1701
      %v1703 = vpop.xlane.xlu0 %1702
      %v1704 = vsub.f32 %v1661, %v1682
      %v1705 = vsub.f32 %v1663, %v1685
      %v1706 = vsub.f32 %v1666, %v1688
      %v1707 = vsub.f32 %v1668, %v1691
      %v1708 = vsub.f32 %v1671, %v1694
      %v1709 = vsub.f32 %v1673, %v1697
      %v1710 = vsub.f32 %v1676, %v1700
      %v1711 = vsub.f32 %v1678, %v1703
      %v1712 = vmul.f32 %v1704, 1.442695
      %v1713 = vpow.pop %v1712
      %v1714 = vmul.f32 %v1705, 1.442695
      %v1715 = vpow.pop %v1714
      %v1716 = vmul.f32 %v1706, 1.442695
      %v1717 = vpow.pop %v1716
      %v1718 = vmul.f32 %v1707, 1.442695
      %v1719 = vpow.pop %v1718
      %v1720 = vmul.f32 %v1708, 1.442695
      %v1721 = vpow.pop %v1720
      %v1722 = vmul.f32 %v1709, 1.442695
      %v1723 = vpow.pop %v1722
      %v1724 = vmul.f32 %v1710, 1.442695
      %v1725 = vpow.pop %v1724
      %v1726 = vmul.f32 %v1711, 1.442695
      %v1727 = vpow.pop %v1726
      %v1728 = vsel %vm279, %v1713, 0.0
      %1729 = vadd.xlane.f32.xlu0 %v1728
      %v1730 = vpop.xlane.xlu0 %1729
      %v1731 = vsel %vm279, %v1715, 0.0
      %1732 = vadd.xlane.f32.xlu0 %v1731
      %v1733 = vpop.xlane.xlu0 %1732
      %v1734 = vsel %vm279, %v1717, 0.0
      %1735 = vadd.xlane.f32.xlu0 %v1734
      %v1736 = vpop.xlane.xlu0 %1735
      %v1737 = vsel %vm279, %v1719, 0.0
      %1738 = vadd.xlane.f32.xlu0 %v1737
      %v1739 = vpop.xlane.xlu0 %1738
      %v1740 = vsel %vm279, %v1721, 0.0
      %1741 = vadd.xlane.f32.xlu0 %v1740
      %v1742 = vpop.xlane.xlu0 %1741
      %v1743 = vsel %vm279, %v1723, 0.0
      %1744 = vadd.xlane.f32.xlu0 %v1743
      %v1745 = vpop.xlane.xlu0 %1744
      %v1746 = vsel %vm279, %v1725, 0.0
      %1747 = vadd.xlane.f32.xlu0 %v1746
      %v1748 = vpop.xlane.xlu0 %1747
      %v1749 = vsel %vm279, %v1727, 0.0
      %1750 = vadd.xlane.f32.xlu0 %v1749
      %v1751 = vpop.xlane.xlu0 %1750
      %v1752 = vrcp.pop %v1730
      %v1753 = vrcp.pop %v1733
      %v1754 = vrcp.pop %v1736
      %v1755 = vrcp.pop %v1739
      %v1756 = vrcp.pop %v1742
      %v1757 = vrcp.pop %v1745
      %v1758 = vrcp.pop %v1748
      %v1759 = vrcp.pop %v1751
      %v1760 = vmul.f32 %v1713, %v1752
      %v1761 = vmul.f32 %v1715, %v1753
      %v1762 = vmul.f32 %v1717, %v1754
      %v1763 = vmul.f32 %v1719, %v1755
      %v1764 = vmul.f32 %v1721, %v1756
      %v1765 = vmul.f32 %v1723, %v1757
      %v1766 = vmul.f32 %v1725, %v1758
      %v1767 = vmul.f32 %v1727, %v1759
      %v1768 = vpack.c.bf16 %v1761, %v1760
      %v1769 = vpack.c.bf16 %v1763, %v1762
      %v1770 = vpack.c.bf16 %v1765, %v1764
      %v1771 = vpack.c.bf16 %v1767, %v1766
      %v1780 = vunpack.c.l.b16 %v1562
      %v1781 = vunpack.c.l.b16 %v1563
      %v1782 = vunpack.c.l.b16 %v1564
      %v1783 = vunpack.c.l.b16 %v1565
      %v1784 = vunpack.c.l.b16 %v1566
      %v1785 = vunpack.c.l.b16 %v1567
      %v1786 = vunpack.c.l.b16 %v1568
      %v1787 = vunpack.c.l.b16 %v1569
      %v1788 = vpack.c.b16 %v1781, %v1780
      %v1789 = vpack.c.b16 %v1783, %v1782
      %v1790 = vpack.c.b16 %v1785, %v1784
      %v1791 = vpack.c.b16 %v1787, %v1786
      %v1797 = vsel %vm279, %v1768, 0
      %v1800 = vsel %vm279, %v1769, 0
      %v1803 = vsel %vm279, %v1770, 0
      %v1806 = vsel %vm279, %v1771, 0
      %1808 = vmatpush.bf16.msra.mxu0 0
      %1809 = vmatpush.bf16.msra.mxu0 0
      %1810 = vmatpush.bf16.msra.mxu0 0
      %1811 = vmatpush.bf16.msra.mxu0 0
      %1812 = vmatpush.bf16.msra.mxu0 %v1791
      %1813 = vmatpush.bf16.msra.mxu0 %v1790
      %1814 = vmatpush.bf16.msra.mxu0 %v1789
      %1815 = vmatpush.bf16.msra.mxu0 %v1788
      %1816 = vmatmul.bf16.gmra.mxu0 %v1797
      %v1817 = vpop.f32.mrf.mxu0
      %v1818 = vadd.f32 0.0, %v1817
      %v1819 = vpop.f32.mrf.mxu0
      %v1820 = vadd.f32 0.0, %v1819
      %1821 = vmatmul.bf16.gmra.mxu0 %v1800
      %v1822 = vpop.f32.mrf.mxu0
      %v1823 = vadd.f32 0.0, %v1822
      %v1824 = vpop.f32.mrf.mxu0
      %v1825 = vadd.f32 0.0, %v1824
      %1826 = vmatmul.bf16.gmra.mxu0 %v1803
      %v1827 = vpop.f32.mrf.mxu0
      %v1828 = vadd.f32 0.0, %v1827
      %v1829 = vpop.f32.mrf.mxu0
      %v1830 = vadd.f32 0.0, %v1829
      %1831 = vmatmul.bf16.gmra.mxu0 %v1806
      %v1832 = vpop.f32.mrf.mxu0
      %v1833 = vadd.f32 0.0, %v1832
      %v1834 = vpop.f32.mrf.mxu0
      %v1835 = vadd.f32 0.0, %v1834
      %1836 = vdwg.mxu0
      %v1837 = vpack.c.bf16 %v1818, %v1818
      %v1838 = vpack.c.bf16 %v1820, %v1820
      %v1839 = vpack.c.bf16 %v1823, %v1823
      %v1840 = vpack.c.bf16 %v1825, %v1825
      %v1841 = vpack.c.bf16 %v1828, %v1828
      %v1842 = vpack.c.bf16 %v1830, %v1830
      %v1843 = vpack.c.bf16 %v1833, %v1833
      %v1844 = vpack.c.bf16 %v1835, %v1835
      %1845 = vst.msk [vmem:[%s143 + $0x4] sm:$0xf] %vm445, %v1837
      %1846 = vst.msk [vmem:[%s143 + $0xc] sm:$0xf] %vm445, %v1838
      %1847 = vst.msk [vmem:[%s143 + $0x14] sm:$0xf] %vm445, %v1839
      %1848 = vst.msk [vmem:[%s143 + $0x1c] sm:$0xf] %vm445, %v1840
      %1849 = vst.msk [vmem:[%s143 + $0x24] sm:$0xf] %vm445, %v1841
      %1850 = vst.msk [vmem:[%s143 + $0x2c] sm:$0xf] %vm445, %v1842
      %1851 = vst.msk [vmem:[%s143 + $0x34] sm:$0xf] %vm445, %v1843
      %1852 = vst.msk [vmem:[%s143 + $0x3c] sm:$0xf] %vm445, %v1844
      %v1853 = vld [vmem:[%s138 + $0x4] sm:$0xf]
      %v1854 = vld [vmem:[%s138 + $0x1c] sm:$0xf]
      %v1855 = vld [vmem:[%s138 + $0x34] sm:$0xf]
      %v1856 = vld [vmem:[%s138 + $0x4c] sm:$0xf]
      %v1857 = vld [vmem:[%s138 + $0x64] sm:$0xf]
      %v1858 = vld [vmem:[%s138 + $0x7c] sm:$0xf]
      %v1859 = vld [vmem:[%s138 + $0x94] sm:$0xf]
      %v1860 = vld [vmem:[%s138 + $0xac] sm:$0xf]
      %v1861 = vld [vmem:[%s138 + $0xc] sm:$0xf]
      %v1862 = vld [vmem:[%s138 + $0x24] sm:$0xf]
      %v1863 = vld [vmem:[%s138 + $0x3c] sm:$0xf]
      %v1864 = vld [vmem:[%s138 + $0x54] sm:$0xf]
      %v1865 = vld [vmem:[%s138 + $0x6c] sm:$0xf]
      %v1866 = vld [vmem:[%s138 + $0x84] sm:$0xf]
      %v1867 = vld [vmem:[%s138 + $0x9c] sm:$0xf]
      %v1868 = vld [vmem:[%s138 + $0xb4] sm:$0xf]
      %v1869 = vld [vmem:[%s138 + $0x14] sm:$0xf]
      %v1870 = vld [vmem:[%s138 + $0x2c] sm:$0xf]
      %v1871 = vld [vmem:[%s138 + $0x44] sm:$0xf]
      %v1872 = vld [vmem:[%s138 + $0x5c] sm:$0xf]
      %v1873 = vld [vmem:[%s138 + $0x74] sm:$0xf]
      %v1874 = vld [vmem:[%s138 + $0x8c] sm:$0xf]
      %v1875 = vld [vmem:[%s138 + $0xa4] sm:$0xf]
      %v1876 = vld [vmem:[%s138 + $0xbc] sm:$0xf]
      %s1877 = scalar_lea.vmem %s1, 160
      %v1878 = vld [vmem:[%s1877] sm:$0xf]
      %v1879 = vld [vmem:[%s1877 + $0x4] sm:$0xf]
      %v1880 = vld [vmem:[%s1877 + $0x8] sm:$0xf]
      %v1881 = vld [vmem:[%s1877 + $0xc] sm:$0xf]
      %v1882 = vld [vmem:[%s1877 + $0x10] sm:$0xf]
      %v1883 = vld [vmem:[%s1877 + $0x14] sm:$0xf]
      %v1884 = vld [vmem:[%s1877 + $0x18] sm:$0xf]
      %v1885 = vld [vmem:[%s1877 + $0x1c] sm:$0xf]
      %v1886 = vunpack.c.l.bf16 %v1878
      %v1887 = vunpack.c.l.bf16 %v1879
      %v1888 = vunpack.c.l.bf16 %v1880
      %v1889 = vunpack.c.l.bf16 %v1881
      %v1890 = vunpack.c.l.bf16 %v1882
      %v1891 = vunpack.c.l.bf16 %v1883
      %v1892 = vunpack.c.l.bf16 %v1884
      %v1893 = vunpack.c.l.bf16 %v1885
      %v1902 = vunpack.c.l.b16 %v1853
      %v1903 = vunpack.c.l.b16 %v1854
      %v1904 = vunpack.c.l.b16 %v1855
      %v1905 = vunpack.c.l.b16 %v1856
      %v1906 = vunpack.c.l.b16 %v1857
      %v1907 = vunpack.c.l.b16 %v1858
      %v1908 = vunpack.c.l.b16 %v1859
      %v1909 = vunpack.c.l.b16 %v1860
      %v1910 = vpack.c.b16 %v1903, %v1902
      %v1911 = vpack.c.b16 %v1905, %v1904
      %v1912 = vpack.c.b16 %v1907, %v1906
      %v1913 = vpack.c.b16 %v1909, %v1908
      %1914 = vrot.lane.b32.xlu0 %v1910, 96
      %v1915 = vpop.permute.xlu0 %1914
      %1916 = vrot.lane.b32.xlu0 %v1911, 96
      %v1917 = vpop.permute.xlu0 %1916
      %1918 = vrot.lane.b32.xlu0 %v1912, 96
      %v1919 = vpop.permute.xlu0 %1918
      %1920 = vrot.lane.b32.xlu0 %v1913, 96
      %v1921 = vpop.permute.xlu0 %1920
      %v1930 = vunpack.c.l.b16 %v1861
      %v1931 = vunpack.c.l.b16 %v1862
      %v1932 = vunpack.c.l.b16 %v1863
      %v1933 = vunpack.c.l.b16 %v1864
      %v1934 = vunpack.c.l.b16 %v1865
      %v1935 = vunpack.c.l.b16 %v1866
      %v1936 = vunpack.c.l.b16 %v1867
      %v1937 = vunpack.c.l.b16 %v1868
      %v1938 = vpack.c.b16 %v1931, %v1930
      %v1939 = vpack.c.b16 %v1933, %v1932
      %v1940 = vpack.c.b16 %v1935, %v1934
      %v1941 = vpack.c.b16 %v1937, %v1936
      %1942 = vrot.lane.b32.xlu0 %v1938, 96
      %v1943 = vpop.permute.xlu0 %1942
      %1944 = vrot.lane.b32.xlu0 %v1939, 96
      %v1945 = vpop.permute.xlu0 %1944
      %1946 = vrot.lane.b32.xlu0 %v1940, 96
      %v1947 = vpop.permute.xlu0 %1946
      %1948 = vrot.lane.b32.xlu0 %v1941, 96
      %v1949 = vpop.permute.xlu0 %1948
      %v1951 = vsel %vm225, %v1915, 0
      %v1954 = vsel %vm225, %v1917, 0
      %v1957 = vsel %vm225, %v1919, 0
      %v1960 = vsel %vm225, %v1921, 0
      %v1963 = vsel %vm225, %v1943, 0
      %v1966 = vsel %vm225, %v1945, 0
      %v1969 = vsel %vm225, %v1947, 0
      %v1972 = vsel %vm225, %v1949, 0
      %1974 = vmatpush.bf16.xpose.msra.mxu0 0
      %1975 = vmatpush.bf16.xpose.msra.mxu0 0
      %1976 = vmatpush.bf16.xpose.msra.mxu0 0
      %1977 = vmatpush.bf16.xpose.msra.mxu0 0
      %1978 = vmatpush.bf16.xpose.msra.mxu0 %v1972
      %1979 = vmatpush.bf16.xpose.msra.mxu0 %v1969
      %1980 = vmatpush.bf16.xpose.msra.mxu0 %v1966
      %1981 = vmatpush.bf16.xpose.msra.mxu0 %v1963
      %1982 = vmatmul.bf16.gmra.mxu0 %v1951
      %v1983 = vpop.f32.mrf.mxu0
      %v1984 = vadd.f32 %v1886, %v1983
      %v1985 = vpop.f32.mrf.mxu0
      %v1986 = vadd.f32 %v1887, %v1985
      %1987 = vmatmul.bf16.gmra.mxu0 %v1954
      %v1988 = vpop.f32.mrf.mxu0
      %v1989 = vadd.f32 %v1888, %v1988
      %v1990 = vpop.f32.mrf.mxu0
      %v1991 = vadd.f32 %v1889, %v1990
      %1992 = vmatmul.bf16.gmra.mxu0 %v1957
      %v1993 = vpop.f32.mrf.mxu0
      %v1994 = vadd.f32 %v1890, %v1993
      %v1995 = vpop.f32.mrf.mxu0
      %v1996 = vadd.f32 %v1891, %v1995
      %1997 = vmatmul.bf16.gmra.mxu0 %v1960
      %v1998 = vpop.f32.mrf.mxu0
      %v1999 = vadd.f32 %v1892, %v1998
      %v2000 = vpop.f32.mrf.mxu0
      %v2001 = vadd.f32 %v1893, %v2000
      %2002 = vdwg.mxu0
      %v2003 = vsel %vm279, %v1984, -inf
      %2004 = vmax.xlane.f32.xlu0 %v2003
      %v2005 = vpop.xlane.xlu0 %2004
      %v2006 = vsel %vm279, %v1986, -inf
      %2007 = vmax.xlane.f32.xlu0 %v2006
      %v2008 = vpop.xlane.xlu0 %2007
      %v2009 = vsel %vm279, %v1989, -inf
      %2010 = vmax.xlane.f32.xlu0 %v2009
      %v2011 = vpop.xlane.xlu0 %2010
      %v2012 = vsel %vm279, %v1991, -inf
      %2013 = vmax.xlane.f32.xlu0 %v2012
      %v2014 = vpop.xlane.xlu0 %2013
      %v2015 = vsel %vm279, %v1994, -inf
      %2016 = vmax.xlane.f32.xlu0 %v2015
      %v2017 = vpop.xlane.xlu0 %2016
      %v2018 = vsel %vm279, %v1996, -inf
      %2019 = vmax.xlane.f32.xlu0 %v2018
      %v2020 = vpop.xlane.xlu0 %2019
      %v2021 = vsel %vm279, %v1999, -inf
      %2022 = vmax.xlane.f32.xlu0 %v2021
      %v2023 = vpop.xlane.xlu0 %2022
      %v2024 = vsel %vm279, %v2001, -inf
      %2025 = vmax.xlane.f32.xlu0 %v2024
      %v2026 = vpop.xlane.xlu0 %2025
      %v2027 = vsub.f32 %v1984, %v2005
      %v2028 = vsub.f32 %v1986, %v2008
      %v2029 = vsub.f32 %v1989, %v2011
      %v2030 = vsub.f32 %v1991, %v2014
      %v2031 = vsub.f32 %v1994, %v2017
      %v2032 = vsub.f32 %v1996, %v2020
      %v2033 = vsub.f32 %v1999, %v2023
      %v2034 = vsub.f32 %v2001, %v2026
      %v2035 = vmul.f32 %v2027, 1.442695
      %v2036 = vpow.pop %v2035
      %v2037 = vmul.f32 %v2028, 1.442695
      %v2038 = vpow.pop %v2037
      %v2039 = vmul.f32 %v2029, 1.442695
      %v2040 = vpow.pop %v2039
      %v2041 = vmul.f32 %v2030, 1.442695
      %v2042 = vpow.pop %v2041
      %v2043 = vmul.f32 %v2031, 1.442695
      %v2044 = vpow.pop %v2043
      %v2045 = vmul.f32 %v2032, 1.442695
      %v2046 = vpow.pop %v2045
      %v2047 = vmul.f32 %v2033, 1.442695
      %v2048 = vpow.pop %v2047
      %v2049 = vmul.f32 %v2034, 1.442695
      %v2050 = vpow.pop %v2049
      %v2051 = vsel %vm279, %v2036, 0.0
      %2052 = vadd.xlane.f32.xlu0 %v2051
      %v2053 = vpop.xlane.xlu0 %2052
      %v2054 = vsel %vm279, %v2038, 0.0
      %2055 = vadd.xlane.f32.xlu0 %v2054
      %v2056 = vpop.xlane.xlu0 %2055
      %v2057 = vsel %vm279, %v2040, 0.0
      %2058 = vadd.xlane.f32.xlu0 %v2057
      %v2059 = vpop.xlane.xlu0 %2058
      %v2060 = vsel %vm279, %v2042, 0.0
      %2061 = vadd.xlane.f32.xlu0 %v2060
      %v2062 = vpop.xlane.xlu0 %2061
      %v2063 = vsel %vm279, %v2044, 0.0
      %2064 = vadd.xlane.f32.xlu0 %v2063
      %v2065 = vpop.xlane.xlu0 %2064
      %v2066 = vsel %vm279, %v2046, 0.0
      %2067 = vadd.xlane.f32.xlu0 %v2066
      %v2068 = vpop.xlane.xlu0 %2067
      %v2069 = vsel %vm279, %v2048, 0.0
      %2070 = vadd.xlane.f32.xlu0 %v2069
      %v2071 = vpop.xlane.xlu0 %2070
      %v2072 = vsel %vm279, %v2050, 0.0
      %2073 = vadd.xlane.f32.xlu0 %v2072
      %v2074 = vpop.xlane.xlu0 %2073
      %v2075 = vrcp.pop %v2053
      %v2076 = vrcp.pop %v2056
      %v2077 = vrcp.pop %v2059
      %v2078 = vrcp.pop %v2062
      %v2079 = vrcp.pop %v2065
      %v2080 = vrcp.pop %v2068
      %v2081 = vrcp.pop %v2071
      %v2082 = vrcp.pop %v2074
      %v2083 = vmul.f32 %v2036, %v2075
      %v2084 = vmul.f32 %v2038, %v2076
      %v2085 = vmul.f32 %v2040, %v2077
      %v2086 = vmul.f32 %v2042, %v2078
      %v2087 = vmul.f32 %v2044, %v2079
      %v2088 = vmul.f32 %v2046, %v2080
      %v2089 = vmul.f32 %v2048, %v2081
      %v2090 = vmul.f32 %v2050, %v2082
      %v2091 = vpack.c.bf16 %v2084, %v2083
      %v2092 = vpack.c.bf16 %v2086, %v2085
      %v2093 = vpack.c.bf16 %v2088, %v2087
      %v2094 = vpack.c.bf16 %v2090, %v2089
      %v2103 = vunpack.c.l.b16 %v1869
      %v2104 = vunpack.c.l.b16 %v1870
      %v2105 = vunpack.c.l.b16 %v1871
      %v2106 = vunpack.c.l.b16 %v1872
      %v2107 = vunpack.c.l.b16 %v1873
      %v2108 = vunpack.c.l.b16 %v1874
      %v2109 = vunpack.c.l.b16 %v1875
      %v2110 = vunpack.c.l.b16 %v1876
      %v2111 = vpack.c.b16 %v2104, %v2103
      %v2112 = vpack.c.b16 %v2106, %v2105
      %v2113 = vpack.c.b16 %v2108, %v2107
      %v2114 = vpack.c.b16 %v2110, %v2109
      %2115 = vrot.lane.b32.xlu0 %v2111, 96
      %v2116 = vpop.permute.xlu0 %2115
      %2117 = vrot.lane.b32.xlu0 %v2112, 96
      %v2118 = vpop.permute.xlu0 %2117
      %2119 = vrot.lane.b32.xlu0 %v2113, 96
      %v2120 = vpop.permute.xlu0 %2119
      %2121 = vrot.lane.b32.xlu0 %v2114, 96
      %v2122 = vpop.permute.xlu0 %2121
      %v2128 = vsel %vm279, %v2091, 0
      %v2131 = vsel %vm279, %v2092, 0
      %v2134 = vsel %vm279, %v2093, 0
      %v2137 = vsel %vm279, %v2094, 0
      %2139 = vmatpush.bf16.msra.mxu0 0
      %2140 = vmatpush.bf16.msra.mxu0 0
      %2141 = vmatpush.bf16.msra.mxu0 0
      %2142 = vmatpush.bf16.msra.mxu0 0
      %2143 = vmatpush.bf16.msra.mxu0 %v2122
      %2144 = vmatpush.bf16.msra.mxu0 %v2120
      %2145 = vmatpush.bf16.msra.mxu0 %v2118
      %2146 = vmatpush.bf16.msra.mxu0 %v2116
      %2147 = vmatmul.bf16.gmra.mxu0 %v2128
      %v2148 = vpop.f32.mrf.mxu0
      %v2149 = vadd.f32 0.0, %v2148
      %v2150 = vpop.f32.mrf.mxu0
      %v2151 = vadd.f32 0.0, %v2150
      %2152 = vmatmul.bf16.gmra.mxu0 %v2131
      %v2153 = vpop.f32.mrf.mxu0
      %v2154 = vadd.f32 0.0, %v2153
      %v2155 = vpop.f32.mrf.mxu0
      %v2156 = vadd.f32 0.0, %v2155
      %2157 = vmatmul.bf16.gmra.mxu0 %v2134
      %v2158 = vpop.f32.mrf.mxu0
      %v2159 = vadd.f32 0.0, %v2158
      %v2160 = vpop.f32.mrf.mxu0
      %v2161 = vadd.f32 0.0, %v2160
      %2162 = vmatmul.bf16.gmra.mxu0 %v2137
      %v2163 = vpop.f32.mrf.mxu0
      %v2164 = vadd.f32 0.0, %v2163
      %v2165 = vpop.f32.mrf.mxu0
      %v2166 = vadd.f32 0.0, %v2165
      %2167 = vdwg.mxu0
      %v2168 = vpack.c.bf16 %v2149, %v2149
      %v2169 = vpack.c.bf16 %v2151, %v2151
      %v2170 = vpack.c.bf16 %v2154, %v2154
      %v2171 = vpack.c.bf16 %v2156, %v2156
      %v2172 = vpack.c.bf16 %v2159, %v2159
      %v2173 = vpack.c.bf16 %v2161, %v2161
      %v2174 = vpack.c.bf16 %v2164, %v2164
      %v2175 = vpack.c.bf16 %v2166, %v2166
      %2184 = vrot.lane.b32.xlu0 %v2168, 32
      %v2185 = vpop.permute.xlu0 %2184
      %2186 = vrot.lane.b32.xlu0 %v2169, 32
      %v2187 = vpop.permute.xlu0 %2186
      %2188 = vrot.lane.b32.xlu0 %v2170, 32
      %v2189 = vpop.permute.xlu0 %2188
      %2190 = vrot.lane.b32.xlu0 %v2171, 32
      %v2191 = vpop.permute.xlu0 %2190
      %2192 = vrot.lane.b32.xlu0 %v2172, 32
      %v2193 = vpop.permute.xlu0 %2192
      %2194 = vrot.lane.b32.xlu0 %v2173, 32
      %v2195 = vpop.permute.xlu0 %2194
      %2196 = vrot.lane.b32.xlu0 %v2174, 32
      %v2197 = vpop.permute.xlu0 %2196
      %2198 = vrot.lane.b32.xlu0 %v2175, 32
      %v2199 = vpop.permute.xlu0 %2198
      %2208 = vst.msk [vmem:[%s143 + $0x4] sm:$0xf] %vm809, %v2185
      %2209 = vst.msk [vmem:[%s143 + $0xc] sm:$0xf] %vm809, %v2187
      %2210 = vst.msk [vmem:[%s143 + $0x14] sm:$0xf] %vm809, %v2189
      %2211 = vst.msk [vmem:[%s143 + $0x1c] sm:$0xf] %vm809, %v2191
      %2212 = vst.msk [vmem:[%s143 + $0x24] sm:$0xf] %vm809, %v2193
      %2213 = vst.msk [vmem:[%s143 + $0x2c] sm:$0xf] %vm809, %v2195
      %2214 = vst.msk [vmem:[%s143 + $0x34] sm:$0xf] %vm809, %v2197
      %2215 = vst.msk [vmem:[%s143 + $0x3c] sm:$0xf] %vm809, %v2199
      %v2216 = vld [vmem:[%s138 + $0x4] sm:$0xf]
      %v2217 = vld [vmem:[%s138 + $0x1c] sm:$0xf]
      %v2218 = vld [vmem:[%s138 + $0x34] sm:$0xf]
      %v2219 = vld [vmem:[%s138 + $0x4c] sm:$0xf]
      %v2220 = vld [vmem:[%s138 + $0x64] sm:$0xf]
      %v2221 = vld [vmem:[%s138 + $0x7c] sm:$0xf]
      %v2222 = vld [vmem:[%s138 + $0x94] sm:$0xf]
      %v2223 = vld [vmem:[%s138 + $0xac] sm:$0xf]
      %v2224 = vld [vmem:[%s138 + $0xc] sm:$0xf]
      %v2225 = vld [vmem:[%s138 + $0x24] sm:$0xf]
      %v2226 = vld [vmem:[%s138 + $0x3c] sm:$0xf]
      %v2227 = vld [vmem:[%s138 + $0x54] sm:$0xf]
      %v2228 = vld [vmem:[%s138 + $0x6c] sm:$0xf]
      %v2229 = vld [vmem:[%s138 + $0x84] sm:$0xf]
      %v2230 = vld [vmem:[%s138 + $0x9c] sm:$0xf]
      %v2231 = vld [vmem:[%s138 + $0xb4] sm:$0xf]
      %v2232 = vld [vmem:[%s138 + $0x14] sm:$0xf]
      %v2233 = vld [vmem:[%s138 + $0x2c] sm:$0xf]
      %v2234 = vld [vmem:[%s138 + $0x44] sm:$0xf]
      %v2235 = vld [vmem:[%s138 + $0x5c] sm:$0xf]
      %v2236 = vld [vmem:[%s138 + $0x74] sm:$0xf]
      %v2237 = vld [vmem:[%s138 + $0x8c] sm:$0xf]
      %v2238 = vld [vmem:[%s138 + $0xa4] sm:$0xf]
      %v2239 = vld [vmem:[%s138 + $0xbc] sm:$0xf]
      %s2240 = scalar_lea.vmem %s1, 192
      %v2241 = vld [vmem:[%s2240] sm:$0xf]
      %v2242 = vld [vmem:[%s2240 + $0x4] sm:$0xf]
      %v2243 = vld [vmem:[%s2240 + $0x8] sm:$0xf]
      %v2244 = vld [vmem:[%s2240 + $0xc] sm:$0xf]
      %v2245 = vld [vmem:[%s2240 + $0x10] sm:$0xf]
      %v2246 = vld [vmem:[%s2240 + $0x14] sm:$0xf]
      %v2247 = vld [vmem:[%s2240 + $0x18] sm:$0xf]
      %v2248 = vld [vmem:[%s2240 + $0x1c] sm:$0xf]
      %v2249 = vunpack.c.l.bf16 %v2241
      %v2250 = vunpack.c.l.bf16 %v2242
      %v2251 = vunpack.c.l.bf16 %v2243
      %v2252 = vunpack.c.l.bf16 %v2244
      %v2253 = vunpack.c.l.bf16 %v2245
      %v2254 = vunpack.c.l.bf16 %v2246
      %v2255 = vunpack.c.l.bf16 %v2247
      %v2256 = vunpack.c.l.bf16 %v2248
      %v2265 = vunpack.c.l.b16 %v2216
      %v2266 = vunpack.c.l.b16 %v2217
      %v2267 = vunpack.c.l.b16 %v2218
      %v2268 = vunpack.c.l.b16 %v2219
      %v2269 = vunpack.c.l.b16 %v2220
      %v2270 = vunpack.c.l.b16 %v2221
      %v2271 = vunpack.c.l.b16 %v2222
      %v2272 = vunpack.c.l.b16 %v2223
      %v2273 = vpack.c.b16 %v2266, %v2265
      %v2274 = vpack.c.b16 %v2268, %v2267
      %v2275 = vpack.c.b16 %v2270, %v2269
      %v2276 = vpack.c.b16 %v2272, %v2271
      %2277 = vrot.lane.b32.xlu0 %v2273, 64
      %v2278 = vpop.permute.xlu0 %2277
      %2279 = vrot.lane.b32.xlu0 %v2274, 64
      %v2280 = vpop.permute.xlu0 %2279
      %2281 = vrot.lane.b32.xlu0 %v2275, 64
      %v2282 = vpop.permute.xlu0 %2281
      %2283 = vrot.lane.b32.xlu0 %v2276, 64
      %v2284 = vpop.permute.xlu0 %2283
      %v2293 = vunpack.c.l.b16 %v2224
      %v2294 = vunpack.c.l.b16 %v2225
      %v2295 = vunpack.c.l.b16 %v2226
      %v2296 = vunpack.c.l.b16 %v2227
      %v2297 = vunpack.c.l.b16 %v2228
      %v2298 = vunpack.c.l.b16 %v2229
      %v2299 = vunpack.c.l.b16 %v2230
      %v2300 = vunpack.c.l.b16 %v2231
      %v2301 = vpack.c.b16 %v2294, %v2293
      %v2302 = vpack.c.b16 %v2296, %v2295
      %v2303 = vpack.c.b16 %v2298, %v2297
      %v2304 = vpack.c.b16 %v2300, %v2299
      %2305 = vrot.lane.b32.xlu0 %v2301, 64
      %v2306 = vpop.permute.xlu0 %2305
      %2307 = vrot.lane.b32.xlu0 %v2302, 64
      %v2308 = vpop.permute.xlu0 %2307
      %2309 = vrot.lane.b32.xlu0 %v2303, 64
      %v2310 = vpop.permute.xlu0 %2309
      %2311 = vrot.lane.b32.xlu0 %v2304, 64
      %v2312 = vpop.permute.xlu0 %2311
      %v2314 = vsel %vm225, %v2278, 0
      %v2317 = vsel %vm225, %v2280, 0
      %v2320 = vsel %vm225, %v2282, 0
      %v2323 = vsel %vm225, %v2284, 0
      %v2326 = vsel %vm225, %v2306, 0
      %v2329 = vsel %vm225, %v2308, 0
      %v2332 = vsel %vm225, %v2310, 0
      %v2335 = vsel %vm225, %v2312, 0
      %2337 = vmatpush.bf16.xpose.msra.mxu0 0
      %2338 = vmatpush.bf16.xpose.msra.mxu0 0
      %2339 = vmatpush.bf16.xpose.msra.mxu0 0
      %2340 = vmatpush.bf16.xpose.msra.mxu0 0
      %2341 = vmatpush.bf16.xpose.msra.mxu0 %v2335
      %2342 = vmatpush.bf16.xpose.msra.mxu0 %v2332
      %2343 = vmatpush.bf16.xpose.msra.mxu0 %v2329
      %2344 = vmatpush.bf16.xpose.msra.mxu0 %v2326
      %2345 = vmatmul.bf16.gmra.mxu0 %v2314
      %v2346 = vpop.f32.mrf.mxu0
      %v2347 = vadd.f32 %v2249, %v2346
      %v2348 = vpop.f32.mrf.mxu0
      %v2349 = vadd.f32 %v2250, %v2348
      %2350 = vmatmul.bf16.gmra.mxu0 %v2317
      %v2351 = vpop.f32.mrf.mxu0
      %v2352 = vadd.f32 %v2251, %v2351
      %v2353 = vpop.f32.mrf.mxu0
      %v2354 = vadd.f32 %v2252, %v2353
      %2355 = vmatmul.bf16.gmra.mxu0 %v2320
      %v2356 = vpop.f32.mrf.mxu0
      %v2357 = vadd.f32 %v2253, %v2356
      %v2358 = vpop.f32.mrf.mxu0
      %v2359 = vadd.f32 %v2254, %v2358
      %2360 = vmatmul.bf16.gmra.mxu0 %v2323
      %v2361 = vpop.f32.mrf.mxu0
      %v2362 = vadd.f32 %v2255, %v2361
      %v2363 = vpop.f32.mrf.mxu0
      %v2364 = vadd.f32 %v2256, %v2363
      %2365 = vdwg.mxu0
      %v2366 = vsel %vm279, %v2347, -inf
      %2367 = vmax.xlane.f32.xlu0 %v2366
      %v2368 = vpop.xlane.xlu0 %2367
      %v2369 = vsel %vm279, %v2349, -inf
      %2370 = vmax.xlane.f32.xlu0 %v2369
      %v2371 = vpop.xlane.xlu0 %2370
      %v2372 = vsel %vm279, %v2352, -inf
      %2373 = vmax.xlane.f32.xlu0 %v2372
      %v2374 = vpop.xlane.xlu0 %2373
      %v2375 = vsel %vm279, %v2354, -inf
      %2376 = vmax.xlane.f32.xlu0 %v2375
      %v2377 = vpop.xlane.xlu0 %2376
      %v2378 = vsel %vm279, %v2357, -inf
      %2379 = vmax.xlane.f32.xlu0 %v2378
      %v2380 = vpop.xlane.xlu0 %2379
      %v2381 = vsel %vm279, %v2359, -inf
      %2382 = vmax.xlane.f32.xlu0 %v2381
      %v2383 = vpop.xlane.xlu0 %2382
      %v2384 = vsel %vm279, %v2362, -inf
      %2385 = vmax.xlane.f32.xlu0 %v2384
      %v2386 = vpop.xlane.xlu0 %2385
      %v2387 = vsel %vm279, %v2364, -inf
      %2388 = vmax.xlane.f32.xlu0 %v2387
      %v2389 = vpop.xlane.xlu0 %2388
      %v2390 = vsub.f32 %v2347, %v2368
      %v2391 = vsub.f32 %v2349, %v2371
      %v2392 = vsub.f32 %v2352, %v2374
      %v2393 = vsub.f32 %v2354, %v2377
      %v2394 = vsub.f32 %v2357, %v2380
      %v2395 = vsub.f32 %v2359, %v2383
      %v2396 = vsub.f32 %v2362, %v2386
      %v2397 = vsub.f32 %v2364, %v2389
      %v2398 = vmul.f32 %v2390, 1.442695
      %v2399 = vpow.pop %v2398
      %v2400 = vmul.f32 %v2391, 1.442695
      %v2401 = vpow.pop %v2400
      %v2402 = vmul.f32 %v2392, 1.442695
      %v2403 = vpow.pop %v2402
      %v2404 = vmul.f32 %v2393, 1.442695
      %v2405 = vpow.pop %v2404
      %v2406 = vmul.f32 %v2394, 1.442695
      %v2407 = vpow.pop %v2406
      %v2408 = vmul.f32 %v2395, 1.442695
      %v2409 = vpow.pop %v2408
      %v2410 = vmul.f32 %v2396, 1.442695
      %v2411 = vpow.pop %v2410
      %v2412 = vmul.f32 %v2397, 1.442695
      %v2413 = vpow.pop %v2412
      %v2414 = vsel %vm279, %v2399, 0.0
      %2415 = vadd.xlane.f32.xlu0 %v2414
      %v2416 = vpop.xlane.xlu0 %2415
      %v2417 = vsel %vm279, %v2401, 0.0
      %2418 = vadd.xlane.f32.xlu0 %v2417
      %v2419 = vpop.xlane.xlu0 %2418
      %v2420 = vsel %vm279, %v2403, 0.0
      %2421 = vadd.xlane.f32.xlu0 %v2420
      %v2422 = vpop.xlane.xlu0 %2421
      %v2423 = vsel %vm279, %v2405, 0.0
      %2424 = vadd.xlane.f32.xlu0 %v2423
      %v2425 = vpop.xlane.xlu0 %2424
      %v2426 = vsel %vm279, %v2407, 0.0
      %2427 = vadd.xlane.f32.xlu0 %v2426
      %v2428 = vpop.xlane.xlu0 %2427
      %v2429 = vsel %vm279, %v2409, 0.0
      %2430 = vadd.xlane.f32.xlu0 %v2429
      %v2431 = vpop.xlane.xlu0 %2430
      %v2432 = vsel %vm279, %v2411, 0.0
      %2433 = vadd.xlane.f32.xlu0 %v2432
      %v2434 = vpop.xlane.xlu0 %2433
      %v2435 = vsel %vm279, %v2413, 0.0
      %2436 = vadd.xlane.f32.xlu0 %v2435
      %v2437 = vpop.xlane.xlu0 %2436
      %v2438 = vrcp.pop %v2416
      %v2439 = vrcp.pop %v2419
      %v2440 = vrcp.pop %v2422
      %v2441 = vrcp.pop %v2425
      %v2442 = vrcp.pop %v2428
      %v2443 = vrcp.pop %v2431
      %v2444 = vrcp.pop %v2434
      %v2445 = vrcp.pop %v2437
      %v2446 = vmul.f32 %v2399, %v2438
      %v2447 = vmul.f32 %v2401, %v2439
      %v2448 = vmul.f32 %v2403, %v2440
      %v2449 = vmul.f32 %v2405, %v2441
      %v2450 = vmul.f32 %v2407, %v2442
      %v2451 = vmul.f32 %v2409, %v2443
      %v2452 = vmul.f32 %v2411, %v2444
      %v2453 = vmul.f32 %v2413, %v2445
      %v2454 = vpack.c.bf16 %v2447, %v2446
      %v2455 = vpack.c.bf16 %v2449, %v2448
      %v2456 = vpack.c.bf16 %v2451, %v2450
      %v2457 = vpack.c.bf16 %v2453, %v2452
      %v2466 = vunpack.c.l.b16 %v2232
      %v2467 = vunpack.c.l.b16 %v2233
      %v2468 = vunpack.c.l.b16 %v2234
      %v2469 = vunpack.c.l.b16 %v2235
      %v2470 = vunpack.c.l.b16 %v2236
      %v2471 = vunpack.c.l.b16 %v2237
      %v2472 = vunpack.c.l.b16 %v2238
      %v2473 = vunpack.c.l.b16 %v2239
      %v2474 = vpack.c.b16 %v2467, %v2466
      %v2475 = vpack.c.b16 %v2469, %v2468
      %v2476 = vpack.c.b16 %v2471, %v2470
      %v2477 = vpack.c.b16 %v2473, %v2472
      %2478 = vrot.lane.b32.xlu0 %v2474, 64
      %v2479 = vpop.permute.xlu0 %2478
      %2480 = vrot.lane.b32.xlu0 %v2475, 64
      %v2481 = vpop.permute.xlu0 %2480
      %2482 = vrot.lane.b32.xlu0 %v2476, 64
      %v2483 = vpop.permute.xlu0 %2482
      %2484 = vrot.lane.b32.xlu0 %v2477, 64
      %v2485 = vpop.permute.xlu0 %2484
      %v2491 = vsel %vm279, %v2454, 0
      %v2494 = vsel %vm279, %v2455, 0
      %v2497 = vsel %vm279, %v2456, 0
      %v2500 = vsel %vm279, %v2457, 0
      %2502 = vmatpush.bf16.msra.mxu0 0
      %2503 = vmatpush.bf16.msra.mxu0 0
      %2504 = vmatpush.bf16.msra.mxu0 0
      %2505 = vmatpush.bf16.msra.mxu0 0
      %2506 = vmatpush.bf16.msra.mxu0 %v2485
      %2507 = vmatpush.bf16.msra.mxu0 %v2483
      %2508 = vmatpush.bf16.msra.mxu0 %v2481
      %2509 = vmatpush.bf16.msra.mxu0 %v2479
      %2510 = vmatmul.bf16.gmra.mxu0 %v2491
      %v2511 = vpop.f32.mrf.mxu0
      %v2512 = vadd.f32 0.0, %v2511
      %v2513 = vpop.f32.mrf.mxu0
      %v2514 = vadd.f32 0.0, %v2513
      %2515 = vmatmul.bf16.gmra.mxu0 %v2494
      %v2516 = vpop.f32.mrf.mxu0
      %v2517 = vadd.f32 0.0, %v2516
      %v2518 = vpop.f32.mrf.mxu0
      %v2519 = vadd.f32 0.0, %v2518
      %2520 = vmatmul.bf16.gmra.mxu0 %v2497
      %v2521 = vpop.f32.mrf.mxu0
      %v2522 = vadd.f32 0.0, %v2521
      %v2523 = vpop.f32.mrf.mxu0
      %v2524 = vadd.f32 0.0, %v2523
      %2525 = vmatmul.bf16.gmra.mxu0 %v2500
      %v2526 = vpop.f32.mrf.mxu0
      %v2527 = vadd.f32 0.0, %v2526
      %v2528 = vpop.f32.mrf.mxu0
      %v2529 = vadd.f32 0.0, %v2528
      %2530 = vdwg.mxu0
      %v2531 = vpack.c.bf16 %v2512, %v2512
      %v2532 = vpack.c.bf16 %v2514, %v2514
      %v2533 = vpack.c.bf16 %v2517, %v2517
      %v2534 = vpack.c.bf16 %v2519, %v2519
      %v2535 = vpack.c.bf16 %v2522, %v2522
      %v2536 = vpack.c.bf16 %v2524, %v2524
      %v2537 = vpack.c.bf16 %v2527, %v2527
      %v2538 = vpack.c.bf16 %v2529, %v2529
      %2547 = vrot.lane.b32.xlu0 %v2531, 64
      %v2548 = vpop.permute.xlu0 %2547
      %2549 = vrot.lane.b32.xlu0 %v2532, 64
      %v2550 = vpop.permute.xlu0 %2549
      %2551 = vrot.lane.b32.xlu0 %v2533, 64
      %v2552 = vpop.permute.xlu0 %2551
      %2553 = vrot.lane.b32.xlu0 %v2534, 64
      %v2554 = vpop.permute.xlu0 %2553
      %2555 = vrot.lane.b32.xlu0 %v2535, 64
      %v2556 = vpop.permute.xlu0 %2555
      %2557 = vrot.lane.b32.xlu0 %v2536, 64
      %v2558 = vpop.permute.xlu0 %2557
      %2559 = vrot.lane.b32.xlu0 %v2537, 64
      %v2560 = vpop.permute.xlu0 %2559
      %2561 = vrot.lane.b32.xlu0 %v2538, 64
      %v2562 = vpop.permute.xlu0 %2561
      %2571 = vst.msk [vmem:[%s143 + $0x4] sm:$0xf] %vm1173, %v2548
      %2572 = vst.msk [vmem:[%s143 + $0xc] sm:$0xf] %vm1173, %v2550
      %2573 = vst.msk [vmem:[%s143 + $0x14] sm:$0xf] %vm1173, %v2552
      %2574 = vst.msk [vmem:[%s143 + $0x1c] sm:$0xf] %vm1173, %v2554
      %2575 = vst.msk [vmem:[%s143 + $0x24] sm:$0xf] %vm1173, %v2556
      %2576 = vst.msk [vmem:[%s143 + $0x2c] sm:$0xf] %vm1173, %v2558
      %2577 = vst.msk [vmem:[%s143 + $0x34] sm:$0xf] %vm1173, %v2560
      %2578 = vst.msk [vmem:[%s143 + $0x3c] sm:$0xf] %vm1173, %v2562
      %v2579 = vld [vmem:[%s138 + $0x4] sm:$0xf]
      %v2580 = vld [vmem:[%s138 + $0x1c] sm:$0xf]
      %v2581 = vld [vmem:[%s138 + $0x34] sm:$0xf]
      %v2582 = vld [vmem:[%s138 + $0x4c] sm:$0xf]
      %v2583 = vld [vmem:[%s138 + $0x64] sm:$0xf]
      %v2584 = vld [vmem:[%s138 + $0x7c] sm:$0xf]
      %v2585 = vld [vmem:[%s138 + $0x94] sm:$0xf]
      %v2586 = vld [vmem:[%s138 + $0xac] sm:$0xf]
      %v2587 = vld [vmem:[%s138 + $0xc] sm:$0xf]
      %v2588 = vld [vmem:[%s138 + $0x24] sm:$0xf]
      %v2589 = vld [vmem:[%s138 + $0x3c] sm:$0xf]
      %v2590 = vld [vmem:[%s138 + $0x54] sm:$0xf]
      %v2591 = vld [vmem:[%s138 + $0x6c] sm:$0xf]
      %v2592 = vld [vmem:[%s138 + $0x84] sm:$0xf]
      %v2593 = vld [vmem:[%s138 + $0x9c] sm:$0xf]
      %v2594 = vld [vmem:[%s138 + $0xb4] sm:$0xf]
      %v2595 = vld [vmem:[%s138 + $0x14] sm:$0xf]
      %v2596 = vld [vmem:[%s138 + $0x2c] sm:$0xf]
      %v2597 = vld [vmem:[%s138 + $0x44] sm:$0xf]
      %v2598 = vld [vmem:[%s138 + $0x5c] sm:$0xf]
      %v2599 = vld [vmem:[%s138 + $0x74] sm:$0xf]
      %v2600 = vld [vmem:[%s138 + $0x8c] sm:$0xf]
      %v2601 = vld [vmem:[%s138 + $0xa4] sm:$0xf]
      %v2602 = vld [vmem:[%s138 + $0xbc] sm:$0xf]
      %s2603 = scalar_lea.vmem %s1, 224
      %v2604 = vld [vmem:[%s2603] sm:$0xf]
      %v2605 = vld [vmem:[%s2603 + $0x4] sm:$0xf]
      %v2606 = vld [vmem:[%s2603 + $0x8] sm:$0xf]
      %v2607 = vld [vmem:[%s2603 + $0xc] sm:$0xf]
      %v2608 = vld [vmem:[%s2603 + $0x10] sm:$0xf]
      %v2609 = vld [vmem:[%s2603 + $0x14] sm:$0xf]
      %v2610 = vld [vmem:[%s2603 + $0x18] sm:$0xf]
      %v2611 = vld [vmem:[%s2603 + $0x1c] sm:$0xf]
      %v2612 = vunpack.c.l.bf16 %v2604
      %v2613 = vunpack.c.l.bf16 %v2605
      %v2614 = vunpack.c.l.bf16 %v2606
      %v2615 = vunpack.c.l.bf16 %v2607
      %v2616 = vunpack.c.l.bf16 %v2608
      %v2617 = vunpack.c.l.bf16 %v2609
      %v2618 = vunpack.c.l.bf16 %v2610
      %v2619 = vunpack.c.l.bf16 %v2611
      %v2628 = vunpack.c.l.b16 %v2579
      %v2629 = vunpack.c.l.b16 %v2580
      %v2630 = vunpack.c.l.b16 %v2581
      %v2631 = vunpack.c.l.b16 %v2582
      %v2632 = vunpack.c.l.b16 %v2583
      %v2633 = vunpack.c.l.b16 %v2584
      %v2634 = vunpack.c.l.b16 %v2585
      %v2635 = vunpack.c.l.b16 %v2586
      %v2636 = vpack.c.b16 %v2629, %v2628
      %v2637 = vpack.c.b16 %v2631, %v2630
      %v2638 = vpack.c.b16 %v2633, %v2632
      %v2639 = vpack.c.b16 %v2635, %v2634
      %2640 = vrot.lane.b32.xlu0 %v2636, 32
      %v2641 = vpop.permute.xlu0 %2640
      %2642 = vrot.lane.b32.xlu0 %v2637, 32
      %v2643 = vpop.permute.xlu0 %2642
      %2644 = vrot.lane.b32.xlu0 %v2638, 32
      %v2645 = vpop.permute.xlu0 %2644
      %2646 = vrot.lane.b32.xlu0 %v2639, 32
      %v2647 = vpop.permute.xlu0 %2646
      %v2656 = vunpack.c.l.b16 %v2587
      %v2657 = vunpack.c.l.b16 %v2588
      %v2658 = vunpack.c.l.b16 %v2589
      %v2659 = vunpack.c.l.b16 %v2590
      %v2660 = vunpack.c.l.b16 %v2591
      %v2661 = vunpack.c.l.b16 %v2592
      %v2662 = vunpack.c.l.b16 %v2593
      %v2663 = vunpack.c.l.b16 %v2594
      %v2664 = vpack.c.b16 %v2657, %v2656
      %v2665 = vpack.c.b16 %v2659, %v2658
      %v2666 = vpack.c.b16 %v2661, %v2660
      %v2667 = vpack.c.b16 %v2663, %v2662
      %2668 = vrot.lane.b32.xlu0 %v2664, 32
      %v2669 = vpop.permute.xlu0 %2668
      %2670 = vrot.lane.b32.xlu0 %v2665, 32
      %v2671 = vpop.permute.xlu0 %2670
      %2672 = vrot.lane.b32.xlu0 %v2666, 32
      %v2673 = vpop.permute.xlu0 %2672
      %2674 = vrot.lane.b32.xlu0 %v2667, 32
      %v2675 = vpop.permute.xlu0 %2674
      %v2677 = vsel %vm225, %v2641, 0
      %v2680 = vsel %vm225, %v2643, 0
      %v2683 = vsel %vm225, %v2645, 0
      %v2686 = vsel %vm225, %v2647, 0
      %v2689 = vsel %vm225, %v2669, 0
      %v2692 = vsel %vm225, %v2671, 0
      %v2695 = vsel %vm225, %v2673, 0
      %v2698 = vsel %vm225, %v2675, 0
      %2700 = vmatpush.bf16.xpose.msra.mxu0 0
      %2701 = vmatpush.bf16.xpose.msra.mxu0 0
      %2702 = vmatpush.bf16.xpose.msra.mxu0 0
      %2703 = vmatpush.bf16.xpose.msra.mxu0 0
      %2704 = vmatpush.bf16.xpose.msra.mxu0 %v2698
      %2705 = vmatpush.bf16.xpose.msra.mxu0 %v2695
      %2706 = vmatpush.bf16.xpose.msra.mxu0 %v2692
      %2707 = vmatpush.bf16.xpose.msra.mxu0 %v2689
      %2708 = vmatmul.bf16.gmra.mxu0 %v2677
      %v2709 = vpop.f32.mrf.mxu0
      %v2710 = vadd.f32 %v2612, %v2709
      %v2711 = vpop.f32.mrf.mxu0
      %v2712 = vadd.f32 %v2613, %v2711
      %2713 = vmatmul.bf16.gmra.mxu0 %v2680
      %v2714 = vpop.f32.mrf.mxu0
      %v2715 = vadd.f32 %v2614, %v2714
      %v2716 = vpop.f32.mrf.mxu0
      %v2717 = vadd.f32 %v2615, %v2716
      %2718 = vmatmul.bf16.gmra.mxu0 %v2683
      %v2719 = vpop.f32.mrf.mxu0
      %v2720 = vadd.f32 %v2616, %v2719
      %v2721 = vpop.f32.mrf.mxu0
      %v2722 = vadd.f32 %v2617, %v2721
      %2723 = vmatmul.bf16.gmra.mxu0 %v2686
      %v2724 = vpop.f32.mrf.mxu0
      %v2725 = vadd.f32 %v2618, %v2724
      %v2726 = vpop.f32.mrf.mxu0
      %v2727 = vadd.f32 %v2619, %v2726
      %2728 = vdwg.mxu0
      %v2729 = vsel %vm279, %v2710, -inf
      %2730 = vmax.xlane.f32.xlu0 %v2729
      %v2731 = vpop.xlane.xlu0 %2730
      %v2732 = vsel %vm279, %v2712, -inf
      %2733 = vmax.xlane.f32.xlu0 %v2732
      %v2734 = vpop.xlane.xlu0 %2733
      %v2735 = vsel %vm279, %v2715, -inf
      %2736 = vmax.xlane.f32.xlu0 %v2735
      %v2737 = vpop.xlane.xlu0 %2736
      %v2738 = vsel %vm279, %v2717, -inf
      %2739 = vmax.xlane.f32.xlu0 %v2738
      %v2740 = vpop.xlane.xlu0 %2739
      %v2741 = vsel %vm279, %v2720, -inf
      %2742 = vmax.xlane.f32.xlu0 %v2741
      %v2743 = vpop.xlane.xlu0 %2742
      %v2744 = vsel %vm279, %v2722, -inf
      %2745 = vmax.xlane.f32.xlu0 %v2744
      %v2746 = vpop.xlane.xlu0 %2745
      %v2747 = vsel %vm279, %v2725, -inf
      %2748 = vmax.xlane.f32.xlu0 %v2747
      %v2749 = vpop.xlane.xlu0 %2748
      %v2750 = vsel %vm279, %v2727, -inf
      %2751 = vmax.xlane.f32.xlu0 %v2750
      %v2752 = vpop.xlane.xlu0 %2751
      %v2753 = vsub.f32 %v2710, %v2731
      %v2754 = vsub.f32 %v2712, %v2734
      %v2755 = vsub.f32 %v2715, %v2737
      %v2756 = vsub.f32 %v2717, %v2740
      %v2757 = vsub.f32 %v2720, %v2743
      %v2758 = vsub.f32 %v2722, %v2746
      %v2759 = vsub.f32 %v2725, %v2749
      %v2760 = vsub.f32 %v2727, %v2752
      %v2761 = vmul.f32 %v2753, 1.442695
      %v2762 = vpow.pop %v2761
      %v2763 = vmul.f32 %v2754, 1.442695
      %v2764 = vpow.pop %v2763
      %v2765 = vmul.f32 %v2755, 1.442695
      %v2766 = vpow.pop %v2765
      %v2767 = vmul.f32 %v2756, 1.442695
      %v2768 = vpow.pop %v2767
      %v2769 = vmul.f32 %v2757, 1.442695
      %v2770 = vpow.pop %v2769
      %v2771 = vmul.f32 %v2758, 1.442695
      %v2772 = vpow.pop %v2771
      %v2773 = vmul.f32 %v2759, 1.442695
      %v2774 = vpow.pop %v2773
      %v2775 = vmul.f32 %v2760, 1.442695
      %v2776 = vpow.pop %v2775
      %v2777 = vsel %vm279, %v2762, 0.0
      %2778 = vadd.xlane.f32.xlu0 %v2777
      %v2779 = vpop.xlane.xlu0 %2778
      %v2780 = vsel %vm279, %v2764, 0.0
      %2781 = vadd.xlane.f32.xlu0 %v2780
      %v2782 = vpop.xlane.xlu0 %2781
      %v2783 = vsel %vm279, %v2766, 0.0
      %2784 = vadd.xlane.f32.xlu0 %v2783
      %v2785 = vpop.xlane.xlu0 %2784
      %v2786 = vsel %vm279, %v2768, 0.0
      %2787 = vadd.xlane.f32.xlu0 %v2786
      %v2788 = vpop.xlane.xlu0 %2787
      %v2789 = vsel %vm279, %v2770, 0.0
      %2790 = vadd.xlane.f32.xlu0 %v2789
      %v2791 = vpop.xlane.xlu0 %2790
      %v2792 = vsel %vm279, %v2772, 0.0
      %2793 = vadd.xlane.f32.xlu0 %v2792
      %v2794 = vpop.xlane.xlu0 %2793
      %v2795 = vsel %vm279, %v2774, 0.0
      %2796 = vadd.xlane.f32.xlu0 %v2795
      %v2797 = vpop.xlane.xlu0 %2796
      %v2798 = vsel %vm279, %v2776, 0.0
      %2799 = vadd.xlane.f32.xlu0 %v2798
      %v2800 = vpop.xlane.xlu0 %2799
      %v2801 = vrcp.pop %v2779
      %v2802 = vrcp.pop %v2782
      %v2803 = vrcp.pop %v2785
      %v2804 = vrcp.pop %v2788
      %v2805 = vrcp.pop %v2791
      %v2806 = vrcp.pop %v2794
      %v2807 = vrcp.pop %v2797
      %v2808 = vrcp.pop %v2800
      %v2809 = vmul.f32 %v2762, %v2801
      %v2810 = vmul.f32 %v2764, %v2802
      %v2811 = vmul.f32 %v2766, %v2803
      %v2812 = vmul.f32 %v2768, %v2804
      %v2813 = vmul.f32 %v2770, %v2805
      %v2814 = vmul.f32 %v2772, %v2806
      %v2815 = vmul.f32 %v2774, %v2807
      %v2816 = vmul.f32 %v2776, %v2808
      %v2817 = vpack.c.bf16 %v2810, %v2809
      %v2818 = vpack.c.bf16 %v2812, %v2811
      %v2819 = vpack.c.bf16 %v2814, %v2813
      %v2820 = vpack.c.bf16 %v2816, %v2815
      %v2829 = vunpack.c.l.b16 %v2595
      %v2830 = vunpack.c.l.b16 %v2596
      %v2831 = vunpack.c.l.b16 %v2597
      %v2832 = vunpack.c.l.b16 %v2598
      %v2833 = vunpack.c.l.b16 %v2599
      %v2834 = vunpack.c.l.b16 %v2600
      %v2835 = vunpack.c.l.b16 %v2601
      %v2836 = vunpack.c.l.b16 %v2602
      %v2837 = vpack.c.b16 %v2830, %v2829
      %v2838 = vpack.c.b16 %v2832, %v2831
      %v2839 = vpack.c.b16 %v2834, %v2833
      %v2840 = vpack.c.b16 %v2836, %v2835
      %2841 = vrot.lane.b32.xlu0 %v2837, 32
      %v2842 = vpop.permute.xlu0 %2841
      %2843 = vrot.lane.b32.xlu0 %v2838, 32
      %v2844 = vpop.permute.xlu0 %2843
      %2845 = vrot.lane.b32.xlu0 %v2839, 32
      %v2846 = vpop.permute.xlu0 %2845
      %2847 = vrot.lane.b32.xlu0 %v2840, 32
      %v2848 = vpop.permute.xlu0 %2847
      %v2854 = vsel %vm279, %v2817, 0
      %v2857 = vsel %vm279, %v2818, 0
      %v2860 = vsel %vm279, %v2819, 0
      %v2863 = vsel %vm279, %v2820, 0
      %2865 = vmatpush.bf16.msra.mxu0 0
      %2866 = vmatpush.bf16.msra.mxu0 0
      %2867 = vmatpush.bf16.msra.mxu0 0
      %2868 = vmatpush.bf16.msra.mxu0 0
      %2869 = vmatpush.bf16.msra.mxu0 %v2848
      %2870 = vmatpush.bf16.msra.mxu0 %v2846
      %2871 = vmatpush.bf16.msra.mxu0 %v2844
      %2872 = vmatpush.bf16.msra.mxu0 %v2842
      %2873 = vmatmul.bf16.gmra.mxu0 %v2854
      %v2874 = vpop.f32.mrf.mxu0
      %v2875 = vadd.f32 0.0, %v2874
      %v2876 = vpop.f32.mrf.mxu0
      %v2877 = vadd.f32 0.0, %v2876
      %2878 = vmatmul.bf16.gmra.mxu0 %v2857
      %v2879 = vpop.f32.mrf.mxu0
      %v2880 = vadd.f32 0.0, %v2879
      %v2881 = vpop.f32.mrf.mxu0
      %v2882 = vadd.f32 0.0, %v2881
      %2883 = vmatmul.bf16.gmra.mxu0 %v2860
      %v2884 = vpop.f32.mrf.mxu0
      %v2885 = vadd.f32 0.0, %v2884
      %v2886 = vpop.f32.mrf.mxu0
      %v2887 = vadd.f32 0.0, %v2886
      %2888 = vmatmul.bf16.gmra.mxu0 %v2863
      %v2889 = vpop.f32.mrf.mxu0
      %v2890 = vadd.f32 0.0, %v2889
      %v2891 = vpop.f32.mrf.mxu0
      %v2892 = vadd.f32 0.0, %v2891
      %2893 = vdwg.mxu0
      %v2894 = vpack.c.bf16 %v2875, %v2875
      %v2895 = vpack.c.bf16 %v2877, %v2877
      %v2896 = vpack.c.bf16 %v2880, %v2880
      %v2897 = vpack.c.bf16 %v2882, %v2882
      %v2898 = vpack.c.bf16 %v2885, %v2885
      %v2899 = vpack.c.bf16 %v2887, %v2887
      %v2900 = vpack.c.bf16 %v2890, %v2890
      %v2901 = vpack.c.bf16 %v2892, %v2892
      %2910 = vrot.lane.b32.xlu0 %v2894, 96
      %v2911 = vpop.permute.xlu0 %2910
      %2912 = vrot.lane.b32.xlu0 %v2895, 96
      %v2913 = vpop.permute.xlu0 %2912
      %2914 = vrot.lane.b32.xlu0 %v2896, 96
      %v2915 = vpop.permute.xlu0 %2914
      %2916 = vrot.lane.b32.xlu0 %v2897, 96
      %v2917 = vpop.permute.xlu0 %2916
      %2918 = vrot.lane.b32.xlu0 %v2898, 96
      %v2919 = vpop.permute.xlu0 %2918
      %2920 = vrot.lane.b32.xlu0 %v2899, 96
      %v2921 = vpop.permute.xlu0 %2920
      %2922 = vrot.lane.b32.xlu0 %v2900, 96
      %v2923 = vpop.permute.xlu0 %2922
      %2924 = vrot.lane.b32.xlu0 %v2901, 96
      %v2925 = vpop.permute.xlu0 %2924
      %2934 = vst.msk [vmem:[%s143 + $0x4] sm:$0xf] %vm1537, %v2911
      %2935 = vst.msk [vmem:[%s143 + $0xc] sm:$0xf] %vm1537, %v2913
      %2936 = vst.msk [vmem:[%s143 + $0x14] sm:$0xf] %vm1537, %v2915
      %2937 = vst.msk [vmem:[%s143 + $0x1c] sm:$0xf] %vm1537, %v2917
      %2938 = vst.msk [vmem:[%s143 + $0x24] sm:$0xf] %vm1537, %v2919
      %2939 = vst.msk [vmem:[%s143 + $0x2c] sm:$0xf] %vm1537, %v2921
      %2940 = vst.msk [vmem:[%s143 + $0x34] sm:$0xf] %vm1537, %v2923
      %2941 = vst.msk [vmem:[%s143 + $0x3c] sm:$0xf] %vm1537, %v2925
      %p2942 = scmp.lt.s32.totalorder %s13, 1
      %s2943 = scalar_select %p2942, %s13, 1
      %s2944 = smul.addr %s2943, 16
      %s2945 = smul.addr %s2944, 4
      %s2946 = scalar_lea.vmem %s2, %s2945
      // Predicated region
      $region29: #{_lambda_.8} parent=27 // pred_check
        %p2947 = pneg %p78
      $region30: #{_lambda_.8} parent=27 // pred_check_branch
        %2949 = sbr.rel (%p2947) target = $region32
      $region31: #{_lambda_.8} parent=27 // pred_region
        _
      $region32: #{_lambda_.8} parent=27 // pred_fallthru
        _
    $region28: #{_lambda_.8} parent=5 // pred_fallthru
      _
    %p2950 = scmp.le.s32.totalorder 2, %s8
    // Predicated region
    $region33: #{_lambda_.8} parent=5 // pred_check
      %p2951 = pneg %p2950
    $region34: #{_lambda_.8} parent=5 // pred_check_branch
      %2953 = sbr.rel (%p2951) target = $region36
    $region35: #{_lambda_.8} parent=5 // pred_region
      %s2954 = ssub.s32 %s8, 2
      // Predicated region
      $region37: #{_lambda_.8} parent=35 // pred_check
        %p2955 = pneg %p84
      $region38: #{_lambda_.8} parent=35 // pred_check_branch
        %2957 = sbr.rel (%p2955) target = $region40
      $region39: #{_lambda_.8} parent=35 // pred_region
        %p2958 = scmp.lt.s32.totalorder %s14, 1
        %s2959 = scalar_select %p2958, %s14, 1
        %s2960 = smul.addr %s2959, 16
        %s2961 = smul.addr %s2960, 4
        %s2962 = scalar_lea.vmem %s2, %s2961
      $region40: #{_lambda_.8} parent=35 // pred_fallthru
        _
    $region36: #{_lambda_.8} parent=5 // pred_fallthru
      _
  $region6: #{_lambda_.8} parent=0 // loop_footer
    %s12 = sadd.s32 1, %s8
  $region7: #{_lambda_.8} parent=0 // loop_footer_branch
    %7 = sbr.rel target = $region3
  $region8: #{_lambda_.8} parent=0 // loop_exit
    _

</llo_original>
